<compile_context>
chip_gen: v5e
topology: v5e:2x2
jax: 0.10.0
libtpu: 0.0.40
codegen_flags: <defaults>
</compile_context>

<pallas_src>
import jax
import jax.numpy as jnp
from jax import lax
from jax.experimental import pallas as pl
from jax.experimental.pallas import tpu as pltpu

# ---------------- small synthetic config (mirrors params dict) ----------------
B = 2
IMG_H = IMG_W = 32
RATIO = 2                  # params['densenet']['ratio']
ENC_C1 = 16
IN_CH = 32                 # params['counting_decoder']['in_channel']
OUT_CH = 10                # params['counting_decoder']['out_channel'] (== vocab)
TRANS_C = 64               # counting trans_layer channels (512 in paper, scaled)
RED_C = TRANS_C // 16      # channel-attention reduction
T_SEQ = 6
EMB = 16
HID = 32
ATT = 32
USE_LABEL_MASK = True      # params['use_label_mask']


# ====================== fused counting-heads Pallas kernel ======================
# One launch handles BOTH counting decoders (k=3 and k=5 trans-conv outputs are
# the inputs), the (p1+p2)/2 average and the three SmoothL1 losses.

def _counting_kernel(x1_ref, x2_ref, mask_ref, clab_ref,
                     g1_ref, be1_ref, aw11_ref, ab11_ref, aw21_ref, ab21_ref, pw1_ref,
                     g2_ref, be2_ref, aw12_ref, ab12_ref, aw22_ref, ab22_ref, pw2_ref,
                     p1_ref, p2_ref, pavg_ref, closs_ref):
    mask = mask_ref[...]                                     # (B, L, 1)

    def head(x_ref, gamma, beta, aw1, ab1, aw2, ab2, pw):
        rows = []
        for b in range(B):                                   # static loop, B=2
            x = x_ref[b]                                     # (L, TRANS_C)
            x = x * gamma + beta                             # eval-mode BN affine
            # channel attention: spatial mean -> fc -> relu -> fc -> sigmoid
            y = jnp.mean(x, axis=0, keepdims=True)           # (1, TRANS_C)
            y = jax.nn.relu(
                jnp.dot(y, aw1, preferred_element_type=jnp.float32) + ab1)
            y = jax.nn.sigmoid(
                jnp.dot(y, aw2, preferred_element_type=jnp.float32) + ab2)
            x = x * y
            # 1x1 prediction conv -> sigmoid -> mask -> spatial sum (bf16 MXU)
            p = jnp.dot(x.astype(jnp.bfloat16), pw.astype(jnp.bfloat16),
                        preferred_element_type=jnp.float32)  # (L, OUT_CH)
            p = jax.nn.sigmoid(p) * mask[b]                  # (L, OUT_CH)
            rows.append(jnp.sum(p, axis=0, keepdims=True))   # (1, OUT_CH)
        return jnp.concatenate(rows, axis=0)                 # (B, OUT_CH)

    p1 = head(x1_ref, g1_ref[...], be1_ref[...], aw11_ref[...], ab11_ref[...],
              aw21_ref[...], ab21_ref[...], pw1_ref[...])
    p2 = head(x2_ref, g2_ref[...], be2_ref[...], aw12_ref[...], ab12_ref[...],
              aw22_ref[...], ab22_ref[...], pw2_ref[...])
    pavg = 0.5 * (p1 + p2)
    p1_ref[...] = p1
    p2_ref[...] = p2
    pavg_ref[...] = pavg

    # three SmoothL1(mean) losses fused into the same launch
    tgt = clab_ref[...]                                      # (B, OUT_CH)

    def smooth_l1(pred):
        d = pred - tgt
        ad = jnp.abs(d)
        return jnp.mean(jnp.where(ad < 1.0, 0.5 * d * d, ad - 0.5),
                        keepdims=True)                       # (1, 1)

    closs_ref[...] = smooth_l1(p1) + smooth_l1(p2) + smooth_l1(pavg)


def fused_counting_heads(cd1, cd2, trans1, trans2, mask3d, counting_labels):
    Bb = trans1.shape[0]
    out_shape = (jax.ShapeDtypeStruct((Bb, OUT_CH), jnp.float32),
                 jax.ShapeDtypeStruct((Bb, OUT_CH), jnp.float32),
                 jax.ShapeDtypeStruct((Bb, OUT_CH), jnp.float32),
                 jax.ShapeDtypeStruct((1, 1), jnp.float32))
    return pl.pallas_call(_counting_kernel, out_shape=out_shape)(
        trans1, trans2, mask3d, counting_labels,
        cd1['bn_gamma'], cd1['bn_beta'], cd1['att_w1'], cd1['att_b1'],
        cd1['att_w2'], cd1['att_b2'], cd1['pred_w'],
        cd2['bn_gamma'], cd2['bn_beta'], cd2['att_w1'], cd2['att_b1'],
        cd2['att_w2'], cd2['att_b2'], cd2['pred_w'])


# ====================== fused attention-decoder Pallas kernel ======================
# grid=(T,), "arbitrary" (sequential carry).  Hidden state and the masked
# cross-entropy accumulators live in VMEM scratch; per-step inputs (embedding
# of previous token, one-hot target, label mask) are blocked over T.

def _decoder_kernel(feats_ref, fp_ref, mask_ref, cnt_ref, h0_ref,
                    whe_ref, whh_ref, whc_ref, bh_ref,
                    wq_ref, bq_ref, wa_ref,
                    woh_ref, woc_ref, wocnt_ref, bo_ref,
                    emb_ref, oh_ref, lm_ref,
                    probs_ref, wal_ref,
                    hid_scr, lsum_scr, msum_scr):
    t = pl.program_id(0)

    @pl.when(t == 0)
    def _init():
        hid_scr[...] = h0_ref[...]
        lsum_scr[...] = jnp.zeros_like(lsum_scr)
        msum_scr[...] = jnp.zeros_like(msum_scr)

    emb = emb_ref[...]                                       # (B, EMB)
    cnt = cnt_ref[...]                                       # (B, OUT_CH)
    hid_prev = hid_scr[...]                                  # (B, HID)

    # recurrent hidden update (split weights == concat([emb,hid,cnt]) @ W_h)
    hid = jnp.tanh(
        jnp.dot(emb, whe_ref[...], preferred_element_type=jnp.float32)
        + jnp.dot(hid_prev, whh_ref[...], preferred_element_type=jnp.float32)
        + jnp.dot(cnt, whc_ref[...], preferred_element_type=jnp.float32)
        + bh_ref[...])
    hid_scr[...] = hid

    query = jnp.dot(hid, wq_ref[...],
                    preferred_element_type=jnp.float32) + bq_ref[...]      # (B, ATT)

    # additive attention with masked softmax
    fp = fp_ref[...]                                         # (B, L, ATT)
    e = jnp.tanh(fp + query[:, None, :])
    scores = jnp.sum(e * wa_ref[...][None, :, :], axis=-1)   # (B, L)

    mask = mask_ref[...]                                     # (B, L)
    valid = mask > 0.5
    scores = jnp.where(valid, scores, jnp.float32(-1e30))
    m = jnp.max(scores, axis=-1, keepdims=True)
    ex = jnp.exp(scores - m) * jnp.where(valid, 1.0, 0.0)
    denom = jnp.sum(ex, axis=-1, keepdims=True) + 1e-10
    alpha = ex / denom                                       # (B, L)

    # context on the MXU (bf16 operands, f32 accumulate)
    ctx = jnp.einsum('bql,blc->bqc',
                     alpha[:, None, :].astype(jnp.bfloat16),
                     feats_ref[...].astype(jnp.bfloat16),
                     preferred_element_type=jnp.float32)[:, 0, :]          # (B, C)

    logits = (jnp.dot(hid, woh_ref[...], preferred_element_type=jnp.float32)
              + jnp.dot(ctx, woc_ref[...], preferred_element_type=jnp.float32)
              + jnp.dot(cnt, wocnt_ref[...], preferred_element_type=jnp.float32)
              + bo_ref[...])                                 # (B, OUT_CH)
    probs_ref[...] = logits

    # fused masked cross-entropy accumulation
    mlog = jnp.max(logits, axis=-1, keepdims=True)
    lse = jnp.log(jnp.sum(jnp.exp(logits - mlog), axis=-1, keepdims=True)) + mlog
    picked = jnp.sum(logits * oh_ref[...], axis=-1, keepdims=True)
    step_loss = lse - picked                                 # (B, 1)
    lm = lm_ref[...]                                         # (B, 1)
    lsum_scr[...] += jnp.sum(step_loss * lm, axis=0, keepdims=True)
    msum_scr[...] += jnp.sum(lm, axis=0, keepdims=True)

    @pl.when(t == pl.num_programs(0) - 1)
    def _final():
        # USE_LABEL_MASK path; unmasked mean == same formula with all-ones mask
        wal_ref[...] = lsum_scr[...] / (msum_scr[...] + 1e-10)


def decoder_forward(dp, feats, labels, counting_preds, mask_flat, labels_mask):
    """Simplified AttDecoder (teacher forcing).  Per-sequence projections run
    once in XLA; the per-timestep loop is a single Pallas kernel."""
    Bb, Hs, Ws, C = feats.shape
    L = Hs * Ws
    T = labels.shape[1]
    feats_flat = feats.reshape(Bb, L, C)

    # per-sequence (not per-step) work, tiny M — keep in XLA
    msum = jnp.sum(mask_flat, axis=1, keepdims=True) + 1e-10
    feat_mean = jnp.sum(feats_flat * mask_flat[..., None], axis=1) / msum
    hidden0 = jnp.tanh(feat_mean @ dp['W_init'] + dp['b_init'])           # (B, HID)
    feat_proj = jnp.einsum('blc,ca->bla', feats_flat, dp['W_f'])          # (B, L, ATT)

    # teacher forcing: previous token (0 at t=0); embedding gather in XLA
    y_prev = jnp.concatenate(
        [jnp.zeros((Bb, 1), labels.dtype), labels[:, :-1]], axis=1)       # (B, T)
    embs_t = jnp.transpose(jnp.take(dp['emb'], y_prev, axis=0), (1, 0, 2))  # (T,B,EMB)
    onehot_t = jnp.transpose(
        jax.nn.one_hot(labels, OUT_CH, dtype=jnp.float32), (1, 0, 2))     # (T,B,V)
    lmask_t = jnp.transpose(labels_mask, (1, 0))[..., None]               # (T,B,1)

    def const_spec(shape):
        zero = (0,) * len(shape)
        return pl.BlockSpec(shape, lambda t: zero)

    def step_spec(shape):
        return pl.BlockSpec((None,) + tuple(shape), lambda t: (t, 0, 0))

    probs_t, wal = pl.pallas_call(
        _decoder_kernel,
        grid=(T,),
        in_specs=[
            const_spec((Bb, L, C)), const_spec((Bb, L, ATT)), const_spec((Bb, L)),
            const_spec((Bb, OUT_CH)), const_spec((Bb, HID)),
            const_spec((EMB, HID)), const_spec((HID, HID)),
            const_spec((OUT_CH, HID)), const_spec((1, HID)),
            const_spec((HID, ATT)), const_spec((1, ATT)), const_spec((1, ATT)),
            const_spec((HID, OUT_CH)), const_spec((C, OUT_CH)),
            const_spec((OUT_CH, OUT_CH)), const_spec((1, OUT_CH)),
            step_spec((Bb, EMB)), step_spec((Bb, OUT_CH)), step_spec((Bb, 1)),
        ],
        out_specs=[
            step_spec((Bb, OUT_CH)),
            const_spec((1, 1)),
        ],
        out_shape=(jax.ShapeDtypeStruct((T, Bb, OUT_CH), jnp.float32),
                   jax.ShapeDtypeStruct((1, 1), jnp.float32)),
        scratch_shapes=[pltpu.VMEM((Bb, HID), jnp.float32),   # hidden carry
                        pltpu.VMEM((1, 1), jnp.float32),      # sum(loss * mask)
                        pltpu.VMEM((1, 1), jnp.float32)],     # sum(mask)
        compiler_params=pltpu.CompilerParams(
            dimension_semantics=("arbitrary",)),
    )(feats_flat, feat_proj, mask_flat, counting_preds, hidden0,
      dp['Wh_e'], dp['Wh_h'], dp['Wh_c'], dp['b_h'],
      dp['W_q'], dp['b_q'], dp['w_a'],
      dp['Wo_h'], dp['Wo_c'], dp['Wo_cnt'], dp['b_o'],
      embs_t, onehot_t, lmask_t)

    word_probs = jnp.transpose(probs_t, (1, 0, 2))            # (B, T, V)
    return word_probs, wal


# ============================ XLA glue (convs etc.) ============================

def encoder_forward(ep, images_nhwc):
    """DenseNet stand-in: conv3x3 -> relu -> 2x2 avg-pool (ratio) -> 1x1 conv -> relu.
    Kept in XLA (lax.conv) per perf review — no im2col materialization."""
    x = lax.conv_general_dilated(
        images_nhwc, ep['conv1_w'], window_strides=(1, 1), padding='SAME',
        dimension_numbers=('NHWC', 'HWIO', 'NHWC'))
    x = jax.nn.relu(x + ep['conv1_b'])
    Bb, H, W, C1 = x.shape
    x = x.reshape(Bb, H // RATIO, RATIO, W // RATIO, RATIO, C1).mean(axis=(2, 4))
    x = jax.nn.relu(jnp.einsum('bhwc,cd->bhwd', x, ep['conv2_w']) + ep['conv2_b'])
    return x                                                  # (B, Hs, Ws, IN_CH)


def trans_conv(feats, w):
    # TODO(synk): at real CAN sizes, replace with in-kernel k*k tap accumulation
    # (grid over taps, VMEM accumulator) to also skip this HBM round trip.
    return lax.conv_general_dilated(
        feats, w, window_strides=(1, 1), padding='SAME',
        dimension_numbers=('NHWC', 'HWIO', 'NHWC'))


def gen_counting_label(labels, channel):
    onehot = jax.nn.one_hot(labels, channel, dtype=jnp.float32)  # (B, T, C)
    valid = jnp.ones(labels.shape, dtype=bool)
    for v in (0, 1, 107, 108, 109, 110):
        valid = valid & (labels != v)
    return jnp.sum(onehot * valid[..., None].astype(jnp.float32), axis=1)


def can_forward(p, images, images_mask, labels, labels_mask, is_train=True):
    images_nhwc = jnp.transpose(images, (0, 2, 3, 1))
    feats = encoder_forward(p['enc'], images_nhwc)            # (B, Hs, Ws, IN_CH)
    Bb, Hs, Ws, _ = feats.shape
    L = Hs * Ws

    counting_mask = images_mask[:, :, ::RATIO, ::RATIO]       # (B, 1, Hs, Ws)
    mask_flat = counting_mask.reshape(Bb, L).astype(jnp.float32)

    counting_labels = gen_counting_label(labels, OUT_CH)      # (B, OUT_CH)

    # k x k trans convs (XLA); everything downstream is ONE fused Pallas kernel
    trans1 = trans_conv(feats, p['cd1']['conv_w']).reshape(Bb, L, TRANS_C)
    trans2 = trans_conv(feats, p['cd2']['conv_w']).reshape(Bb, L, TRANS_C)

    _, _, counting_preds, counting_loss = fused_counting_heads(
        p['cd1'], p['cd2'], trans1, trans2,
        mask_flat[..., None], counting_labels)

    word_probs, word_average_loss = decoder_forward(
        p['dec'], feats, labels, counting_preds, mask_flat,
        labels_mask.astype(jnp.float32))

    return (word_probs, counting_preds,
            word_average_loss[0, 0], counting_loss[0, 0])


# ============================ parameter init ============================

def init_params(key):
    keys = iter(jax.random.split(key, 64))

    def nrm(shape, scale=0.1):
        return (scale * jax.random.normal(next(keys), shape)).astype(jnp.float32)

    def zeros(shape):
        return jnp.zeros(shape, jnp.float32)

    def ones(shape):
        return jnp.ones(shape, jnp.float32)

    def counting_dec(k):
        return dict(
            conv_w=nrm((k, k, IN_CH, TRANS_C)),
            bn_gamma=ones((1, TRANS_C)), bn_beta=zeros((1, TRANS_C)),
            att_w1=nrm((TRANS_C, RED_C)), att_b1=zeros((1, RED_C)),
            att_w2=nrm((RED_C, TRANS_C)), att_b2=zeros((1, TRANS_C)),
            pred_w=nrm((TRANS_C, OUT_CH)),
        )

    return dict(
        enc=dict(conv1_w=nrm((3, 3, 1, ENC_C1)), conv1_b=zeros((ENC_C1,)),
                 conv2_w=nrm((ENC_C1, IN_CH)), conv2_b=zeros((IN_CH,))),
        cd1=counting_dec(3),
        cd2=counting_dec(5),
        dec=dict(
            emb=nrm((OUT_CH, EMB)),
            W_init=nrm((IN_CH, HID)), b_init=zeros((HID,)),
            W_f=nrm((IN_CH, ATT)),
            # recurrent weight split as [emb | hidden | counting] blocks
            Wh_e=nrm((EMB, HID)), Wh_h=nrm((HID, HID)), Wh_c=nrm((OUT_CH, HID)),
            b_h=zeros((1, HID)),
            W_q=nrm((HID, ATT)), b_q=zeros((1, ATT)),
            w_a=nrm((1, ATT)),
            # output weight split as [hidden | context | counting] blocks
            Wo_h=nrm((HID, OUT_CH)), Wo_c=nrm((IN_CH, OUT_CH)),
            Wo_cnt=nrm((OUT_CH, OUT_CH)), b_o=zeros((1, OUT_CH)),
        ),
    )


# ============================ main ============================

if __name__ == "__main__":
    root = jax.random.PRNGKey(0)
    k_param, k_img, k_lab = jax.random.split(root, 3)

    params = init_params(k_param)

    images = jax.random.normal(k_img, (B, 1, IMG_H, IMG_W), jnp.float32)
    images_mask = jnp.ones((B, 1, IMG_H, IMG_W), jnp.float32)
    labels = jax.random.randint(k_lab, (B, T_SEQ), 0, OUT_CH).astype(jnp.int32)
    labels_mask = jnp.ones((B, T_SEQ), jnp.float32)

    fwd = jax.jit(can_forward)
    word_probs, counting_preds, word_average_loss, counting_loss = fwd(
        params, images, images_mask, labels, labels_mask)

    jax.block_until_ready((word_probs, counting_preds,
                           word_average_loss, counting_loss))

    assert word_probs.shape == (B, T_SEQ, OUT_CH)
    assert counting_preds.shape == (B, OUT_CH)
    assert word_average_loss.shape == ()
    assert counting_loss.shape == ()
    assert bool(jnp.isfinite(word_average_loss)) and bool(jnp.isfinite(counting_loss))
    print("KERNEL_OK")
</pallas_src>

<mosaic_0001>
module attributes {stable_mosaic.version = 11 : i64} {
  func.func @_counting_kernel(%arg0: memref<2x256x64xf32, #tpu.memory_space<vmem>>, %arg1: memref<2x256x64xf32, #tpu.memory_space<vmem>>, %arg2: memref<2x256x1xf32, #tpu.memory_space<vmem>>, %arg3: memref<2x10xf32, #tpu.memory_space<vmem>>, %arg4: memref<1x64xf32, #tpu.memory_space<vmem>>, %arg5: memref<1x64xf32, #tpu.memory_space<vmem>>, %arg6: memref<64x4xf32, #tpu.memory_space<vmem>>, %arg7: memref<1x4xf32, #tpu.memory_space<vmem>>, %arg8: memref<4x64xf32, #tpu.memory_space<vmem>>, %arg9: memref<1x64xf32, #tpu.memory_space<vmem>>, %arg10: memref<64x10xf32, #tpu.memory_space<vmem>>, %arg11: memref<1x64xf32, #tpu.memory_space<vmem>>, %arg12: memref<1x64xf32, #tpu.memory_space<vmem>>, %arg13: memref<64x4xf32, #tpu.memory_space<vmem>>, %arg14: memref<1x4xf32, #tpu.memory_space<vmem>>, %arg15: memref<4x64xf32, #tpu.memory_space<vmem>>, %arg16: memref<1x64xf32, #tpu.memory_space<vmem>>, %arg17: memref<64x10xf32, #tpu.memory_space<vmem>>, %arg18: memref<2x10xf32, #tpu.memory_space<vmem>>, %arg19: memref<2x10xf32, #tpu.memory_space<vmem>>, %arg20: memref<2x10xf32, #tpu.memory_space<vmem>>, %arg21: memref<1x1xf32, #tpu.memory_space<vmem>>) attributes {dimension_semantics = [], scalar_prefetch = 0 : i64, scratch_operands = 0 : i64, tpu.core_type = #tpu.core_type<tc>} {
    %c0 = arith.constant 0 : index
    %c0_0 = arith.constant 0 : index
    %c0_1 = arith.constant 0 : index
    %0 = vector.load %arg2[%c0, %c0_0, %c0_1] : memref<2x256x1xf32, #tpu.memory_space<vmem>>, vector<2x256x1xf32>
    %c0_2 = arith.constant 0 : index
    %c0_3 = arith.constant 0 : index
    %1 = vector.load %arg4[%c0_2, %c0_3] : memref<1x64xf32, #tpu.memory_space<vmem>>, vector<1x64xf32>
    %c0_4 = arith.constant 0 : index
    %c0_5 = arith.constant 0 : index
    %2 = vector.load %arg5[%c0_4, %c0_5] : memref<1x64xf32, #tpu.memory_space<vmem>>, vector<1x64xf32>
    %c0_6 = arith.constant 0 : index
    %c0_7 = arith.constant 0 : index
    %3 = vector.load %arg6[%c0_6, %c0_7] : memref<64x4xf32, #tpu.memory_space<vmem>>, vector<64x4xf32>
    %c0_8 = arith.constant 0 : index
    %c0_9 = arith.constant 0 : index
    %4 = vector.load %arg7[%c0_8, %c0_9] : memref<1x4xf32, #tpu.memory_space<vmem>>, vector<1x4xf32>
    %c0_10 = arith.constant 0 : index
    %c0_11 = arith.constant 0 : index
    %5 = vector.load %arg8[%c0_10, %c0_11] : memref<4x64xf32, #tpu.memory_space<vmem>>, vector<4x64xf32>
    %c0_12 = arith.constant 0 : index
    %c0_13 = arith.constant 0 : index
    %6 = vector.load %arg9[%c0_12, %c0_13] : memref<1x64xf32, #tpu.memory_space<vmem>>, vector<1x64xf32>
    %c0_14 = arith.constant 0 : index
    %c0_15 = arith.constant 0 : index
    %7 = vector.load %arg10[%c0_14, %c0_15] : memref<64x10xf32, #tpu.memory_space<vmem>>, vector<64x10xf32>
    %c0_16 = arith.constant 0 : index
    %c0_17 = arith.constant 0 : index
    %c0_18 = arith.constant 0 : index
    %8 = vector.load %arg0[%c0_16, %c0_17, %c0_18] : memref<2x256x64xf32, #tpu.memory_space<vmem>>, vector<1x256x64xf32>
    %9 = vector.shape_cast %8 : vector<1x256x64xf32> to vector<256x64xf32>
    %10 = vector.broadcast %1 : vector<1x64xf32> to vector<256x64xf32>
    %11 = arith.mulf %9, %10 : vector<256x64xf32>
    %12 = vector.broadcast %2 : vector<1x64xf32> to vector<256x64xf32>
    %13 = arith.addf %11, %12 : vector<256x64xf32>
    %cst = arith.constant dense<0.000000e+00> : vector<64xf32>
    %14 = vector.multi_reduction <add>, %13, %cst [0] : vector<256x64xf32> to vector<64xf32>
    %15 = vector.shape_cast %14 : vector<64xf32> to vector<1x64xf32>
    %cst_19 = arith.constant 2.560000e+02 : f32
    %16 = vector.broadcast %cst_19 : f32 to vector<1x64xf32>
    %17 = arith.divf %15, %16 : vector<1x64xf32>
    %cst_20 = arith.constant dense<0.000000e+00> : vector<1x4xf32>
    %18 = tpu.matmul %17, %3, %cst_20 {dimension_numbers = #tpu.dot_dimension_numbers<[1], [0], [0], [1], [0, 0, 1, 1], [], []>} : vector<1x64xf32>, vector<64x4xf32>, vector<1x4xf32> -> vector<1x4xf32>
    %19 = arith.addf %18, %4 : vector<1x4xf32>
    %cst_21 = arith.constant 0.000000e+00 : f32
    %20 = vector.broadcast %cst_21 : f32 to vector<1x4xf32>
    %21 = arith.maximumf %19, %20 : vector<1x4xf32>
    %cst_22 = arith.constant dense<0.000000e+00> : vector<1x64xf32>
    %22 = tpu.matmul %21, %5, %cst_22 {dimension_numbers = #tpu.dot_dimension_numbers<[1], [0], [0], [1], [0, 0, 1, 1], [], []>} : vector<1x4xf32>, vector<4x64xf32>, vector<1x64xf32> -> vector<1x64xf32>
    %23 = arith.addf %22, %6 : vector<1x64xf32>
    %24 = arith.negf %23 : vector<1x64xf32>
    %25 = math.exp %24 : vector<1x64xf32>
    %cst_23 = arith.constant 1.000000e+00 : f32
    %26 = vector.broadcast %cst_23 : f32 to vector<1x64xf32>
    %27 = arith.addf %26, %25 : vector<1x64xf32>
    %28 = arith.divf %26, %27 : vector<1x64xf32>
    %29 = vector.broadcast %28 : vector<1x64xf32> to vector<256x64xf32>
    %30 = arith.mulf %13, %29 : vector<256x64xf32>
    %31 = arith.truncf %30 : vector<256x64xf32> to vector<256x64xbf16>
    %32 = arith.truncf %7 : vector<64x10xf32> to vector<64x10xbf16>
    %cst_24 = arith.constant dense<0.000000e+00> : vector<256x10xf32>
    %33 = tpu.matmul %31, %32, %cst_24 {dimension_numbers = #tpu.dot_dimension_numbers<[1], [0], [0], [1], [0, 0, 1, 1], [], []>} : vector<256x64xbf16>, vector<64x10xbf16>, vector<256x10xf32> -> vector<256x10xf32>
    %34 = arith.negf %33 : vector<256x10xf32>
    %35 = math.exp %34 : vector<256x10xf32>
    %cst_25 = arith.constant 1.000000e+00 : f32
    %36 = vector.broadcast %cst_25 : f32 to vector<256x10xf32>
    %37 = arith.addf %36, %35 : vector<256x10xf32>
    %38 = arith.divf %36, %37 : vector<256x10xf32>
    %39 = vector.extract_strided_slice %0 {offsets = [0, 0, 0], sizes = [1, 256, 1], strides = [1, 1, 1]} : vector<2x256x1xf32> to vector<1x256x1xf32>
    %40 = vector.shape_cast %39 : vector<1x256x1xf32> to vector<256x1xf32>
    %41 = vector.broadcast %40 : vector<256x1xf32> to vector<256x10xf32>
    %42 = arith.mulf %38, %41 : vector<256x10xf32>
    %cst_26 = arith.constant dense<0.000000e+00> : vector<10xf32>
    %43 = vector.multi_reduction <add>, %42, %cst_26 [0] : vector<256x10xf32> to vector<10xf32>
    %44 = vector.shape_cast %43 : vector<10xf32> to vector<1x10xf32>
    %c1 = arith.constant 1 : index
    %c0_27 = arith.constant 0 : index
    %c0_28 = arith.constant 0 : index
    %45 = vector.load %arg0[%c1, %c0_27, %c0_28] : memref<2x256x64xf32, #tpu.memory_space<vmem>>, vector<1x256x64xf32>
    %46 = vector.shape_cast %45 : vector<1x256x64xf32> to vector<256x64xf32>
    %47 = vector.broadcast %1 : vector<1x64xf32> to vector<256x64xf32>
    %48 = arith.mulf %46, %47 : vector<256x64xf32>
    %49 = vector.broadcast %2 : vector<1x64xf32> to vector<256x64xf32>
    %50 = arith.addf %48, %49 : vector<256x64xf32>
    %cst_29 = arith.constant dense<0.000000e+00> : vector<64xf32>
    %51 = vector.multi_reduction <add>, %50, %cst_29 [0] : vector<256x64xf32> to vector<64xf32>
    %52 = vector.shape_cast %51 : vector<64xf32> to vector<1x64xf32>
    %cst_30 = arith.constant 2.560000e+02 : f32
    %53 = vector.broadcast %cst_30 : f32 to vector<1x64xf32>
    %54 = arith.divf %52, %53 : vector<1x64xf32>
    %cst_31 = arith.constant dense<0.000000e+00> : vector<1x4xf32>
    %55 = tpu.matmul %54, %3, %cst_31 {dimension_numbers = #tpu.dot_dimension_numbers<[1], [0], [0], [1], [0, 0, 1, 1], [], []>} : vector<1x64xf32>, vector<64x4xf32>, vector<1x4xf32> -> vector<1x4xf32>
    %56 = arith.addf %55, %4 : vector<1x4xf32>
    %cst_32 = arith.constant 0.000000e+00 : f32
    %57 = vector.broadcast %cst_32 : f32 to vector<1x4xf32>
    %58 = arith.maximumf %56, %57 : vector<1x4xf32>
    %cst_33 = arith.constant dense<0.000000e+00> : vector<1x64xf32>
    %59 = tpu.matmul %58, %5, %cst_33 {dimension_numbers = #tpu.dot_dimension_numbers<[1], [0], [0], [1], [0, 0, 1, 1], [], []>} : vector<1x4xf32>, vector<4x64xf32>, vector<1x64xf32> -> vector<1x64xf32>
    %60 = arith.addf %59, %6 : vector<1x64xf32>
    %61 = arith.negf %60 : vector<1x64xf32>
    %62 = math.exp %61 : vector<1x64xf32>
    %cst_34 = arith.constant 1.000000e+00 : f32
    %63 = vector.broadcast %cst_34 : f32 to vector<1x64xf32>
    %64 = arith.addf %63, %62 : vector<1x64xf32>
    %65 = arith.divf %63, %64 : vector<1x64xf32>
    %66 = vector.broadcast %65 : vector<1x64xf32> to vector<256x64xf32>
    %67 = arith.mulf %50, %66 : vector<256x64xf32>
    %68 = arith.truncf %67 : vector<256x64xf32> to vector<256x64xbf16>
    %69 = arith.truncf %7 : vector<64x10xf32> to vector<64x10xbf16>
    %cst_35 = arith.constant dense<0.000000e+00> : vector<256x10xf32>
    %70 = tpu.matmul %68, %69, %cst_35 {dimension_numbers = #tpu.dot_dimension_numbers<[1], [0], [0], [1], [0, 0, 1, 1], [], []>} : vector<256x64xbf16>, vector<64x10xbf16>, vector<256x10xf32> -> vector<256x10xf32>
    %71 = arith.negf %70 : vector<256x10xf32>
    %72 = math.exp %71 : vector<256x10xf32>
    %cst_36 = arith.constant 1.000000e+00 : f32
    %73 = vector.broadcast %cst_36 : f32 to vector<256x10xf32>
    %74 = arith.addf %73, %72 : vector<256x10xf32>
    %75 = arith.divf %73, %74 : vector<256x10xf32>
    %76 = vector.extract_strided_slice %0 {offsets = [1, 0, 0], sizes = [1, 256, 1], strides = [1, 1, 1]} : vector<2x256x1xf32> to vector<1x256x1xf32>
    %77 = vector.shape_cast %76 : vector<1x256x1xf32> to vector<256x1xf32>
    %78 = vector.broadcast %77 : vector<256x1xf32> to vector<256x10xf32>
    %79 = arith.mulf %75, %78 : vector<256x10xf32>
    %cst_37 = arith.constant dense<0.000000e+00> : vector<10xf32>
    %80 = vector.multi_reduction <add>, %79, %cst_37 [0] : vector<256x10xf32> to vector<10xf32>
    %81 = vector.shape_cast %80 : vector<10xf32> to vector<1x10xf32>
    %82 = tpu.concatenate %44, %81 in 0 : vector<1x10xf32>, vector<1x10xf32> -> vector<2x10xf32>
    %c0_38 = arith.constant 0 : index
    %c0_39 = arith.constant 0 : index
    %83 = vector.load %arg11[%c0_38, %c0_39] : memref<1x64xf32, #tpu.memory_space<vmem>>, vector<1x64xf32>
    %c0_40 = arith.constant 0 : index
    %c0_41 = arith.constant 0 : index
    %84 = vector.load %arg12[%c0_40, %c0_41] : memref<1x64xf32, #tpu.memory_space<vmem>>, vector<1x64xf32>
    %c0_42 = arith.constant 0 : index
    %c0_43 = arith.constant 0 : index
    %85 = vector.load %arg13[%c0_42, %c0_43] : memref<64x4xf32, #tpu.memory_space<vmem>>, vector<64x4xf32>
    %c0_44 = arith.constant 0 : index
    %c0_45 = arith.constant 0 : index
    %86 = vector.load %arg14[%c0_44, %c0_45] : memref<1x4xf32, #tpu.memory_space<vmem>>, vector<1x4xf32>
    %c0_46 = arith.constant 0 : index
    %c0_47 = arith.constant 0 : index
    %87 = vector.load %arg15[%c0_46, %c0_47] : memref<4x64xf32, #tpu.memory_space<vmem>>, vector<4x64xf32>
    %c0_48 = arith.constant 0 : index
    %c0_49 = arith.constant 0 : index
    %88 = vector.load %arg16[%c0_48, %c0_49] : memref<1x64xf32, #tpu.memory_space<vmem>>, vector<1x64xf32>
    %c0_50 = arith.constant 0 : index
    %c0_51 = arith.constant 0 : index
    %89 = vector.load %arg17[%c0_50, %c0_51] : memref<64x10xf32, #tpu.memory_space<vmem>>, vector<64x10xf32>
    %c0_52 = arith.constant 0 : index
    %c0_53 = arith.constant 0 : index
    %c0_54 = arith.constant 0 : index
    %90 = vector.load %arg1[%c0_52, %c0_53, %c0_54] : memref<2x256x64xf32, #tpu.memory_space<vmem>>, vector<1x256x64xf32>
    %91 = vector.shape_cast %90 : vector<1x256x64xf32> to vector<256x64xf32>
    %92 = vector.broadcast %83 : vector<1x64xf32> to vector<256x64xf32>
    %93 = arith.mulf %91, %92 : vector<256x64xf32>
    %94 = vector.broadcast %84 : vector<1x64xf32> to vector<256x64xf32>
    %95 = arith.addf %93, %94 : vector<256x64xf32>
    %cst_55 = arith.constant dense<0.000000e+00> : vector<64xf32>
    %96 = vector.multi_reduction <add>, %95, %cst_55 [0] : vector<256x64xf32> to vector<64xf32>
    %97 = vector.shape_cast %96 : vector<64xf32> to vector<1x64xf32>
    %cst_56 = arith.constant 2.560000e+02 : f32
    %98 = vector.broadcast %cst_56 : f32 to vector<1x64xf32>
    %99 = arith.divf %97, %98 : vector<1x64xf32>
    %cst_57 = arith.constant dense<0.000000e+00> : vector<1x4xf32>
    %100 = tpu.matmul %99, %85, %cst_57 {dimension_numbers = #tpu.dot_dimension_numbers<[1], [0], [0], [1], [0, 0, 1, 1], [], []>} : vector<1x64xf32>, vector<64x4xf32>, vector<1x4xf32> -> vector<1x4xf32>
    %101 = arith.addf %100, %86 : vector<1x4xf32>
    %cst_58 = arith.constant 0.000000e+00 : f32
    %102 = vector.broadcast %cst_58 : f32 to vector<1x4xf32>
    %103 = arith.maximumf %101, %102 : vector<1x4xf32>
    %cst_59 = arith.constant dense<0.000000e+00> : vector<1x64xf32>
    %104 = tpu.matmul %103, %87, %cst_59 {dimension_numbers = #tpu.dot_dimension_numbers<[1], [0], [0], [1], [0, 0, 1, 1], [], []>} : vector<1x4xf32>, vector<4x64xf32>, vector<1x64xf32> -> vector<1x64xf32>
    %105 = arith.addf %104, %88 : vector<1x64xf32>
    %106 = arith.negf %105 : vector<1x64xf32>
    %107 = math.exp %106 : vector<1x64xf32>
    %cst_60 = arith.constant 1.000000e+00 : f32
    %108 = vector.broadcast %cst_60 : f32 to vector<1x64xf32>
    %109 = arith.addf %108, %107 : vector<1x64xf32>
    %110 = arith.divf %108, %109 : vector<1x64xf32>
    %111 = vector.broadcast %110 : vector<1x64xf32> to vector<256x64xf32>
    %112 = arith.mulf %95, %111 : vector<256x64xf32>
    %113 = arith.truncf %112 : vector<256x64xf32> to vector<256x64xbf16>
    %114 = arith.truncf %89 : vector<64x10xf32> to vector<64x10xbf16>
    %cst_61 = arith.constant dense<0.000000e+00> : vector<256x10xf32>
    %115 = tpu.matmul %113, %114, %cst_61 {dimension_numbers = #tpu.dot_dimension_numbers<[1], [0], [0], [1], [0, 0, 1, 1], [], []>} : vector<256x64xbf16>, vector<64x10xbf16>, vector<256x10xf32> -> vector<256x10xf32>
    %116 = arith.negf %115 : vector<256x10xf32>
    %117 = math.exp %116 : vector<256x10xf32>
    %cst_62 = arith.constant 1.000000e+00 : f32
    %118 = vector.broadcast %cst_62 : f32 to vector<256x10xf32>
    %119 = arith.addf %118, %117 : vector<256x10xf32>
    %120 = arith.divf %118, %119 : vector<256x10xf32>
    %121 = vector.extract_strided_slice %0 {offsets = [0, 0, 0], sizes = [1, 256, 1], strides = [1, 1, 1]} : vector<2x256x1xf32> to vector<1x256x1xf32>
    %122 = vector.shape_cast %121 : vector<1x256x1xf32> to vector<256x1xf32>
    %123 = vector.broadcast %122 : vector<256x1xf32> to vector<256x10xf32>
    %124 = arith.mulf %120, %123 : vector<256x10xf32>
    %cst_63 = arith.constant dense<0.000000e+00> : vector<10xf32>
    %125 = vector.multi_reduction <add>, %124, %cst_63 [0] : vector<256x10xf32> to vector<10xf32>
    %126 = vector.shape_cast %125 : vector<10xf32> to vector<1x10xf32>
    %c1_64 = arith.constant 1 : index
    %c0_65 = arith.constant 0 : index
    %c0_66 = arith.constant 0 : index
    %127 = vector.load %arg1[%c1_64, %c0_65, %c0_66] : memref<2x256x64xf32, #tpu.memory_space<vmem>>, vector<1x256x64xf32>
    %128 = vector.shape_cast %127 : vector<1x256x64xf32> to vector<256x64xf32>
    %129 = vector.broadcast %83 : vector<1x64xf32> to vector<256x64xf32>
    %130 = arith.mulf %128, %129 : vector<256x64xf32>
    %131 = vector.broadcast %84 : vector<1x64xf32> to vector<256x64xf32>
    %132 = arith.addf %130, %131 : vector<256x64xf32>
    %cst_67 = arith.constant dense<0.000000e+00> : vector<64xf32>
    %133 = vector.multi_reduction <add>, %132, %cst_67 [0] : vector<256x64xf32> to vector<64xf32>
    %134 = vector.shape_cast %133 : vector<64xf32> to vector<1x64xf32>
    %cst_68 = arith.constant 2.560000e+02 : f32
    %135 = vector.broadcast %cst_68 : f32 to vector<1x64xf32>
    %136 = arith.divf %134, %135 : vector<1x64xf32>
    %cst_69 = arith.constant dense<0.000000e+00> : vector<1x4xf32>
    %137 = tpu.matmul %136, %85, %cst_69 {dimension_numbers = #tpu.dot_dimension_numbers<[1], [0], [0], [1], [0, 0, 1, 1], [], []>} : vector<1x64xf32>, vector<64x4xf32>, vector<1x4xf32> -> vector<1x4xf32>
    %138 = arith.addf %137, %86 : vector<1x4xf32>
    %cst_70 = arith.constant 0.000000e+00 : f32
    %139 = vector.broadcast %cst_70 : f32 to vector<1x4xf32>
    %140 = arith.maximumf %138, %139 : vector<1x4xf32>
    %cst_71 = arith.constant dense<0.000000e+00> : vector<1x64xf32>
    %141 = tpu.matmul %140, %87, %cst_71 {dimension_numbers = #tpu.dot_dimension_numbers<[1], [0], [0], [1], [0, 0, 1, 1], [], []>} : vector<1x4xf32>, vector<4x64xf32>, vector<1x64xf32> -> vector<1x64xf32>
    %142 = arith.addf %141, %88 : vector<1x64xf32>
    %143 = arith.negf %142 : vector<1x64xf32>
    %144 = math.exp %143 : vector<1x64xf32>
    %cst_72 = arith.constant 1.000000e+00 : f32
    %145 = vector.broadcast %cst_72 : f32 to vector<1x64xf32>
    %146 = arith.addf %145, %144 : vector<1x64xf32>
    %147 = arith.divf %145, %146 : vector<1x64xf32>
    %148 = vector.broadcast %147 : vector<1x64xf32> to vector<256x64xf32>
    %149 = arith.mulf %132, %148 : vector<256x64xf32>
    %150 = arith.truncf %149 : vector<256x64xf32> to vector<256x64xbf16>
    %151 = arith.truncf %89 : vector<64x10xf32> to vector<64x10xbf16>
    %cst_73 = arith.constant dense<0.000000e+00> : vector<256x10xf32>
    %152 = tpu.matmul %150, %151, %cst_73 {dimension_numbers = #tpu.dot_dimension_numbers<[1], [0], [0], [1], [0, 0, 1, 1], [], []>} : vector<256x64xbf16>, vector<64x10xbf16>, vector<256x10xf32> -> vector<256x10xf32>
    %153 = arith.negf %152 : vector<256x10xf32>
    %154 = math.exp %153 : vector<256x10xf32>
    %cst_74 = arith.constant 1.000000e+00 : f32
    %155 = vector.broadcast %cst_74 : f32 to vector<256x10xf32>
    %156 = arith.addf %155, %154 : vector<256x10xf32>
    %157 = arith.divf %155, %156 : vector<256x10xf32>
    %158 = vector.extract_strided_slice %0 {offsets = [1, 0, 0], sizes = [1, 256, 1], strides = [1, 1, 1]} : vector<2x256x1xf32> to vector<1x256x1xf32>
    %159 = vector.shape_cast %158 : vector<1x256x1xf32> to vector<256x1xf32>
    %160 = vector.broadcast %159 : vector<256x1xf32> to vector<256x10xf32>
    %161 = arith.mulf %157, %160 : vector<256x10xf32>
    %cst_75 = arith.constant dense<0.000000e+00> : vector<10xf32>
    %162 = vector.multi_reduction <add>, %161, %cst_75 [0] : vector<256x10xf32> to vector<10xf32>
    %163 = vector.shape_cast %162 : vector<10xf32> to vector<1x10xf32>
    %164 = tpu.concatenate %126, %163 in 0 : vector<1x10xf32>, vector<1x10xf32> -> vector<2x10xf32>
    %165 = arith.addf %82, %164 : vector<2x10xf32>
    %cst_76 = arith.constant 5.000000e-01 : f32
    %166 = vector.broadcast %cst_76 : f32 to vector<2x10xf32>
    %167 = arith.mulf %166, %165 : vector<2x10xf32>
    %c0_77 = arith.constant 0 : index
    %c0_78 = arith.constant 0 : index
    %168 = vector.load %arg18[%c0_77, %c0_78] : memref<2x10xf32, #tpu.memory_space<vmem>>, vector<2x10xf32>
    tpu.vector_store %arg18[%c0_77, %c0_78], %82 {strides = array<i32>} : memref<2x10xf32, #tpu.memory_space<vmem>>, vector<2x10xf32>,
    %c0_79 = arith.constant 0 : index
    %c0_80 = arith.constant 0 : index
    %169 = vector.load %arg19[%c0_79, %c0_80] : memref<2x10xf32, #tpu.memory_space<vmem>>, vector<2x10xf32>
    tpu.vector_store %arg19[%c0_79, %c0_80], %164 {strides = array<i32>} : memref<2x10xf32, #tpu.memory_space<vmem>>, vector<2x10xf32>,
    %c0_81 = arith.constant 0 : index
    %c0_82 = arith.constant 0 : index
    %170 = vector.load %arg20[%c0_81, %c0_82] : memref<2x10xf32, #tpu.memory_space<vmem>>, vector<2x10xf32>
    tpu.vector_store %arg20[%c0_81, %c0_82], %167 {strides = array<i32>} : memref<2x10xf32, #tpu.memory_space<vmem>>, vector<2x10xf32>,
    %c0_83 = arith.constant 0 : index
    %c0_84 = arith.constant 0 : index
    %171 = vector.load %arg3[%c0_83, %c0_84] : memref<2x10xf32, #tpu.memory_space<vmem>>, vector<2x10xf32>
    %172 = arith.subf %82, %171 : vector<2x10xf32>
    %173 = math.absf %172 : vector<2x10xf32>
    %cst_85 = arith.constant 1.000000e+00 : f32
    %174 = vector.broadcast %cst_85 : f32 to vector<2x10xf32>
    %175 = arith.cmpf olt, %173, %174 : vector<2x10xf32>
    %cst_86 = arith.constant 5.000000e-01 : f32
    %176 = vector.broadcast %cst_86 : f32 to vector<2x10xf32>
    %177 = arith.mulf %176, %172 : vector<2x10xf32>
    %178 = arith.mulf %177, %172 : vector<2x10xf32>
    %cst_87 = arith.constant 5.000000e-01 : f32
    %179 = vector.broadcast %cst_87 : f32 to vector<2x10xf32>
    %180 = arith.subf %173, %179 : vector<2x10xf32>
    %181 = arith.select %175, %178, %180 : vector<2x10xi1>, vector<2x10xf32>
    %182 = vector.shape_cast %181 : vector<2x10xf32> to vector<1x2x10xf32>
    %cst_88 = arith.constant dense<0.000000e+00> : vector<1xf32>
    %183 = vector.multi_reduction <add>, %182, %cst_88 [1, 2] : vector<1x2x10xf32> to vector<1xf32>
    %184 = vector.shape_cast %183 : vector<1xf32> to vector<1x1x1xf32>
    %185 = vector.extract %184[0, 0, 0] : f32 from vector<1x1x1xf32>
    %186 = vector.broadcast %185 : f32 to vector<1x1xf32>
    %cst_89 = arith.constant 2.000000e+01 : f32
    %187 = vector.broadcast %cst_89 : f32 to vector<1x1xf32>
    %188 = arith.divf %186, %187 : vector<1x1xf32>
    %189 = arith.subf %164, %171 : vector<2x10xf32>
    %190 = math.absf %189 : vector<2x10xf32>
    %cst_90 = arith.constant 1.000000e+00 : f32
    %191 = vector.broadcast %cst_90 : f32 to vector<2x10xf32>
    %192 = arith.cmpf olt, %190, %191 : vector<2x10xf32>
    %cst_91 = arith.constant 5.000000e-01 : f32
    %193 = vector.broadcast %cst_91 : f32 to vector<2x10xf32>
    %194 = arith.mulf %193, %189 : vector<2x10xf32>
    %195 = arith.mulf %194, %189 : vector<2x10xf32>
    %cst_92 = arith.constant 5.000000e-01 : f32
    %196 = vector.broadcast %cst_92 : f32 to vector<2x10xf32>
    %197 = arith.subf %190, %196 : vector<2x10xf32>
    %198 = arith.select %192, %195, %197 : vector<2x10xi1>, vector<2x10xf32>
    %199 = vector.shape_cast %198 : vector<2x10xf32> to vector<1x2x10xf32>
    %cst_93 = arith.constant dense<0.000000e+00> : vector<1xf32>
    %200 = vector.multi_reduction <add>, %199, %cst_93 [1, 2] : vector<1x2x10xf32> to vector<1xf32>
    %201 = vector.shape_cast %200 : vector<1xf32> to vector<1x1x1xf32>
    %202 = vector.extract %201[0, 0, 0] : f32 from vector<1x1x1xf32>
    %203 = vector.broadcast %202 : f32 to vector<1x1xf32>
    %cst_94 = arith.constant 2.000000e+01 : f32
    %204 = vector.broadcast %cst_94 : f32 to vector<1x1xf32>
    %205 = arith.divf %203, %204 : vector<1x1xf32>
    %206 = arith.addf %188, %205 : vector<1x1xf32>
    %207 = arith.subf %167, %171 : vector<2x10xf32>
    %208 = math.absf %207 : vector<2x10xf32>
    %cst_95 = arith.constant 1.000000e+00 : f32
    %209 = vector.broadcast %cst_95 : f32 to vector<2x10xf32>
    %210 = arith.cmpf olt, %208, %209 : vector<2x10xf32>
    %cst_96 = arith.constant 5.000000e-01 : f32
    %211 = vector.broadcast %cst_96 : f32 to vector<2x10xf32>
    %212 = arith.mulf %211, %207 : vector<2x10xf32>
    %213 = arith.mulf %212, %207 : vector<2x10xf32>
    %cst_97 = arith.constant 5.000000e-01 : f32
    %214 = vector.broadcast %cst_97 : f32 to vector<2x10xf32>
    %215 = arith.subf %208, %214 : vector<2x10xf32>
    %216 = arith.select %210, %213, %215 : vector<2x10xi1>, vector<2x10xf32>
    %217 = vector.shape_cast %216 : vector<2x10xf32> to vector<1x2x10xf32>
    %cst_98 = arith.constant dense<0.000000e+00> : vector<1xf32>
    %218 = vector.multi_reduction <add>, %217, %cst_98 [1, 2] : vector<1x2x10xf32> to vector<1xf32>
    %219 = vector.shape_cast %218 : vector<1xf32> to vector<1x1x1xf32>
    %220 = vector.extract %219[0, 0, 0] : f32 from vector<1x1x1xf32>
    %221 = vector.broadcast %220 : f32 to vector<1x1xf32>
    %cst_99 = arith.constant 2.000000e+01 : f32
    %222 = vector.broadcast %cst_99 : f32 to vector<1x1xf32>
    %223 = arith.divf %221, %222 : vector<1x1xf32>
    %224 = arith.addf %206, %223 : vector<1x1xf32>
    %c0_100 = arith.constant 0 : index
    %c0_101 = arith.constant 0 : index
    %225 = vector.load %arg21[%c0_100, %c0_101] : memref<1x1xf32, #tpu.memory_space<vmem>>, vector<1x1xf32>
    tpu.vector_store %arg21[%c0_100, %c0_101], %224 {strides = array<i32>} : memref<1x1xf32, #tpu.memory_space<vmem>>, vector<1x1xf32>,
    return
  }
}

module attributes {stable_mosaic.version = 11 : i64} {
  func.func @_decoder_kernel(%arg0: i32, %arg1: memref<2x256x32xf32, #tpu.memory_space<vmem>>, %arg2: memref<2x256x32xf32, #tpu.memory_space<vmem>>, %arg3: memref<2x256xf32, #tpu.memory_space<vmem>>, %arg4: memref<2x10xf32, #tpu.memory_space<vmem>>, %arg5: memref<2x32xf32, #tpu.memory_space<vmem>>, %arg6: memref<16x32xf32, #tpu.memory_space<vmem>>, %arg7: memref<32x32xf32, #tpu.memory_space<vmem>>, %arg8: memref<10x32xf32, #tpu.memory_space<vmem>>, %arg9: memref<1x32xf32, #tpu.memory_space<vmem>>, %arg10: memref<32x32xf32, #tpu.memory_space<vmem>>, %arg11: memref<1x32xf32, #tpu.memory_space<vmem>>, %arg12: memref<1x32xf32, #tpu.memory_space<vmem>>, %arg13: memref<32x10xf32, #tpu.memory_space<vmem>>, %arg14: memref<32x10xf32, #tpu.memory_space<vmem>>, %arg15: memref<10x10xf32, #tpu.memory_space<vmem>>, %arg16: memref<1x10xf32, #tpu.memory_space<vmem>>, %arg17: memref<1x2x16xf32, #tpu.memory_space<vmem>>, %arg18: memref<1x2x10xf32, #tpu.memory_space<vmem>>, %arg19: memref<1x2x1xf32, #tpu.memory_space<vmem>>, %arg20: memref<1x2x10xf32, #tpu.memory_space<vmem>>, %arg21: memref<1x1xf32, #tpu.memory_space<vmem>>, %arg22: memref<2x32xf32, #tpu.memory_space<vmem>>, %arg23: memref<1x1xf32, #tpu.memory_space<vmem>>, %arg24: memref<1x1xf32, #tpu.memory_space<vmem>>) attributes {dimension_semantics = [#tpu.dimension_semantics<arbitrary>], iteration_bounds = array<i64: 6>, scalar_prefetch = 0 : i64, scratch_operands = 3 : i64, tpu.core_type = #tpu.core_type<tc>, window_params = [{pipeline_mode = #tpu.pipeline_mode<synchronous>, transform_indices = @transform_0, window_bounds = array<i64: 2, 256, 32>}, {pipeline_mode = #tpu.pipeline_mode<synchronous>, transform_indices = @transform_1, window_bounds = array<i64: 2, 256, 32>}, {pipeline_mode = #tpu.pipeline_mode<synchronous>, transform_indices = @transform_2, window_bounds = array<i64: 2, 256>}, {pipeline_mode = #tpu.pipeline_mode<synchronous>, transform_indices = @transform_3, window_bounds = array<i64: 2, 10>}, {pipeline_mode = #tpu.pipeline_mode<synchronous>, transform_indices = @transform_4, window_bounds = array<i64: 2, 32>}, {pipeline_mode = #tpu.pipeline_mode<synchronous>, transform_indices = @transform_5, window_bounds = array<i64: 16, 32>}, {pipeline_mode = #tpu.pipeline_mode<synchronous>, transform_indices = @transform_6, window_bounds = array<i64: 32, 32>}, {pipeline_mode = #tpu.pipeline_mode<synchronous>, transform_indices = @transform_7, window_bounds = array<i64: 10, 32>}, {pipeline_mode = #tpu.pipeline_mode<synchronous>, transform_indices = @transform_8, window_bounds = array<i64: 1, 32>}, {pipeline_mode = #tpu.pipeline_mode<synchronous>, transform_indices = @transform_9, window_bounds = array<i64: 32, 32>}, {pipeline_mode = #tpu.pipeline_mode<synchronous>, transform_indices = @transform_10, window_bounds = array<i64: 1, 32>}, {pipeline_mode = #tpu.pipeline_mode<synchronous>, transform_indices = @transform_11, window_bounds = array<i64: 1, 32>}, {pipeline_mode = #tpu.pipeline_mode<synchronous>, transform_indices = @transform_12, window_bounds = array<i64: 32, 10>}, {pipeline_mode = #tpu.pipeline_mode<synchronous>, transform_indices = @transform_13, window_bounds = array<i64: 32, 10>}, {pipeline_mode = #tpu.pipeline_mode<synchronous>, transform_indices = @transform_14, window_bounds = array<i64: 10, 10>}, {pipeline_mode = #tpu.pipeline_mode<synchronous>, transform_indices = @transform_15, window_bounds = array<i64: 1, 10>}, {transform_indices = @transform_16, window_bounds = array<i64: 1, 2, 16>}, {transform_indices = @transform_17, window_bounds = array<i64: 1, 2, 10>}, {transform_indices = @transform_18, window_bounds = array<i64: 1, 2, 1>}, {transform_indices = @transform_19, window_bounds = array<i64: 1, 2, 10>}, {pipeline_mode = #tpu.pipeline_mode<synchronous>, transform_indices = @transform_20, window_bounds = array<i64: 1, 1>}]} {
    %c0_i32 = arith.constant 0 : i32
    %0 = arith.cmpi eq, %arg0, %c0_i32 : i32
    %1 = arith.extui %0 : i1 to i32
    %c0_i32_0 = arith.constant 0 : i32
    %2 = arith.cmpi ne, %1, %c0_i32_0 : i32
    scf.if %2 {
      %c0_77 = arith.constant 0 : index
      %c0_78 = arith.constant 0 : index
      %106 = vector.load %arg5[%c0_77, %c0_78] : memref<2x32xf32, #tpu.memory_space<vmem>>, vector<2x32xf32>
      %c0_79 = arith.constant 0 : index
      %c0_80 = arith.constant 0 : index
      %107 = vector.load %arg22[%c0_79, %c0_80] : memref<2x32xf32, #tpu.memory_space<vmem>>, vector<2x32xf32>
      tpu.vector_store %arg22[%c0_79, %c0_80], %106 {strides = array<i32>} : memref<2x32xf32, #tpu.memory_space<vmem>>, vector<2x32xf32>,
      %cst_81 = arith.constant 0.000000e+00 : f32
      %108 = vector.broadcast %cst_81 : f32 to vector<1x1xf32>
      %c0_82 = arith.constant 0 : index
      %c0_83 = arith.constant 0 : index
      %109 = vector.load %arg23[%c0_82, %c0_83] : memref<1x1xf32, #tpu.memory_space<vmem>>, vector<1x1xf32>
      tpu.vector_store %arg23[%c0_82, %c0_83], %108 {strides = array<i32>} : memref<1x1xf32, #tpu.memory_space<vmem>>, vector<1x1xf32>,
      %cst_84 = arith.constant 0.000000e+00 : f32
      %110 = vector.broadcast %cst_84 : f32 to vector<1x1xf32>
      %c0_85 = arith.constant 0 : index
      %c0_86 = arith.constant 0 : index
      %111 = vector.load %arg24[%c0_85, %c0_86] : memref<1x1xf32, #tpu.memory_space<vmem>>, vector<1x1xf32>
      tpu.vector_store %arg24[%c0_85, %c0_86], %110 {strides = array<i32>} : memref<1x1xf32, #tpu.memory_space<vmem>>, vector<1x1xf32>,
    } else {
    }
    %c0 = arith.constant 0 : index
    %c0_1 = arith.constant 0 : index
    %c0_2 = arith.constant 0 : index
    %3 = vector.load %arg17[%c0, %c0_1, %c0_2] : memref<1x2x16xf32, #tpu.memory_space<vmem>>, vector<1x2x16xf32>
    %4 = vector.shape_cast %3 : vector<1x2x16xf32> to vector<2x16xf32>
    %c0_3 = arith.constant 0 : index
    %c0_4 = arith.constant 0 : index
    %5 = vector.load %arg4[%c0_3, %c0_4] : memref<2x10xf32, #tpu.memory_space<vmem>>, vector<2x10xf32>
    %c0_5 = arith.constant 0 : index
    %c0_6 = arith.constant 0 : index
    %6 = vector.load %arg22[%c0_5, %c0_6] : memref<2x32xf32, #tpu.memory_space<vmem>>, vector<2x32xf32>
    %c0_7 = arith.constant 0 : index
    %c0_8 = arith.constant 0 : index
    %7 = vector.load %arg6[%c0_7, %c0_8] : memref<16x32xf32, #tpu.memory_space<vmem>>, vector<16x32xf32>
    %cst = arith.constant dense<0.000000e+00> : vector<2x32xf32>
    %8 = tpu.matmul %4, %7, %cst {dimension_numbers = #tpu.dot_dimension_numbers<[1], [0], [0], [1], [0, 0, 1, 1], [], []>} : vector<2x16xf32>, vector<16x32xf32>, vector<2x32xf32> -> vector<2x32xf32>
    %c0_9 = arith.constant 0 : index
    %c0_10 = arith.constant 0 : index
    %9 = vector.load %arg7[%c0_9, %c0_10] : memref<32x32xf32, #tpu.memory_space<vmem>>, vector<32x32xf32>
    %cst_11 = arith.constant dense<0.000000e+00> : vector<2x32xf32>
    %10 = tpu.matmul %6, %9, %cst_11 {dimension_numbers = #tpu.dot_dimension_numbers<[1], [0], [0], [1], [0, 0, 1, 1], [], []>} : vector<2x32xf32>, vector<32x32xf32>, vector<2x32xf32> -> vector<2x32xf32>
    %11 = arith.addf %8, %10 : vector<2x32xf32>
    %c0_12 = arith.constant 0 : index
    %c0_13 = arith.constant 0 : index
    %12 = vector.load %arg8[%c0_12, %c0_13] : memref<10x32xf32, #tpu.memory_space<vmem>>, vector<10x32xf32>
    %cst_14 = arith.constant dense<0.000000e+00> : vector<2x32xf32>
    %13 = tpu.matmul %5, %12, %cst_14 {dimension_numbers = #tpu.dot_dimension_numbers<[1], [0], [0], [1], [0, 0, 1, 1], [], []>} : vector<2x10xf32>, vector<10x32xf32>, vector<2x32xf32> -> vector<2x32xf32>
    %14 = arith.addf %11, %13 : vector<2x32xf32>
    %c0_15 = arith.constant 0 : index
    %c0_16 = arith.constant 0 : index
    %15 = vector.load %arg9[%c0_15, %c0_16] : memref<1x32xf32, #tpu.memory_space<vmem>>, vector<1x32xf32>
    %16 = vector.broadcast %15 : vector<1x32xf32> to vector<2x32xf32>
    %17 = arith.addf %14, %16 : vector<2x32xf32>
    %18 = math.tanh %17 : vector<2x32xf32>
    %c0_17 = arith.constant 0 : index
    %c0_18 = arith.constant 0 : index
    %19 = vector.load %arg22[%c0_17, %c0_18] : memref<2x32xf32, #tpu.memory_space<vmem>>, vector<2x32xf32>
    tpu.vector_store %arg22[%c0_17, %c0_18], %18 {strides = array<i32>} : memref<2x32xf32, #tpu.memory_space<vmem>>, vector<2x32xf32>,
    %c0_19 = arith.constant 0 : index
    %c0_20 = arith.constant 0 : index
    %20 = vector.load %arg10[%c0_19, %c0_20] : memref<32x32xf32, #tpu.memory_space<vmem>>, vector<32x32xf32>
    %cst_21 = arith.constant dense<0.000000e+00> : vector<2x32xf32>
    %21 = tpu.matmul %18, %20, %cst_21 {dimension_numbers = #tpu.dot_dimension_numbers<[1], [0], [0], [1], [0, 0, 1, 1], [], []>} : vector<2x32xf32>, vector<32x32xf32>, vector<2x32xf32> -> vector<2x32xf32>
    %c0_22 = arith.constant 0 : index
    %c0_23 = arith.constant 0 : index
    %22 = vector.load %arg11[%c0_22, %c0_23] : memref<1x32xf32, #tpu.memory_space<vmem>>, vector<1x32xf32>
    %23 = vector.broadcast %22 : vector<1x32xf32> to vector<2x32xf32>
    %24 = arith.addf %21, %23 : vector<2x32xf32>
    %c0_24 = arith.constant 0 : index
    %c0_25 = arith.constant 0 : index
    %c0_26 = arith.constant 0 : index
    %25 = vector.load %arg2[%c0_24, %c0_25, %c0_26] : memref<2x256x32xf32, #tpu.memory_space<vmem>>, vector<2x256x32xf32>
    %26 = vector.shape_cast %24 : vector<2x32xf32> to vector<2x1x32xf32>
    %27 = vector.broadcast %26 : vector<2x1x32xf32> to vector<2x256x32xf32>
    %28 = arith.addf %25, %27 : vector<2x256x32xf32>
    %29 = math.tanh %28 : vector<2x256x32xf32>
    %c0_27 = arith.constant 0 : index
    %c0_28 = arith.constant 0 : index
    %30 = vector.load %arg12[%c0_27, %c0_28] : memref<1x32xf32, #tpu.memory_space<vmem>>, vector<1x32xf32>
    %31 = vector.shape_cast %30 : vector<1x32xf32> to vector<1x1x32xf32>
    %32 = vector.broadcast %31 : vector<1x1x32xf32> to vector<2x256x32xf32>
    %33 = arith.mulf %29, %32 : vector<2x256x32xf32>
    %cst_29 = arith.constant dense<0.000000e+00> : vector<2x256xf32>
    %34 = vector.multi_reduction <add>, %33, %cst_29 [2] : vector<2x256x32xf32> to vector<2x256xf32>
    %c0_30 = arith.constant 0 : index
    %c0_31 = arith.constant 0 : index
    %35 = vector.load %arg3[%c0_30, %c0_31] : memref<2x256xf32, #tpu.memory_space<vmem>>, vector<2x256xf32>
    %cst_32 = arith.constant 5.000000e-01 : f32
    %36 = vector.broadcast %cst_32 : f32 to vector<2x256xf32>
    %37 = arith.cmpf ogt, %35, %36 : vector<2x256xf32>
    %cst_33 = arith.constant -1.000000e+30 : f32
    %38 = vector.broadcast %cst_33 : f32 to vector<2x256xf32>
    %39 = arith.select %37, %34, %38 : vector<2x256xi1>, vector<2x256xf32>
    %cst_34 = arith.constant dense<0xFF800000> : vector<2xf32>
    %40 = vector.multi_reduction <maximumf>, %39, %cst_34 [1] : vector<2x256xf32> to vector<2xf32>
    %41 = vector.shape_cast %40 : vector<2xf32> to vector<2x1xf32>
    %42 = vector.broadcast %41 : vector<2x1xf32> to vector<2x256xf32>
    %43 = arith.subf %39, %42 : vector<2x256xf32>
    %44 = math.exp %43 : vector<2x256xf32>
    %cst_35 = arith.constant 1.000000e+00 : f32
    %cst_36 = arith.constant 0.000000e+00 : f32
    %45 = vector.broadcast %cst_35 : f32 to vector<2x256xf32>
    %46 = vector.broadcast %cst_36 : f32 to vector<2x256xf32>
    %47 = arith.select %37, %45, %46 : vector<2x256xi1>, vector<2x256xf32>
    %48 = arith.mulf %44, %47 : vector<2x256xf32>
    %cst_37 = arith.constant dense<0.000000e+00> : vector<2xf32>
    %49 = vector.multi_reduction <add>, %48, %cst_37 [1] : vector<2x256xf32> to vector<2xf32>
    %50 = vector.shape_cast %49 : vector<2xf32> to vector<2x1xf32>
    %cst_38 = arith.constant 1.000000e-10 : f32
    %51 = vector.broadcast %cst_38 : f32 to vector<2x1xf32>
    %52 = arith.addf %50, %51 : vector<2x1xf32>
    %53 = vector.broadcast %52 : vector<2x1xf32> to vector<2x256xf32>
    %54 = arith.divf %48, %53 : vector<2x256xf32>
    %55 = vector.shape_cast %54 : vector<2x256xf32> to vector<2x1x256xf32>
    %56 = arith.truncf %55 : vector<2x1x256xf32> to vector<2x1x256xbf16>
    %c0_39 = arith.constant 0 : index
    %c0_40 = arith.constant 0 : index
    %c0_41 = arith.constant 0 : index
    %57 = vector.load %arg1[%c0_39, %c0_40, %c0_41] : memref<2x256x32xf32, #tpu.memory_space<vmem>>, vector<2x256x32xf32>
    %58 = arith.truncf %57 : vector<2x256x32xf32> to vector<2x256x32xbf16>
    "tpu.trace_start"() <{level = 10 : i32, message = "bql,blc->bqc"}> : () -> ()
    %cst_42 = arith.constant dense<0.000000e+00> : vector<2x1x32xf32>
    %59 = tpu.matmul %56, %58, %cst_42 {dimension_numbers = #tpu.dot_dimension_numbers<[2], [1], [1], [2], [0, 0, 0, 1, 1, 2], [0], [0]>} : vector<2x1x256xbf16>, vector<2x256x32xbf16>, vector<2x1x32xf32> -> vector<2x1x32xf32>
    "tpu.trace_stop"() : () -> ()
    %60 = vector.shape_cast %59 : vector<2x1x32xf32> to vector<2x32xf32>
    %c0_43 = arith.constant 0 : index
    %c0_44 = arith.constant 0 : index
    %61 = vector.load %arg13[%c0_43, %c0_44] : memref<32x10xf32, #tpu.memory_space<vmem>>, vector<32x10xf32>
    %cst_45 = arith.constant dense<0.000000e+00> : vector<2x10xf32>
    %62 = tpu.matmul %18, %61, %cst_45 {dimension_numbers = #tpu.dot_dimension_numbers<[1], [0], [0], [1], [0, 0, 1, 1], [], []>} : vector<2x32xf32>, vector<32x10xf32>, vector<2x10xf32> -> vector<2x10xf32>
    %c0_46 = arith.constant 0 : index
    %c0_47 = arith.constant 0 : index
    %63 = vector.load %arg14[%c0_46, %c0_47] : memref<32x10xf32, #tpu.memory_space<vmem>>, vector<32x10xf32>
    %cst_48 = arith.constant dense<0.000000e+00> : vector<2x10xf32>
    %64 = tpu.matmul %60, %63, %cst_48 {dimension_numbers = #tpu.dot_dimension_numbers<[1], [0], [0], [1], [0, 0, 1, 1], [], []>} : vector<2x32xf32>, vector<32x10xf32>, vector<2x10xf32> -> vector<2x10xf32>
    %65 = arith.addf %62, %64 : vector<2x10xf32>
    %c0_49 = arith.constant 0 : index
    %c0_50 = arith.constant 0 : index
    %66 = vector.load %arg15[%c0_49, %c0_50] : memref<10x10xf32, #tpu.memory_space<vmem>>, vector<10x10xf32>
    %cst_51 = arith.constant dense<0.000000e+00> : vector<2x10xf32>
    %67 = tpu.matmul %5, %66, %cst_51 {dimension_numbers = #tpu.dot_dimension_numbers<[1], [0], [0], [1], [0, 0, 1, 1], [], []>} : vector<2x10xf32>, vector<10x10xf32>, vector<2x10xf32> -> vector<2x10xf32>
    %68 = arith.addf %65, %67 : vector<2x10xf32>
    %c0_52 = arith.constant 0 : index
    %c0_53 = arith.constant 0 : index
    %69 = vector.load %arg16[%c0_52, %c0_53] : memref<1x10xf32, #tpu.memory_space<vmem>>, vector<1x10xf32>
    %70 = vector.broadcast %69 : vector<1x10xf32> to vector<2x10xf32>
    %71 = arith.addf %68, %70 : vector<2x10xf32>
    %c0_54 = arith.constant 0 : index
    %c0_55 = arith.constant 0 : index
    %c0_56 = arith.constant 0 : index
    %72 = vector.load %arg20[%c0_54, %c0_55, %c0_56] : memref<1x2x10xf32, #tpu.memory_space<vmem>>, vector<1x2x10xf32>
    %73 = vector.shape_cast %72 : vector<1x2x10xf32> to vector<2x10xf32>
    %74 = vector.shape_cast %71 : vector<2x10xf32> to vector<1x2x10xf32>
    tpu.vector_store %arg20[%c0_54, %c0_55, %c0_56], %74 {strides = array<i32>} : memref<1x2x10xf32, #tpu.memory_space<vmem>>, vector<1x2x10xf32>,
    %cst_57 = arith.constant dense<0xFF800000> : vector<2xf32>
    %75 = vector.multi_reduction <maximumf>, %71, %cst_57 [1] : vector<2x10xf32> to vector<2xf32>
    %76 = vector.shape_cast %75 : vector<2xf32> to vector<2x1xf32>
    %77 = vector.broadcast %76 : vector<2x1xf32> to vector<2x10xf32>
    %78 = arith.subf %71, %77 : vector<2x10xf32>
    %79 = math.exp %78 : vector<2x10xf32>
    %cst_58 = arith.constant dense<0.000000e+00> : vector<2xf32>
    %80 = vector.multi_reduction <add>, %79, %cst_58 [1] : vector<2x10xf32> to vector<2xf32>
    %81 = vector.shape_cast %80 : vector<2xf32> to vector<2x1xf32>
    %82 = math.log %81 : vector<2x1xf32>
    %83 = arith.addf %82, %76 : vector<2x1xf32>
    %c0_59 = arith.constant 0 : index
    %c0_60 = arith.constant 0 : index
    %c0_61 = arith.constant 0 : index
    %84 = vector.load %arg18[%c0_59, %c0_60, %c0_61] : memref<1x2x10xf32, #tpu.memory_space<vmem>>, vector<1x2x10xf32>
    %85 = vector.shape_cast %84 : vector<1x2x10xf32> to vector<2x10xf32>
    %86 = arith.mulf %71, %85 : vector<2x10xf32>
    %cst_62 = arith.constant dense<0.000000e+00> : vector<2xf32>
    %87 = vector.multi_reduction <add>, %86, %cst_62 [1] : vector<2x10xf32> to vector<2xf32>
    %88 = vector.shape_cast %87 : vector<2xf32> to vector<2x1xf32>
    %89 = arith.subf %83, %88 : vector<2x1xf32>
    %c0_63 = arith.constant 0 : index
    %c0_64 = arith.constant 0 : index
    %c0_65 = arith.constant 0 : index
    %90 = vector.load %arg19[%c0_63, %c0_64, %c0_65] : memref<1x2x1xf32, #tpu.memory_space<vmem>>, vector<1x2x1xf32>
    %91 = vector.shape_cast %90 : vector<1x2x1xf32> to vector<2x1xf32>
    %c0_66 = arith.constant 0 : index
    %c0_67 = arith.constant 0 : index
    %92 = vector.load %arg23[%c0_66, %c0_67] : memref<1x1xf32, #tpu.memory_space<vmem>>, vector<1x1xf32>
    %93 = arith.mulf %89, %91 : vector<2x1xf32>
    %cst_68 = arith.constant dense<0.000000e+00> : vector<1xf32>
    %94 = vector.multi_reduction <add>, %93, %cst_68 [0] : vector<2x1xf32> to vector<1xf32>
    %95 = vector.shape_cast %94 : vector<1xf32> to vector<1x1xf32>
    %96 = arith.addf %92, %95 : vector<1x1xf32>
    %c0_69 = arith.constant 0 : index
    %c0_70 = arith.constant 0 : index
    %97 = vector.load %arg23[%c0_69, %c0_70] : memref<1x1xf32, #tpu.memory_space<vmem>>, vector<1x1xf32>
    tpu.vector_store %arg23[%c0_69, %c0_70], %96 {strides = array<i32>} : memref<1x1xf32, #tpu.memory_space<vmem>>, vector<1x1xf32>,
    %c0_71 = arith.constant 0 : index
    %c0_72 = arith.constant 0 : index
    %98 = vector.load %arg24[%c0_71, %c0_72] : memref<1x1xf32, #tpu.memory_space<vmem>>, vector<1x1xf32>
    %cst_73 = arith.constant dense<0.000000e+00> : vector<1xf32>
    %99 = vector.multi_reduction <add>, %91, %cst_73 [0] : vector<2x1xf32> to vector<1xf32>
    %100 = vector.shape_cast %99 : vector<1xf32> to vector<1x1xf32>
    %101 = arith.addf %98, %100 : vector<1x1xf32>
    %c0_74 = arith.constant 0 : index
    %c0_75 = arith.constant 0 : index
    %102 = vector.load %arg24[%c0_74, %c0_75] : memref<1x1xf32, #tpu.memory_space<vmem>>, vector<1x1xf32>
    tpu.vector_store %arg24[%c0_74, %c0_75], %101 {strides = array<i32>} : memref<1x1xf32, #tpu.memory_space<vmem>>, vector<1x1xf32>,
    %c5_i32 = arith.constant 5 : i32
    %103 = arith.cmpi eq, %arg0, %c5_i32 : i32
    %104 = arith.extui %103 : i1 to i32
    %c0_i32_76 = arith.constant 0 : i32
    %105 = arith.cmpi ne, %104, %c0_i32_76 : i32
    scf.if %105 {
      %c0_77 = arith.constant 0 : index
      %c0_78 = arith.constant 0 : index
      %106 = vector.load %arg23[%c0_77, %c0_78] : memref<1x1xf32, #tpu.memory_space<vmem>>, vector<1x1xf32>
      %c0_79 = arith.constant 0 : index
      %c0_80 = arith.constant 0 : index
      %107 = vector.load %arg24[%c0_79, %c0_80] : memref<1x1xf32, #tpu.memory_space<vmem>>, vector<1x1xf32>
      %cst_81 = arith.constant 1.000000e-10 : f32
      %108 = vector.broadcast %cst_81 : f32 to vector<1x1xf32>
      %109 = arith.addf %107, %108 : vector<1x1xf32>
      %110 = arith.divf %106, %109 : vector<1x1xf32>
      %c0_82 = arith.constant 0 : index
      %c0_83 = arith.constant 0 : index
      %111 = vector.load %arg21[%c0_82, %c0_83] : memref<1x1xf32, #tpu.memory_space<vmem>>, vector<1x1xf32>
      tpu.vector_store %arg21[%c0_82, %c0_83], %110 {strides = array<i32>} : memref<1x1xf32, #tpu.memory_space<vmem>>, vector<1x1xf32>,
    } else {
    }
    return
  }
  func.func @transform_0(%arg0: i32) -> (i32, i32, i32) {
    %c0_i32 = arith.constant 0 : i32
    %c0_i32_0 = arith.constant 0 : i32
    %c0_i32_1 = arith.constant 0 : i32
    %c0_i32_2 = arith.constant 0 : i32
    return %c0_i32, %c0_i32_0, %c0_i32_1 : i32, i32, i32
  }
  func.func @transform_1(%arg0: i32) -> (i32, i32, i32) {
    %c0_i32 = arith.constant 0 : i32
    %c0_i32_0 = arith.constant 0 : i32
    %c0_i32_1 = arith.constant 0 : i32
    %c0_i32_2 = arith.constant 0 : i32
    return %c0_i32, %c0_i32_0, %c0_i32_1 : i32, i32, i32
  }
  func.func @transform_2(%arg0: i32) -> (i32, i32) {
    %c0_i32 = arith.constant 0 : i32
    %c0_i32_0 = arith.constant 0 : i32
    %c0_i32_1 = arith.constant 0 : i32
    return %c0_i32, %c0_i32_0 : i32, i32
  }
  func.func @transform_3(%arg0: i32) -> (i32, i32) {
    %c0_i32 = arith.constant 0 : i32
    %c0_i32_0 = arith.constant 0 : i32
    %c0_i32_1 = arith.constant 0 : i32
    return %c0_i32, %c0_i32_0 : i32, i32
  }
  func.func @transform_4(%arg0: i32) -> (i32, i32) {
    %c0_i32 = arith.constant 0 : i32
    %c0_i32_0 = arith.constant 0 : i32
    %c0_i32_1 = arith.constant 0 : i32
    return %c0_i32, %c0_i32_0 : i32, i32
  }
  func.func @transform_5(%arg0: i32) -> (i32, i32) {
    %c0_i32 = arith.constant 0 : i32
    %c0_i32_0 = arith.constant 0 : i32
    %c0_i32_1 = arith.constant 0 : i32
    return %c0_i32, %c0_i32_0 : i32, i32
  }
  func.func @transform_6(%arg0: i32) -> (i32, i32) {
    %c0_i32 = arith.constant 0 : i32
    %c0_i32_0 = arith.constant 0 : i32
    %c0_i32_1 = arith.constant 0 : i32
    return %c0_i32, %c0_i32_0 : i32, i32
  }
  func.func @transform_7(%arg0: i32) -> (i32, i32) {
    %c0_i32 = arith.constant 0 : i32
    %c0_i32_0 = arith.constant 0 : i32
    %c0_i32_1 = arith.constant 0 : i32
    return %c0_i32, %c0_i32_0 : i32, i32
  }
  func.func @transform_8(%arg0: i32) -> (i32, i32) {
    %c0_i32 = arith.constant 0 : i32
    %c0_i32_0 = arith.constant 0 : i32
    %c0_i32_1 = arith.constant 0 : i32
    return %c0_i32, %c0_i32_0 : i32, i32
  }
  func.func @transform_9(%arg0: i32) -> (i32, i32) {
    %c0_i32 = arith.constant 0 : i32
    %c0_i32_0 = arith.constant 0 : i32
    %c0_i32_1 = arith.constant 0 : i32
    return %c0_i32, %c0_i32_0 : i32, i32
  }
  func.func @transform_10(%arg0: i32) -> (i32, i32) {
    %c0_i32 = arith.constant 0 : i32
    %c0_i32_0 = arith.constant 0 : i32
    %c0_i32_1 = arith.constant 0 : i32
    return %c0_i32, %c0_i32_0 : i32, i32
  }
  func.func @transform_11(%arg0: i32) -> (i32, i32) {
    %c0_i32 = arith.constant 0 : i32
    %c0_i32_0 = arith.constant 0 : i32
    %c0_i32_1 = arith.constant 0 : i32
    return %c0_i32, %c0_i32_0 : i32, i32
  }
  func.func @transform_12(%arg0: i32) -> (i32, i32) {
    %c0_i32 = arith.constant 0 : i32
    %c0_i32_0 = arith.constant 0 : i32
    %c0_i32_1 = arith.constant 0 : i32
    return %c0_i32, %c0_i32_0 : i32, i32
  }
  func.func @transform_13(%arg0: i32) -> (i32, i32) {
    %c0_i32 = arith.constant 0 : i32
    %c0_i32_0 = arith.constant 0 : i32
    %c0_i32_1 = arith.constant 0 : i32
    return %c0_i32, %c0_i32_0 : i32, i32
  }
  func.func @transform_14(%arg0: i32) -> (i32, i32) {
    %c0_i32 = arith.constant 0 : i32
    %c0_i32_0 = arith.constant 0 : i32
    %c0_i32_1 = arith.constant 0 : i32
    return %c0_i32, %c0_i32_0 : i32, i32
  }
  func.func @transform_15(%arg0: i32) -> (i32, i32) {
    %c0_i32 = arith.constant 0 : i32
    %c0_i32_0 = arith.constant 0 : i32
    %c0_i32_1 = arith.constant 0 : i32
    return %c0_i32, %c0_i32_0 : i32, i32
  }
  func.func @transform_16(%arg0: i32) -> (i32, i32, i32) {
    %c0_i32 = arith.constant 0 : i32
    %c0_i32_0 = arith.constant 0 : i32
    %c0_i32_1 = arith.constant 0 : i32
    return %arg0, %c0_i32, %c0_i32_0 : i32, i32, i32
  }
  func.func @transform_17(%arg0: i32) -> (i32, i32, i32) {
    %c0_i32 = arith.constant 0 : i32
    %c0_i32_0 = arith.constant 0 : i32
    %c0_i32_1 = arith.constant 0 : i32
    return %arg0, %c0_i32, %c0_i32_0 : i32, i32, i32
  }
  func.func @transform_18(%arg0: i32) -> (i32, i32, i32) {
    %c0_i32 = arith.constant 0 : i32
    %c0_i32_0 = arith.constant 0 : i32
    %c0_i32_1 = arith.constant 0 : i32
    return %arg0, %c0_i32, %c0_i32_0 : i32, i32, i32
  }
  func.func @transform_19(%arg0: i32) -> (i32, i32, i32) {
    %c0_i32 = arith.constant 0 : i32
    %c0_i32_0 = arith.constant 0 : i32
    %c0_i32_1 = arith.constant 0 : i32
    return %arg0, %c0_i32, %c0_i32_0 : i32, i32, i32
  }
  func.func @transform_20(%arg0: i32) -> (i32, i32) {
    %c0_i32 = arith.constant 0 : i32
    %c0_i32_0 = arith.constant 0 : i32
    %c0_i32_1 = arith.constant 0 : i32
    return %c0_i32, %c0_i32_0 : i32, i32
  }
}

</mosaic_0001>

<llo_original>
// kernel: can_forward.2
$region0: #{can_forward.2}
  #allocation0 [shape = 'u32[]', space=smem, size = 0x4, offset = 0x4, fixed_abs, tag = 'smem constant byte address 0x4 - core index']
  #allocation1 [shape = 'u32[72,128]{1,0:T(1,128)}', space=vmem, size = 0x9000, scoped, tag = 'internal scratch']
  %s0 = inlined_call_operand.vmem [shape: f32[2,256,64], index: 0, kind: input, shape index: {}]
  %s1 = inlined_call_operand.vmem [shape: f32[2,256,64], index: 1, kind: input, shape index: {}]
  %s2 = inlined_call_operand.vmem [shape: f32[2,256,1], index: 2, kind: input, shape index: {}]
  %s3 = inlined_call_operand.vmem [shape: f32[2,10], index: 3, kind: input, shape index: {}]
  %s4 = inlined_call_operand.vmem [shape: f32[1,64], index: 4, kind: input, shape index: {}]
  %s5 = inlined_call_operand.vmem [shape: f32[1,64], index: 5, kind: input, shape index: {}]
  %s6 = inlined_call_operand.vmem [shape: f32[64,4], index: 6, kind: input, shape index: {}]
  %s7 = inlined_call_operand.vmem [shape: f32[1,4], index: 7, kind: input, shape index: {}]
  %s8 = inlined_call_operand.vmem [shape: f32[4,64], index: 8, kind: input, shape index: {}]
  %s9 = inlined_call_operand.vmem [shape: f32[1,64], index: 9, kind: input, shape index: {}]
  %s10 = inlined_call_operand.vmem [shape: f32[64,10], index: 10, kind: input, shape index: {}]
  %s11 = inlined_call_operand.vmem [shape: f32[1,64], index: 11, kind: input, shape index: {}]
  %s12 = inlined_call_operand.vmem [shape: f32[1,64], index: 12, kind: input, shape index: {}]
  %s13 = inlined_call_operand.vmem [shape: f32[64,4], index: 13, kind: input, shape index: {}]
  %s14 = inlined_call_operand.vmem [shape: f32[1,4], index: 14, kind: input, shape index: {}]
  %s15 = inlined_call_operand.vmem [shape: f32[4,64], index: 15, kind: input, shape index: {}]
  %s16 = inlined_call_operand.vmem [shape: f32[1,64], index: 16, kind: input, shape index: {}]
  %s17 = inlined_call_operand.vmem [shape: f32[64,10], index: 17, kind: input, shape index: {}]
  %s18 = inlined_call_operand.hbm [shape: f32[2,10], index: 18, kind: output, shape index: {0}]
  %s19 = inlined_call_operand.hbm [shape: f32[2,10], index: 19, kind: output, shape index: {1}]
  %s20 = inlined_call_operand.vmem [shape: f32[2,10], index: 20, kind: output, shape index: {2}]
  %s21 = inlined_call_operand.hbm [shape: f32[1,1], index: 21, kind: output, shape index: {3}]
  %22 = xla_tuple %s18, %s19, %s20, %s21
  %s23 = sld [smem:[#allocation0]]
  $region106: #{can_forward.2} parent=0
    _
  %s25 = ssub.s32 1, %s23
  %s26 = scalar_select 0, %s25, %s23
  $region1: #{can_forward.2} parent=0
    #allocation2 [shape = 'u8[1024]{0}', space=vmem, size = 0x400, scoped, tag = 'output window, operand 0, single buffered']
    #allocation3 [shape = 's32[1]{0}', space=sflag, size = 0x4, scoped, tag = 'scoped memory for can_forward.2']
    #allocation4 [shape = 'u8[1024]{0}', space=vmem, size = 0x400, scoped, tag = 'output window, operand 1, single buffered']
    #allocation5 [shape = 's32[1]{0}', space=sflag, size = 0x4, scoped, tag = 'scoped memory for can_forward.2']
    #allocation6 [shape = 'u8[512]{0}', space=vmem, size = 0x400, scoped, tag = 'output window, operand 3, single buffered']
    %27 = vsyncpa [#allocation3], 0
    %28 = vsyncpa [#allocation5], 0
    // Predicated region
    $region2: #{can_forward.2} parent=1 // pred_check
      _
    $region3: #{can_forward.2} parent=1 // pred_check_branch
      %30 = sbr.rel (0) target = $region5
    $region4: #{can_forward.2} parent=1 // pred_region
      _
    $region5: #{can_forward.2} parent=1 // pred_fallthru
      _
    // Predicated region
    $region6: #{can_forward.2} parent=1 // pred_check
      _
    $region7: #{can_forward.2} parent=1 // pred_check_branch
      %32 = sbr.rel (0) target = $region9
    $region8: #{can_forward.2} parent=1 // pred_region
      _
    $region9: #{can_forward.2} parent=1 // pred_fallthru
      _
    // Predicated region
    $region10: #{can_forward.2} parent=1 // pred_check
      _
    $region11: #{can_forward.2} parent=1 // pred_check_branch
      %34 = sbr.rel (0) target = $region13
    $region12: #{can_forward.2} parent=1 // pred_region
      _
    $region13: #{can_forward.2} parent=1 // pred_fallthru
      _
    // Predicated region
    $region14: #{can_forward.2} parent=1 // pred_check
      _
    $region15: #{can_forward.2} parent=1 // pred_check_branch
      %36 = sbr.rel (0) target = $region17
    $region16: #{can_forward.2} parent=1 // pred_region
      _
    $region17: #{can_forward.2} parent=1 // pred_fallthru
      _
    // Predicated region
    $region18: #{can_forward.2} parent=1 // pred_check
      _
    $region19: #{can_forward.2} parent=1 // pred_check_branch
      %38 = sbr.rel (0) target = $region21
    $region20: #{can_forward.2} parent=1 // pred_region
      _
    $region21: #{can_forward.2} parent=1 // pred_fallthru
      _
    // Predicated region
    $region22: #{can_forward.2} parent=1 // pred_check
      _
    $region23: #{can_forward.2} parent=1 // pred_check_branch
      %40 = sbr.rel (0) target = $region25
    $region24: #{can_forward.2} parent=1 // pred_region
      _
    $region25: #{can_forward.2} parent=1 // pred_fallthru
      _
    // Predicated region
    $region26: #{can_forward.2} parent=1 // pred_check
      _
    $region27: #{can_forward.2} parent=1 // pred_check_branch
      %42 = sbr.rel (0) target = $region29
    $region28: #{can_forward.2} parent=1 // pred_region
      _
    $region29: #{can_forward.2} parent=1 // pred_fallthru
      _
    // Predicated region
    $region30: #{can_forward.2} parent=1 // pred_check
      _
    $region31: #{can_forward.2} parent=1 // pred_check_branch
      %44 = sbr.rel (0) target = $region33
    $region32: #{can_forward.2} parent=1 // pred_region
      _
    $region33: #{can_forward.2} parent=1 // pred_fallthru
      _
    // Predicated region
    $region34: #{can_forward.2} parent=1 // pred_check
      _
    $region35: #{can_forward.2} parent=1 // pred_check_branch
      %46 = sbr.rel (0) target = $region37
    $region36: #{can_forward.2} parent=1 // pred_region
      _
    $region37: #{can_forward.2} parent=1 // pred_fallthru
      _
    // Predicated region
    $region38: #{can_forward.2} parent=1 // pred_check
      _
    $region39: #{can_forward.2} parent=1 // pred_check_branch
      %48 = sbr.rel (0) target = $region41
    $region40: #{can_forward.2} parent=1 // pred_region
      _
    $region41: #{can_forward.2} parent=1 // pred_fallthru
      _
    // Predicated region
    $region42: #{can_forward.2} parent=1 // pred_check
      _
    $region43: #{can_forward.2} parent=1 // pred_check_branch
      %50 = sbr.rel (0) target = $region45
    $region44: #{can_forward.2} parent=1 // pred_region
      _
    $region45: #{can_forward.2} parent=1 // pred_fallthru
      _
    // Predicated region
    $region46: #{can_forward.2} parent=1 // pred_check
      _
    $region47: #{can_forward.2} parent=1 // pred_check_branch
      %52 = sbr.rel (0) target = $region49
    $region48: #{can_forward.2} parent=1 // pred_region
      _
    $region49: #{can_forward.2} parent=1 // pred_fallthru
      _
    // Predicated region
    $region50: #{can_forward.2} parent=1 // pred_check
      _
    $region51: #{can_forward.2} parent=1 // pred_check_branch
      %54 = sbr.rel (0) target = $region53
    $region52: #{can_forward.2} parent=1 // pred_region
      _
    $region53: #{can_forward.2} parent=1 // pred_fallthru
      _
    // Predicated region
    $region54: #{can_forward.2} parent=1 // pred_check
      _
    $region55: #{can_forward.2} parent=1 // pred_check_branch
      %56 = sbr.rel (0) target = $region57
    $region56: #{can_forward.2} parent=1 // pred_region
      _
    $region57: #{can_forward.2} parent=1 // pred_fallthru
      _
    // Predicated region
    $region58: #{can_forward.2} parent=1 // pred_check
      _
    $region59: #{can_forward.2} parent=1 // pred_check_branch
      %58 = sbr.rel (0) target = $region61
    $region60: #{can_forward.2} parent=1 // pred_region
      _
    $region61: #{can_forward.2} parent=1 // pred_fallthru
      _
    // Predicated region
    $region62: #{can_forward.2} parent=1 // pred_check
      _
    $region63: #{can_forward.2} parent=1 // pred_check_branch
      %60 = sbr.rel (0) target = $region65
    $region64: #{can_forward.2} parent=1 // pred_region
      _
    $region65: #{can_forward.2} parent=1 // pred_fallthru
      _
    // Predicated region
    $region66: #{can_forward.2} parent=1 // pred_check
      _
    $region67: #{can_forward.2} parent=1 // pred_check_branch
      %62 = sbr.rel (0) target = $region69
    $region68: #{can_forward.2} parent=1 // pred_region
      _
    $region69: #{can_forward.2} parent=1 // pred_fallthru
      _
    // Predicated region
    $region70: #{can_forward.2} parent=1 // pred_check
      _
    $region71: #{can_forward.2} parent=1 // pred_check_branch
      %64 = sbr.rel (0) target = $region73
    $region72: #{can_forward.2} parent=1 // pred_region
      _
    $region73: #{can_forward.2} parent=1 // pred_fallthru
      _
    %v66 = vld [vmem:[%s2] sm:$0xff]
    %v67 = vld [vmem:[%s2 + $0x8] sm:$0xff]
    %v68 = vld [vmem:[%s2 + $0x10] sm:$0xff]
    %v69 = vld [vmem:[%s2 + $0x18] sm:$0xff]
    %v70 = vld [vmem:[%s2 + $0x20] sm:$0xff]
    %v71 = vld [vmem:[%s2 + $0x28] sm:$0xff]
    %v72 = vld [vmem:[%s2 + $0x30] sm:$0xff]
    %v73 = vld [vmem:[%s2 + $0x38] sm:$0xff]
    %v74 = vld [vmem:[%s2 + $0x40] sm:$0xff]
    %v75 = vld [vmem:[%s2 + $0x48] sm:$0xff]
    %v76 = vld [vmem:[%s2 + $0x50] sm:$0xff]
    %v77 = vld [vmem:[%s2 + $0x58] sm:$0xff]
    %v78 = vld [vmem:[%s2 + $0x60] sm:$0xff]
    %v79 = vld [vmem:[%s2 + $0x68] sm:$0xff]
    %v80 = vld [vmem:[%s2 + $0x70] sm:$0xff]
    %v81 = vld [vmem:[%s2 + $0x78] sm:$0xff]
    %v82 = vld [vmem:[%s2 + $0x80] sm:$0xff]
    %v83 = vld [vmem:[%s2 + $0x88] sm:$0xff]
    %v84 = vld [vmem:[%s2 + $0x90] sm:$0xff]
    %v85 = vld [vmem:[%s2 + $0x98] sm:$0xff]
    %v86 = vld [vmem:[%s2 + $0xa0] sm:$0xff]
    %v87 = vld [vmem:[%s2 + $0xa8] sm:$0xff]
    %v88 = vld [vmem:[%s2 + $0xb0] sm:$0xff]
    %v89 = vld [vmem:[%s2 + $0xb8] sm:$0xff]
    %v90 = vld [vmem:[%s2 + $0xc0] sm:$0xff]
    %v91 = vld [vmem:[%s2 + $0xc8] sm:$0xff]
    %v92 = vld [vmem:[%s2 + $0xd0] sm:$0xff]
    %v93 = vld [vmem:[%s2 + $0xd8] sm:$0xff]
    %v94 = vld [vmem:[%s2 + $0xe0] sm:$0xff]
    %v95 = vld [vmem:[%s2 + $0xe8] sm:$0xff]
    %v96 = vld [vmem:[%s2 + $0xf0] sm:$0xff]
    %v97 = vld [vmem:[%s2 + $0xf8] sm:$0xff]
    %v98 = vld [vmem:[%s2 + $0x100] sm:$0xff]
    %v99 = vld [vmem:[%s2 + $0x108] sm:$0xff]
    %v100 = vld [vmem:[%s2 + $0x110] sm:$0xff]
    %v101 = vld [vmem:[%s2 + $0x118] sm:$0xff]
    %v102 = vld [vmem:[%s2 + $0x120] sm:$0xff]
    %v103 = vld [vmem:[%s2 + $0x128] sm:$0xff]
    %v104 = vld [vmem:[%s2 + $0x130] sm:$0xff]
    %v105 = vld [vmem:[%s2 + $0x138] sm:$0xff]
    %v106 = vld [vmem:[%s2 + $0x140] sm:$0xff]
    %v107 = vld [vmem:[%s2 + $0x148] sm:$0xff]
    %v108 = vld [vmem:[%s2 + $0x150] sm:$0xff]
    %v109 = vld [vmem:[%s2 + $0x158] sm:$0xff]
    %v110 = vld [vmem:[%s2 + $0x160] sm:$0xff]
    %v111 = vld [vmem:[%s2 + $0x168] sm:$0xff]
    %v112 = vld [vmem:[%s2 + $0x170] sm:$0xff]
    %v113 = vld [vmem:[%s2 + $0x178] sm:$0xff]
    %v114 = vld [vmem:[%s2 + $0x180] sm:$0xff]
    %v115 = vld [vmem:[%s2 + $0x188] sm:$0xff]
    %v116 = vld [vmem:[%s2 + $0x190] sm:$0xff]
    %v117 = vld [vmem:[%s2 + $0x198] sm:$0xff]
    %v118 = vld [vmem:[%s2 + $0x1a0] sm:$0xff]
    %v119 = vld [vmem:[%s2 + $0x1a8] sm:$0xff]
    %v120 = vld [vmem:[%s2 + $0x1b0] sm:$0xff]
    %v121 = vld [vmem:[%s2 + $0x1b8] sm:$0xff]
    %v122 = vld [vmem:[%s2 + $0x1c0] sm:$0xff]
    %v123 = vld [vmem:[%s2 + $0x1c8] sm:$0xff]
    %v124 = vld [vmem:[%s2 + $0x1d0] sm:$0xff]
    %v125 = vld [vmem:[%s2 + $0x1d8] sm:$0xff]
    %v126 = vld [vmem:[%s2 + $0x1e0] sm:$0xff]
    %v127 = vld [vmem:[%s2 + $0x1e8] sm:$0xff]
    %v128 = vld [vmem:[%s2 + $0x1f0] sm:$0xff]
    %v129 = vld [vmem:[%s2 + $0x1f8] sm:$0xff]
    %v130 = vld [vmem:[%s4] sm:$0x1]
    %v131 = vld [vmem:[%s5] sm:$0x1]
    %v132 = vld [vmem:[%s6] sm:$0xff]
    %v133 = vld [vmem:[%s6 + $0x8] sm:$0xff]
    %v134 = vld [vmem:[%s6 + $0x10] sm:$0xff]
    %v135 = vld [vmem:[%s6 + $0x18] sm:$0xff]
    %v136 = vld [vmem:[%s6 + $0x20] sm:$0xff]
    %v137 = vld [vmem:[%s6 + $0x28] sm:$0xff]
    %v138 = vld [vmem:[%s6 + $0x30] sm:$0xff]
    %v139 = vld [vmem:[%s6 + $0x38] sm:$0xff]
    %v140 = vld [vmem:[%s7] sm:$0x1]
    %v141 = vld [vmem:[%s8] sm:$0xf]
    %v142 = vld [vmem:[%s9] sm:$0x1]
    %v143 = vld [vmem:[%s10] sm:$0xff]
    %v144 = vld [vmem:[%s10 + $0x8] sm:$0xff]
    %v145 = vld [vmem:[%s10 + $0x10] sm:$0xff]
    %v146 = vld [vmem:[%s10 + $0x18] sm:$0xff]
    %v147 = vld [vmem:[%s10 + $0x20] sm:$0xff]
    %v148 = vld [vmem:[%s10 + $0x28] sm:$0xff]
    %v149 = vld [vmem:[%s10 + $0x30] sm:$0xff]
    %v150 = vld [vmem:[%s10 + $0x38] sm:$0xff]
    %v151 = vld [vmem:[%s0] sm:$0xff]
    %v152 = vld [vmem:[%s0 + $0x8] sm:$0xff]
    %v153 = vld [vmem:[%s0 + $0x10] sm:$0xff]
    %v154 = vld [vmem:[%s0 + $0x18] sm:$0xff]
    %v155 = vld [vmem:[%s0 + $0x20] sm:$0xff]
    %v156 = vld [vmem:[%s0 + $0x28] sm:$0xff]
    %v157 = vld [vmem:[%s0 + $0x30] sm:$0xff]
    %v158 = vld [vmem:[%s0 + $0x38] sm:$0xff]
    %v159 = vld [vmem:[%s0 + $0x40] sm:$0xff]
    %v160 = vld [vmem:[%s0 + $0x48] sm:$0xff]
    %v161 = vld [vmem:[%s0 + $0x50] sm:$0xff]
    %v162 = vld [vmem:[%s0 + $0x58] sm:$0xff]
    %v163 = vld [vmem:[%s0 + $0x60] sm:$0xff]
    %v164 = vld [vmem:[%s0 + $0x68] sm:$0xff]
    %v165 = vld [vmem:[%s0 + $0x70] sm:$0xff]
    %v166 = vld [vmem:[%s0 + $0x78] sm:$0xff]
    %v167 = vld [vmem:[%s0 + $0x80] sm:$0xff]
    %v168 = vld [vmem:[%s0 + $0x88] sm:$0xff]
    %v169 = vld [vmem:[%s0 + $0x90] sm:$0xff]
    %v170 = vld [vmem:[%s0 + $0x98] sm:$0xff]
    %v171 = vld [vmem:[%s0 + $0xa0] sm:$0xff]
    %v172 = vld [vmem:[%s0 + $0xa8] sm:$0xff]
    %v173 = vld [vmem:[%s0 + $0xb0] sm:$0xff]
    %v174 = vld [vmem:[%s0 + $0xb8] sm:$0xff]
    %v175 = vld [vmem:[%s0 + $0xc0] sm:$0xff]
    %v176 = vld [vmem:[%s0 + $0xc8] sm:$0xff]
    %v177 = vld [vmem:[%s0 + $0xd0] sm:$0xff]
    %v178 = vld [vmem:[%s0 + $0xd8] sm:$0xff]
    %v179 = vld [vmem:[%s0 + $0xe0] sm:$0xff]
    %v180 = vld [vmem:[%s0 + $0xe8] sm:$0xff]
    %v181 = vld [vmem:[%s0 + $0xf0] sm:$0xff]
    %v182 = vld [vmem:[%s0 + $0xf8] sm:$0xff]
    %v184 = vperm.slane %v130, 0
    %v186 = vmul.f32 %v151, %v184
    %v187 = vmul.f32 %v152, %v184
    %v188 = vmul.f32 %v153, %v184
    %v189 = vmul.f32 %v154, %v184
    %v190 = vmul.f32 %v155, %v184
    %v191 = vmul.f32 %v156, %v184
    %v192 = vmul.f32 %v157, %v184
    %v193 = vmul.f32 %v158, %v184
    %v194 = vmul.f32 %v159, %v184
    %v195 = vmul.f32 %v160, %v184
    %v196 = vmul.f32 %v161, %v184
    %v197 = vmul.f32 %v162, %v184
    %v198 = vmul.f32 %v163, %v184
    %v199 = vmul.f32 %v164, %v184
    %v200 = vmul.f32 %v165, %v184
    %v201 = vmul.f32 %v166, %v184
    %v202 = vmul.f32 %v167, %v184
    %v203 = vmul.f32 %v168, %v184
    %v204 = vmul.f32 %v169, %v184
    %v205 = vmul.f32 %v170, %v184
    %v206 = vmul.f32 %v171, %v184
    %v207 = vmul.f32 %v172, %v184
    %v208 = vmul.f32 %v173, %v184
    %v209 = vmul.f32 %v174, %v184
    %v210 = vmul.f32 %v175, %v184
    %v211 = vmul.f32 %v176, %v184
    %v212 = vmul.f32 %v177, %v184
    %v213 = vmul.f32 %v178, %v184
    %v214 = vmul.f32 %v179, %v184
    %v215 = vmul.f32 %v180, %v184
    %v216 = vmul.f32 %v181, %v184
    %v217 = vmul.f32 %v182, %v184
    %v219 = vperm.slane %v131, 0
    %v221 = vadd.f32 %v186, %v219
    %v222 = vadd.f32 %v187, %v219
    %v223 = vadd.f32 %v188, %v219
    %v224 = vadd.f32 %v189, %v219
    %v225 = vadd.f32 %v190, %v219
    %v226 = vadd.f32 %v191, %v219
    %v227 = vadd.f32 %v192, %v219
    %v228 = vadd.f32 %v193, %v219
    %v229 = vadd.f32 %v194, %v219
    %v230 = vadd.f32 %v195, %v219
    %v231 = vadd.f32 %v196, %v219
    %v232 = vadd.f32 %v197, %v219
    %v233 = vadd.f32 %v198, %v219
    %v234 = vadd.f32 %v199, %v219
    %v235 = vadd.f32 %v200, %v219
    %v236 = vadd.f32 %v201, %v219
    %v237 = vadd.f32 %v202, %v219
    %v238 = vadd.f32 %v203, %v219
    %v239 = vadd.f32 %v204, %v219
    %v240 = vadd.f32 %v205, %v219
    %v241 = vadd.f32 %v206, %v219
    %v242 = vadd.f32 %v207, %v219
    %v243 = vadd.f32 %v208, %v219
    %v244 = vadd.f32 %v209, %v219
    %v245 = vadd.f32 %v210, %v219
    %v246 = vadd.f32 %v211, %v219
    %v247 = vadd.f32 %v212, %v219
    %v248 = vadd.f32 %v213, %v219
    %v249 = vadd.f32 %v214, %v219
    %v250 = vadd.f32 %v215, %v219
    %v251 = vadd.f32 %v216, %v219
    %v252 = vadd.f32 %v217, %v219
    %vm253 = vcmask 523264
    %v254 = vsel %vm253, %v221, 0.0
    %v255 = vsel %vm253, %v222, 0.0
    %v256 = vadd.f32 %v254, %v255
    %v257 = vsel %vm253, %v223, 0.0
    %v258 = vadd.f32 %v256, %v257
    %v259 = vsel %vm253, %v224, 0.0
    %v260 = vadd.f32 %v258, %v259
    %v261 = vsel %vm253, %v225, 0.0
    %v262 = vadd.f32 %v260, %v261
    %v263 = vsel %vm253, %v226, 0.0
    %v264 = vadd.f32 %v262, %v263
    %v265 = vsel %vm253, %v227, 0.0
    %v266 = vadd.f32 %v264, %v265
    %v267 = vsel %vm253, %v228, 0.0
    %v268 = vadd.f32 %v266, %v267
    %v269 = vsel %vm253, %v229, 0.0
    %v270 = vadd.f32 %v268, %v269
    %v271 = vsel %vm253, %v230, 0.0
    %v272 = vadd.f32 %v270, %v271
    %v273 = vsel %vm253, %v231, 0.0
    %v274 = vadd.f32 %v272, %v273
    %v275 = vsel %vm253, %v232, 0.0
    %v276 = vadd.f32 %v274, %v275
    %v277 = vsel %vm253, %v233, 0.0
    %v278 = vadd.f32 %v276, %v277
    %v279 = vsel %vm253, %v234, 0.0
    %v280 = vadd.f32 %v278, %v279
    %v281 = vsel %vm253, %v235, 0.0
    %v282 = vadd.f32 %v280, %v281
    %v283 = vsel %vm253, %v236, 0.0
    %v284 = vadd.f32 %v282, %v283
    %v285 = vsel %vm253, %v237, 0.0
    %v286 = vadd.f32 %v284, %v285
    %v287 = vsel %vm253, %v238, 0.0
    %v288 = vadd.f32 %v286, %v287
    %v289 = vsel %vm253, %v239, 0.0
    %v290 = vadd.f32 %v288, %v289
    %v291 = vsel %vm253, %v240, 0.0
    %v292 = vadd.f32 %v290, %v291
    %v293 = vsel %vm253, %v241, 0.0
    %v294 = vadd.f32 %v292, %v293
    %v295 = vsel %vm253, %v242, 0.0
    %v296 = vadd.f32 %v294, %v295
    %v297 = vsel %vm253, %v243, 0.0
    %v298 = vadd.f32 %v296, %v297
    %v299 = vsel %vm253, %v244, 0.0
    %v300 = vadd.f32 %v298, %v299
    %v301 = vsel %vm253, %v245, 0.0
    %v302 = vadd.f32 %v300, %v301
    %v303 = vsel %vm253, %v246, 0.0
    %v304 = vadd.f32 %v302, %v303
    %v305 = vsel %vm253, %v247, 0.0
    %v306 = vadd.f32 %v304, %v305
    %v307 = vsel %vm253, %v248, 0.0
    %v308 = vadd.f32 %v306, %v307
    %v309 = vsel %vm253, %v249, 0.0
    %v310 = vadd.f32 %v308, %v309
    %v311 = vsel %vm253, %v250, 0.0
    %v312 = vadd.f32 %v310, %v311
    %v313 = vsel %vm253, %v251, 0.0
    %v314 = vadd.f32 %v312, %v313
    %v315 = vsel %vm253, %v252, 0.0
    %v316 = vadd.f32 %v314, %v315
    %v317 = vrot.slane %v316, 4
    %v318 = vadd.f32 %v316, %v317
    %v319 = vrot.slane %v318, 2
    %v320 = vadd.f32 %v318, %v319
    %v321 = vrot.slane %v320, 1
    %v322 = vadd.f32 %v320, %v321
    %v323 = vrcp.pop 256.0
    %v324 = vmul.f32 256.0, %v323
    %v325 = vsub.f32 1.0, %v324
    %v326 = vmul.f32 %v323, %v325
    %v327 = vadd.f32 %v323, %v326
    %vm328 = vweird.f32 %v323
    %v329 = vsel %vm328, %v323, %v327
    %v330 = vmul.f32 %v322, %v329
    %v332 = vsel %vm253, %v330, 0
    %334 = vmatpush.msra.mxu0 0.0
    %335 = vmatpush.msra.mxu0 0.0
    %336 = vmatpush.msra.mxu0 0.0
    %337 = vmatpush.msra.mxu0 0.0
    %338 = vmatpush.msra.mxu0 0.0
    %339 = vmatpush.msra.mxu0 0.0
    %340 = vmatpush.msra.mxu0 0.0
    %341 = vmatpush.msra.mxu0 0.0
    %342 = vmatpush.msra.mxu0 %v139
    %343 = vmatpush.msra.mxu0 %v138
    %344 = vmatpush.msra.mxu0 %v137
    %345 = vmatpush.msra.mxu0 %v136
    %346 = vmatpush.msra.mxu0 %v135
    %347 = vmatpush.msra.mxu0 %v134
    %348 = vmatpush.msra.mxu0 %v133
    %349 = vmatpush.msra.mxu0 %v132
    %350 = vmatmul.f32.gmra.mxu0 %v332
    %v351 = vpop.f32.mrf.mxu0
    %v352 = vadd.f32 %v140, %v351
    %353 = vdwg.mxu0
    %v354 = vmax.f32 %v352, 0.0
    %vm355 = vcmask 31744
    %v357 = vsel %vm355, %v354, 0
    %vm359 = vcmask 1043456
    %v361 = vsel %vm359, %v141, 0
    %363 = vmatpush.msra.mxu0 0.0
    %364 = vmatpush.msra.mxu0 0.0
    %365 = vmatpush.msra.mxu0 0.0
    %366 = vmatpush.msra.mxu0 0.0
    %367 = vmatpush.msra.mxu0 0.0
    %368 = vmatpush.msra.mxu0 0.0
    %369 = vmatpush.msra.mxu0 0.0
    %370 = vmatpush.msra.mxu0 0.0
    %371 = vmatpush.msra.mxu0 0.0
    %372 = vmatpush.msra.mxu0 0.0
    %373 = vmatpush.msra.mxu0 0.0
    %374 = vmatpush.msra.mxu0 0.0
    %375 = vmatpush.msra.mxu0 0.0
    %376 = vmatpush.msra.mxu0 0.0
    %377 = vmatpush.msra.mxu0 0.0
    %378 = vmatpush.msra.mxu0 %v361
    %379 = vmatmul.f32.gmra.mxu0 %v357
    %v380 = vpop.f32.mrf.mxu0
    %v381 = vadd.f32 %v142, %v380
    %382 = vdwg.mxu0
    %v383 = vxor.u32 %v381, 2147483648
    %v384 = vmul.f32 %v383, 1.442695
    %v385 = vpow.pop %v384
    %v386 = vadd.f32 %v385, 1.0
    %v387 = vrcp.pop %v386
    %v388 = vmul.f32 %v386, %v387
    %v389 = vsub.f32 1.0, %v388
    %v390 = vmul.f32 %v387, %v389
    %v391 = vadd.f32 %v387, %v390
    %vm392 = vweird.f32 %v386
    %vm393 = vweird.f32 %v387
    %vm394 = vmor %vm392, %vm393
    %v395 = vsel %vm394, %v387, %v391
    %v396 = vand.u32 2147483647, %v386
    %vm397 = vcmp.eq.f32.partialorder %v396, 8.507059e+37
    %v398 = vand.u32 %v386, 2147483648
    %v399 = vor.u32 1.1754944e-38, %v398
    %v400 = vsel %vm397, %v399, %v395
    %v401 = vmul.f32 1.0, %v400
    %v402 = vperm.slane %v401, 0
    %v403 = vmul.f32 %v221, %v402
    %v404 = vmul.f32 %v222, %v402
    %v405 = vmul.f32 %v223, %v402
    %v406 = vmul.f32 %v224, %v402
    %v407 = vmul.f32 %v225, %v402
    %v408 = vmul.f32 %v226, %v402
    %v409 = vmul.f32 %v227, %v402
    %v410 = vmul.f32 %v228, %v402
    %v411 = vmul.f32 %v229, %v402
    %v412 = vmul.f32 %v230, %v402
    %v413 = vmul.f32 %v231, %v402
    %v414 = vmul.f32 %v232, %v402
    %v415 = vmul.f32 %v233, %v402
    %v416 = vmul.f32 %v234, %v402
    %v417 = vmul.f32 %v235, %v402
    %v418 = vmul.f32 %v236, %v402
    %v419 = vmul.f32 %v237, %v402
    %v420 = vmul.f32 %v238, %v402
    %v421 = vmul.f32 %v239, %v402
    %v422 = vmul.f32 %v240, %v402
    %v423 = vmul.f32 %v241, %v402
    %v424 = vmul.f32 %v242, %v402
    %v425 = vmul.f32 %v243, %v402
    %v426 = vmul.f32 %v244, %v402
    %v427 = vmul.f32 %v245, %v402
    %v428 = vmul.f32 %v246, %v402
    %v429 = vmul.f32 %v247, %v402
    %v430 = vmul.f32 %v248, %v402
    %v431 = vmul.f32 %v249, %v402
    %v432 = vmul.f32 %v250, %v402
    %v433 = vmul.f32 %v251, %v402
    %v434 = vmul.f32 %v252, %v402
    %v435 = vpack.c.bf16 %v404, %v403
    %v436 = vpack.c.bf16 %v406, %v405
    %v437 = vpack.c.bf16 %v408, %v407
    %v438 = vpack.c.bf16 %v410, %v409
    %v439 = vpack.c.bf16 %v412, %v411
    %v440 = vpack.c.bf16 %v414, %v413
    %v441 = vpack.c.bf16 %v416, %v415
    %v442 = vpack.c.bf16 %v418, %v417
    %v443 = vpack.c.bf16 %v420, %v419
    %v444 = vpack.c.bf16 %v422, %v421
    %v445 = vpack.c.bf16 %v424, %v423
    %v446 = vpack.c.bf16 %v426, %v425
    %v447 = vpack.c.bf16 %v428, %v427
    %v448 = vpack.c.bf16 %v430, %v429
    %v449 = vpack.c.bf16 %v432, %v431
    %v450 = vpack.c.bf16 %v434, %v433
    %v451 = vpack.c.bf16 %v144, %v143
    %v452 = vpack.c.bf16 %v146, %v145
    %v453 = vpack.c.bf16 %v148, %v147
    %v454 = vpack.c.bf16 %v150, %v149
    %v456 = vsel %vm253, %v435, 0
    %v459 = vsel %vm253, %v436, 0
    %v462 = vsel %vm253, %v437, 0
    %v465 = vsel %vm253, %v438, 0
    %v468 = vsel %vm253, %v439, 0
    %v471 = vsel %vm253, %v440, 0
    %v474 = vsel %vm253, %v441, 0
    %v477 = vsel %vm253, %v442, 0
    %v480 = vsel %vm253, %v443, 0
    %v483 = vsel %vm253, %v444, 0
    %v486 = vsel %vm253, %v445, 0
    %v489 = vsel %vm253, %v446, 0
    %v492 = vsel %vm253, %v447, 0
    %v495 = vsel %vm253, %v448, 0
    %v498 = vsel %vm253, %v449, 0
    %v501 = vsel %vm253, %v450, 0
    %503 = vmatpush.bf16.msra.mxu0 0
    %504 = vmatpush.bf16.msra.mxu0 0
    %505 = vmatpush.bf16.msra.mxu0 0
    %506 = vmatpush.bf16.msra.mxu0 0
    %507 = vmatpush.bf16.msra.mxu0 %v454
    %508 = vmatpush.bf16.msra.mxu0 %v453
    %509 = vmatpush.bf16.msra.mxu0 %v452
    %510 = vmatpush.bf16.msra.mxu0 %v451
    %511 = vmatmul.bf16.gmra.mxu0 %v456
    %v512 = vpop.f32.mrf.mxu0
    %v513 = vadd.f32 0.0, %v512
    %v514 = vpop.f32.mrf.mxu0
    %v515 = vadd.f32 0.0, %v514
    %516 = vmatmul.bf16.gmra.mxu0 %v459
    %v517 = vpop.f32.mrf.mxu0
    %v518 = vadd.f32 0.0, %v517
    %v519 = vpop.f32.mrf.mxu0
    %v520 = vadd.f32 0.0, %v519
    %521 = vmatmul.bf16.gmra.mxu0 %v462
    %v522 = vpop.f32.mrf.mxu0
    %v523 = vadd.f32 0.0, %v522
    %v524 = vpop.f32.mrf.mxu0
    %v525 = vadd.f32 0.0, %v524
    %526 = vmatmul.bf16.gmra.mxu0 %v465
    %v527 = vpop.f32.mrf.mxu0
    %v528 = vadd.f32 0.0, %v527
    %v529 = vpop.f32.mrf.mxu0
    %v530 = vadd.f32 0.0, %v529
    %531 = vmatmul.bf16.gmra.mxu0 %v468
    %v532 = vpop.f32.mrf.mxu0
    %v533 = vadd.f32 0.0, %v532
    %v534 = vpop.f32.mrf.mxu0
    %v535 = vadd.f32 0.0, %v534
    %536 = vmatmul.bf16.gmra.mxu0 %v471
    %v537 = vpop.f32.mrf.mxu0
    %v538 = vadd.f32 0.0, %v537
    %v539 = vpop.f32.mrf.mxu0
    %v540 = vadd.f32 0.0, %v539
    %541 = vmatmul.bf16.gmra.mxu0 %v474
    %v542 = vpop.f32.mrf.mxu0
    %v543 = vadd.f32 0.0, %v542
    %v544 = vpop.f32.mrf.mxu0
    %v545 = vadd.f32 0.0, %v544
    %546 = vmatmul.bf16.gmra.mxu0 %v477
    %v547 = vpop.f32.mrf.mxu0
    %v548 = vadd.f32 0.0, %v547
    %v549 = vpop.f32.mrf.mxu0
    %v550 = vadd.f32 0.0, %v549
    %551 = vmatmul.bf16.gmra.mxu0 %v480
    %v552 = vpop.f32.mrf.mxu0
    %v553 = vadd.f32 0.0, %v552
    %v554 = vpop.f32.mrf.mxu0
    %v555 = vadd.f32 0.0, %v554
    %556 = vmatmul.bf16.gmra.mxu0 %v483
    %v557 = vpop.f32.mrf.mxu0
    %v558 = vadd.f32 0.0, %v557
    %v559 = vpop.f32.mrf.mxu0
    %v560 = vadd.f32 0.0, %v559
    %561 = vmatmul.bf16.gmra.mxu0 %v486
    %v562 = vpop.f32.mrf.mxu0
    %v563 = vadd.f32 0.0, %v562
    %v564 = vpop.f32.mrf.mxu0
    %v565 = vadd.f32 0.0, %v564
    %566 = vmatmul.bf16.gmra.mxu0 %v489
    %v567 = vpop.f32.mrf.mxu0
    %v568 = vadd.f32 0.0, %v567
    %v569 = vpop.f32.mrf.mxu0
    %v570 = vadd.f32 0.0, %v569
    %571 = vmatmul.bf16.gmra.mxu0 %v492
    %v572 = vpop.f32.mrf.mxu0
    %v573 = vadd.f32 0.0, %v572
    %v574 = vpop.f32.mrf.mxu0
    %v575 = vadd.f32 0.0, %v574
    %576 = vmatmul.bf16.gmra.mxu0 %v495
    %v577 = vpop.f32.mrf.mxu0
    %v578 = vadd.f32 0.0, %v577
    %v579 = vpop.f32.mrf.mxu0
    %v580 = vadd.f32 0.0, %v579
    %581 = vmatmul.bf16.gmra.mxu0 %v498
    %v582 = vpop.f32.mrf.mxu0
    %v583 = vadd.f32 0.0, %v582
    %v584 = vpop.f32.mrf.mxu0
    %v585 = vadd.f32 0.0, %v584
    %586 = vmatmul.bf16.gmra.mxu0 %v501
    %v587 = vpop.f32.mrf.mxu0
    %v588 = vadd.f32 0.0, %v587
    %v589 = vpop.f32.mrf.mxu0
    %v590 = vadd.f32 0.0, %v589
    %591 = vdwg.mxu0
    %v592 = vxor.u32 %v513, 2147483648
    %v593 = vxor.u32 %v515, 2147483648
    %v594 = vxor.u32 %v518, 2147483648
    %v595 = vxor.u32 %v520, 2147483648
    %v596 = vxor.u32 %v523, 2147483648
    %v597 = vxor.u32 %v525, 2147483648
    %v598 = vxor.u32 %v528, 2147483648
    %v599 = vxor.u32 %v530, 2147483648
    %v600 = vxor.u32 %v533, 2147483648
    %v601 = vxor.u32 %v535, 2147483648
    %v602 = vxor.u32 %v538, 2147483648
    %v603 = vxor.u32 %v540, 2147483648
    %v604 = vxor.u32 %v543, 2147483648
    %v605 = vxor.u32 %v545, 2147483648
    %v606 = vxor.u32 %v548, 2147483648
    %v607 = vxor.u32 %v550, 2147483648
    %v608 = vxor.u32 %v553, 2147483648
    %v609 = vxor.u32 %v555, 2147483648
    %v610 = vxor.u32 %v558, 2147483648
    %v611 = vxor.u32 %v560, 2147483648
    %v612 = vxor.u32 %v563, 2147483648
    %v613 = vxor.u32 %v565, 2147483648
    %v614 = vxor.u32 %v568, 2147483648
    %v615 = vxor.u32 %v570, 2147483648
    %v616 = vxor.u32 %v573, 2147483648
    %v617 = vxor.u32 %v575, 2147483648
    %v618 = vxor.u32 %v578, 2147483648
    %v619 = vxor.u32 %v580, 2147483648
    %v620 = vxor.u32 %v583, 2147483648
    %v621 = vxor.u32 %v585, 2147483648
    %v622 = vxor.u32 %v588, 2147483648
    %v623 = vxor.u32 %v590, 2147483648
    %v624 = vmul.f32 %v592, 1.442695
    %v625 = vpow.pop %v624
    %v626 = vmul.f32 %v593, 1.442695
    %v627 = vpow.pop %v626
    %v628 = vmul.f32 %v594, 1.442695
    %v629 = vpow.pop %v628
    %v630 = vmul.f32 %v595, 1.442695
    %v631 = vpow.pop %v630
    %v632 = vmul.f32 %v596, 1.442695
    %v633 = vpow.pop %v632
    %v634 = vmul.f32 %v597, 1.442695
    %v635 = vpow.pop %v634
    %v636 = vmul.f32 %v598, 1.442695
    %v637 = vpow.pop %v636
    %v638 = vmul.f32 %v599, 1.442695
    %v639 = vpow.pop %v638
    %v640 = vmul.f32 %v600, 1.442695
    %v641 = vpow.pop %v640
    %v642 = vmul.f32 %v601, 1.442695
    %v643 = vpow.pop %v642
    %v644 = vmul.f32 %v602, 1.442695
    %v645 = vpow.pop %v644
    %v646 = vmul.f32 %v603, 1.442695
    %v647 = vpow.pop %v646
    %v648 = vmul.f32 %v604, 1.442695
    %v649 = vpow.pop %v648
    %v650 = vmul.f32 %v605, 1.442695
    %v651 = vpow.pop %v650
    %v652 = vmul.f32 %v606, 1.442695
    %v653 = vpow.pop %v652
    %v654 = vmul.f32 %v607, 1.442695
    %v655 = vpow.pop %v654
    %v656 = vmul.f32 %v608, 1.442695
    %v657 = vpow.pop %v656
    %v658 = vmul.f32 %v609, 1.442695
    %v659 = vpow.pop %v658
    %v660 = vmul.f32 %v610, 1.442695
    %v661 = vpow.pop %v660
    %v662 = vmul.f32 %v611, 1.442695
    %v663 = vpow.pop %v662
    %v664 = vmul.f32 %v612, 1.442695
    %v665 = vpow.pop %v664
    %v666 = vmul.f32 %v613, 1.442695
    %v667 = vpow.pop %v666
    %v668 = vmul.f32 %v614, 1.442695
    %v669 = vpow.pop %v668
    %v670 = vmul.f32 %v615, 1.442695
    %v671 = vpow.pop %v670
    %v672 = vmul.f32 %v616, 1.442695
    %v673 = vpow.pop %v672
    %v674 = vmul.f32 %v617, 1.442695
    %v675 = vpow.pop %v674
    %v676 = vmul.f32 %v618, 1.442695
    %v677 = vpow.pop %v676
    %v678 = vmul.f32 %v619, 1.442695
    %v679 = vpow.pop %v678
    %v680 = vmul.f32 %v620, 1.442695
    %v681 = vpow.pop %v680
    %v682 = vmul.f32 %v621, 1.442695
    %v683 = vpow.pop %v682
    %v684 = vmul.f32 %v622, 1.442695
    %v685 = vpow.pop %v684
    %v686 = vmul.f32 %v623, 1.442695
    %v687 = vpow.pop %v686
    %v688 = vadd.f32 %v625, 1.0
    %v689 = vadd.f32 %v627, 1.0
    %v690 = vadd.f32 %v629, 1.0
    %v691 = vadd.f32 %v631, 1.0
    %v692 = vadd.f32 %v633, 1.0
    %v693 = vadd.f32 %v635, 1.0
    %v694 = vadd.f32 %v637, 1.0
    %v695 = vadd.f32 %v639, 1.0
    %v696 = vadd.f32 %v641, 1.0
    %v697 = vadd.f32 %v643, 1.0
    %v698 = vadd.f32 %v645, 1.0
    %v699 = vadd.f32 %v647, 1.0
    %v700 = vadd.f32 %v649, 1.0
    %v701 = vadd.f32 %v651, 1.0
    %v702 = vadd.f32 %v653, 1.0
    %v703 = vadd.f32 %v655, 1.0
    %v704 = vadd.f32 %v657, 1.0
    %v705 = vadd.f32 %v659, 1.0
    %v706 = vadd.f32 %v661, 1.0
    %v707 = vadd.f32 %v663, 1.0
    %v708 = vadd.f32 %v665, 1.0
    %v709 = vadd.f32 %v667, 1.0
    %v710 = vadd.f32 %v669, 1.0
    %v711 = vadd.f32 %v671, 1.0
    %v712 = vadd.f32 %v673, 1.0
    %v713 = vadd.f32 %v675, 1.0
    %v714 = vadd.f32 %v677, 1.0
    %v715 = vadd.f32 %v679, 1.0
    %v716 = vadd.f32 %v681, 1.0
    %v717 = vadd.f32 %v683, 1.0
    %v718 = vadd.f32 %v685, 1.0
    %v719 = vadd.f32 %v687, 1.0
    %v720 = vrcp.pop %v688
    %v721 = vmul.f32 %v688, %v720
    %v722 = vsub.f32 1.0, %v721
    %v723 = vmul.f32 %v720, %v722
    %v724 = vadd.f32 %v720, %v723
    %vm725 = vweird.f32 %v688
    %vm726 = vweird.f32 %v720
    %vm727 = vmor %vm725, %vm726
    %v728 = vsel %vm727, %v720, %v724
    %v729 = vand.u32 2147483647, %v688
    %vm730 = vcmp.eq.f32.partialorder %v729, 8.507059e+37
    %v731 = vand.u32 %v688, 2147483648
    %v732 = vor.u32 1.1754944e-38, %v731
    %v733 = vsel %vm730, %v732, %v728
    %v734 = vmul.f32 1.0, %v733
    %v735 = vrcp.pop %v689
    %v736 = vmul.f32 %v689, %v735
    %v737 = vsub.f32 1.0, %v736
    %v738 = vmul.f32 %v735, %v737
    %v739 = vadd.f32 %v735, %v738
    %vm740 = vweird.f32 %v689
    %vm741 = vweird.f32 %v735
    %vm742 = vmor %vm740, %vm741
    %v743 = vsel %vm742, %v735, %v739
    %v744 = vand.u32 2147483647, %v689
    %vm745 = vcmp.eq.f32.partialorder %v744, 8.507059e+37
    %v746 = vand.u32 %v689, 2147483648
    %v747 = vor.u32 1.1754944e-38, %v746
    %v748 = vsel %vm745, %v747, %v743
    %v749 = vmul.f32 1.0, %v748
    %v750 = vrcp.pop %v690
    %v751 = vmul.f32 %v690, %v750
    %v752 = vsub.f32 1.0, %v751
    %v753 = vmul.f32 %v750, %v752
    %v754 = vadd.f32 %v750, %v753
    %vm755 = vweird.f32 %v690
    %vm756 = vweird.f32 %v750
    %vm757 = vmor %vm755, %vm756
    %v758 = vsel %vm757, %v750, %v754
    %v759 = vand.u32 2147483647, %v690
    %vm760 = vcmp.eq.f32.partialorder %v759, 8.507059e+37
    %v761 = vand.u32 %v690, 2147483648
    %v762 = vor.u32 1.1754944e-38, %v761
    %v763 = vsel %vm760, %v762, %v758
    %v764 = vmul.f32 1.0, %v763
    %v765 = vrcp.pop %v691
    %v766 = vmul.f32 %v691, %v765
    %v767 = vsub.f32 1.0, %v766
    %v768 = vmul.f32 %v765, %v767
    %v769 = vadd.f32 %v765, %v768
    %vm770 = vweird.f32 %v691
    %vm771 = vweird.f32 %v765
    %vm772 = vmor %vm770, %vm771
    %v773 = vsel %vm772, %v765, %v769
    %v774 = vand.u32 2147483647, %v691
    %vm775 = vcmp.eq.f32.partialorder %v774, 8.507059e+37
    %v776 = vand.u32 %v691, 2147483648
    %v777 = vor.u32 1.1754944e-38, %v776
    %v778 = vsel %vm775, %v777, %v773
    %v779 = vmul.f32 1.0, %v778
    %v780 = vrcp.pop %v692
    %v781 = vmul.f32 %v692, %v780
    %v782 = vsub.f32 1.0, %v781
    %v783 = vmul.f32 %v780, %v782
    %v784 = vadd.f32 %v780, %v783
    %vm785 = vweird.f32 %v692
    %vm786 = vweird.f32 %v780
    %vm787 = vmor %vm785, %vm786
    %v788 = vsel %vm787, %v780, %v784
    %v789 = vand.u32 2147483647, %v692
    %vm790 = vcmp.eq.f32.partialorder %v789, 8.507059e+37
    %v791 = vand.u32 %v692, 2147483648
    %v792 = vor.u32 1.1754944e-38, %v791
    %v793 = vsel %vm790, %v792, %v788
    %v794 = vmul.f32 1.0, %v793
    %v795 = vrcp.pop %v693
    %v796 = vmul.f32 %v693, %v795
    %v797 = vsub.f32 1.0, %v796
    %v798 = vmul.f32 %v795, %v797
    %v799 = vadd.f32 %v795, %v798
    %vm800 = vweird.f32 %v693
    %vm801 = vweird.f32 %v795
    %vm802 = vmor %vm800, %vm801
    %v803 = vsel %vm802, %v795, %v799
    %v804 = vand.u32 2147483647, %v693
    %vm805 = vcmp.eq.f32.partialorder %v804, 8.507059e+37
    %v806 = vand.u32 %v693, 2147483648
    %v807 = vor.u32 1.1754944e-38, %v806
    %v808 = vsel %vm805, %v807, %v803
    %v809 = vmul.f32 1.0, %v808
    %v810 = vrcp.pop %v694
    %v811 = vmul.f32 %v694, %v810
    %v812 = vsub.f32 1.0, %v811
    %v813 = vmul.f32 %v810, %v812
    %v814 = vadd.f32 %v810, %v813
    %vm815 = vweird.f32 %v694
    %vm816 = vweird.f32 %v810
    %vm817 = vmor %vm815, %vm816
    %v818 = vsel %vm817, %v810, %v814
    %v819 = vand.u32 2147483647, %v694
    %vm820 = vcmp.eq.f32.partialorder %v819, 8.507059e+37
    %v821 = vand.u32 %v694, 2147483648
    %v822 = vor.u32 1.1754944e-38, %v821
    %v823 = vsel %vm820, %v822, %v818
    %v824 = vmul.f32 1.0, %v823
    %v825 = vrcp.pop %v695
    %v826 = vmul.f32 %v695, %v825
    %v827 = vsub.f32 1.0, %v826
    %v828 = vmul.f32 %v825, %v827
    %v829 = vadd.f32 %v825, %v828
    %vm830 = vweird.f32 %v695
    %vm831 = vweird.f32 %v825
    %vm832 = vmor %vm830, %vm831
    %v833 = vsel %vm832, %v825, %v829
    %v834 = vand.u32 2147483647, %v695
    %vm835 = vcmp.eq.f32.partialorder %v834, 8.507059e+37
    %v836 = vand.u32 %v695, 2147483648
    %v837 = vor.u32 1.1754944e-38, %v836
    %v838 = vsel %vm835, %v837, %v833
    %v839 = vmul.f32 1.0, %v838
    %v840 = vrcp.pop %v696
    %v841 = vmul.f32 %v696, %v840
    %v842 = vsub.f32 1.0, %v841
    %v843 = vmul.f32 %v840, %v842
    %v844 = vadd.f32 %v840, %v843
    %vm845 = vweird.f32 %v696
    %vm846 = vweird.f32 %v840
    %vm847 = vmor %vm845, %vm846
    %v848 = vsel %vm847, %v840, %v844
    %v849 = vand.u32 2147483647, %v696
    %vm850 = vcmp.eq.f32.partialorder %v849, 8.507059e+37
    %v851 = vand.u32 %v696, 2147483648
    %v852 = vor.u32 1.1754944e-38, %v851
    %v853 = vsel %vm850, %v852, %v848
    %v854 = vmul.f32 1.0, %v853
    %v855 = vrcp.pop %v697
    %v856 = vmul.f32 %v697, %v855
    %v857 = vsub.f32 1.0, %v856
    %v858 = vmul.f32 %v855, %v857
    %v859 = vadd.f32 %v855, %v858
    %vm860 = vweird.f32 %v697
    %vm861 = vweird.f32 %v855
    %vm862 = vmor %vm860, %vm861
    %v863 = vsel %vm862, %v855, %v859
    %v864 = vand.u32 2147483647, %v697
    %vm865 = vcmp.eq.f32.partialorder %v864, 8.507059e+37
    %v866 = vand.u32 %v697, 2147483648
    %v867 = vor.u32 1.1754944e-38, %v866
    %v868 = vsel %vm865, %v867, %v863
    %v869 = vmul.f32 1.0, %v868
    %v870 = vrcp.pop %v698
    %v871 = vmul.f32 %v698, %v870
    %v872 = vsub.f32 1.0, %v871
    %v873 = vmul.f32 %v870, %v872
    %v874 = vadd.f32 %v870, %v873
    %vm875 = vweird.f32 %v698
    %vm876 = vweird.f32 %v870
    %vm877 = vmor %vm875, %vm876
    %v878 = vsel %vm877, %v870, %v874
    %v879 = vand.u32 2147483647, %v698
    %vm880 = vcmp.eq.f32.partialorder %v879, 8.507059e+37
    %v881 = vand.u32 %v698, 2147483648
    %v882 = vor.u32 1.1754944e-38, %v881
    %v883 = vsel %vm880, %v882, %v878
    %v884 = vmul.f32 1.0, %v883
    %v885 = vrcp.pop %v699
    %v886 = vmul.f32 %v699, %v885
    %v887 = vsub.f32 1.0, %v886
    %v888 = vmul.f32 %v885, %v887
    %v889 = vadd.f32 %v885, %v888
    %vm890 = vweird.f32 %v699
    %vm891 = vweird.f32 %v885
    %vm892 = vmor %vm890, %vm891
    %v893 = vsel %vm892, %v885, %v889
    %v894 = vand.u32 2147483647, %v699
    %vm895 = vcmp.eq.f32.partialorder %v894, 8.507059e+37
    %v896 = vand.u32 %v699, 2147483648
    %v897 = vor.u32 1.1754944e-38, %v896
    %v898 = vsel %vm895, %v897, %v893
    %v899 = vmul.f32 1.0, %v898
    %v900 = vrcp.pop %v700
    %v901 = vmul.f32 %v700, %v900
    %v902 = vsub.f32 1.0, %v901
    %v903 = vmul.f32 %v900, %v902
    %v904 = vadd.f32 %v900, %v903
    %vm905 = vweird.f32 %v700
    %vm906 = vweird.f32 %v900
    %vm907 = vmor %vm905, %vm906
    %v908 = vsel %vm907, %v900, %v904
    %v909 = vand.u32 2147483647, %v700
    %vm910 = vcmp.eq.f32.partialorder %v909, 8.507059e+37
    %v911 = vand.u32 %v700, 2147483648
    %v912 = vor.u32 1.1754944e-38, %v911
    %v913 = vsel %vm910, %v912, %v908
    %v914 = vmul.f32 1.0, %v913
    %v915 = vrcp.pop %v701
    %v916 = vmul.f32 %v701, %v915
    %v917 = vsub.f32 1.0, %v916
    %v918 = vmul.f32 %v915, %v917
    %v919 = vadd.f32 %v915, %v918
    %vm920 = vweird.f32 %v701
    %vm921 = vweird.f32 %v915
    %vm922 = vmor %vm920, %vm921
    %v923 = vsel %vm922, %v915, %v919
    %v924 = vand.u32 2147483647, %v701
    %vm925 = vcmp.eq.f32.partialorder %v924, 8.507059e+37
    %v926 = vand.u32 %v701, 2147483648
    %v927 = vor.u32 1.1754944e-38, %v926
    %v928 = vsel %vm925, %v927, %v923
    %v929 = vmul.f32 1.0, %v928
    %v930 = vrcp.pop %v702
    %v931 = vmul.f32 %v702, %v930
    %v932 = vsub.f32 1.0, %v931
    %v933 = vmul.f32 %v930, %v932
    %v934 = vadd.f32 %v930, %v933
    %vm935 = vweird.f32 %v702
    %vm936 = vweird.f32 %v930
    %vm937 = vmor %vm935, %vm936
    %v938 = vsel %vm937, %v930, %v934
    %v939 = vand.u32 2147483647, %v702
    %vm940 = vcmp.eq.f32.partialorder %v939, 8.507059e+37
    %v941 = vand.u32 %v702, 2147483648
    %v942 = vor.u32 1.1754944e-38, %v941
    %v943 = vsel %vm940, %v942, %v938
    %v944 = vmul.f32 1.0, %v943
    %v945 = vrcp.pop %v703
    %v946 = vmul.f32 %v703, %v945
    %v947 = vsub.f32 1.0, %v946
    %v948 = vmul.f32 %v945, %v947
    %v949 = vadd.f32 %v945, %v948
    %vm950 = vweird.f32 %v703
    %vm951 = vweird.f32 %v945
    %vm952 = vmor %vm950, %vm951
    %v953 = vsel %vm952, %v945, %v949
    %v954 = vand.u32 2147483647, %v703
    %vm955 = vcmp.eq.f32.partialorder %v954, 8.507059e+37
    %v956 = vand.u32 %v703, 2147483648
    %v957 = vor.u32 1.1754944e-38, %v956
    %v958 = vsel %vm955, %v957, %v953
    %v959 = vmul.f32 1.0, %v958
    %v960 = vrcp.pop %v704
    %v961 = vmul.f32 %v704, %v960
    %v962 = vsub.f32 1.0, %v961
    %v963 = vmul.f32 %v960, %v962
    %v964 = vadd.f32 %v960, %v963
    %vm965 = vweird.f32 %v704
    %vm966 = vweird.f32 %v960
    %vm967 = vmor %vm965, %vm966
    %v968 = vsel %vm967, %v960, %v964
    %v969 = vand.u32 2147483647, %v704
    %vm970 = vcmp.eq.f32.partialorder %v969, 8.507059e+37
    %v971 = vand.u32 %v704, 2147483648
    %v972 = vor.u32 1.1754944e-38, %v971
    %v973 = vsel %vm970, %v972, %v968
    %v974 = vmul.f32 1.0, %v973
    %v975 = vrcp.pop %v705
    %v976 = vmul.f32 %v705, %v975
    %v977 = vsub.f32 1.0, %v976
    %v978 = vmul.f32 %v975, %v977
    %v979 = vadd.f32 %v975, %v978
    %vm980 = vweird.f32 %v705
    %vm981 = vweird.f32 %v975
    %vm982 = vmor %vm980, %vm981
    %v983 = vsel %vm982, %v975, %v979
    %v984 = vand.u32 2147483647, %v705
    %vm985 = vcmp.eq.f32.partialorder %v984, 8.507059e+37
    %v986 = vand.u32 %v705, 2147483648
    %v987 = vor.u32 1.1754944e-38, %v986
    %v988 = vsel %vm985, %v987, %v983
    %v989 = vmul.f32 1.0, %v988
    %v990 = vrcp.pop %v706
    %v991 = vmul.f32 %v706, %v990
    %v992 = vsub.f32 1.0, %v991
    %v993 = vmul.f32 %v990, %v992
    %v994 = vadd.f32 %v990, %v993
    %vm995 = vweird.f32 %v706
    %vm996 = vweird.f32 %v990
    %vm997 = vmor %vm995, %vm996
    %v998 = vsel %vm997, %v990, %v994
    %v999 = vand.u32 2147483647, %v706
    %vm1000 = vcmp.eq.f32.partialorder %v999, 8.507059e+37
    %v1001 = vand.u32 %v706, 2147483648
    %v1002 = vor.u32 1.1754944e-38, %v1001
    %v1003 = vsel %vm1000, %v1002, %v998
    %v1004 = vmul.f32 1.0, %v1003
    %v1005 = vrcp.pop %v707
    %v1006 = vmul.f32 %v707, %v1005
    %v1007 = vsub.f32 1.0, %v1006
    %v1008 = vmul.f32 %v1005, %v1007
    %v1009 = vadd.f32 %v1005, %v1008
    %vm1010 = vweird.f32 %v707
    %vm1011 = vweird.f32 %v1005
    %vm1012 = vmor %vm1010, %vm1011
    %v1013 = vsel %vm1012, %v1005, %v1009
    %v1014 = vand.u32 2147483647, %v707
    %vm1015 = vcmp.eq.f32.partialorder %v1014, 8.507059e+37
    %v1016 = vand.u32 %v707, 2147483648
    %v1017 = vor.u32 1.1754944e-38, %v1016
    %v1018 = vsel %vm1015, %v1017, %v1013
    %v1019 = vmul.f32 1.0, %v1018
    %v1020 = vrcp.pop %v708
    %v1021 = vmul.f32 %v708, %v1020
    %v1022 = vsub.f32 1.0, %v1021
    %v1023 = vmul.f32 %v1020, %v1022
    %v1024 = vadd.f32 %v1020, %v1023
    %vm1025 = vweird.f32 %v708
    %vm1026 = vweird.f32 %v1020
    %vm1027 = vmor %vm1025, %vm1026
    %v1028 = vsel %vm1027, %v1020, %v1024
    %v1029 = vand.u32 2147483647, %v708
    %vm1030 = vcmp.eq.f32.partialorder %v1029, 8.507059e+37
    %v1031 = vand.u32 %v708, 2147483648
    %v1032 = vor.u32 1.1754944e-38, %v1031
    %v1033 = vsel %vm1030, %v1032, %v1028
    %v1034 = vmul.f32 1.0, %v1033
    %v1035 = vrcp.pop %v709
    %v1036 = vmul.f32 %v709, %v1035
    %v1037 = vsub.f32 1.0, %v1036
    %v1038 = vmul.f32 %v1035, %v1037
    %v1039 = vadd.f32 %v1035, %v1038
    %vm1040 = vweird.f32 %v709
    %vm1041 = vweird.f32 %v1035
    %vm1042 = vmor %vm1040, %vm1041
    %v1043 = vsel %vm1042, %v1035, %v1039
    %v1044 = vand.u32 2147483647, %v709
    %vm1045 = vcmp.eq.f32.partialorder %v1044, 8.507059e+37
    %v1046 = vand.u32 %v709, 2147483648
    %v1047 = vor.u32 1.1754944e-38, %v1046
    %v1048 = vsel %vm1045, %v1047, %v1043
    %v1049 = vmul.f32 1.0, %v1048
    %v1050 = vrcp.pop %v710
    %v1051 = vmul.f32 %v710, %v1050
    %v1052 = vsub.f32 1.0, %v1051
    %v1053 = vmul.f32 %v1050, %v1052
    %v1054 = vadd.f32 %v1050, %v1053
    %vm1055 = vweird.f32 %v710
    %vm1056 = vweird.f32 %v1050
    %vm1057 = vmor %vm1055, %vm1056
    %v1058 = vsel %vm1057, %v1050, %v1054
    %v1059 = vand.u32 2147483647, %v710
    %vm1060 = vcmp.eq.f32.partialorder %v1059, 8.507059e+37
    %v1061 = vand.u32 %v710, 2147483648
    %v1062 = vor.u32 1.1754944e-38, %v1061
    %v1063 = vsel %vm1060, %v1062, %v1058
    %v1064 = vmul.f32 1.0, %v1063
    %v1065 = vrcp.pop %v711
    %v1066 = vmul.f32 %v711, %v1065
    %v1067 = vsub.f32 1.0, %v1066
    %v1068 = vmul.f32 %v1065, %v1067
    %v1069 = vadd.f32 %v1065, %v1068
    %vm1070 = vweird.f32 %v711
    %vm1071 = vweird.f32 %v1065
    %vm1072 = vmor %vm1070, %vm1071
    %v1073 = vsel %vm1072, %v1065, %v1069
    %v1074 = vand.u32 2147483647, %v711
    %vm1075 = vcmp.eq.f32.partialorder %v1074, 8.507059e+37
    %v1076 = vand.u32 %v711, 2147483648
    %v1077 = vor.u32 1.1754944e-38, %v1076
    %v1078 = vsel %vm1075, %v1077, %v1073
    %v1079 = vmul.f32 1.0, %v1078
    %v1080 = vrcp.pop %v712
    %v1081 = vmul.f32 %v712, %v1080
    %v1082 = vsub.f32 1.0, %v1081
    %v1083 = vmul.f32 %v1080, %v1082
    %v1084 = vadd.f32 %v1080, %v1083
    %vm1085 = vweird.f32 %v712
    %vm1086 = vweird.f32 %v1080
    %vm1087 = vmor %vm1085, %vm1086
    %v1088 = vsel %vm1087, %v1080, %v1084
    %v1089 = vand.u32 2147483647, %v712
    %vm1090 = vcmp.eq.f32.partialorder %v1089, 8.507059e+37
    %v1091 = vand.u32 %v712, 2147483648
    %v1092 = vor.u32 1.1754944e-38, %v1091
    %v1093 = vsel %vm1090, %v1092, %v1088
    %v1094 = vmul.f32 1.0, %v1093
    %v1095 = vrcp.pop %v713
    %v1096 = vmul.f32 %v713, %v1095
    %v1097 = vsub.f32 1.0, %v1096
    %v1098 = vmul.f32 %v1095, %v1097
    %v1099 = vadd.f32 %v1095, %v1098
    %vm1100 = vweird.f32 %v713
    %vm1101 = vweird.f32 %v1095
    %vm1102 = vmor %vm1100, %vm1101
    %v1103 = vsel %vm1102, %v1095, %v1099
    %v1104 = vand.u32 2147483647, %v713
    %vm1105 = vcmp.eq.f32.partialorder %v1104, 8.507059e+37
    %v1106 = vand.u32 %v713, 2147483648
    %v1107 = vor.u32 1.1754944e-38, %v1106
    %v1108 = vsel %vm1105, %v1107, %v1103
    %v1109 = vmul.f32 1.0, %v1108
    %v1110 = vrcp.pop %v714
    %v1111 = vmul.f32 %v714, %v1110
    %v1112 = vsub.f32 1.0, %v1111
    %v1113 = vmul.f32 %v1110, %v1112
    %v1114 = vadd.f32 %v1110, %v1113
    %vm1115 = vweird.f32 %v714
    %vm1116 = vweird.f32 %v1110
    %vm1117 = vmor %vm1115, %vm1116
    %v1118 = vsel %vm1117, %v1110, %v1114
    %v1119 = vand.u32 2147483647, %v714
    %vm1120 = vcmp.eq.f32.partialorder %v1119, 8.507059e+37
    %v1121 = vand.u32 %v714, 2147483648
    %v1122 = vor.u32 1.1754944e-38, %v1121
    %v1123 = vsel %vm1120, %v1122, %v1118
    %v1124 = vmul.f32 1.0, %v1123
    %v1125 = vrcp.pop %v715
    %v1126 = vmul.f32 %v715, %v1125
    %v1127 = vsub.f32 1.0, %v1126
    %v1128 = vmul.f32 %v1125, %v1127
    %v1129 = vadd.f32 %v1125, %v1128
    %vm1130 = vweird.f32 %v715
    %vm1131 = vweird.f32 %v1125
    %vm1132 = vmor %vm1130, %vm1131
    %v1133 = vsel %vm1132, %v1125, %v1129
    %v1134 = vand.u32 2147483647, %v715
    %vm1135 = vcmp.eq.f32.partialorder %v1134, 8.507059e+37
    %v1136 = vand.u32 %v715, 2147483648
    %v1137 = vor.u32 1.1754944e-38, %v1136
    %v1138 = vsel %vm1135, %v1137, %v1133
    %v1139 = vmul.f32 1.0, %v1138
    %v1140 = vrcp.pop %v716
    %v1141 = vmul.f32 %v716, %v1140
    %v1142 = vsub.f32 1.0, %v1141
    %v1143 = vmul.f32 %v1140, %v1142
    %v1144 = vadd.f32 %v1140, %v1143
    %vm1145 = vweird.f32 %v716
    %vm1146 = vweird.f32 %v1140
    %vm1147 = vmor %vm1145, %vm1146
    %v1148 = vsel %vm1147, %v1140, %v1144
    %v1149 = vand.u32 2147483647, %v716
    %vm1150 = vcmp.eq.f32.partialorder %v1149, 8.507059e+37
    %v1151 = vand.u32 %v716, 2147483648
    %v1152 = vor.u32 1.1754944e-38, %v1151
    %v1153 = vsel %vm1150, %v1152, %v1148
    %v1154 = vmul.f32 1.0, %v1153
    %v1155 = vrcp.pop %v717
    %v1156 = vmul.f32 %v717, %v1155
    %v1157 = vsub.f32 1.0, %v1156
    %v1158 = vmul.f32 %v1155, %v1157
    %v1159 = vadd.f32 %v1155, %v1158
    %vm1160 = vweird.f32 %v717
    %vm1161 = vweird.f32 %v1155
    %vm1162 = vmor %vm1160, %vm1161
    %v1163 = vsel %vm1162, %v1155, %v1159
    %v1164 = vand.u32 2147483647, %v717
    %vm1165 = vcmp.eq.f32.partialorder %v1164, 8.507059e+37
    %v1166 = vand.u32 %v717, 2147483648
    %v1167 = vor.u32 1.1754944e-38, %v1166
    %v1168 = vsel %vm1165, %v1167, %v1163
    %v1169 = vmul.f32 1.0, %v1168
    %v1170 = vrcp.pop %v718
    %v1171 = vmul.f32 %v718, %v1170
    %v1172 = vsub.f32 1.0, %v1171
    %v1173 = vmul.f32 %v1170, %v1172
    %v1174 = vadd.f32 %v1170, %v1173
    %vm1175 = vweird.f32 %v718
    %vm1176 = vweird.f32 %v1170
    %vm1177 = vmor %vm1175, %vm1176
    %v1178 = vsel %vm1177, %v1170, %v1174
    %v1179 = vand.u32 2147483647, %v718
    %vm1180 = vcmp.eq.f32.partialorder %v1179, 8.507059e+37
    %v1181 = vand.u32 %v718, 2147483648
    %v1182 = vor.u32 1.1754944e-38, %v1181
    %v1183 = vsel %vm1180, %v1182, %v1178
    %v1184 = vmul.f32 1.0, %v1183
    %v1185 = vrcp.pop %v719
    %v1186 = vmul.f32 %v719, %v1185
    %v1187 = vsub.f32 1.0, %v1186
    %v1188 = vmul.f32 %v1185, %v1187
    %v1189 = vadd.f32 %v1185, %v1188
    %vm1190 = vweird.f32 %v719
    %vm1191 = vweird.f32 %v1185
    %vm1192 = vmor %vm1190, %vm1191
    %v1193 = vsel %vm1192, %v1185, %v1189
    %v1194 = vand.u32 2147483647, %v719
    %vm1195 = vcmp.eq.f32.partialorder %v1194, 8.507059e+37
    %v1196 = vand.u32 %v719, 2147483648
    %v1197 = vor.u32 1.1754944e-38, %v1196
    %v1198 = vsel %vm1195, %v1197, %v1193
    %v1199 = vmul.f32 1.0, %v1198
    %1201 = vset.pattern.permute.xlu0 0
    %1202 = vperm.xlu0 %1201, %v66
    %v1203 = vpop.permute.xlu0 %1202
    %1206 = vset.pattern.permute.xlu0 0
    %1207 = vperm.xlu0 %1206, %v67
    %v1208 = vpop.permute.xlu0 %1207
    %1211 = vset.pattern.permute.xlu0 0
    %1212 = vperm.xlu0 %1211, %v68
    %v1213 = vpop.permute.xlu0 %1212
    %1216 = vset.pattern.permute.xlu0 0
    %1217 = vperm.xlu0 %1216, %v69
    %v1218 = vpop.permute.xlu0 %1217
    %1221 = vset.pattern.permute.xlu0 0
    %1222 = vperm.xlu0 %1221, %v70
    %v1223 = vpop.permute.xlu0 %1222
    %1226 = vset.pattern.permute.xlu0 0
    %1227 = vperm.xlu0 %1226, %v71
    %v1228 = vpop.permute.xlu0 %1227
    %1231 = vset.pattern.permute.xlu0 0
    %1232 = vperm.xlu0 %1231, %v72
    %v1233 = vpop.permute.xlu0 %1232
    %1236 = vset.pattern.permute.xlu0 0
    %1237 = vperm.xlu0 %1236, %v73
    %v1238 = vpop.permute.xlu0 %1237
    %1241 = vset.pattern.permute.xlu0 0
    %1242 = vperm.xlu0 %1241, %v74
    %v1243 = vpop.permute.xlu0 %1242
    %1246 = vset.pattern.permute.xlu0 0
    %1247 = vperm.xlu0 %1246, %v75
    %v1248 = vpop.permute.xlu0 %1247
    %1251 = vset.pattern.permute.xlu0 0
    %1252 = vperm.xlu0 %1251, %v76
    %v1253 = vpop.permute.xlu0 %1252
    %1256 = vset.pattern.permute.xlu0 0
    %1257 = vperm.xlu0 %1256, %v77
    %v1258 = vpop.permute.xlu0 %1257
    %1261 = vset.pattern.permute.xlu0 0
    %1262 = vperm.xlu0 %1261, %v78
    %v1263 = vpop.permute.xlu0 %1262
    %1266 = vset.pattern.permute.xlu0 0
    %1267 = vperm.xlu0 %1266, %v79
    %v1268 = vpop.permute.xlu0 %1267
    %1271 = vset.pattern.permute.xlu0 0
    %1272 = vperm.xlu0 %1271, %v80
    %v1273 = vpop.permute.xlu0 %1272
    %1276 = vset.pattern.permute.xlu0 0
    %1277 = vperm.xlu0 %1276, %v81
    %v1278 = vpop.permute.xlu0 %1277
    %1281 = vset.pattern.permute.xlu0 0
    %1282 = vperm.xlu0 %1281, %v82
    %v1283 = vpop.permute.xlu0 %1282
    %1286 = vset.pattern.permute.xlu0 0
    %1287 = vperm.xlu0 %1286, %v83
    %v1288 = vpop.permute.xlu0 %1287
    %1291 = vset.pattern.permute.xlu0 0
    %1292 = vperm.xlu0 %1291, %v84
    %v1293 = vpop.permute.xlu0 %1292
    %1296 = vset.pattern.permute.xlu0 0
    %1297 = vperm.xlu0 %1296, %v85
    %v1298 = vpop.permute.xlu0 %1297
    %1301 = vset.pattern.permute.xlu0 0
    %1302 = vperm.xlu0 %1301, %v86
    %v1303 = vpop.permute.xlu0 %1302
    %1306 = vset.pattern.permute.xlu0 0
    %1307 = vperm.xlu0 %1306, %v87
    %v1308 = vpop.permute.xlu0 %1307
    %1311 = vset.pattern.permute.xlu0 0
    %1312 = vperm.xlu0 %1311, %v88
    %v1313 = vpop.permute.xlu0 %1312
    %1316 = vset.pattern.permute.xlu0 0
    %1317 = vperm.xlu0 %1316, %v89
    %v1318 = vpop.permute.xlu0 %1317
    %1321 = vset.pattern.permute.xlu0 0
    %1322 = vperm.xlu0 %1321, %v90
    %v1323 = vpop.permute.xlu0 %1322
    %1326 = vset.pattern.permute.xlu0 0
    %1327 = vperm.xlu0 %1326, %v91
    %v1328 = vpop.permute.xlu0 %1327
    %1331 = vset.pattern.permute.xlu0 0
    %1332 = vperm.xlu0 %1331, %v92
    %v1333 = vpop.permute.xlu0 %1332
    %1336 = vset.pattern.permute.xlu0 0
    %1337 = vperm.xlu0 %1336, %v93
    %v1338 = vpop.permute.xlu0 %1337
    %1341 = vset.pattern.permute.xlu0 0
    %1342 = vperm.xlu0 %1341, %v94
    %v1343 = vpop.permute.xlu0 %1342
    %1346 = vset.pattern.permute.xlu0 0
    %1347 = vperm.xlu0 %1346, %v95
    %v1348 = vpop.permute.xlu0 %1347
    %1351 = vset.pattern.permute.xlu0 0
    %1352 = vperm.xlu0 %1351, %v96
    %v1353 = vpop.permute.xlu0 %1352
    %1356 = vset.pattern.permute.xlu0 0
    %1357 = vperm.xlu0 %1356, %v97
    %v1358 = vpop.permute.xlu0 %1357
    %v1360 = vmul.f32 %v734, %v1203
    %v1361 = vmul.f32 %v749, %v1208
    %v1362 = vmul.f32 %v764, %v1213
    %v1363 = vmul.f32 %v779, %v1218
    %v1364 = vmul.f32 %v794, %v1223
    %v1365 = vmul.f32 %v809, %v1228
    %v1366 = vmul.f32 %v824, %v1233
    %v1367 = vmul.f32 %v839, %v1238
    %v1368 = vmul.f32 %v854, %v1243
    %v1369 = vmul.f32 %v869, %v1248
    %v1370 = vmul.f32 %v884, %v1253
    %v1371 = vmul.f32 %v899, %v1258
    %v1372 = vmul.f32 %v914, %v1263
    %v1373 = vmul.f32 %v929, %v1268
    %v1374 = vmul.f32 %v944, %v1273
    %v1375 = vmul.f32 %v959, %v1278
    %v1376 = vmul.f32 %v974, %v1283
    %v1377 = vmul.f32 %v989, %v1288
    %v1378 = vmul.f32 %v1004, %v1293
    %v1379 = vmul.f32 %v1019, %v1298
    %v1380 = vmul.f32 %v1034, %v1303
    %v1381 = vmul.f32 %v1049, %v1308
    %v1382 = vmul.f32 %v1064, %v1313
    %v1383 = vmul.f32 %v1079, %v1318
    %v1384 = vmul.f32 %v1094, %v1323
    %v1385 = vmul.f32 %v1109, %v1328
    %v1386 = vmul.f32 %v1124, %v1333
    %v1387 = vmul.f32 %v1139, %v1338
    %v1388 = vmul.f32 %v1154, %v1343
    %v1389 = vmul.f32 %v1169, %v1348
    %v1390 = vmul.f32 %v1184, %v1353
    %v1391 = vmul.f32 %v1199, %v1358
    %vm1392 = vcmask 80896
    %v1393 = vsel %vm1392, %v1360, 0.0
    %v1394 = vsel %vm1392, %v1361, 0.0
    %v1395 = vadd.f32 %v1393, %v1394
    %v1396 = vsel %vm1392, %v1362, 0.0
    %v1397 = vadd.f32 %v1395, %v1396
    %v1398 = vsel %vm1392, %v1363, 0.0
    %v1399 = vadd.f32 %v1397, %v1398
    %v1400 = vsel %vm1392, %v1364, 0.0
    %v1401 = vadd.f32 %v1399, %v1400
    %v1402 = vsel %vm1392, %v1365, 0.0
    %v1403 = vadd.f32 %v1401, %v1402
    %v1404 = vsel %vm1392, %v1366, 0.0
    %v1405 = vadd.f32 %v1403, %v1404
    %v1406 = vsel %vm1392, %v1367, 0.0
    %v1407 = vadd.f32 %v1405, %v1406
    %v1408 = vsel %vm1392, %v1368, 0.0
    %v1409 = vadd.f32 %v1407, %v1408
    %v1410 = vsel %vm1392, %v1369, 0.0
    %v1411 = vadd.f32 %v1409, %v1410
    %v1412 = vsel %vm1392, %v1370, 0.0
    %v1413 = vadd.f32 %v1411, %v1412
    %v1414 = vsel %vm1392, %v1371, 0.0
    %v1415 = vadd.f32 %v1413, %v1414
    %v1416 = vsel %vm1392, %v1372, 0.0
    %v1417 = vadd.f32 %v1415, %v1416
    %v1418 = vsel %vm1392, %v1373, 0.0
    %v1419 = vadd.f32 %v1417, %v1418
    %v1420 = vsel %vm1392, %v1374, 0.0
    %v1421 = vadd.f32 %v1419, %v1420
    %v1422 = vsel %vm1392, %v1375, 0.0
    %v1423 = vadd.f32 %v1421, %v1422
    %v1424 = vsel %vm1392, %v1376, 0.0
    %v1425 = vadd.f32 %v1423, %v1424
    %v1426 = vsel %vm1392, %v1377, 0.0
    %v1427 = vadd.f32 %v1425, %v1426
    %v1428 = vsel %vm1392, %v1378, 0.0
    %v1429 = vadd.f32 %v1427, %v1428
    %v1430 = vsel %vm1392, %v1379, 0.0
    %v1431 = vadd.f32 %v1429, %v1430
    %v1432 = vsel %vm1392, %v1380, 0.0
    %v1433 = vadd.f32 %v1431, %v1432
    %v1434 = vsel %vm1392, %v1381, 0.0
    %v1435 = vadd.f32 %v1433, %v1434
    %v1436 = vsel %vm1392, %v1382, 0.0
    %v1437 = vadd.f32 %v1435, %v1436
    %v1438 = vsel %vm1392, %v1383, 0.0
    %v1439 = vadd.f32 %v1437, %v1438
    %v1440 = vsel %vm1392, %v1384, 0.0
    %v1441 = vadd.f32 %v1439, %v1440
    %v1442 = vsel %vm1392, %v1385, 0.0
    %v1443 = vadd.f32 %v1441, %v1442
    %v1444 = vsel %vm1392, %v1386, 0.0
    %v1445 = vadd.f32 %v1443, %v1444
    %v1446 = vsel %vm1392, %v1387, 0.0
    %v1447 = vadd.f32 %v1445, %v1446
    %v1448 = vsel %vm1392, %v1388, 0.0
    %v1449 = vadd.f32 %v1447, %v1448
    %v1450 = vsel %vm1392, %v1389, 0.0
    %v1451 = vadd.f32 %v1449, %v1450
    %v1452 = vsel %vm1392, %v1390, 0.0
    %v1453 = vadd.f32 %v1451, %v1452
    %v1454 = vsel %vm1392, %v1391, 0.0
    %v1455 = vadd.f32 %v1453, %v1454
    %v1456 = vrot.slane %v1455, 4
    %v1457 = vadd.f32 %v1455, %v1456
    %v1458 = vrot.slane %v1457, 2
    %v1459 = vadd.f32 %v1457, %v1458
    %v1460 = vrot.slane %v1459, 1
    %v1461 = vadd.f32 %v1459, %v1460
    %s1462 = scalar_lea.vmem %s0, 256
    %v1463 = vld [vmem:[%s1462] sm:$0xff]
    %v1464 = vld [vmem:[%s1462 + $0x8] sm:$0xff]
    %v1465 = vld [vmem:[%s1462 + $0x10] sm:$0xff]
    %v1466 = vld [vmem:[%s1462 + $0x18] sm:$0xff]
    %v1467 = vld [vmem:[%s1462 + $0x20] sm:$0xff]
    %v1468 = vld [vmem:[%s1462 + $0x28] sm:$0xff]
    %v1469 = vld [vmem:[%s1462 + $0x30] sm:$0xff]
    %v1470 = vld [vmem:[%s1462 + $0x38] sm:$0xff]
    %v1471 = vld [vmem:[%s1462 + $0x40] sm:$0xff]
    %v1472 = vld [vmem:[%s1462 + $0x48] sm:$0xff]
    %v1473 = vld [vmem:[%s1462 + $0x50] sm:$0xff]
    %v1474 = vld [vmem:[%s1462 + $0x58] sm:$0xff]
    %v1475 = vld [vmem:[%s1462 + $0x60] sm:$0xff]
    %v1476 = vld [vmem:[%s1462 + $0x68] sm:$0xff]
    %v1477 = vld [vmem:[%s1462 + $0x70] sm:$0xff]
    %v1478 = vld [vmem:[%s1462 + $0x78] sm:$0xff]
    %v1479 = vld [vmem:[%s1462 + $0x80] sm:$0xff]
    %v1480 = vld [vmem:[%s1462 + $0x88] sm:$0xff]
    %v1481 = vld [vmem:[%s1462 + $0x90] sm:$0xff]
    %v1482 = vld [vmem:[%s1462 + $0x98] sm:$0xff]
    %v1483 = vld [vmem:[%s1462 + $0xa0] sm:$0xff]
    %v1484 = vld [vmem:[%s1462 + $0xa8] sm:$0xff]
    %v1485 = vld [vmem:[%s1462 + $0xb0] sm:$0xff]
    %v1486 = vld [vmem:[%s1462 + $0xb8] sm:$0xff]
    %v1487 = vld [vmem:[%s1462 + $0xc0] sm:$0xff]
    %v1488 = vld [vmem:[%s1462 + $0xc8] sm:$0xff]
    %v1489 = vld [vmem:[%s1462 + $0xd0] sm:$0xff]
    %v1490 = vld [vmem:[%s1462 + $0xd8] sm:$0xff]
    %v1491 = vld [vmem:[%s1462 + $0xe0] sm:$0xff]
    %v1492 = vld [vmem:[%s1462 + $0xe8] sm:$0xff]
    %v1493 = vld [vmem:[%s1462 + $0xf0] sm:$0xff]
    %v1494 = vld [vmem:[%s1462 + $0xf8] sm:$0xff]
    %v1495 = vmul.f32 %v1463, %v184
    %v1496 = vmul.f32 %v1464, %v184
    %v1497 = vmul.f32 %v1465, %v184
    %v1498 = vmul.f32 %v1466, %v184
    %v1499 = vmul.f32 %v1467, %v184
    %v1500 = vmul.f32 %v1468, %v184
    %v1501 = vmul.f32 %v1469, %v184
    %v1502 = vmul.f32 %v1470, %v184
    %v1503 = vmul.f32 %v1471, %v184
    %v1504 = vmul.f32 %v1472, %v184
    %v1505 = vmul.f32 %v1473, %v184
    %v1506 = vmul.f32 %v1474, %v184
    %v1507 = vmul.f32 %v1475, %v184
    %v1508 = vmul.f32 %v1476, %v184
    %v1509 = vmul.f32 %v1477, %v184
    %v1510 = vmul.f32 %v1478, %v184
    %v1511 = vmul.f32 %v1479, %v184
    %v1512 = vmul.f32 %v1480, %v184
    %v1513 = vmul.f32 %v1481, %v184
    %v1514 = vmul.f32 %v1482, %v184
    %v1515 = vmul.f32 %v1483, %v184
    %v1516 = vmul.f32 %v1484, %v184
    %v1517 = vmul.f32 %v1485, %v184
    %v1518 = vmul.f32 %v1486, %v184
    %v1519 = vmul.f32 %v1487, %v184
    %v1520 = vmul.f32 %v1488, %v184
    %v1521 = vmul.f32 %v1489, %v184
    %v1522 = vmul.f32 %v1490, %v184
    %v1523 = vmul.f32 %v1491, %v184
    %v1524 = vmul.f32 %v1492, %v184
    %v1525 = vmul.f32 %v1493, %v184
    %v1526 = vmul.f32 %v1494, %v184
    %v1527 = vadd.f32 %v1495, %v219
    %v1528 = vadd.f32 %v1496, %v219
    %v1529 = vadd.f32 %v1497, %v219
    %v1530 = vadd.f32 %v1498, %v219
    %v1531 = vadd.f32 %v1499, %v219
    %v1532 = vadd.f32 %v1500, %v219
    %v1533 = vadd.f32 %v1501, %v219
    %v1534 = vadd.f32 %v1502, %v219
    %v1535 = vadd.f32 %v1503, %v219
    %v1536 = vadd.f32 %v1504, %v219
    %v1537 = vadd.f32 %v1505, %v219
    %v1538 = vadd.f32 %v1506, %v219
    %v1539 = vadd.f32 %v1507, %v219
    %v1540 = vadd.f32 %v1508, %v219
    %v1541 = vadd.f32 %v1509, %v219
    %v1542 = vadd.f32 %v1510, %v219
    %v1543 = vadd.f32 %v1511, %v219
    %v1544 = vadd.f32 %v1512, %v219
    %v1545 = vadd.f32 %v1513, %v219
    %v1546 = vadd.f32 %v1514, %v219
    %v1547 = vadd.f32 %v1515, %v219
    %v1548 = vadd.f32 %v1516, %v219
    %v1549 = vadd.f32 %v1517, %v219
    %v1550 = vadd.f32 %v1518, %v219
    %v1551 = vadd.f32 %v1519, %v219
    %v1552 = vadd.f32 %v1520, %v219
    %v1553 = vadd.f32 %v1521, %v219
    %v1554 = vadd.f32 %v1522, %v219
    %v1555 = vadd.f32 %v1523, %v219
    %v1556 = vadd.f32 %v1524, %v219
    %v1557 = vadd.f32 %v1525, %v219
    %v1558 = vadd.f32 %v1526, %v219
    %v1559 = vsel %vm253, %v1527, 0.0
    %v1560 = vsel %vm253, %v1528, 0.0
    %v1561 = vadd.f32 %v1559, %v1560
    %v1562 = vsel %vm253, %v1529, 0.0
    %v1563 = vadd.f32 %v1561, %v1562
    %v1564 = vsel %vm253, %v1530, 0.0
    %v1565 = vadd.f32 %v1563, %v1564
    %v1566 = vsel %vm253, %v1531, 0.0
    %v1567 = vadd.f32 %v1565, %v1566
    %v1568 = vsel %vm253, %v1532, 0.0
    %v1569 = vadd.f32 %v1567, %v1568
    %v1570 = vsel %vm253, %v1533, 0.0
    %v1571 = vadd.f32 %v1569, %v1570
    %v1572 = vsel %vm253, %v1534, 0.0
    %v1573 = vadd.f32 %v1571, %v1572
    %v1574 = vsel %vm253, %v1535, 0.0
    %v1575 = vadd.f32 %v1573, %v1574
    %v1576 = vsel %vm253, %v1536, 0.0
    %v1577 = vadd.f32 %v1575, %v1576
    %v1578 = vsel %vm253, %v1537, 0.0
    %v1579 = vadd.f32 %v1577, %v1578
    %v1580 = vsel %vm253, %v1538, 0.0
    %v1581 = vadd.f32 %v1579, %v1580
    %v1582 = vsel %vm253, %v1539, 0.0
    %v1583 = vadd.f32 %v1581, %v1582
    %v1584 = vsel %vm253, %v1540, 0.0
    %v1585 = vadd.f32 %v1583, %v1584
    %v1586 = vsel %vm253, %v1541, 0.0
    %v1587 = vadd.f32 %v1585, %v1586
    %v1588 = vsel %vm253, %v1542, 0.0
    %v1589 = vadd.f32 %v1587, %v1588
    %v1590 = vsel %vm253, %v1543, 0.0
    %v1591 = vadd.f32 %v1589, %v1590
    %v1592 = vsel %vm253, %v1544, 0.0
    %v1593 = vadd.f32 %v1591, %v1592
    %v1594 = vsel %vm253, %v1545, 0.0
    %v1595 = vadd.f32 %v1593, %v1594
    %v1596 = vsel %vm253, %v1546, 0.0
    %v1597 = vadd.f32 %v1595, %v1596
    %v1598 = vsel %vm253, %v1547, 0.0
    %v1599 = vadd.f32 %v1597, %v1598
    %v1600 = vsel %vm253, %v1548, 0.0
    %v1601 = vadd.f32 %v1599, %v1600
    %v1602 = vsel %vm253, %v1549, 0.0
    %v1603 = vadd.f32 %v1601, %v1602
    %v1604 = vsel %vm253, %v1550, 0.0
    %v1605 = vadd.f32 %v1603, %v1604
    %v1606 = vsel %vm253, %v1551, 0.0
    %v1607 = vadd.f32 %v1605, %v1606
    %v1608 = vsel %vm253, %v1552, 0.0
    %v1609 = vadd.f32 %v1607, %v1608
    %v1610 = vsel %vm253, %v1553, 0.0
    %v1611 = vadd.f32 %v1609, %v1610
    %v1612 = vsel %vm253, %v1554, 0.0
    %v1613 = vadd.f32 %v1611, %v1612
    %v1614 = vsel %vm253, %v1555, 0.0
    %v1615 = vadd.f32 %v1613, %v1614
    %v1616 = vsel %vm253, %v1556, 0.0
    %v1617 = vadd.f32 %v1615, %v1616
    %v1618 = vsel %vm253, %v1557, 0.0
    %v1619 = vadd.f32 %v1617, %v1618
    %v1620 = vsel %vm253, %v1558, 0.0
    %v1621 = vadd.f32 %v1619, %v1620
    %v1622 = vrot.slane %v1621, 4
    %v1623 = vadd.f32 %v1621, %v1622
    %v1624 = vrot.slane %v1623, 2
    %v1625 = vadd.f32 %v1623, %v1624
    %v1626 = vrot.slane %v1625, 1
    %v1627 = vadd.f32 %v1625, %v1626
    %v1628 = vmul.f32 %v1627, %v329
    %v1630 = vsel %vm253, %v1628, 0
    %1632 = vmatpush.msra.mxu0 0.0
    %1633 = vmatpush.msra.mxu0 0.0
    %1634 = vmatpush.msra.mxu0 0.0
    %1635 = vmatpush.msra.mxu0 0.0
    %1636 = vmatpush.msra.mxu0 0.0
    %1637 = vmatpush.msra.mxu0 0.0
    %1638 = vmatpush.msra.mxu0 0.0
    %1639 = vmatpush.msra.mxu0 0.0
    %1640 = vmatpush.msra.mxu0 %v139
    %1641 = vmatpush.msra.mxu0 %v138
    %1642 = vmatpush.msra.mxu0 %v137
    %1643 = vmatpush.msra.mxu0 %v136
    %1644 = vmatpush.msra.mxu0 %v135
    %1645 = vmatpush.msra.mxu0 %v134
    %1646 = vmatpush.msra.mxu0 %v133
    %1647 = vmatpush.msra.mxu0 %v132
    %1648 = vmatmul.f32.gmra.mxu0 %v1630
    %v1649 = vpop.f32.mrf.mxu0
    %v1650 = vadd.f32 %v140, %v1649
    %1651 = vdwg.mxu0
    %v1652 = vmax.f32 %v1650, 0.0
    %v1654 = vsel %vm355, %v1652, 0
    %1656 = vmatpush.msra.mxu0 0.0
    %1657 = vmatpush.msra.mxu0 0.0
    %1658 = vmatpush.msra.mxu0 0.0
    %1659 = vmatpush.msra.mxu0 0.0
    %1660 = vmatpush.msra.mxu0 0.0
    %1661 = vmatpush.msra.mxu0 0.0
    %1662 = vmatpush.msra.mxu0 0.0
    %1663 = vmatpush.msra.mxu0 0.0
    %1664 = vmatpush.msra.mxu0 0.0
    %1665 = vmatpush.msra.mxu0 0.0
    %1666 = vmatpush.msra.mxu0 0.0
    %1667 = vmatpush.msra.mxu0 0.0
    %1668 = vmatpush.msra.mxu0 0.0
    %1669 = vmatpush.msra.mxu0 0.0
    %1670 = vmatpush.msra.mxu0 0.0
    %1671 = vmatpush.msra.mxu0 %v361
    %1672 = vmatmul.f32.gmra.mxu0 %v1654
    %v1673 = vpop.f32.mrf.mxu0
    %v1674 = vadd.f32 %v142, %v1673
    %1675 = vdwg.mxu0
    %v1676 = vxor.u32 %v1674, 2147483648
    %v1677 = vmul.f32 %v1676, 1.442695
    %v1678 = vpow.pop %v1677
    %v1679 = vadd.f32 %v1678, 1.0
    %v1680 = vrcp.pop %v1679
    %v1681 = vmul.f32 %v1679, %v1680
    %v1682 = vsub.f32 1.0, %v1681
    %v1683 = vmul.f32 %v1680, %v1682
    %v1684 = vadd.f32 %v1680, %v1683
    %vm1685 = vweird.f32 %v1679
    %vm1686 = vweird.f32 %v1680
    %vm1687 = vmor %vm1685, %vm1686
    %v1688 = vsel %vm1687, %v1680, %v1684
    %v1689 = vand.u32 2147483647, %v1679
    %vm1690 = vcmp.eq.f32.partialorder %v1689, 8.507059e+37
    %v1691 = vand.u32 %v1679, 2147483648
    %v1692 = vor.u32 1.1754944e-38, %v1691
    %v1693 = vsel %vm1690, %v1692, %v1688
    %v1694 = vmul.f32 1.0, %v1693
    %v1695 = vperm.slane %v1694, 0
    %v1696 = vmul.f32 %v1527, %v1695
    %v1697 = vmul.f32 %v1528, %v1695
    %v1698 = vmul.f32 %v1529, %v1695
    %v1699 = vmul.f32 %v1530, %v1695
    %v1700 = vmul.f32 %v1531, %v1695
    %v1701 = vmul.f32 %v1532, %v1695
    %v1702 = vmul.f32 %v1533, %v1695
    %v1703 = vmul.f32 %v1534, %v1695
    %v1704 = vmul.f32 %v1535, %v1695
    %v1705 = vmul.f32 %v1536, %v1695
    %v1706 = vmul.f32 %v1537, %v1695
    %v1707 = vmul.f32 %v1538, %v1695
    %v1708 = vmul.f32 %v1539, %v1695
    %v1709 = vmul.f32 %v1540, %v1695
    %v1710 = vmul.f32 %v1541, %v1695
    %v1711 = vmul.f32 %v1542, %v1695
    %v1712 = vmul.f32 %v1543, %v1695
    %v1713 = vmul.f32 %v1544, %v1695
    %v1714 = vmul.f32 %v1545, %v1695
    %v1715 = vmul.f32 %v1546, %v1695
    %v1716 = vmul.f32 %v1547, %v1695
    %v1717 = vmul.f32 %v1548, %v1695
    %v1718 = vmul.f32 %v1549, %v1695
    %v1719 = vmul.f32 %v1550, %v1695
    %v1720 = vmul.f32 %v1551, %v1695
    %v1721 = vmul.f32 %v1552, %v1695
    %v1722 = vmul.f32 %v1553, %v1695
    %v1723 = vmul.f32 %v1554, %v1695
    %v1724 = vmul.f32 %v1555, %v1695
    %v1725 = vmul.f32 %v1556, %v1695
    %v1726 = vmul.f32 %v1557, %v1695
    %v1727 = vmul.f32 %v1558, %v1695
    %v1728 = vpack.c.bf16 %v1697, %v1696
    %v1729 = vpack.c.bf16 %v1699, %v1698
    %v1730 = vpack.c.bf16 %v1701, %v1700
    %v1731 = vpack.c.bf16 %v1703, %v1702
    %v1732 = vpack.c.bf16 %v1705, %v1704
    %v1733 = vpack.c.bf16 %v1707, %v1706
    %v1734 = vpack.c.bf16 %v1709, %v1708
    %v1735 = vpack.c.bf16 %v1711, %v1710
    %v1736 = vpack.c.bf16 %v1713, %v1712
    %v1737 = vpack.c.bf16 %v1715, %v1714
    %v1738 = vpack.c.bf16 %v1717, %v1716
    %v1739 = vpack.c.bf16 %v1719, %v1718
    %v1740 = vpack.c.bf16 %v1721, %v1720
    %v1741 = vpack.c.bf16 %v1723, %v1722
    %v1742 = vpack.c.bf16 %v1725, %v1724
    %v1743 = vpack.c.bf16 %v1727, %v1726
    %v1745 = vsel %vm253, %v1728, 0
    %v1748 = vsel %vm253, %v1729, 0
    %v1751 = vsel %vm253, %v1730, 0
    %v1754 = vsel %vm253, %v1731, 0
    %v1757 = vsel %vm253, %v1732, 0
    %v1760 = vsel %vm253, %v1733, 0
    %v1763 = vsel %vm253, %v1734, 0
    %v1766 = vsel %vm253, %v1735, 0
    %v1769 = vsel %vm253, %v1736, 0
    %v1772 = vsel %vm253, %v1737, 0
    %v1775 = vsel %vm253, %v1738, 0
    %v1778 = vsel %vm253, %v1739, 0
    %v1781 = vsel %vm253, %v1740, 0
    %v1784 = vsel %vm253, %v1741, 0
    %v1787 = vsel %vm253, %v1742, 0
    %v1790 = vsel %vm253, %v1743, 0
    %1792 = vmatpush.bf16.msra.mxu0 0
    %1793 = vmatpush.bf16.msra.mxu0 0
    %1794 = vmatpush.bf16.msra.mxu0 0
    %1795 = vmatpush.bf16.msra.mxu0 0
    %1796 = vmatpush.bf16.msra.mxu0 %v454
    %1797 = vmatpush.bf16.msra.mxu0 %v453
    %1798 = vmatpush.bf16.msra.mxu0 %v452
    %1799 = vmatpush.bf16.msra.mxu0 %v451
    %1800 = vmatmul.bf16.gmra.mxu0 %v1745
    %v1801 = vpop.f32.mrf.mxu0
    %v1802 = vadd.f32 0.0, %v1801
    %v1803 = vpop.f32.mrf.mxu0
    %v1804 = vadd.f32 0.0, %v1803
    %1805 = vmatmul.bf16.gmra.mxu0 %v1748
    %v1806 = vpop.f32.mrf.mxu0
    %v1807 = vadd.f32 0.0, %v1806
    %v1808 = vpop.f32.mrf.mxu0
    %v1809 = vadd.f32 0.0, %v1808
    %1810 = vmatmul.bf16.gmra.mxu0 %v1751
    %v1811 = vpop.f32.mrf.mxu0
    %v1812 = vadd.f32 0.0, %v1811
    %v1813 = vpop.f32.mrf.mxu0
    %v1814 = vadd.f32 0.0, %v1813
    %1815 = vmatmul.bf16.gmra.mxu0 %v1754
    %v1816 = vpop.f32.mrf.mxu0
    %v1817 = vadd.f32 0.0, %v1816
    %v1818 = vpop.f32.mrf.mxu0
    %v1819 = vadd.f32 0.0, %v1818
    %1820 = vmatmul.bf16.gmra.mxu0 %v1757
    %v1821 = vpop.f32.mrf.mxu0
    %v1822 = vadd.f32 0.0, %v1821
    %v1823 = vpop.f32.mrf.mxu0
    %v1824 = vadd.f32 0.0, %v1823
    %1825 = vmatmul.bf16.gmra.mxu0 %v1760
    %v1826 = vpop.f32.mrf.mxu0
    %v1827 = vadd.f32 0.0, %v1826
    %v1828 = vpop.f32.mrf.mxu0
    %v1829 = vadd.f32 0.0, %v1828
    %1830 = vmatmul.bf16.gmra.mxu0 %v1763
    %v1831 = vpop.f32.mrf.mxu0
    %v1832 = vadd.f32 0.0, %v1831
    %v1833 = vpop.f32.mrf.mxu0
    %v1834 = vadd.f32 0.0, %v1833
    %1835 = vmatmul.bf16.gmra.mxu0 %v1766
    %v1836 = vpop.f32.mrf.mxu0
    %v1837 = vadd.f32 0.0, %v1836
    %v1838 = vpop.f32.mrf.mxu0
    %v1839 = vadd.f32 0.0, %v1838
    %1840 = vmatmul.bf16.gmra.mxu0 %v1769
    %v1841 = vpop.f32.mrf.mxu0
    %v1842 = vadd.f32 0.0, %v1841
    %v1843 = vpop.f32.mrf.mxu0
    %v1844 = vadd.f32 0.0, %v1843
    %1845 = vmatmul.bf16.gmra.mxu0 %v1772
    %v1846 = vpop.f32.mrf.mxu0
    %v1847 = vadd.f32 0.0, %v1846
    %v1848 = vpop.f32.mrf.mxu0
    %v1849 = vadd.f32 0.0, %v1848
    %1850 = vmatmul.bf16.gmra.mxu0 %v1775
    %v1851 = vpop.f32.mrf.mxu0
    %v1852 = vadd.f32 0.0, %v1851
    %v1853 = vpop.f32.mrf.mxu0
    %v1854 = vadd.f32 0.0, %v1853
    %1855 = vmatmul.bf16.gmra.mxu0 %v1778
    %v1856 = vpop.f32.mrf.mxu0
    %v1857 = vadd.f32 0.0, %v1856
    %v1858 = vpop.f32.mrf.mxu0
    %v1859 = vadd.f32 0.0, %v1858
    %1860 = vmatmul.bf16.gmra.mxu0 %v1781
    %v1861 = vpop.f32.mrf.mxu0
    %v1862 = vadd.f32 0.0, %v1861
    %v1863 = vpop.f32.mrf.mxu0
    %v1864 = vadd.f32 0.0, %v1863
    %1865 = vmatmul.bf16.gmra.mxu0 %v1784
    %v1866 = vpop.f32.mrf.mxu0
    %v1867 = vadd.f32 0.0, %v1866
    %v1868 = vpop.f32.mrf.mxu0
    %v1869 = vadd.f32 0.0, %v1868
    %1870 = vmatmul.bf16.gmra.mxu0 %v1787
    %v1871 = vpop.f32.mrf.mxu0
    %v1872 = vadd.f32 0.0, %v1871
    %v1873 = vpop.f32.mrf.mxu0
    %v1874 = vadd.f32 0.0, %v1873
    %1875 = vmatmul.bf16.gmra.mxu0 %v1790
    %v1876 = vpop.f32.mrf.mxu0
    %v1877 = vadd.f32 0.0, %v1876
    %v1878 = vpop.f32.mrf.mxu0
    %v1879 = vadd.f32 0.0, %v1878
    %1880 = vdwg.mxu0
    %v1881 = vxor.u32 %v1802, 2147483648
    %v1882 = vxor.u32 %v1804, 2147483648
    %v1883 = vxor.u32 %v1807, 2147483648
    %v1884 = vxor.u32 %v1809, 2147483648
    %v1885 = vxor.u32 %v1812, 2147483648
    %v1886 = vxor.u32 %v1814, 2147483648
    %v1887 = vxor.u32 %v1817, 2147483648
    %v1888 = vxor.u32 %v1819, 2147483648
    %v1889 = vxor.u32 %v1822, 2147483648
    %v1890 = vxor.u32 %v1824, 2147483648
    %v1891 = vxor.u32 %v1827, 2147483648
    %v1892 = vxor.u32 %v1829, 2147483648
    %v1893 = vxor.u32 %v1832, 2147483648
    %v1894 = vxor.u32 %v1834, 2147483648
    %v1895 = vxor.u32 %v1837, 2147483648
    %v1896 = vxor.u32 %v1839, 2147483648
    %v1897 = vxor.u32 %v1842, 2147483648
    %v1898 = vxor.u32 %v1844, 2147483648
    %v1899 = vxor.u32 %v1847, 2147483648
    %v1900 = vxor.u32 %v1849, 2147483648
    %v1901 = vxor.u32 %v1852, 2147483648
    %v1902 = vxor.u32 %v1854, 2147483648
    %v1903 = vxor.u32 %v1857, 2147483648
    %v1904 = vxor.u32 %v1859, 2147483648
    %v1905 = vxor.u32 %v1862, 2147483648
    %v1906 = vxor.u32 %v1864, 2147483648
    %v1907 = vxor.u32 %v1867, 2147483648
    %v1908 = vxor.u32 %v1869, 2147483648
    %v1909 = vxor.u32 %v1872, 2147483648
    %v1910 = vxor.u32 %v1874, 2147483648
    %v1911 = vxor.u32 %v1877, 2147483648
    %v1912 = vxor.u32 %v1879, 2147483648
    %v1913 = vmul.f32 %v1881, 1.442695
    %v1914 = vpow.pop %v1913
    %v1915 = vmul.f32 %v1882, 1.442695
    %v1916 = vpow.pop %v1915
    %v1917 = vmul.f32 %v1883, 1.442695
    %v1918 = vpow.pop %v1917
    %v1919 = vmul.f32 %v1884, 1.442695
    %v1920 = vpow.pop %v1919
    %v1921 = vmul.f32 %v1885, 1.442695
    %v1922 = vpow.pop %v1921
    %v1923 = vmul.f32 %v1886, 1.442695
    %v1924 = vpow.pop %v1923
    %v1925 = vmul.f32 %v1887, 1.442695
    %v1926 = vpow.pop %v1925
    %v1927 = vmul.f32 %v1888, 1.442695
    %v1928 = vpow.pop %v1927
    %v1929 = vmul.f32 %v1889, 1.442695
    %v1930 = vpow.pop %v1929
    %v1931 = vmul.f32 %v1890, 1.442695
    %v1932 = vpow.pop %v1931
    %v1933 = vmul.f32 %v1891, 1.442695
    %v1934 = vpow.pop %v1933
    %v1935 = vmul.f32 %v1892, 1.442695
    %v1936 = vpow.pop %v1935
    %v1937 = vmul.f32 %v1893, 1.442695
    %v1938 = vpow.pop %v1937
    %v1939 = vmul.f32 %v1894, 1.442695
    %v1940 = vpow.pop %v1939
    %v1941 = vmul.f32 %v1895, 1.442695
    %v1942 = vpow.pop %v1941
    %v1943 = vmul.f32 %v1896, 1.442695
    %v1944 = vpow.pop %v1943
    %v1945 = vmul.f32 %v1897, 1.442695
    %v1946 = vpow.pop %v1945
    %v1947 = vmul.f32 %v1898, 1.442695
    %v1948 = vpow.pop %v1947
    %v1949 = vmul.f32 %v1899, 1.442695
    %v1950 = vpow.pop %v1949
    %v1951 = vmul.f32 %v1900, 1.442695
    %v1952 = vpow.pop %v1951
    %v1953 = vmul.f32 %v1901, 1.442695
    %v1954 = vpow.pop %v1953
    %v1955 = vmul.f32 %v1902, 1.442695
    %v1956 = vpow.pop %v1955
    %v1957 = vmul.f32 %v1903, 1.442695
    %v1958 = vpow.pop %v1957
    %v1959 = vmul.f32 %v1904, 1.442695
    %v1960 = vpow.pop %v1959
    %v1961 = vmul.f32 %v1905, 1.442695
    %v1962 = vpow.pop %v1961
    %v1963 = vmul.f32 %v1906, 1.442695
    %v1964 = vpow.pop %v1963
    %v1965 = vmul.f32 %v1907, 1.442695
    %v1966 = vpow.pop %v1965
    %v1967 = vmul.f32 %v1908, 1.442695
    %v1968 = vpow.pop %v1967
    %v1969 = vmul.f32 %v1909, 1.442695
    %v1970 = vpow.pop %v1969
    %v1971 = vmul.f32 %v1910, 1.442695
    %v1972 = vpow.pop %v1971
    %v1973 = vmul.f32 %v1911, 1.442695
    %v1974 = vpow.pop %v1973
    %v1975 = vmul.f32 %v1912, 1.442695
    %v1976 = vpow.pop %v1975
    %v1977 = vadd.f32 %v1914, 1.0
    %v1978 = vadd.f32 %v1916, 1.0
    %v1979 = vadd.f32 %v1918, 1.0
    %v1980 = vadd.f32 %v1920, 1.0
    %v1981 = vadd.f32 %v1922, 1.0
    %v1982 = vadd.f32 %v1924, 1.0
    %v1983 = vadd.f32 %v1926, 1.0
    %v1984 = vadd.f32 %v1928, 1.0
    %v1985 = vadd.f32 %v1930, 1.0
    %v1986 = vadd.f32 %v1932, 1.0
    %v1987 = vadd.f32 %v1934, 1.0
    %v1988 = vadd.f32 %v1936, 1.0
    %v1989 = vadd.f32 %v1938, 1.0
    %v1990 = vadd.f32 %v1940, 1.0
    %v1991 = vadd.f32 %v1942, 1.0
    %v1992 = vadd.f32 %v1944, 1.0
    %v1993 = vadd.f32 %v1946, 1.0
    %v1994 = vadd.f32 %v1948, 1.0
    %v1995 = vadd.f32 %v1950, 1.0
    %v1996 = vadd.f32 %v1952, 1.0
    %v1997 = vadd.f32 %v1954, 1.0
    %v1998 = vadd.f32 %v1956, 1.0
    %v1999 = vadd.f32 %v1958, 1.0
    %v2000 = vadd.f32 %v1960, 1.0
    %v2001 = vadd.f32 %v1962, 1.0
    %v2002 = vadd.f32 %v1964, 1.0
    %v2003 = vadd.f32 %v1966, 1.0
    %v2004 = vadd.f32 %v1968, 1.0
    %v2005 = vadd.f32 %v1970, 1.0
    %v2006 = vadd.f32 %v1972, 1.0
    %v2007 = vadd.f32 %v1974, 1.0
    %v2008 = vadd.f32 %v1976, 1.0
    %v2009 = vrcp.pop %v1977
    %v2010 = vmul.f32 %v1977, %v2009
    %v2011 = vsub.f32 1.0, %v2010
    %v2012 = vmul.f32 %v2009, %v2011
    %v2013 = vadd.f32 %v2009, %v2012
    %vm2014 = vweird.f32 %v1977
    %vm2015 = vweird.f32 %v2009
    %vm2016 = vmor %vm2014, %vm2015
    %v2017 = vsel %vm2016, %v2009, %v2013
    %v2018 = vand.u32 2147483647, %v1977
    %vm2019 = vcmp.eq.f32.partialorder %v2018, 8.507059e+37
    %v2020 = vand.u32 %v1977, 2147483648
    %v2021 = vor.u32 1.1754944e-38, %v2020
    %v2022 = vsel %vm2019, %v2021, %v2017
    %v2023 = vmul.f32 1.0, %v2022
    %v2024 = vrcp.pop %v1978
    %v2025 = vmul.f32 %v1978, %v2024
    %v2026 = vsub.f32 1.0, %v2025
    %v2027 = vmul.f32 %v2024, %v2026
    %v2028 = vadd.f32 %v2024, %v2027
    %vm2029 = vweird.f32 %v1978
    %vm2030 = vweird.f32 %v2024
    %vm2031 = vmor %vm2029, %vm2030
    %v2032 = vsel %vm2031, %v2024, %v2028
    %v2033 = vand.u32 2147483647, %v1978
    %vm2034 = vcmp.eq.f32.partialorder %v2033, 8.507059e+37
    %v2035 = vand.u32 %v1978, 2147483648
    %v2036 = vor.u32 1.1754944e-38, %v2035
    %v2037 = vsel %vm2034, %v2036, %v2032
    %v2038 = vmul.f32 1.0, %v2037
    %v2039 = vrcp.pop %v1979
    %v2040 = vmul.f32 %v1979, %v2039
    %v2041 = vsub.f32 1.0, %v2040
    %v2042 = vmul.f32 %v2039, %v2041
    %v2043 = vadd.f32 %v2039, %v2042
    %vm2044 = vweird.f32 %v1979
    %vm2045 = vweird.f32 %v2039
    %vm2046 = vmor %vm2044, %vm2045
    %v2047 = vsel %vm2046, %v2039, %v2043
    %v2048 = vand.u32 2147483647, %v1979
    %vm2049 = vcmp.eq.f32.partialorder %v2048, 8.507059e+37
    %v2050 = vand.u32 %v1979, 2147483648
    %v2051 = vor.u32 1.1754944e-38, %v2050
    %v2052 = vsel %vm2049, %v2051, %v2047
    %v2053 = vmul.f32 1.0, %v2052
    %v2054 = vrcp.pop %v1980
    %v2055 = vmul.f32 %v1980, %v2054
    %v2056 = vsub.f32 1.0, %v2055
    %v2057 = vmul.f32 %v2054, %v2056
    %v2058 = vadd.f32 %v2054, %v2057
    %vm2059 = vweird.f32 %v1980
    %vm2060 = vweird.f32 %v2054
    %vm2061 = vmor %vm2059, %vm2060
    %v2062 = vsel %vm2061, %v2054, %v2058
    %v2063 = vand.u32 2147483647, %v1980
    %vm2064 = vcmp.eq.f32.partialorder %v2063, 8.507059e+37
    %v2065 = vand.u32 %v1980, 2147483648
    %v2066 = vor.u32 1.1754944e-38, %v2065
    %v2067 = vsel %vm2064, %v2066, %v2062
    %v2068 = vmul.f32 1.0, %v2067
    %v2069 = vrcp.pop %v1981
    %v2070 = vmul.f32 %v1981, %v2069
    %v2071 = vsub.f32 1.0, %v2070
    %v2072 = vmul.f32 %v2069, %v2071
    %v2073 = vadd.f32 %v2069, %v2072
    %vm2074 = vweird.f32 %v1981
    %vm2075 = vweird.f32 %v2069
    %vm2076 = vmor %vm2074, %vm2075
    %v2077 = vsel %vm2076, %v2069, %v2073
    %v2078 = vand.u32 2147483647, %v1981
    %vm2079 = vcmp.eq.f32.partialorder %v2078, 8.507059e+37
    %v2080 = vand.u32 %v1981, 2147483648
    %v2081 = vor.u32 1.1754944e-38, %v2080
    %v2082 = vsel %vm2079, %v2081, %v2077
    %v2083 = vmul.f32 1.0, %v2082
    %v2084 = vrcp.pop %v1982
    %v2085 = vmul.f32 %v1982, %v2084
    %v2086 = vsub.f32 1.0, %v2085
    %v2087 = vmul.f32 %v2084, %v2086
    %v2088 = vadd.f32 %v2084, %v2087
    %vm2089 = vweird.f32 %v1982
    %vm2090 = vweird.f32 %v2084
    %vm2091 = vmor %vm2089, %vm2090
    %v2092 = vsel %vm2091, %v2084, %v2088
    %v2093 = vand.u32 2147483647, %v1982
    %vm2094 = vcmp.eq.f32.partialorder %v2093, 8.507059e+37
    %v2095 = vand.u32 %v1982, 2147483648
    %v2096 = vor.u32 1.1754944e-38, %v2095
    %v2097 = vsel %vm2094, %v2096, %v2092
    %v2098 = vmul.f32 1.0, %v2097
    %v2099 = vrcp.pop %v1983
    %v2100 = vmul.f32 %v1983, %v2099
    %v2101 = vsub.f32 1.0, %v2100
    %v2102 = vmul.f32 %v2099, %v2101
    %v2103 = vadd.f32 %v2099, %v2102
    %vm2104 = vweird.f32 %v1983
    %vm2105 = vweird.f32 %v2099
    %vm2106 = vmor %vm2104, %vm2105
    %v2107 = vsel %vm2106, %v2099, %v2103
    %v2108 = vand.u32 2147483647, %v1983
    %vm2109 = vcmp.eq.f32.partialorder %v2108, 8.507059e+37
    %v2110 = vand.u32 %v1983, 2147483648
    %v2111 = vor.u32 1.1754944e-38, %v2110
    %v2112 = vsel %vm2109, %v2111, %v2107
    %v2113 = vmul.f32 1.0, %v2112
    %v2114 = vrcp.pop %v1984
    %v2115 = vmul.f32 %v1984, %v2114
    %v2116 = vsub.f32 1.0, %v2115
    %v2117 = vmul.f32 %v2114, %v2116
    %v2118 = vadd.f32 %v2114, %v2117
    %vm2119 = vweird.f32 %v1984
    %vm2120 = vweird.f32 %v2114
    %vm2121 = vmor %vm2119, %vm2120
    %v2122 = vsel %vm2121, %v2114, %v2118
    %v2123 = vand.u32 2147483647, %v1984
    %vm2124 = vcmp.eq.f32.partialorder %v2123, 8.507059e+37
    %v2125 = vand.u32 %v1984, 2147483648
    %v2126 = vor.u32 1.1754944e-38, %v2125
    %v2127 = vsel %vm2124, %v2126, %v2122
    %v2128 = vmul.f32 1.0, %v2127
    %v2129 = vrcp.pop %v1985
    %v2130 = vmul.f32 %v1985, %v2129
    %v2131 = vsub.f32 1.0, %v2130
    %v2132 = vmul.f32 %v2129, %v2131
    %v2133 = vadd.f32 %v2129, %v2132
    %vm2134 = vweird.f32 %v1985
    %vm2135 = vweird.f32 %v2129
    %vm2136 = vmor %vm2134, %vm2135
    %v2137 = vsel %vm2136, %v2129, %v2133
    %v2138 = vand.u32 2147483647, %v1985
    %vm2139 = vcmp.eq.f32.partialorder %v2138, 8.507059e+37
    %v2140 = vand.u32 %v1985, 2147483648
    %v2141 = vor.u32 1.1754944e-38, %v2140
    %v2142 = vsel %vm2139, %v2141, %v2137
    %v2143 = vmul.f32 1.0, %v2142
    %v2144 = vrcp.pop %v1986
    %v2145 = vmul.f32 %v1986, %v2144
    %v2146 = vsub.f32 1.0, %v2145
    %v2147 = vmul.f32 %v2144, %v2146
    %v2148 = vadd.f32 %v2144, %v2147
    %vm2149 = vweird.f32 %v1986
    %vm2150 = vweird.f32 %v2144
    %vm2151 = vmor %vm2149, %vm2150
    %v2152 = vsel %vm2151, %v2144, %v2148
    %v2153 = vand.u32 2147483647, %v1986
    %vm2154 = vcmp.eq.f32.partialorder %v2153, 8.507059e+37
    %v2155 = vand.u32 %v1986, 2147483648
    %v2156 = vor.u32 1.1754944e-38, %v2155
    %v2157 = vsel %vm2154, %v2156, %v2152
    %v2158 = vmul.f32 1.0, %v2157
    %v2159 = vrcp.pop %v1987
    %v2160 = vmul.f32 %v1987, %v2159
    %v2161 = vsub.f32 1.0, %v2160
    %v2162 = vmul.f32 %v2159, %v2161
    %v2163 = vadd.f32 %v2159, %v2162
    %vm2164 = vweird.f32 %v1987
    %vm2165 = vweird.f32 %v2159
    %vm2166 = vmor %vm2164, %vm2165
    %v2167 = vsel %vm2166, %v2159, %v2163
    %v2168 = vand.u32 2147483647, %v1987
    %vm2169 = vcmp.eq.f32.partialorder %v2168, 8.507059e+37
    %v2170 = vand.u32 %v1987, 2147483648
    %v2171 = vor.u32 1.1754944e-38, %v2170
    %v2172 = vsel %vm2169, %v2171, %v2167
    %v2173 = vmul.f32 1.0, %v2172
    %v2174 = vrcp.pop %v1988
    %v2175 = vmul.f32 %v1988, %v2174
    %v2176 = vsub.f32 1.0, %v2175
    %v2177 = vmul.f32 %v2174, %v2176
    %v2178 = vadd.f32 %v2174, %v2177
    %vm2179 = vweird.f32 %v1988
    %vm2180 = vweird.f32 %v2174
    %vm2181 = vmor %vm2179, %vm2180
    %v2182 = vsel %vm2181, %v2174, %v2178
    %v2183 = vand.u32 2147483647, %v1988
    %vm2184 = vcmp.eq.f32.partialorder %v2183, 8.507059e+37
    %v2185 = vand.u32 %v1988, 2147483648
    %v2186 = vor.u32 1.1754944e-38, %v2185
    %v2187 = vsel %vm2184, %v2186, %v2182
    %v2188 = vmul.f32 1.0, %v2187
    %v2189 = vrcp.pop %v1989
    %v2190 = vmul.f32 %v1989, %v2189
    %v2191 = vsub.f32 1.0, %v2190
    %v2192 = vmul.f32 %v2189, %v2191
    %v2193 = vadd.f32 %v2189, %v2192
    %vm2194 = vweird.f32 %v1989
    %vm2195 = vweird.f32 %v2189
    %vm2196 = vmor %vm2194, %vm2195
    %v2197 = vsel %vm2196, %v2189, %v2193
    %v2198 = vand.u32 2147483647, %v1989
    %vm2199 = vcmp.eq.f32.partialorder %v2198, 8.507059e+37
    %v2200 = vand.u32 %v1989, 2147483648
    %v2201 = vor.u32 1.1754944e-38, %v2200
    %v2202 = vsel %vm2199, %v2201, %v2197
    %v2203 = vmul.f32 1.0, %v2202
    %v2204 = vrcp.pop %v1990
    %v2205 = vmul.f32 %v1990, %v2204
    %v2206 = vsub.f32 1.0, %v2205
    %v2207 = vmul.f32 %v2204, %v2206
    %v2208 = vadd.f32 %v2204, %v2207
    %vm2209 = vweird.f32 %v1990
    %vm2210 = vweird.f32 %v2204
    %vm2211 = vmor %vm2209, %vm2210
    %v2212 = vsel %vm2211, %v2204, %v2208
    %v2213 = vand.u32 2147483647, %v1990
    %vm2214 = vcmp.eq.f32.partialorder %v2213, 8.507059e+37
    %v2215 = vand.u32 %v1990, 2147483648
    %v2216 = vor.u32 1.1754944e-38, %v2215
    %v2217 = vsel %vm2214, %v2216, %v2212
    %v2218 = vmul.f32 1.0, %v2217
    %v2219 = vrcp.pop %v1991
    %v2220 = vmul.f32 %v1991, %v2219
    %v2221 = vsub.f32 1.0, %v2220
    %v2222 = vmul.f32 %v2219, %v2221
    %v2223 = vadd.f32 %v2219, %v2222
    %vm2224 = vweird.f32 %v1991
    %vm2225 = vweird.f32 %v2219
    %vm2226 = vmor %vm2224, %vm2225
    %v2227 = vsel %vm2226, %v2219, %v2223
    %v2228 = vand.u32 2147483647, %v1991
    %vm2229 = vcmp.eq.f32.partialorder %v2228, 8.507059e+37
    %v2230 = vand.u32 %v1991, 2147483648
    %v2231 = vor.u32 1.1754944e-38, %v2230
    %v2232 = vsel %vm2229, %v2231, %v2227
    %v2233 = vmul.f32 1.0, %v2232
    %v2234 = vrcp.pop %v1992
    %v2235 = vmul.f32 %v1992, %v2234
    %v2236 = vsub.f32 1.0, %v2235
    %v2237 = vmul.f32 %v2234, %v2236
    %v2238 = vadd.f32 %v2234, %v2237
    %vm2239 = vweird.f32 %v1992
    %vm2240 = vweird.f32 %v2234
    %vm2241 = vmor %vm2239, %vm2240
    %v2242 = vsel %vm2241, %v2234, %v2238
    %v2243 = vand.u32 2147483647, %v1992
    %vm2244 = vcmp.eq.f32.partialorder %v2243, 8.507059e+37
    %v2245 = vand.u32 %v1992, 2147483648
    %v2246 = vor.u32 1.1754944e-38, %v2245
    %v2247 = vsel %vm2244, %v2246, %v2242
    %v2248 = vmul.f32 1.0, %v2247
    %v2249 = vrcp.pop %v1993
    %v2250 = vmul.f32 %v1993, %v2249
    %v2251 = vsub.f32 1.0, %v2250
    %v2252 = vmul.f32 %v2249, %v2251
    %v2253 = vadd.f32 %v2249, %v2252
    %vm2254 = vweird.f32 %v1993
    %vm2255 = vweird.f32 %v2249
    %vm2256 = vmor %vm2254, %vm2255
    %v2257 = vsel %vm2256, %v2249, %v2253
    %v2258 = vand.u32 2147483647, %v1993
    %vm2259 = vcmp.eq.f32.partialorder %v2258, 8.507059e+37
    %v2260 = vand.u32 %v1993, 2147483648
    %v2261 = vor.u32 1.1754944e-38, %v2260
    %v2262 = vsel %vm2259, %v2261, %v2257
    %v2263 = vmul.f32 1.0, %v2262
    %v2264 = vrcp.pop %v1994
    %v2265 = vmul.f32 %v1994, %v2264
    %v2266 = vsub.f32 1.0, %v2265
    %v2267 = vmul.f32 %v2264, %v2266
    %v2268 = vadd.f32 %v2264, %v2267
    %vm2269 = vweird.f32 %v1994
    %vm2270 = vweird.f32 %v2264
    %vm2271 = vmor %vm2269, %vm2270
    %v2272 = vsel %vm2271, %v2264, %v2268
    %v2273 = vand.u32 2147483647, %v1994
    %vm2274 = vcmp.eq.f32.partialorder %v2273, 8.507059e+37
    %v2275 = vand.u32 %v1994, 2147483648
    %v2276 = vor.u32 1.1754944e-38, %v2275
    %v2277 = vsel %vm2274, %v2276, %v2272
    %v2278 = vmul.f32 1.0, %v2277
    %v2279 = vrcp.pop %v1995
    %v2280 = vmul.f32 %v1995, %v2279
    %v2281 = vsub.f32 1.0, %v2280
    %v2282 = vmul.f32 %v2279, %v2281
    %v2283 = vadd.f32 %v2279, %v2282
    %vm2284 = vweird.f32 %v1995
    %vm2285 = vweird.f32 %v2279
    %vm2286 = vmor %vm2284, %vm2285
    %v2287 = vsel %vm2286, %v2279, %v2283
    %v2288 = vand.u32 2147483647, %v1995
    %vm2289 = vcmp.eq.f32.partialorder %v2288, 8.507059e+37
    %v2290 = vand.u32 %v1995, 2147483648
    %v2291 = vor.u32 1.1754944e-38, %v2290
    %v2292 = vsel %vm2289, %v2291, %v2287
    %v2293 = vmul.f32 1.0, %v2292
    %v2294 = vrcp.pop %v1996
    %v2295 = vmul.f32 %v1996, %v2294
    %v2296 = vsub.f32 1.0, %v2295
    %v2297 = vmul.f32 %v2294, %v2296
    %v2298 = vadd.f32 %v2294, %v2297
    %vm2299 = vweird.f32 %v1996
    %vm2300 = vweird.f32 %v2294
    %vm2301 = vmor %vm2299, %vm2300
    %v2302 = vsel %vm2301, %v2294, %v2298
    %v2303 = vand.u32 2147483647, %v1996
    %vm2304 = vcmp.eq.f32.partialorder %v2303, 8.507059e+37
    %v2305 = vand.u32 %v1996, 2147483648
    %v2306 = vor.u32 1.1754944e-38, %v2305
    %v2307 = vsel %vm2304, %v2306, %v2302
    %v2308 = vmul.f32 1.0, %v2307
    %v2309 = vrcp.pop %v1997
    %v2310 = vmul.f32 %v1997, %v2309
    %v2311 = vsub.f32 1.0, %v2310
    %v2312 = vmul.f32 %v2309, %v2311
    %v2313 = vadd.f32 %v2309, %v2312
    %vm2314 = vweird.f32 %v1997
    %vm2315 = vweird.f32 %v2309
    %vm2316 = vmor %vm2314, %vm2315
    %v2317 = vsel %vm2316, %v2309, %v2313
    %v2318 = vand.u32 2147483647, %v1997
    %vm2319 = vcmp.eq.f32.partialorder %v2318, 8.507059e+37
    %v2320 = vand.u32 %v1997, 2147483648
    %v2321 = vor.u32 1.1754944e-38, %v2320
    %v2322 = vsel %vm2319, %v2321, %v2317
    %v2323 = vmul.f32 1.0, %v2322
    %v2324 = vrcp.pop %v1998
    %v2325 = vmul.f32 %v1998, %v2324
    %v2326 = vsub.f32 1.0, %v2325
    %v2327 = vmul.f32 %v2324, %v2326
    %v2328 = vadd.f32 %v2324, %v2327
    %vm2329 = vweird.f32 %v1998
    %vm2330 = vweird.f32 %v2324
    %vm2331 = vmor %vm2329, %vm2330
    %v2332 = vsel %vm2331, %v2324, %v2328
    %v2333 = vand.u32 2147483647, %v1998
    %vm2334 = vcmp.eq.f32.partialorder %v2333, 8.507059e+37
    %v2335 = vand.u32 %v1998, 2147483648
    %v2336 = vor.u32 1.1754944e-38, %v2335
    %v2337 = vsel %vm2334, %v2336, %v2332
    %v2338 = vmul.f32 1.0, %v2337
    %v2339 = vrcp.pop %v1999
    %v2340 = vmul.f32 %v1999, %v2339
    %v2341 = vsub.f32 1.0, %v2340
    %v2342 = vmul.f32 %v2339, %v2341
    %v2343 = vadd.f32 %v2339, %v2342
    %vm2344 = vweird.f32 %v1999
    %vm2345 = vweird.f32 %v2339
    %vm2346 = vmor %vm2344, %vm2345
    %v2347 = vsel %vm2346, %v2339, %v2343
    %v2348 = vand.u32 2147483647, %v1999
    %vm2349 = vcmp.eq.f32.partialorder %v2348, 8.507059e+37
    %v2350 = vand.u32 %v1999, 2147483648
    %v2351 = vor.u32 1.1754944e-38, %v2350
    %v2352 = vsel %vm2349, %v2351, %v2347
    %v2353 = vmul.f32 1.0, %v2352
    %v2354 = vrcp.pop %v2000
    %v2355 = vmul.f32 %v2000, %v2354
    %v2356 = vsub.f32 1.0, %v2355
    %v2357 = vmul.f32 %v2354, %v2356
    %v2358 = vadd.f32 %v2354, %v2357
    %vm2359 = vweird.f32 %v2000
    %vm2360 = vweird.f32 %v2354
    %vm2361 = vmor %vm2359, %vm2360
    %v2362 = vsel %vm2361, %v2354, %v2358
    %v2363 = vand.u32 2147483647, %v2000
    %vm2364 = vcmp.eq.f32.partialorder %v2363, 8.507059e+37
    %v2365 = vand.u32 %v2000, 2147483648
    %v2366 = vor.u32 1.1754944e-38, %v2365
    %v2367 = vsel %vm2364, %v2366, %v2362
    %v2368 = vmul.f32 1.0, %v2367
    %v2369 = vrcp.pop %v2001
    %v2370 = vmul.f32 %v2001, %v2369
    %v2371 = vsub.f32 1.0, %v2370
    %v2372 = vmul.f32 %v2369, %v2371
    %v2373 = vadd.f32 %v2369, %v2372
    %vm2374 = vweird.f32 %v2001
    %vm2375 = vweird.f32 %v2369
    %vm2376 = vmor %vm2374, %vm2375
    %v2377 = vsel %vm2376, %v2369, %v2373
    %v2378 = vand.u32 2147483647, %v2001
    %vm2379 = vcmp.eq.f32.partialorder %v2378, 8.507059e+37
    %v2380 = vand.u32 %v2001, 2147483648
    %v2381 = vor.u32 1.1754944e-38, %v2380
    %v2382 = vsel %vm2379, %v2381, %v2377
    %v2383 = vmul.f32 1.0, %v2382
    %v2384 = vrcp.pop %v2002
    %v2385 = vmul.f32 %v2002, %v2384
    %v2386 = vsub.f32 1.0, %v2385
    %v2387 = vmul.f32 %v2384, %v2386
    %v2388 = vadd.f32 %v2384, %v2387
    %vm2389 = vweird.f32 %v2002
    %vm2390 = vweird.f32 %v2384
    %vm2391 = vmor %vm2389, %vm2390
    %v2392 = vsel %vm2391, %v2384, %v2388
    %v2393 = vand.u32 2147483647, %v2002
    %vm2394 = vcmp.eq.f32.partialorder %v2393, 8.507059e+37
    %v2395 = vand.u32 %v2002, 2147483648
    %v2396 = vor.u32 1.1754944e-38, %v2395
    %v2397 = vsel %vm2394, %v2396, %v2392
    %v2398 = vmul.f32 1.0, %v2397
    %v2399 = vrcp.pop %v2003
    %v2400 = vmul.f32 %v2003, %v2399
    %v2401 = vsub.f32 1.0, %v2400
    %v2402 = vmul.f32 %v2399, %v2401
    %v2403 = vadd.f32 %v2399, %v2402
    %vm2404 = vweird.f32 %v2003
    %vm2405 = vweird.f32 %v2399
    %vm2406 = vmor %vm2404, %vm2405
    %v2407 = vsel %vm2406, %v2399, %v2403
    %v2408 = vand.u32 2147483647, %v2003
    %vm2409 = vcmp.eq.f32.partialorder %v2408, 8.507059e+37
    %v2410 = vand.u32 %v2003, 2147483648
    %v2411 = vor.u32 1.1754944e-38, %v2410
    %v2412 = vsel %vm2409, %v2411, %v2407
    %v2413 = vmul.f32 1.0, %v2412
    %v2414 = vrcp.pop %v2004
    %v2415 = vmul.f32 %v2004, %v2414
    %v2416 = vsub.f32 1.0, %v2415
    %v2417 = vmul.f32 %v2414, %v2416
    %v2418 = vadd.f32 %v2414, %v2417
    %vm2419 = vweird.f32 %v2004
    %vm2420 = vweird.f32 %v2414
    %vm2421 = vmor %vm2419, %vm2420
    %v2422 = vsel %vm2421, %v2414, %v2418
    %v2423 = vand.u32 2147483647, %v2004
    %vm2424 = vcmp.eq.f32.partialorder %v2423, 8.507059e+37
    %v2425 = vand.u32 %v2004, 2147483648
    %v2426 = vor.u32 1.1754944e-38, %v2425
    %v2427 = vsel %vm2424, %v2426, %v2422
    %v2428 = vmul.f32 1.0, %v2427
    %v2429 = vrcp.pop %v2005
    %v2430 = vmul.f32 %v2005, %v2429
    %v2431 = vsub.f32 1.0, %v2430
    %v2432 = vmul.f32 %v2429, %v2431
    %v2433 = vadd.f32 %v2429, %v2432
    %vm2434 = vweird.f32 %v2005
    %vm2435 = vweird.f32 %v2429
    %vm2436 = vmor %vm2434, %vm2435
    %v2437 = vsel %vm2436, %v2429, %v2433
    %v2438 = vand.u32 2147483647, %v2005
    %vm2439 = vcmp.eq.f32.partialorder %v2438, 8.507059e+37
    %v2440 = vand.u32 %v2005, 2147483648
    %v2441 = vor.u32 1.1754944e-38, %v2440
    %v2442 = vsel %vm2439, %v2441, %v2437
    %v2443 = vmul.f32 1.0, %v2442
    %v2444 = vrcp.pop %v2006
    %v2445 = vmul.f32 %v2006, %v2444
    %v2446 = vsub.f32 1.0, %v2445
    %v2447 = vmul.f32 %v2444, %v2446
    %v2448 = vadd.f32 %v2444, %v2447
    %vm2449 = vweird.f32 %v2006
    %vm2450 = vweird.f32 %v2444
    %vm2451 = vmor %vm2449, %vm2450
    %v2452 = vsel %vm2451, %v2444, %v2448
    %v2453 = vand.u32 2147483647, %v2006
    %vm2454 = vcmp.eq.f32.partialorder %v2453, 8.507059e+37
    %v2455 = vand.u32 %v2006, 2147483648
    %v2456 = vor.u32 1.1754944e-38, %v2455
    %v2457 = vsel %vm2454, %v2456, %v2452
    %v2458 = vmul.f32 1.0, %v2457
    %v2459 = vrcp.pop %v2007
    %v2460 = vmul.f32 %v2007, %v2459
    %v2461 = vsub.f32 1.0, %v2460
    %v2462 = vmul.f32 %v2459, %v2461
    %v2463 = vadd.f32 %v2459, %v2462
    %vm2464 = vweird.f32 %v2007
    %vm2465 = vweird.f32 %v2459
    %vm2466 = vmor %vm2464, %vm2465
    %v2467 = vsel %vm2466, %v2459, %v2463
    %v2468 = vand.u32 2147483647, %v2007
    %vm2469 = vcmp.eq.f32.partialorder %v2468, 8.507059e+37
    %v2470 = vand.u32 %v2007, 2147483648
    %v2471 = vor.u32 1.1754944e-38, %v2470
    %v2472 = vsel %vm2469, %v2471, %v2467
    %v2473 = vmul.f32 1.0, %v2472
    %v2474 = vrcp.pop %v2008
    %v2475 = vmul.f32 %v2008, %v2474
    %v2476 = vsub.f32 1.0, %v2475
    %v2477 = vmul.f32 %v2474, %v2476
    %v2478 = vadd.f32 %v2474, %v2477
    %vm2479 = vweird.f32 %v2008
    %vm2480 = vweird.f32 %v2474
    %vm2481 = vmor %vm2479, %vm2480
    %v2482 = vsel %vm2481, %v2474, %v2478
    %v2483 = vand.u32 2147483647, %v2008
    %vm2484 = vcmp.eq.f32.partialorder %v2483, 8.507059e+37
    %v2485 = vand.u32 %v2008, 2147483648
    %v2486 = vor.u32 1.1754944e-38, %v2485
    %v2487 = vsel %vm2484, %v2486, %v2482
    %v2488 = vmul.f32 1.0, %v2487
    %2490 = vset.pattern.permute.xlu0 0
    %2491 = vperm.xlu0 %2490, %v98
    %v2492 = vpop.permute.xlu0 %2491
    %2495 = vset.pattern.permute.xlu0 0
    %2496 = vperm.xlu0 %2495, %v99
    %v2497 = vpop.permute.xlu0 %2496
    %2500 = vset.pattern.permute.xlu0 0
    %2501 = vperm.xlu0 %2500, %v100
    %v2502 = vpop.permute.xlu0 %2501
    %2505 = vset.pattern.permute.xlu0 0
    %2506 = vperm.xlu0 %2505, %v101
    %v2507 = vpop.permute.xlu0 %2506
    %2510 = vset.pattern.permute.xlu0 0
    %2511 = vperm.xlu0 %2510, %v102
    %v2512 = vpop.permute.xlu0 %2511
    %2515 = vset.pattern.permute.xlu0 0
    %2516 = vperm.xlu0 %2515, %v103
    %v2517 = vpop.permute.xlu0 %2516
    %2520 = vset.pattern.permute.xlu0 0
    %2521 = vperm.xlu0 %2520, %v104
    %v2522 = vpop.permute.xlu0 %2521
    %2525 = vset.pattern.permute.xlu0 0
    %2526 = vperm.xlu0 %2525, %v105
    %v2527 = vpop.permute.xlu0 %2526
    %2530 = vset.pattern.permute.xlu0 0
    %2531 = vperm.xlu0 %2530, %v106
    %v2532 = vpop.permute.xlu0 %2531
    %2535 = vset.pattern.permute.xlu0 0
    %2536 = vperm.xlu0 %2535, %v107
    %v2537 = vpop.permute.xlu0 %2536
    %2540 = vset.pattern.permute.xlu0 0
    %2541 = vperm.xlu0 %2540, %v108
    %v2542 = vpop.permute.xlu0 %2541
    %2545 = vset.pattern.permute.xlu0 0
    %2546 = vperm.xlu0 %2545, %v109
    %v2547 = vpop.permute.xlu0 %2546
    %2550 = vset.pattern.permute.xlu0 0
    %2551 = vperm.xlu0 %2550, %v110
    %v2552 = vpop.permute.xlu0 %2551
    %2555 = vset.pattern.permute.xlu0 0
    %2556 = vperm.xlu0 %2555, %v111
    %v2557 = vpop.permute.xlu0 %2556
    %2560 = vset.pattern.permute.xlu0 0
    %2561 = vperm.xlu0 %2560, %v112
    %v2562 = vpop.permute.xlu0 %2561
    %2565 = vset.pattern.permute.xlu0 0
    %2566 = vperm.xlu0 %2565, %v113
    %v2567 = vpop.permute.xlu0 %2566
    %2570 = vset.pattern.permute.xlu0 0
    %2571 = vperm.xlu0 %2570, %v114
    %v2572 = vpop.permute.xlu0 %2571
    %2575 = vset.pattern.permute.xlu0 0
    %2576 = vperm.xlu0 %2575, %v115
    %v2577 = vpop.permute.xlu0 %2576
    %2580 = vset.pattern.permute.xlu0 0
    %2581 = vperm.xlu0 %2580, %v116
    %v2582 = vpop.permute.xlu0 %2581
    %2585 = vset.pattern.permute.xlu0 0
    %2586 = vperm.xlu0 %2585, %v117
    %v2587 = vpop.permute.xlu0 %2586
    %2590 = vset.pattern.permute.xlu0 0
    %2591 = vperm.xlu0 %2590, %v118
    %v2592 = vpop.permute.xlu0 %2591
    %2595 = vset.pattern.permute.xlu0 0
    %2596 = vperm.xlu0 %2595, %v119
    %v2597 = vpop.permute.xlu0 %2596
    %2600 = vset.pattern.permute.xlu0 0
    %2601 = vperm.xlu0 %2600, %v120
    %v2602 = vpop.permute.xlu0 %2601
    %2605 = vset.pattern.permute.xlu0 0
    %2606 = vperm.xlu0 %2605, %v121
    %v2607 = vpop.permute.xlu0 %2606
    %2610 = vset.pattern.permute.xlu0 0
    %2611 = vperm.xlu0 %2610, %v122
    %v2612 = vpop.permute.xlu0 %2611
    %2615 = vset.pattern.permute.xlu0 0
    %2616 = vperm.xlu0 %2615, %v123
    %v2617 = vpop.permute.xlu0 %2616
    %2620 = vset.pattern.permute.xlu0 0
    %2621 = vperm.xlu0 %2620, %v124
    %v2622 = vpop.permute.xlu0 %2621
    %2625 = vset.pattern.permute.xlu0 0
    %2626 = vperm.xlu0 %2625, %v125
    %v2627 = vpop.permute.xlu0 %2626
    %2630 = vset.pattern.permute.xlu0 0
    %2631 = vperm.xlu0 %2630, %v126
    %v2632 = vpop.permute.xlu0 %2631
    %2635 = vset.pattern.permute.xlu0 0
    %2636 = vperm.xlu0 %2635, %v127
    %v2637 = vpop.permute.xlu0 %2636
    %2640 = vset.pattern.permute.xlu0 0
    %2641 = vperm.xlu0 %2640, %v128
    %v2642 = vpop.permute.xlu0 %2641
    %2645 = vset.pattern.permute.xlu0 0
    %2646 = vperm.xlu0 %2645, %v129
    %v2647 = vpop.permute.xlu0 %2646
    %v2649 = vmul.f32 %v2023, %v2492
    %v2650 = vmul.f32 %v2038, %v2497
    %v2651 = vmul.f32 %v2053, %v2502
    %v2652 = vmul.f32 %v2068, %v2507
    %v2653 = vmul.f32 %v2083, %v2512
    %v2654 = vmul.f32 %v2098, %v2517
    %v2655 = vmul.f32 %v2113, %v2522
    %v2656 = vmul.f32 %v2128, %v2527
    %v2657 = vmul.f32 %v2143, %v2532
    %v2658 = vmul.f32 %v2158, %v2537
    %v2659 = vmul.f32 %v2173, %v2542
    %v2660 = vmul.f32 %v2188, %v2547
    %v2661 = vmul.f32 %v2203, %v2552
    %v2662 = vmul.f32 %v2218, %v2557
    %v2663 = vmul.f32 %v2233, %v2562
    %v2664 = vmul.f32 %v2248, %v2567
    %v2665 = vmul.f32 %v2263, %v2572
    %v2666 = vmul.f32 %v2278, %v2577
    %v2667 = vmul.f32 %v2293, %v2582
    %v2668 = vmul.f32 %v2308, %v2587
    %v2669 = vmul.f32 %v2323, %v2592
    %v2670 = vmul.f32 %v2338, %v2597
    %v2671 = vmul.f32 %v2353, %v2602
    %v2672 = vmul.f32 %v2368, %v2607
    %v2673 = vmul.f32 %v2383, %v2612
    %v2674 = vmul.f32 %v2398, %v2617
    %v2675 = vmul.f32 %v2413, %v2622
    %v2676 = vmul.f32 %v2428, %v2627
    %v2677 = vmul.f32 %v2443, %v2632
    %v2678 = vmul.f32 %v2458, %v2637
    %v2679 = vmul.f32 %v2473, %v2642
    %v2680 = vmul.f32 %v2488, %v2647
    %v2681 = vsel %vm1392, %v2649, 0.0
    %v2682 = vsel %vm1392, %v2650, 0.0
    %v2683 = vadd.f32 %v2681, %v2682
    %v2684 = vsel %vm1392, %v2651, 0.0
    %v2685 = vadd.f32 %v2683, %v2684
    %v2686 = vsel %vm1392, %v2652, 0.0
    %v2687 = vadd.f32 %v2685, %v2686
    %v2688 = vsel %vm1392, %v2653, 0.0
    %v2689 = vadd.f32 %v2687, %v2688
    %v2690 = vsel %vm1392, %v2654, 0.0
    %v2691 = vadd.f32 %v2689, %v2690
    %v2692 = vsel %vm1392, %v2655, 0.0
    %v2693 = vadd.f32 %v2691, %v2692
    %v2694 = vsel %vm1392, %v2656, 0.0
    %v2695 = vadd.f32 %v2693, %v2694
    %v2696 = vsel %vm1392, %v2657, 0.0
    %v2697 = vadd.f32 %v2695, %v2696
    %v2698 = vsel %vm1392, %v2658, 0.0
    %v2699 = vadd.f32 %v2697, %v2698
    %v2700 = vsel %vm1392, %v2659, 0.0
    %v2701 = vadd.f32 %v2699, %v2700
    %v2702 = vsel %vm1392, %v2660, 0.0
    %v2703 = vadd.f32 %v2701, %v2702
    %v2704 = vsel %vm1392, %v2661, 0.0
    %v2705 = vadd.f32 %v2703, %v2704
    %v2706 = vsel %vm1392, %v2662, 0.0
    %v2707 = vadd.f32 %v2705, %v2706
    %v2708 = vsel %vm1392, %v2663, 0.0
    %v2709 = vadd.f32 %v2707, %v2708
    %v2710 = vsel %vm1392, %v2664, 0.0
    %v2711 = vadd.f32 %v2709, %v2710
    %v2712 = vsel %vm1392, %v2665, 0.0
    %v2713 = vadd.f32 %v2711, %v2712
    %v2714 = vsel %vm1392, %v2666, 0.0
    %v2715 = vadd.f32 %v2713, %v2714
    %v2716 = vsel %vm1392, %v2667, 0.0
    %v2717 = vadd.f32 %v2715, %v2716
    %v2718 = vsel %vm1392, %v2668, 0.0
    %v2719 = vadd.f32 %v2717, %v2718
    %v2720 = vsel %vm1392, %v2669, 0.0
    %v2721 = vadd.f32 %v2719, %v2720
    %v2722 = vsel %vm1392, %v2670, 0.0
    %v2723 = vadd.f32 %v2721, %v2722
    %v2724 = vsel %vm1392, %v2671, 0.0
    %v2725 = vadd.f32 %v2723, %v2724
    %v2726 = vsel %vm1392, %v2672, 0.0
    %v2727 = vadd.f32 %v2725, %v2726
    %v2728 = vsel %vm1392, %v2673, 0.0
    %v2729 = vadd.f32 %v2727, %v2728
    %v2730 = vsel %vm1392, %v2674, 0.0
    %v2731 = vadd.f32 %v2729, %v2730
    %v2732 = vsel %vm1392, %v2675, 0.0
    %v2733 = vadd.f32 %v2731, %v2732
    %v2734 = vsel %vm1392, %v2676, 0.0
    %v2735 = vadd.f32 %v2733, %v2734
    %v2736 = vsel %vm1392, %v2677, 0.0
    %v2737 = vadd.f32 %v2735, %v2736
    %v2738 = vsel %vm1392, %v2678, 0.0
    %v2739 = vadd.f32 %v2737, %v2738
    %v2740 = vsel %vm1392, %v2679, 0.0
    %v2741 = vadd.f32 %v2739, %v2740
    %v2742 = vsel %vm1392, %v2680, 0.0
    %v2743 = vadd.f32 %v2741, %v2742
    %v2744 = vrot.slane %v2743, 4
    %v2745 = vadd.f32 %v2743, %v2744
    %v2746 = vrot.slane %v2745, 2
    %v2747 = vadd.f32 %v2745, %v2746
    %v2748 = vrot.slane %v2747, 1
    %v2749 = vadd.f32 %v2747, %v2748
    %vm2750 = vcmask 1040384
    %v2751 = vsel %vm2750, %v1461, %v2749
    %v2752 = vld [vmem:[%s11] sm:$0x1]
    %v2753 = vld [vmem:[%s12] sm:$0x1]
    %v2754 = vld [vmem:[%s13] sm:$0xff]
    %v2755 = vld [vmem:[%s13 + $0x8] sm:$0xff]
    %v2756 = vld [vmem:[%s13 + $0x10] sm:$0xff]
    %v2757 = vld [vmem:[%s13 + $0x18] sm:$0xff]
    %v2758 = vld [vmem:[%s13 + $0x20] sm:$0xff]
    %v2759 = vld [vmem:[%s13 + $0x28] sm:$0xff]
    %v2760 = vld [vmem:[%s13 + $0x30] sm:$0xff]
    %v2761 = vld [vmem:[%s13 + $0x38] sm:$0xff]
    %v2762 = vld [vmem:[%s14] sm:$0x1]
    %v2763 = vld [vmem:[%s15] sm:$0xf]
    %v2764 = vld [vmem:[%s16] sm:$0x1]
    %v2765 = vld [vmem:[%s17] sm:$0xff]
    %v2766 = vld [vmem:[%s17 + $0x8] sm:$0xff]
    %v2767 = vld [vmem:[%s17 + $0x10] sm:$0xff]
    %v2768 = vld [vmem:[%s17 + $0x18] sm:$0xff]
    %v2769 = vld [vmem:[%s17 + $0x20] sm:$0xff]
    %v2770 = vld [vmem:[%s17 + $0x28] sm:$0xff]
    %v2771 = vld [vmem:[%s17 + $0x30] sm:$0xff]
    %v2772 = vld [vmem:[%s17 + $0x38] sm:$0xff]
    %v2773 = vld [vmem:[%s1] sm:$0xff]
    %v2774 = vld [vmem:[%s1 + $0x8] sm:$0xff]
    %v2775 = vld [vmem:[%s1 + $0x10] sm:$0xff]
    %v2776 = vld [vmem:[%s1 + $0x18] sm:$0xff]
    %v2777 = vld [vmem:[%s1 + $0x20] sm:$0xff]
    %v2778 = vld [vmem:[%s1 + $0x28] sm:$0xff]
    %v2779 = vld [vmem:[%s1 + $0x30] sm:$0xff]
    %v2780 = vld [vmem:[%s1 + $0x38] sm:$0xff]
    %v2781 = vld [vmem:[%s1 + $0x40] sm:$0xff]
    %v2782 = vld [vmem:[%s1 + $0x48] sm:$0xff]
    %v2783 = vld [vmem:[%s1 + $0x50] sm:$0xff]
    %v2784 = vld [vmem:[%s1 + $0x58] sm:$0xff]
    %v2785 = vld [vmem:[%s1 + $0x60] sm:$0xff]
    %v2786 = vld [vmem:[%s1 + $0x68] sm:$0xff]
    %v2787 = vld [vmem:[%s1 + $0x70] sm:$0xff]
    %v2788 = vld [vmem:[%s1 + $0x78] sm:$0xff]
    %v2789 = vld [vmem:[%s1 + $0x80] sm:$0xff]
    %v2790 = vld [vmem:[%s1 + $0x88] sm:$0xff]
    %v2791 = vld [vmem:[%s1 + $0x90] sm:$0xff]
    %v2792 = vld [vmem:[%s1 + $0x98] sm:$0xff]
    %v2793 = vld [vmem:[%s1 + $0xa0] sm:$0xff]
    %v2794 = vld [vmem:[%s1 + $0xa8] sm:$0xff]
    %v2795 = vld [vmem:[%s1 + $0xb0] sm:$0xff]
    %v2796 = vld [vmem:[%s1 + $0xb8] sm:$0xff]
    %v2797 = vld [vmem:[%s1 + $0xc0] sm:$0xff]
    %v2798 = vld [vmem:[%s1 + $0xc8] sm:$0xff]
    %v2799 = vld [vmem:[%s1 + $0xd0] sm:$0xff]
    %v2800 = vld [vmem:[%s1 + $0xd8] sm:$0xff]
    %v2801 = vld [vmem:[%s1 + $0xe0] sm:$0xff]
    %v2802 = vld [vmem:[%s1 + $0xe8] sm:$0xff]
    %v2803 = vld [vmem:[%s1 + $0xf0] sm:$0xff]
    %v2804 = vld [vmem:[%s1 + $0xf8] sm:$0xff]
    %v2806 = vperm.slane %v2752, 0
    %v2808 = vmul.f32 %v2773, %v2806
    %v2809 = vmul.f32 %v2774, %v2806
    %v2810 = vmul.f32 %v2775, %v2806
    %v2811 = vmul.f32 %v2776, %v2806
    %v2812 = vmul.f32 %v2777, %v2806
    %v2813 = vmul.f32 %v2778, %v2806
    %v2814 = vmul.f32 %v2779, %v2806
    %v2815 = vmul.f32 %v2780, %v2806
    %v2816 = vmul.f32 %v2781, %v2806
    %v2817 = vmul.f32 %v2782, %v2806
    %v2818 = vmul.f32 %v2783, %v2806
    %v2819 = vmul.f32 %v2784, %v2806
    %v2820 = vmul.f32 %v2785, %v2806
    %v2821 = vmul.f32 %v2786, %v2806
    %v2822 = vmul.f32 %v2787, %v2806
    %v2823 = vmul.f32 %v2788, %v2806
    %v2824 = vmul.f32 %v2789, %v2806
    %v2825 = vmul.f32 %v2790, %v2806
    %v2826 = vmul.f32 %v2791, %v2806
    %v2827 = vmul.f32 %v2792, %v2806
    %v2828 = vmul.f32 %v2793, %v2806
    %v2829 = vmul.f32 %v2794, %v2806
    %v2830 = vmul.f32 %v2795, %v2806
    %v2831 = vmul.f32 %v2796, %v2806
    %v2832 = vmul.f32 %v2797, %v2806
    %v2833 = vmul.f32 %v2798, %v2806
    %v2834 = vmul.f32 %v2799, %v2806
    %v2835 = vmul.f32 %v2800, %v2806
    %v2836 = vmul.f32 %v2801, %v2806
    %v2837 = vmul.f32 %v2802, %v2806
    %v2838 = vmul.f32 %v2803, %v2806
    %v2839 = vmul.f32 %v2804, %v2806
    %v2841 = vperm.slane %v2753, 0
    %v2843 = vadd.f32 %v2808, %v2841
    %v2844 = vadd.f32 %v2809, %v2841
    %v2845 = vadd.f32 %v2810, %v2841
    %v2846 = vadd.f32 %v2811, %v2841
    %v2847 = vadd.f32 %v2812, %v2841
    %v2848 = vadd.f32 %v2813, %v2841
    %v2849 = vadd.f32 %v2814, %v2841
    %v2850 = vadd.f32 %v2815, %v2841
    %v2851 = vadd.f32 %v2816, %v2841
    %v2852 = vadd.f32 %v2817, %v2841
    %v2853 = vadd.f32 %v2818, %v2841
    %v2854 = vadd.f32 %v2819, %v2841
    %v2855 = vadd.f32 %v2820, %v2841
    %v2856 = vadd.f32 %v2821, %v2841
    %v2857 = vadd.f32 %v2822, %v2841
    %v2858 = vadd.f32 %v2823, %v2841
    %v2859 = vadd.f32 %v2824, %v2841
    %v2860 = vadd.f32 %v2825, %v2841
    %v2861 = vadd.f32 %v2826, %v2841
    %v2862 = vadd.f32 %v2827, %v2841
    %v2863 = vadd.f32 %v2828, %v2841
    %v2864 = vadd.f32 %v2829, %v2841
    %v2865 = vadd.f32 %v2830, %v2841
    %v2866 = vadd.f32 %v2831, %v2841
    %v2867 = vadd.f32 %v2832, %v2841
    %v2868 = vadd.f32 %v2833, %v2841
    %v2869 = vadd.f32 %v2834, %v2841
    %v2870 = vadd.f32 %v2835, %v2841
    %v2871 = vadd.f32 %v2836, %v2841
    %v2872 = vadd.f32 %v2837, %v2841
    %v2873 = vadd.f32 %v2838, %v2841
    %v2874 = vadd.f32 %v2839, %v2841
    %v2875 = vsel %vm253, %v2843, 0.0
    %v2876 = vsel %vm253, %v2844, 0.0
    %v2877 = vadd.f32 %v2875, %v2876
    %v2878 = vsel %vm253, %v2845, 0.0
    %v2879 = vadd.f32 %v2877, %v2878
    %v2880 = vsel %vm253, %v2846, 0.0
    %v2881 = vadd.f32 %v2879, %v2880
    %v2882 = vsel %vm253, %v2847, 0.0
    %v2883 = vadd.f32 %v2881, %v2882
    %v2884 = vsel %vm253, %v2848, 0.0
    %v2885 = vadd.f32 %v2883, %v2884
    %v2886 = vsel %vm253, %v2849, 0.0
    %v2887 = vadd.f32 %v2885, %v2886
    %v2888 = vsel %vm253, %v2850, 0.0
    %v2889 = vadd.f32 %v2887, %v2888
    %v2890 = vsel %vm253, %v2851, 0.0
    %v2891 = vadd.f32 %v2889, %v2890
    %v2892 = vsel %vm253, %v2852, 0.0
    %v2893 = vadd.f32 %v2891, %v2892
    %v2894 = vsel %vm253, %v2853, 0.0
    %v2895 = vadd.f32 %v2893, %v2894
    %v2896 = vsel %vm253, %v2854, 0.0
    %v2897 = vadd.f32 %v2895, %v2896
    %v2898 = vsel %vm253, %v2855, 0.0
    %v2899 = vadd.f32 %v2897, %v2898
    %v2900 = vsel %vm253, %v2856, 0.0
    %v2901 = vadd.f32 %v2899, %v2900
    %v2902 = vsel %vm253, %v2857, 0.0
    %v2903 = vadd.f32 %v2901, %v2902
    %v2904 = vsel %vm253, %v2858, 0.0
    %v2905 = vadd.f32 %v2903, %v2904
    %v2906 = vsel %vm253, %v2859, 0.0
    %v2907 = vadd.f32 %v2905, %v2906
    %v2908 = vsel %vm253, %v2860, 0.0
    %v2909 = vadd.f32 %v2907, %v2908
    %v2910 = vsel %vm253, %v2861, 0.0
    %v2911 = vadd.f32 %v2909, %v2910
    %v2912 = vsel %vm253, %v2862, 0.0
    %v2913 = vadd.f32 %v2911, %v2912
    %v2914 = vsel %vm253, %v2863, 0.0
    %v2915 = vadd.f32 %v2913, %v2914
    %v2916 = vsel %vm253, %v2864, 0.0
    %v2917 = vadd.f32 %v2915, %v2916
    %v2918 = vsel %vm253, %v2865, 0.0
    %v2919 = vadd.f32 %v2917, %v2918
    %v2920 = vsel %vm253, %v2866, 0.0
    %v2921 = vadd.f32 %v2919, %v2920
    %v2922 = vsel %vm253, %v2867, 0.0
    %v2923 = vadd.f32 %v2921, %v2922
    %v2924 = vsel %vm253, %v2868, 0.0
    %v2925 = vadd.f32 %v2923, %v2924
    %v2926 = vsel %vm253, %v2869, 0.0
    %v2927 = vadd.f32 %v2925, %v2926
    %v2928 = vsel %vm253, %v2870, 0.0
    %v2929 = vadd.f32 %v2927, %v2928
    %v2930 = vsel %vm253, %v2871, 0.0
    %v2931 = vadd.f32 %v2929, %v2930
    %v2932 = vsel %vm253, %v2872, 0.0
    %v2933 = vadd.f32 %v2931, %v2932
    %v2934 = vsel %vm253, %v2873, 0.0
    %v2935 = vadd.f32 %v2933, %v2934
    %v2936 = vsel %vm253, %v2874, 0.0
    %v2937 = vadd.f32 %v2935, %v2936
    %v2938 = vrot.slane %v2937, 4
    %v2939 = vadd.f32 %v2937, %v2938
    %v2940 = vrot.slane %v2939, 2
    %v2941 = vadd.f32 %v2939, %v2940
    %v2942 = vrot.slane %v2941, 1
    %v2943 = vadd.f32 %v2941, %v2942
    %v2944 = vmul.f32 %v2943, %v329
    %v2946 = vsel %vm253, %v2944, 0
    %2948 = vmatpush.msra.mxu0 0.0
    %2949 = vmatpush.msra.mxu0 0.0
    %2950 = vmatpush.msra.mxu0 0.0
    %2951 = vmatpush.msra.mxu0 0.0
    %2952 = vmatpush.msra.mxu0 0.0
    %2953 = vmatpush.msra.mxu0 0.0
    %2954 = vmatpush.msra.mxu0 0.0
    %2955 = vmatpush.msra.mxu0 0.0
    %2956 = vmatpush.msra.mxu0 %v2761
    %2957 = vmatpush.msra.mxu0 %v2760
    %2958 = vmatpush.msra.mxu0 %v2759
    %2959 = vmatpush.msra.mxu0 %v2758
    %2960 = vmatpush.msra.mxu0 %v2757
    %2961 = vmatpush.msra.mxu0 %v2756
    %2962 = vmatpush.msra.mxu0 %v2755
    %2963 = vmatpush.msra.mxu0 %v2754
    %2964 = vmatmul.f32.gmra.mxu0 %v2946
    %v2965 = vpop.f32.mrf.mxu0
    %v2966 = vadd.f32 %v2762, %v2965
    %2967 = vdwg.mxu0
    %v2968 = vmax.f32 %v2966, 0.0
    %v2970 = vsel %vm355, %v2968, 0
    %v2973 = vsel %vm359, %v2763, 0
    %2975 = vmatpush.msra.mxu0 0.0
    %2976 = vmatpush.msra.mxu0 0.0
    %2977 = vmatpush.msra.mxu0 0.0
    %2978 = vmatpush.msra.mxu0 0.0
    %2979 = vmatpush.msra.mxu0 0.0
    %2980 = vmatpush.msra.mxu0 0.0
    %2981 = vmatpush.msra.mxu0 0.0
    %2982 = vmatpush.msra.mxu0 0.0
    %2983 = vmatpush.msra.mxu0 0.0
    %2984 = vmatpush.msra.mxu0 0.0
    %2985 = vmatpush.msra.mxu0 0.0
    %2986 = vmatpush.msra.mxu0 0.0
    %2987 = vmatpush.msra.mxu0 0.0
    %2988 = vmatpush.msra.mxu0 0.0
    %2989 = vmatpush.msra.mxu0 0.0
    %2990 = vmatpush.msra.mxu0 %v2973
    %2991 = vmatmul.f32.gmra.mxu0 %v2970
    %v2992 = vpop.f32.mrf.mxu0
    %v2993 = vadd.f32 %v2764, %v2992
    %2994 = vdwg.mxu0
    %v2995 = vxor.u32 %v2993, 2147483648
    %v2996 = vmul.f32 %v2995, 1.442695
    %v2997 = vpow.pop %v2996
    %v2998 = vadd.f32 %v2997, 1.0
    %v2999 = vrcp.pop %v2998
    %v3000 = vmul.f32 %v2998, %v2999
    %v3001 = vsub.f32 1.0, %v3000
    %v3002 = vmul.f32 %v2999, %v3001
    %v3003 = vadd.f32 %v2999, %v3002
    %vm3004 = vweird.f32 %v2998
    %vm3005 = vweird.f32 %v2999
    %vm3006 = vmor %vm3004, %vm3005
    %v3007 = vsel %vm3006, %v2999, %v3003
    %v3008 = vand.u32 2147483647, %v2998
    %vm3009 = vcmp.eq.f32.partialorder %v3008, 8.507059e+37
    %v3010 = vand.u32 %v2998, 2147483648
    %v3011 = vor.u32 1.1754944e-38, %v3010
    %v3012 = vsel %vm3009, %v3011, %v3007
    %v3013 = vmul.f32 1.0, %v3012
    %v3014 = vperm.slane %v3013, 0
    %v3015 = vmul.f32 %v2843, %v3014
    %v3016 = vmul.f32 %v2844, %v3014
    %v3017 = vmul.f32 %v2845, %v3014
    %v3018 = vmul.f32 %v2846, %v3014
    %v3019 = vmul.f32 %v2847, %v3014
    %v3020 = vmul.f32 %v2848, %v3014
    %v3021 = vmul.f32 %v2849, %v3014
    %v3022 = vmul.f32 %v2850, %v3014
    %v3023 = vmul.f32 %v2851, %v3014
    %v3024 = vmul.f32 %v2852, %v3014
    %v3025 = vmul.f32 %v2853, %v3014
    %v3026 = vmul.f32 %v2854, %v3014
    %v3027 = vmul.f32 %v2855, %v3014
    %v3028 = vmul.f32 %v2856, %v3014
    %v3029 = vmul.f32 %v2857, %v3014
    %v3030 = vmul.f32 %v2858, %v3014
    %v3031 = vmul.f32 %v2859, %v3014
    %v3032 = vmul.f32 %v2860, %v3014
    %v3033 = vmul.f32 %v2861, %v3014
    %v3034 = vmul.f32 %v2862, %v3014
    %v3035 = vmul.f32 %v2863, %v3014
    %v3036 = vmul.f32 %v2864, %v3014
    %v3037 = vmul.f32 %v2865, %v3014
    %v3038 = vmul.f32 %v2866, %v3014
    %v3039 = vmul.f32 %v2867, %v3014
    %v3040 = vmul.f32 %v2868, %v3014
    %v3041 = vmul.f32 %v2869, %v3014
    %v3042 = vmul.f32 %v2870, %v3014
    %v3043 = vmul.f32 %v2871, %v3014
    %v3044 = vmul.f32 %v2872, %v3014
    %v3045 = vmul.f32 %v2873, %v3014
    %v3046 = vmul.f32 %v2874, %v3014
    %v3047 = vpack.c.bf16 %v3016, %v3015
    %v3048 = vpack.c.bf16 %v3018, %v3017
    %v3049 = vpack.c.bf16 %v3020, %v3019
    %v3050 = vpack.c.bf16 %v3022, %v3021
    %v3051 = vpack.c.bf16 %v3024, %v3023
    %v3052 = vpack.c.bf16 %v3026, %v3025
    %v3053 = vpack.c.bf16 %v3028, %v3027
    %v3054 = vpack.c.bf16 %v3030, %v3029
    %v3055 = vpack.c.bf16 %v3032, %v3031
    %v3056 = vpack.c.bf16 %v3034, %v3033
    %v3057 = vpack.c.bf16 %v3036, %v3035
    %v3058 = vpack.c.bf16 %v3038, %v3037
    %v3059 = vpack.c.bf16 %v3040, %v3039
    %v3060 = vpack.c.bf16 %v3042, %v3041
    %v3061 = vpack.c.bf16 %v3044, %v3043
    %v3062 = vpack.c.bf16 %v3046, %v3045
    %v3063 = vpack.c.bf16 %v2766, %v2765
    %v3064 = vpack.c.bf16 %v2768, %v2767
    %v3065 = vpack.c.bf16 %v2770, %v2769
    %v3066 = vpack.c.bf16 %v2772, %v2771
    %v3068 = vsel %vm253, %v3047, 0
    %v3071 = vsel %vm253, %v3048, 0
    %v3074 = vsel %vm253, %v3049, 0
    %v3077 = vsel %vm253, %v3050, 0
    %v3080 = vsel %vm253, %v3051, 0
    %v3083 = vsel %vm253, %v3052, 0
    %v3086 = vsel %vm253, %v3053, 0
    %v3089 = vsel %vm253, %v3054, 0
    %v3092 = vsel %vm253, %v3055, 0
    %v3095 = vsel %vm253, %v3056, 0
    %v3098 = vsel %vm253, %v3057, 0
    %v3101 = vsel %vm253, %v3058, 0
    %v3104 = vsel %vm253, %v3059, 0
    %v3107 = vsel %vm253, %v3060, 0
    %v3110 = vsel %vm253, %v3061, 0
    %v3113 = vsel %vm253, %v3062, 0
    %3115 = vmatpush.bf16.msra.mxu0 0
    %3116 = vmatpush.bf16.msra.mxu0 0
    %3117 = vmatpush.bf16.msra.mxu0 0
    %3118 = vmatpush.bf16.msra.mxu0 0
    %3119 = vmatpush.bf16.msra.mxu0 %v3066
    %3120 = vmatpush.bf16.msra.mxu0 %v3065
    %3121 = vmatpush.bf16.msra.mxu0 %v3064
    %3122 = vmatpush.bf16.msra.mxu0 %v3063
    %3123 = vmatmul.bf16.gmra.mxu0 %v3068
    %v3124 = vpop.f32.mrf.mxu0
    %v3125 = vadd.f32 0.0, %v3124
    %v3126 = vpop.f32.mrf.mxu0
    %v3127 = vadd.f32 0.0, %v3126
    %3128 = vmatmul.bf16.gmra.mxu0 %v3071
    %v3129 = vpop.f32.mrf.mxu0
    %v3130 = vadd.f32 0.0, %v3129
    %v3131 = vpop.f32.mrf.mxu0
    %v3132 = vadd.f32 0.0, %v3131
    %3133 = vmatmul.bf16.gmra.mxu0 %v3074
    %v3134 = vpop.f32.mrf.mxu0
    %v3135 = vadd.f32 0.0, %v3134
    %v3136 = vpop.f32.mrf.mxu0
    %v3137 = vadd.f32 0.0, %v3136
    %3138 = vmatmul.bf16.gmra.mxu0 %v3077
    %v3139 = vpop.f32.mrf.mxu0
    %v3140 = vadd.f32 0.0, %v3139
    %v3141 = vpop.f32.mrf.mxu0
    %v3142 = vadd.f32 0.0, %v3141
    %3143 = vmatmul.bf16.gmra.mxu0 %v3080
    %v3144 = vpop.f32.mrf.mxu0
    %v3145 = vadd.f32 0.0, %v3144
    %v3146 = vpop.f32.mrf.mxu0
    %v3147 = vadd.f32 0.0, %v3146
    %3148 = vmatmul.bf16.gmra.mxu0 %v3083
    %v3149 = vpop.f32.mrf.mxu0
    %v3150 = vadd.f32 0.0, %v3149
    %v3151 = vpop.f32.mrf.mxu0
    %v3152 = vadd.f32 0.0, %v3151
    %3153 = vmatmul.bf16.gmra.mxu0 %v3086
    %v3154 = vpop.f32.mrf.mxu0
    %v3155 = vadd.f32 0.0, %v3154
    %v3156 = vpop.f32.mrf.mxu0
    %v3157 = vadd.f32 0.0, %v3156
    %3158 = vmatmul.bf16.gmra.mxu0 %v3089
    %v3159 = vpop.f32.mrf.mxu0
    %v3160 = vadd.f32 0.0, %v3159
    %v3161 = vpop.f32.mrf.mxu0
    %v3162 = vadd.f32 0.0, %v3161
    %3163 = vmatmul.bf16.gmra.mxu0 %v3092
    %v3164 = vpop.f32.mrf.mxu0
    %v3165 = vadd.f32 0.0, %v3164
    %v3166 = vpop.f32.mrf.mxu0
    %v3167 = vadd.f32 0.0, %v3166
    %3168 = vmatmul.bf16.gmra.mxu0 %v3095
    %v3169 = vpop.f32.mrf.mxu0
    %v3170 = vadd.f32 0.0, %v3169
    %v3171 = vpop.f32.mrf.mxu0
    %v3172 = vadd.f32 0.0, %v3171
    %3173 = vmatmul.bf16.gmra.mxu0 %v3098
    %v3174 = vpop.f32.mrf.mxu0
    %v3175 = vadd.f32 0.0, %v3174
    %v3176 = vpop.f32.mrf.mxu0
    %v3177 = vadd.f32 0.0, %v3176
    %3178 = vmatmul.bf16.gmra.mxu0 %v3101
    %v3179 = vpop.f32.mrf.mxu0
    %v3180 = vadd.f32 0.0, %v3179
    %v3181 = vpop.f32.mrf.mxu0
    %v3182 = vadd.f32 0.0, %v3181
    %3183 = vmatmul.bf16.gmra.mxu0 %v3104
    %v3184 = vpop.f32.mrf.mxu0
    %v3185 = vadd.f32 0.0, %v3184
    %v3186 = vpop.f32.mrf.mxu0
    %v3187 = vadd.f32 0.0, %v3186
    %3188 = vmatmul.bf16.gmra.mxu0 %v3107
    %v3189 = vpop.f32.mrf.mxu0
    %v3190 = vadd.f32 0.0, %v3189
    %v3191 = vpop.f32.mrf.mxu0
    %v3192 = vadd.f32 0.0, %v3191
    %3193 = vmatmul.bf16.gmra.mxu0 %v3110
    %v3194 = vpop.f32.mrf.mxu0
    %v3195 = vadd.f32 0.0, %v3194
    %v3196 = vpop.f32.mrf.mxu0
    %v3197 = vadd.f32 0.0, %v3196
    %3198 = vmatmul.bf16.gmra.mxu0 %v3113
    %v3199 = vpop.f32.mrf.mxu0
    %v3200 = vadd.f32 0.0, %v3199
    %v3201 = vpop.f32.mrf.mxu0
    %v3202 = vadd.f32 0.0, %v3201
    %3203 = vdwg.mxu0
    %v3204 = vxor.u32 %v3125, 2147483648
    %v3205 = vxor.u32 %v3127, 2147483648
    %v3206 = vxor.u32 %v3130, 2147483648
    %v3207 = vxor.u32 %v3132, 2147483648
    %v3208 = vxor.u32 %v3135, 2147483648
    %v3209 = vxor.u32 %v3137, 2147483648
    %v3210 = vxor.u32 %v3140, 2147483648
    %v3211 = vxor.u32 %v3142, 2147483648
    %v3212 = vxor.u32 %v3145, 2147483648
    %v3213 = vxor.u32 %v3147, 2147483648
    %v3214 = vxor.u32 %v3150, 2147483648
    %v3215 = vxor.u32 %v3152, 2147483648
    %v3216 = vxor.u32 %v3155, 2147483648
    %v3217 = vxor.u32 %v3157, 2147483648
    %v3218 = vxor.u32 %v3160, 2147483648
    %v3219 = vxor.u32 %v3162, 2147483648
    %v3220 = vxor.u32 %v3165, 2147483648
    %v3221 = vxor.u32 %v3167, 2147483648
    %v3222 = vxor.u32 %v3170, 2147483648
    %v3223 = vxor.u32 %v3172, 2147483648
    %v3224 = vxor.u32 %v3175, 2147483648
    %v3225 = vxor.u32 %v3177, 2147483648
    %v3226 = vxor.u32 %v3180, 2147483648
    %v3227 = vxor.u32 %v3182, 2147483648
    %v3228 = vxor.u32 %v3185, 2147483648
    %v3229 = vxor.u32 %v3187, 2147483648
    %v3230 = vxor.u32 %v3190, 2147483648
    %v3231 = vxor.u32 %v3192, 2147483648
    %v3232 = vxor.u32 %v3195, 2147483648
    %v3233 = vxor.u32 %v3197, 2147483648
    %v3234 = vxor.u32 %v3200, 2147483648
    %v3235 = vxor.u32 %v3202, 2147483648
    %v3236 = vmul.f32 %v3204, 1.442695
    %v3237 = vpow.pop %v3236
    %v3238 = vmul.f32 %v3205, 1.442695
    %v3239 = vpow.pop %v3238
    %v3240 = vmul.f32 %v3206, 1.442695
    %v3241 = vpow.pop %v3240
    %v3242 = vmul.f32 %v3207, 1.442695
    %v3243 = vpow.pop %v3242
    %v3244 = vmul.f32 %v3208, 1.442695
    %v3245 = vpow.pop %v3244
    %v3246 = vmul.f32 %v3209, 1.442695
    %v3247 = vpow.pop %v3246
    %v3248 = vmul.f32 %v3210, 1.442695
    %v3249 = vpow.pop %v3248
    %v3250 = vmul.f32 %v3211, 1.442695
    %v3251 = vpow.pop %v3250
    %v3252 = vmul.f32 %v3212, 1.442695
    %v3253 = vpow.pop %v3252
    %v3254 = vmul.f32 %v3213, 1.442695
    %v3255 = vpow.pop %v3254
    %v3256 = vmul.f32 %v3214, 1.442695
    %v3257 = vpow.pop %v3256
    %v3258 = vmul.f32 %v3215, 1.442695
    %v3259 = vpow.pop %v3258
    %v3260 = vmul.f32 %v3216, 1.442695
    %v3261 = vpow.pop %v3260
    %v3262 = vmul.f32 %v3217, 1.442695
    %v3263 = vpow.pop %v3262
    %v3264 = vmul.f32 %v3218, 1.442695
    %v3265 = vpow.pop %v3264
    %v3266 = vmul.f32 %v3219, 1.442695
    %v3267 = vpow.pop %v3266
    %v3268 = vmul.f32 %v3220, 1.442695
    %v3269 = vpow.pop %v3268
    %v3270 = vmul.f32 %v3221, 1.442695
    %v3271 = vpow.pop %v3270
    %v3272 = vmul.f32 %v3222, 1.442695
    %v3273 = vpow.pop %v3272
    %v3274 = vmul.f32 %v3223, 1.442695
    %v3275 = vpow.pop %v3274
    %v3276 = vmul.f32 %v3224, 1.442695
    %v3277 = vpow.pop %v3276
    %v3278 = vmul.f32 %v3225, 1.442695
    %v3279 = vpow.pop %v3278
    %v3280 = vmul.f32 %v3226, 1.442695
    %v3281 = vpow.pop %v3280
    %v3282 = vmul.f32 %v3227, 1.442695
    %v3283 = vpow.pop %v3282
    %v3284 = vmul.f32 %v3228, 1.442695
    %v3285 = vpow.pop %v3284
    %v3286 = vmul.f32 %v3229, 1.442695
    %v3287 = vpow.pop %v3286
    %v3288 = vmul.f32 %v3230, 1.442695
    %v3289 = vpow.pop %v3288
    %v3290 = vmul.f32 %v3231, 1.442695
    %v3291 = vpow.pop %v3290
    %v3292 = vmul.f32 %v3232, 1.442695
    %v3293 = vpow.pop %v3292
    %v3294 = vmul.f32 %v3233, 1.442695
    %v3295 = vpow.pop %v3294
    %v3296 = vmul.f32 %v3234, 1.442695
    %v3297 = vpow.pop %v3296
    %v3298 = vmul.f32 %v3235, 1.442695
    %v3299 = vpow.pop %v3298
    %v3300 = vadd.f32 %v3237, 1.0
    %v3301 = vadd.f32 %v3239, 1.0
    %v3302 = vadd.f32 %v3241, 1.0
    %v3303 = vadd.f32 %v3243, 1.0
    %v3304 = vadd.f32 %v3245, 1.0
    %v3305 = vadd.f32 %v3247, 1.0
    %v3306 = vadd.f32 %v3249, 1.0
    %v3307 = vadd.f32 %v3251, 1.0
    %v3308 = vadd.f32 %v3253, 1.0
    %v3309 = vadd.f32 %v3255, 1.0
    %v3310 = vadd.f32 %v3257, 1.0
    %v3311 = vadd.f32 %v3259, 1.0
    %v3312 = vadd.f32 %v3261, 1.0
    %v3313 = vadd.f32 %v3263, 1.0
    %v3314 = vadd.f32 %v3265, 1.0
    %v3315 = vadd.f32 %v3267, 1.0
    %v3316 = vadd.f32 %v3269, 1.0
    %v3317 = vadd.f32 %v3271, 1.0
    %v3318 = vadd.f32 %v3273, 1.0
    %v3319 = vadd.f32 %v3275, 1.0
    %v3320 = vadd.f32 %v3277, 1.0
    %v3321 = vadd.f32 %v3279, 1.0
    %v3322 = vadd.f32 %v3281, 1.0
    %v3323 = vadd.f32 %v3283, 1.0
    %v3324 = vadd.f32 %v3285, 1.0
    %v3325 = vadd.f32 %v3287, 1.0
    %v3326 = vadd.f32 %v3289, 1.0
    %v3327 = vadd.f32 %v3291, 1.0
    %v3328 = vadd.f32 %v3293, 1.0
    %v3329 = vadd.f32 %v3295, 1.0
    %v3330 = vadd.f32 %v3297, 1.0
    %v3331 = vadd.f32 %v3299, 1.0
    %v3332 = vrcp.pop %v3300
    %v3333 = vmul.f32 %v3300, %v3332
    %v3334 = vsub.f32 1.0, %v3333
    %v3335 = vmul.f32 %v3332, %v3334
    %v3336 = vadd.f32 %v3332, %v3335
    %vm3337 = vweird.f32 %v3300
    %vm3338 = vweird.f32 %v3332
    %vm3339 = vmor %vm3337, %vm3338
    %v3340 = vsel %vm3339, %v3332, %v3336
    %v3341 = vand.u32 2147483647, %v3300
    %vm3342 = vcmp.eq.f32.partialorder %v3341, 8.507059e+37
    %v3343 = vand.u32 %v3300, 2147483648
    %v3344 = vor.u32 1.1754944e-38, %v3343
    %v3345 = vsel %vm3342, %v3344, %v3340
    %v3346 = vmul.f32 1.0, %v3345
    %v3347 = vrcp.pop %v3301
    %v3348 = vmul.f32 %v3301, %v3347
    %v3349 = vsub.f32 1.0, %v3348
    %v3350 = vmul.f32 %v3347, %v3349
    %v3351 = vadd.f32 %v3347, %v3350
    %vm3352 = vweird.f32 %v3301
    %vm3353 = vweird.f32 %v3347
    %vm3354 = vmor %vm3352, %vm3353
    %v3355 = vsel %vm3354, %v3347, %v3351
    %v3356 = vand.u32 2147483647, %v3301
    %vm3357 = vcmp.eq.f32.partialorder %v3356, 8.507059e+37
    %v3358 = vand.u32 %v3301, 2147483648
    %v3359 = vor.u32 1.1754944e-38, %v3358
    %v3360 = vsel %vm3357, %v3359, %v3355
    %v3361 = vmul.f32 1.0, %v3360
    %v3362 = vrcp.pop %v3302
    %v3363 = vmul.f32 %v3302, %v3362
    %v3364 = vsub.f32 1.0, %v3363
    %v3365 = vmul.f32 %v3362, %v3364
    %v3366 = vadd.f32 %v3362, %v3365
    %vm3367 = vweird.f32 %v3302
    %vm3368 = vweird.f32 %v3362
    %vm3369 = vmor %vm3367, %vm3368
    %v3370 = vsel %vm3369, %v3362, %v3366
    %v3371 = vand.u32 2147483647, %v3302
    %vm3372 = vcmp.eq.f32.partialorder %v3371, 8.507059e+37
    %v3373 = vand.u32 %v3302, 2147483648
    %v3374 = vor.u32 1.1754944e-38, %v3373
    %v3375 = vsel %vm3372, %v3374, %v3370
    %v3376 = vmul.f32 1.0, %v3375
    %v3377 = vrcp.pop %v3303
    %v3378 = vmul.f32 %v3303, %v3377
    %v3379 = vsub.f32 1.0, %v3378
    %v3380 = vmul.f32 %v3377, %v3379
    %v3381 = vadd.f32 %v3377, %v3380
    %vm3382 = vweird.f32 %v3303
    %vm3383 = vweird.f32 %v3377
    %vm3384 = vmor %vm3382, %vm3383
    %v3385 = vsel %vm3384, %v3377, %v3381
    %v3386 = vand.u32 2147483647, %v3303
    %vm3387 = vcmp.eq.f32.partialorder %v3386, 8.507059e+37
    %v3388 = vand.u32 %v3303, 2147483648
    %v3389 = vor.u32 1.1754944e-38, %v3388
    %v3390 = vsel %vm3387, %v3389, %v3385
    %v3391 = vmul.f32 1.0, %v3390
    %v3392 = vrcp.pop %v3304
    %v3393 = vmul.f32 %v3304, %v3392
    %v3394 = vsub.f32 1.0, %v3393
    %v3395 = vmul.f32 %v3392, %v3394
    %v3396 = vadd.f32 %v3392, %v3395
    %vm3397 = vweird.f32 %v3304
    %vm3398 = vweird.f32 %v3392
    %vm3399 = vmor %vm3397, %vm3398
    %v3400 = vsel %vm3399, %v3392, %v3396
    %v3401 = vand.u32 2147483647, %v3304
    %vm3402 = vcmp.eq.f32.partialorder %v3401, 8.507059e+37
    %v3403 = vand.u32 %v3304, 2147483648
    %v3404 = vor.u32 1.1754944e-38, %v3403
    %v3405 = vsel %vm3402, %v3404, %v3400
    %v3406 = vmul.f32 1.0, %v3405
    %v3407 = vrcp.pop %v3305
    %v3408 = vmul.f32 %v3305, %v3407
    %v3409 = vsub.f32 1.0, %v3408
    %v3410 = vmul.f32 %v3407, %v3409
    %v3411 = vadd.f32 %v3407, %v3410
    %vm3412 = vweird.f32 %v3305
    %vm3413 = vweird.f32 %v3407
    %vm3414 = vmor %vm3412, %vm3413
    %v3415 = vsel %vm3414, %v3407, %v3411
    %v3416 = vand.u32 2147483647, %v3305
    %vm3417 = vcmp.eq.f32.partialorder %v3416, 8.507059e+37
    %v3418 = vand.u32 %v3305, 2147483648
    %v3419 = vor.u32 1.1754944e-38, %v3418
    %v3420 = vsel %vm3417, %v3419, %v3415
    %v3421 = vmul.f32 1.0, %v3420
    %v3422 = vrcp.pop %v3306
    %v3423 = vmul.f32 %v3306, %v3422
    %v3424 = vsub.f32 1.0, %v3423
    %v3425 = vmul.f32 %v3422, %v3424
    %v3426 = vadd.f32 %v3422, %v3425
    %vm3427 = vweird.f32 %v3306
    %vm3428 = vweird.f32 %v3422
    %vm3429 = vmor %vm3427, %vm3428
    %v3430 = vsel %vm3429, %v3422, %v3426
    %v3431 = vand.u32 2147483647, %v3306
    %vm3432 = vcmp.eq.f32.partialorder %v3431, 8.507059e+37
    %v3433 = vand.u32 %v3306, 2147483648
    %v3434 = vor.u32 1.1754944e-38, %v3433
    %v3435 = vsel %vm3432, %v3434, %v3430
    %v3436 = vmul.f32 1.0, %v3435
    %v3437 = vrcp.pop %v3307
    %v3438 = vmul.f32 %v3307, %v3437
    %v3439 = vsub.f32 1.0, %v3438
    %v3440 = vmul.f32 %v3437, %v3439
    %v3441 = vadd.f32 %v3437, %v3440
    %vm3442 = vweird.f32 %v3307
    %vm3443 = vweird.f32 %v3437
    %vm3444 = vmor %vm3442, %vm3443
    %v3445 = vsel %vm3444, %v3437, %v3441
    %v3446 = vand.u32 2147483647, %v3307
    %vm3447 = vcmp.eq.f32.partialorder %v3446, 8.507059e+37
    %v3448 = vand.u32 %v3307, 2147483648
    %v3449 = vor.u32 1.1754944e-38, %v3448
    %v3450 = vsel %vm3447, %v3449, %v3445
    %v3451 = vmul.f32 1.0, %v3450
    %v3452 = vrcp.pop %v3308
    %v3453 = vmul.f32 %v3308, %v3452
    %v3454 = vsub.f32 1.0, %v3453
    %v3455 = vmul.f32 %v3452, %v3454
    %v3456 = vadd.f32 %v3452, %v3455
    %vm3457 = vweird.f32 %v3308
    %vm3458 = vweird.f32 %v3452
    %vm3459 = vmor %vm3457, %vm3458
    %v3460 = vsel %vm3459, %v3452, %v3456
    %v3461 = vand.u32 2147483647, %v3308
    %vm3462 = vcmp.eq.f32.partialorder %v3461, 8.507059e+37
    %v3463 = vand.u32 %v3308, 2147483648
    %v3464 = vor.u32 1.1754944e-38, %v3463
    %v3465 = vsel %vm3462, %v3464, %v3460
    %v3466 = vmul.f32 1.0, %v3465
    %v3467 = vrcp.pop %v3309
    %v3468 = vmul.f32 %v3309, %v3467
    %v3469 = vsub.f32 1.0, %v3468
    %v3470 = vmul.f32 %v3467, %v3469
    %v3471 = vadd.f32 %v3467, %v3470
    %vm3472 = vweird.f32 %v3309
    %vm3473 = vweird.f32 %v3467
    %vm3474 = vmor %vm3472, %vm3473
    %v3475 = vsel %vm3474, %v3467, %v3471
    %v3476 = vand.u32 2147483647, %v3309
    %vm3477 = vcmp.eq.f32.partialorder %v3476, 8.507059e+37
    %v3478 = vand.u32 %v3309, 2147483648
    %v3479 = vor.u32 1.1754944e-38, %v3478
    %v3480 = vsel %vm3477, %v3479, %v3475
    %v3481 = vmul.f32 1.0, %v3480
    %v3482 = vrcp.pop %v3310
    %v3483 = vmul.f32 %v3310, %v3482
    %v3484 = vsub.f32 1.0, %v3483
    %v3485 = vmul.f32 %v3482, %v3484
    %v3486 = vadd.f32 %v3482, %v3485
    %vm3487 = vweird.f32 %v3310
    %vm3488 = vweird.f32 %v3482
    %vm3489 = vmor %vm3487, %vm3488
    %v3490 = vsel %vm3489, %v3482, %v3486
    %v3491 = vand.u32 2147483647, %v3310
    %vm3492 = vcmp.eq.f32.partialorder %v3491, 8.507059e+37
    %v3493 = vand.u32 %v3310, 2147483648
    %v3494 = vor.u32 1.1754944e-38, %v3493
    %v3495 = vsel %vm3492, %v3494, %v3490
    %v3496 = vmul.f32 1.0, %v3495
    %v3497 = vrcp.pop %v3311
    %v3498 = vmul.f32 %v3311, %v3497
    %v3499 = vsub.f32 1.0, %v3498
    %v3500 = vmul.f32 %v3497, %v3499
    %v3501 = vadd.f32 %v3497, %v3500
    %vm3502 = vweird.f32 %v3311
    %vm3503 = vweird.f32 %v3497
    %vm3504 = vmor %vm3502, %vm3503
    %v3505 = vsel %vm3504, %v3497, %v3501
    %v3506 = vand.u32 2147483647, %v3311
    %vm3507 = vcmp.eq.f32.partialorder %v3506, 8.507059e+37
    %v3508 = vand.u32 %v3311, 2147483648
    %v3509 = vor.u32 1.1754944e-38, %v3508
    %v3510 = vsel %vm3507, %v3509, %v3505
    %v3511 = vmul.f32 1.0, %v3510
    %v3512 = vrcp.pop %v3312
    %v3513 = vmul.f32 %v3312, %v3512
    %v3514 = vsub.f32 1.0, %v3513
    %v3515 = vmul.f32 %v3512, %v3514
    %v3516 = vadd.f32 %v3512, %v3515
    %vm3517 = vweird.f32 %v3312
    %vm3518 = vweird.f32 %v3512
    %vm3519 = vmor %vm3517, %vm3518
    %v3520 = vsel %vm3519, %v3512, %v3516
    %v3521 = vand.u32 2147483647, %v3312
    %vm3522 = vcmp.eq.f32.partialorder %v3521, 8.507059e+37
    %v3523 = vand.u32 %v3312, 2147483648
    %v3524 = vor.u32 1.1754944e-38, %v3523
    %v3525 = vsel %vm3522, %v3524, %v3520
    %v3526 = vmul.f32 1.0, %v3525
    %v3527 = vrcp.pop %v3313
    %v3528 = vmul.f32 %v3313, %v3527
    %v3529 = vsub.f32 1.0, %v3528
    %v3530 = vmul.f32 %v3527, %v3529
    %v3531 = vadd.f32 %v3527, %v3530
    %vm3532 = vweird.f32 %v3313
    %vm3533 = vweird.f32 %v3527
    %vm3534 = vmor %vm3532, %vm3533
    %v3535 = vsel %vm3534, %v3527, %v3531
    %v3536 = vand.u32 2147483647, %v3313
    %vm3537 = vcmp.eq.f32.partialorder %v3536, 8.507059e+37
    %v3538 = vand.u32 %v3313, 2147483648
    %v3539 = vor.u32 1.1754944e-38, %v3538
    %v3540 = vsel %vm3537, %v3539, %v3535
    %v3541 = vmul.f32 1.0, %v3540
    %v3542 = vrcp.pop %v3314
    %v3543 = vmul.f32 %v3314, %v3542
    %v3544 = vsub.f32 1.0, %v3543
    %v3545 = vmul.f32 %v3542, %v3544
    %v3546 = vadd.f32 %v3542, %v3545
    %vm3547 = vweird.f32 %v3314
    %vm3548 = vweird.f32 %v3542
    %vm3549 = vmor %vm3547, %vm3548
    %v3550 = vsel %vm3549, %v3542, %v3546
    %v3551 = vand.u32 2147483647, %v3314
    %vm3552 = vcmp.eq.f32.partialorder %v3551, 8.507059e+37
    %v3553 = vand.u32 %v3314, 2147483648
    %v3554 = vor.u32 1.1754944e-38, %v3553
    %v3555 = vsel %vm3552, %v3554, %v3550
    %v3556 = vmul.f32 1.0, %v3555
    %v3557 = vrcp.pop %v3315
    %v3558 = vmul.f32 %v3315, %v3557
    %v3559 = vsub.f32 1.0, %v3558
    %v3560 = vmul.f32 %v3557, %v3559
    %v3561 = vadd.f32 %v3557, %v3560
    %vm3562 = vweird.f32 %v3315
    %vm3563 = vweird.f32 %v3557
    %vm3564 = vmor %vm3562, %vm3563
    %v3565 = vsel %vm3564, %v3557, %v3561
    %v3566 = vand.u32 2147483647, %v3315
    %vm3567 = vcmp.eq.f32.partialorder %v3566, 8.507059e+37
    %v3568 = vand.u32 %v3315, 2147483648
    %v3569 = vor.u32 1.1754944e-38, %v3568
    %v3570 = vsel %vm3567, %v3569, %v3565
    %v3571 = vmul.f32 1.0, %v3570
    %v3572 = vrcp.pop %v3316
    %v3573 = vmul.f32 %v3316, %v3572
    %v3574 = vsub.f32 1.0, %v3573
    %v3575 = vmul.f32 %v3572, %v3574
    %v3576 = vadd.f32 %v3572, %v3575
    %vm3577 = vweird.f32 %v3316
    %vm3578 = vweird.f32 %v3572
    %vm3579 = vmor %vm3577, %vm3578
    %v3580 = vsel %vm3579, %v3572, %v3576
    %v3581 = vand.u32 2147483647, %v3316
    %vm3582 = vcmp.eq.f32.partialorder %v3581, 8.507059e+37
    %v3583 = vand.u32 %v3316, 2147483648
    %v3584 = vor.u32 1.1754944e-38, %v3583
    %v3585 = vsel %vm3582, %v3584, %v3580
    %v3586 = vmul.f32 1.0, %v3585
    %v3587 = vrcp.pop %v3317
    %v3588 = vmul.f32 %v3317, %v3587
    %v3589 = vsub.f32 1.0, %v3588
    %v3590 = vmul.f32 %v3587, %v3589
    %v3591 = vadd.f32 %v3587, %v3590
    %vm3592 = vweird.f32 %v3317
    %vm3593 = vweird.f32 %v3587
    %vm3594 = vmor %vm3592, %vm3593
    %v3595 = vsel %vm3594, %v3587, %v3591
    %v3596 = vand.u32 2147483647, %v3317
    %vm3597 = vcmp.eq.f32.partialorder %v3596, 8.507059e+37
    %v3598 = vand.u32 %v3317, 2147483648
    %v3599 = vor.u32 1.1754944e-38, %v3598
    %v3600 = vsel %vm3597, %v3599, %v3595
    %v3601 = vmul.f32 1.0, %v3600
    %v3602 = vrcp.pop %v3318
    %v3603 = vmul.f32 %v3318, %v3602
    %v3604 = vsub.f32 1.0, %v3603
    %v3605 = vmul.f32 %v3602, %v3604
    %v3606 = vadd.f32 %v3602, %v3605
    %vm3607 = vweird.f32 %v3318
    %vm3608 = vweird.f32 %v3602
    %vm3609 = vmor %vm3607, %vm3608
    %v3610 = vsel %vm3609, %v3602, %v3606
    %v3611 = vand.u32 2147483647, %v3318
    %vm3612 = vcmp.eq.f32.partialorder %v3611, 8.507059e+37
    %v3613 = vand.u32 %v3318, 2147483648
    %v3614 = vor.u32 1.1754944e-38, %v3613
    %v3615 = vsel %vm3612, %v3614, %v3610
    %v3616 = vmul.f32 1.0, %v3615
    %v3617 = vrcp.pop %v3319
    %v3618 = vmul.f32 %v3319, %v3617
    %v3619 = vsub.f32 1.0, %v3618
    %v3620 = vmul.f32 %v3617, %v3619
    %v3621 = vadd.f32 %v3617, %v3620
    %vm3622 = vweird.f32 %v3319
    %vm3623 = vweird.f32 %v3617
    %vm3624 = vmor %vm3622, %vm3623
    %v3625 = vsel %vm3624, %v3617, %v3621
    %v3626 = vand.u32 2147483647, %v3319
    %vm3627 = vcmp.eq.f32.partialorder %v3626, 8.507059e+37
    %v3628 = vand.u32 %v3319, 2147483648
    %v3629 = vor.u32 1.1754944e-38, %v3628
    %v3630 = vsel %vm3627, %v3629, %v3625
    %v3631 = vmul.f32 1.0, %v3630
    %v3632 = vrcp.pop %v3320
    %v3633 = vmul.f32 %v3320, %v3632
    %v3634 = vsub.f32 1.0, %v3633
    %v3635 = vmul.f32 %v3632, %v3634
    %v3636 = vadd.f32 %v3632, %v3635
    %vm3637 = vweird.f32 %v3320
    %vm3638 = vweird.f32 %v3632
    %vm3639 = vmor %vm3637, %vm3638
    %v3640 = vsel %vm3639, %v3632, %v3636
    %v3641 = vand.u32 2147483647, %v3320
    %vm3642 = vcmp.eq.f32.partialorder %v3641, 8.507059e+37
    %v3643 = vand.u32 %v3320, 2147483648
    %v3644 = vor.u32 1.1754944e-38, %v3643
    %v3645 = vsel %vm3642, %v3644, %v3640
    %v3646 = vmul.f32 1.0, %v3645
    %v3647 = vrcp.pop %v3321
    %v3648 = vmul.f32 %v3321, %v3647
    %v3649 = vsub.f32 1.0, %v3648
    %v3650 = vmul.f32 %v3647, %v3649
    %v3651 = vadd.f32 %v3647, %v3650
    %vm3652 = vweird.f32 %v3321
    %vm3653 = vweird.f32 %v3647
    %vm3654 = vmor %vm3652, %vm3653
    %v3655 = vsel %vm3654, %v3647, %v3651
    %v3656 = vand.u32 2147483647, %v3321
    %vm3657 = vcmp.eq.f32.partialorder %v3656, 8.507059e+37
    %v3658 = vand.u32 %v3321, 2147483648
    %v3659 = vor.u32 1.1754944e-38, %v3658
    %v3660 = vsel %vm3657, %v3659, %v3655
    %v3661 = vmul.f32 1.0, %v3660
    %v3662 = vrcp.pop %v3322
    %v3663 = vmul.f32 %v3322, %v3662
    %v3664 = vsub.f32 1.0, %v3663
    %v3665 = vmul.f32 %v3662, %v3664
    %v3666 = vadd.f32 %v3662, %v3665
    %vm3667 = vweird.f32 %v3322
    %vm3668 = vweird.f32 %v3662
    %vm3669 = vmor %vm3667, %vm3668
    %v3670 = vsel %vm3669, %v3662, %v3666
    %v3671 = vand.u32 2147483647, %v3322
    %vm3672 = vcmp.eq.f32.partialorder %v3671, 8.507059e+37
    %v3673 = vand.u32 %v3322, 2147483648
    %v3674 = vor.u32 1.1754944e-38, %v3673
    %v3675 = vsel %vm3672, %v3674, %v3670
    %v3676 = vmul.f32 1.0, %v3675
    %v3677 = vrcp.pop %v3323
    %v3678 = vmul.f32 %v3323, %v3677
    %v3679 = vsub.f32 1.0, %v3678
    %v3680 = vmul.f32 %v3677, %v3679
    %v3681 = vadd.f32 %v3677, %v3680
    %vm3682 = vweird.f32 %v3323
    %vm3683 = vweird.f32 %v3677
    %vm3684 = vmor %vm3682, %vm3683
    %v3685 = vsel %vm3684, %v3677, %v3681
    %v3686 = vand.u32 2147483647, %v3323
    %vm3687 = vcmp.eq.f32.partialorder %v3686, 8.507059e+37
    %v3688 = vand.u32 %v3323, 2147483648
    %v3689 = vor.u32 1.1754944e-38, %v3688
    %v3690 = vsel %vm3687, %v3689, %v3685
    %v3691 = vmul.f32 1.0, %v3690
    %v3692 = vrcp.pop %v3324
    %v3693 = vmul.f32 %v3324, %v3692
    %v3694 = vsub.f32 1.0, %v3693
    %v3695 = vmul.f32 %v3692, %v3694
    %v3696 = vadd.f32 %v3692, %v3695
    %vm3697 = vweird.f32 %v3324
    %vm3698 = vweird.f32 %v3692
    %vm3699 = vmor %vm3697, %vm3698
    %v3700 = vsel %vm3699, %v3692, %v3696
    %v3701 = vand.u32 2147483647, %v3324
    %vm3702 = vcmp.eq.f32.partialorder %v3701, 8.507059e+37
    %v3703 = vand.u32 %v3324, 2147483648
    %v3704 = vor.u32 1.1754944e-38, %v3703
    %v3705 = vsel %vm3702, %v3704, %v3700
    %v3706 = vmul.f32 1.0, %v3705
    %v3707 = vrcp.pop %v3325
    %v3708 = vmul.f32 %v3325, %v3707
    %v3709 = vsub.f32 1.0, %v3708
    %v3710 = vmul.f32 %v3707, %v3709
    %v3711 = vadd.f32 %v3707, %v3710
    %vm3712 = vweird.f32 %v3325
    %vm3713 = vweird.f32 %v3707
    %vm3714 = vmor %vm3712, %vm3713
    %v3715 = vsel %vm3714, %v3707, %v3711
    %v3716 = vand.u32 2147483647, %v3325
    %vm3717 = vcmp.eq.f32.partialorder %v3716, 8.507059e+37
    %v3718 = vand.u32 %v3325, 2147483648
    %v3719 = vor.u32 1.1754944e-38, %v3718
    %v3720 = vsel %vm3717, %v3719, %v3715
    %v3721 = vmul.f32 1.0, %v3720
    %v3722 = vrcp.pop %v3326
    %v3723 = vmul.f32 %v3326, %v3722
    %v3724 = vsub.f32 1.0, %v3723
    %v3725 = vmul.f32 %v3722, %v3724
    %v3726 = vadd.f32 %v3722, %v3725
    %vm3727 = vweird.f32 %v3326
    %vm3728 = vweird.f32 %v3722
    %vm3729 = vmor %vm3727, %vm3728
    %v3730 = vsel %vm3729, %v3722, %v3726
    %v3731 = vand.u32 2147483647, %v3326
    %vm3732 = vcmp.eq.f32.partialorder %v3731, 8.507059e+37
    %v3733 = vand.u32 %v3326, 2147483648
    %v3734 = vor.u32 1.1754944e-38, %v3733
    %v3735 = vsel %vm3732, %v3734, %v3730
    %v3736 = vmul.f32 1.0, %v3735
    %v3737 = vrcp.pop %v3327
    %v3738 = vmul.f32 %v3327, %v3737
    %v3739 = vsub.f32 1.0, %v3738
    %v3740 = vmul.f32 %v3737, %v3739
    %v3741 = vadd.f32 %v3737, %v3740
    %vm3742 = vweird.f32 %v3327
    %vm3743 = vweird.f32 %v3737
    %vm3744 = vmor %vm3742, %vm3743
    %v3745 = vsel %vm3744, %v3737, %v3741
    %v3746 = vand.u32 2147483647, %v3327
    %vm3747 = vcmp.eq.f32.partialorder %v3746, 8.507059e+37
    %v3748 = vand.u32 %v3327, 2147483648
    %v3749 = vor.u32 1.1754944e-38, %v3748
    %v3750 = vsel %vm3747, %v3749, %v3745
    %v3751 = vmul.f32 1.0, %v3750
    %v3752 = vrcp.pop %v3328
    %v3753 = vmul.f32 %v3328, %v3752
    %v3754 = vsub.f32 1.0, %v3753
    %v3755 = vmul.f32 %v3752, %v3754
    %v3756 = vadd.f32 %v3752, %v3755
    %vm3757 = vweird.f32 %v3328
    %vm3758 = vweird.f32 %v3752
    %vm3759 = vmor %vm3757, %vm3758
    %v3760 = vsel %vm3759, %v3752, %v3756
    %v3761 = vand.u32 2147483647, %v3328
    %vm3762 = vcmp.eq.f32.partialorder %v3761, 8.507059e+37
    %v3763 = vand.u32 %v3328, 2147483648
    %v3764 = vor.u32 1.1754944e-38, %v3763
    %v3765 = vsel %vm3762, %v3764, %v3760
    %v3766 = vmul.f32 1.0, %v3765
    %v3767 = vrcp.pop %v3329
    %v3768 = vmul.f32 %v3329, %v3767
    %v3769 = vsub.f32 1.0, %v3768
    %v3770 = vmul.f32 %v3767, %v3769
    %v3771 = vadd.f32 %v3767, %v3770
    %vm3772 = vweird.f32 %v3329
    %vm3773 = vweird.f32 %v3767
    %vm3774 = vmor %vm3772, %vm3773
    %v3775 = vsel %vm3774, %v3767, %v3771
    %v3776 = vand.u32 2147483647, %v3329
    %vm3777 = vcmp.eq.f32.partialorder %v3776, 8.507059e+37
    %v3778 = vand.u32 %v3329, 2147483648
    %v3779 = vor.u32 1.1754944e-38, %v3778
    %v3780 = vsel %vm3777, %v3779, %v3775
    %v3781 = vmul.f32 1.0, %v3780
    %v3782 = vrcp.pop %v3330
    %v3783 = vmul.f32 %v3330, %v3782
    %v3784 = vsub.f32 1.0, %v3783
    %v3785 = vmul.f32 %v3782, %v3784
    %v3786 = vadd.f32 %v3782, %v3785
    %vm3787 = vweird.f32 %v3330
    %vm3788 = vweird.f32 %v3782
    %vm3789 = vmor %vm3787, %vm3788
    %v3790 = vsel %vm3789, %v3782, %v3786
    %v3791 = vand.u32 2147483647, %v3330
    %vm3792 = vcmp.eq.f32.partialorder %v3791, 8.507059e+37
    %v3793 = vand.u32 %v3330, 2147483648
    %v3794 = vor.u32 1.1754944e-38, %v3793
    %v3795 = vsel %vm3792, %v3794, %v3790
    %v3796 = vmul.f32 1.0, %v3795
    %v3797 = vrcp.pop %v3331
    %v3798 = vmul.f32 %v3331, %v3797
    %v3799 = vsub.f32 1.0, %v3798
    %v3800 = vmul.f32 %v3797, %v3799
    %v3801 = vadd.f32 %v3797, %v3800
    %vm3802 = vweird.f32 %v3331
    %vm3803 = vweird.f32 %v3797
    %vm3804 = vmor %vm3802, %vm3803
    %v3805 = vsel %vm3804, %v3797, %v3801
    %v3806 = vand.u32 2147483647, %v3331
    %vm3807 = vcmp.eq.f32.partialorder %v3806, 8.507059e+37
    %v3808 = vand.u32 %v3331, 2147483648
    %v3809 = vor.u32 1.1754944e-38, %v3808
    %v3810 = vsel %vm3807, %v3809, %v3805
    %v3811 = vmul.f32 1.0, %v3810
    %v3812 = vmul.f32 %v3346, %v1203
    %v3813 = vmul.f32 %v3361, %v1208
    %v3814 = vmul.f32 %v3376, %v1213
    %v3815 = vmul.f32 %v3391, %v1218
    %v3816 = vmul.f32 %v3406, %v1223
    %v3817 = vmul.f32 %v3421, %v1228
    %v3818 = vmul.f32 %v3436, %v1233
    %v3819 = vmul.f32 %v3451, %v1238
    %v3820 = vmul.f32 %v3466, %v1243
    %v3821 = vmul.f32 %v3481, %v1248
    %v3822 = vmul.f32 %v3496, %v1253
    %v3823 = vmul.f32 %v3511, %v1258
    %v3824 = vmul.f32 %v3526, %v1263
    %v3825 = vmul.f32 %v3541, %v1268
    %v3826 = vmul.f32 %v3556, %v1273
    %v3827 = vmul.f32 %v3571, %v1278
    %v3828 = vmul.f32 %v3586, %v1283
    %v3829 = vmul.f32 %v3601, %v1288
    %v3830 = vmul.f32 %v3616, %v1293
    %v3831 = vmul.f32 %v3631, %v1298
    %v3832 = vmul.f32 %v3646, %v1303
    %v3833 = vmul.f32 %v3661, %v1308
    %v3834 = vmul.f32 %v3676, %v1313
    %v3835 = vmul.f32 %v3691, %v1318
    %v3836 = vmul.f32 %v3706, %v1323
    %v3837 = vmul.f32 %v3721, %v1328
    %v3838 = vmul.f32 %v3736, %v1333
    %v3839 = vmul.f32 %v3751, %v1338
    %v3840 = vmul.f32 %v3766, %v1343
    %v3841 = vmul.f32 %v3781, %v1348
    %v3842 = vmul.f32 %v3796, %v1353
    %v3843 = vmul.f32 %v3811, %v1358
    %v3844 = vsel %vm1392, %v3812, 0.0
    %v3845 = vsel %vm1392, %v3813, 0.0
    %v3846 = vadd.f32 %v3844, %v3845
    %v3847 = vsel %vm1392, %v3814, 0.0
    %v3848 = vadd.f32 %v3846, %v3847
    %v3849 = vsel %vm1392, %v3815, 0.0
    %v3850 = vadd.f32 %v3848, %v3849
    %v3851 = vsel %vm1392, %v3816, 0.0
    %v3852 = vadd.f32 %v3850, %v3851
    %v3853 = vsel %vm1392, %v3817, 0.0
    %v3854 = vadd.f32 %v3852, %v3853
    %v3855 = vsel %vm1392, %v3818, 0.0
    %v3856 = vadd.f32 %v3854, %v3855
    %v3857 = vsel %vm1392, %v3819, 0.0
    %v3858 = vadd.f32 %v3856, %v3857
    %v3859 = vsel %vm1392, %v3820, 0.0
    %v3860 = vadd.f32 %v3858, %v3859
    %v3861 = vsel %vm1392, %v3821, 0.0
    %v3862 = vadd.f32 %v3860, %v3861
    %v3863 = vsel %vm1392, %v3822, 0.0
    %v3864 = vadd.f32 %v3862, %v3863
    %v3865 = vsel %vm1392, %v3823, 0.0
    %v3866 = vadd.f32 %v3864, %v3865
    %v3867 = vsel %vm1392, %v3824, 0.0
    %v3868 = vadd.f32 %v3866, %v3867
    %v3869 = vsel %vm1392, %v3825, 0.0
    %v3870 = vadd.f32 %v3868, %v3869
    %v3871 = vsel %vm1392, %v3826, 0.0
    %v3872 = vadd.f32 %v3870, %v3871
    %v3873 = vsel %vm1392, %v3827, 0.0
    %v3874 = vadd.f32 %v3872, %v3873
    %v3875 = vsel %vm1392, %v3828, 0.0
    %v3876 = vadd.f32 %v3874, %v3875
    %v3877 = vsel %vm1392, %v3829, 0.0
    %v3878 = vadd.f32 %v3876, %v3877
    %v3879 = vsel %vm1392, %v3830, 0.0
    %v3880 = vadd.f32 %v3878, %v3879
    %v3881 = vsel %vm1392, %v3831, 0.0
    %v3882 = vadd.f32 %v3880, %v3881
    %v3883 = vsel %vm1392, %v3832, 0.0
    %v3884 = vadd.f32 %v3882, %v3883
    %v3885 = vsel %vm1392, %v3833, 0.0
    %v3886 = vadd.f32 %v3884, %v3885
    %v3887 = vsel %vm1392, %v3834, 0.0
    %v3888 = vadd.f32 %v3886, %v3887
    %v3889 = vsel %vm1392, %v3835, 0.0
    %v3890 = vadd.f32 %v3888, %v3889
    %v3891 = vsel %vm1392, %v3836, 0.0
    %v3892 = vadd.f32 %v3890, %v3891
    %v3893 = vsel %vm1392, %v3837, 0.0
    %v3894 = vadd.f32 %v3892, %v3893
    %v3895 = vsel %vm1392, %v3838, 0.0
    %v3896 = vadd.f32 %v3894, %v3895
    %v3897 = vsel %vm1392, %v3839, 0.0
    %v3898 = vadd.f32 %v3896, %v3897
    %v3899 = vsel %vm1392, %v3840, 0.0
    %v3900 = vadd.f32 %v3898, %v3899
    %v3901 = vsel %vm1392, %v3841, 0.0
    %v3902 = vadd.f32 %v3900, %v3901
    %v3903 = vsel %vm1392, %v3842, 0.0
    %v3904 = vadd.f32 %v3902, %v3903
    %v3905 = vsel %vm1392, %v3843, 0.0
    %v3906 = vadd.f32 %v3904, %v3905
    %v3907 = vrot.slane %v3906, 4
    %v3908 = vadd.f32 %v3906, %v3907
    %v3909 = vrot.slane %v3908, 2
    %v3910 = vadd.f32 %v3908, %v3909
    %v3911 = vrot.slane %v3910, 1
    %v3912 = vadd.f32 %v3910, %v3911
    %s3913 = scalar_lea.vmem %s1, 256
    %v3914 = vld [vmem:[%s3913] sm:$0xff]
    %v3915 = vld [vmem:[%s3913 + $0x8] sm:$0xff]
    %v3916 = vld [vmem:[%s3913 + $0x10] sm:$0xff]
    %v3917 = vld [vmem:[%s3913 + $0x18] sm:$0xff]
    %v3918 = vld [vmem:[%s3913 + $0x20] sm:$0xff]
    %v3919 = vld [vmem:[%s3913 + $0x28] sm:$0xff]
    %v3920 = vld [vmem:[%s3913 + $0x30] sm:$0xff]
    %v3921 = vld [vmem:[%s3913 + $0x38] sm:$0xff]
    %v3922 = vld [vmem:[%s3913 + $0x40] sm:$0xff]
    %v3923 = vld [vmem:[%s3913 + $0x48] sm:$0xff]
    %v3924 = vld [vmem:[%s3913 + $0x50] sm:$0xff]
    %v3925 = vld [vmem:[%s3913 + $0x58] sm:$0xff]
    %v3926 = vld [vmem:[%s3913 + $0x60] sm:$0xff]
    %v3927 = vld [vmem:[%s3913 + $0x68] sm:$0xff]
    %v3928 = vld [vmem:[%s3913 + $0x70] sm:$0xff]
    %v3929 = vld [vmem:[%s3913 + $0x78] sm:$0xff]
    %v3930 = vld [vmem:[%s3913 + $0x80] sm:$0xff]
    %v3931 = vld [vmem:[%s3913 + $0x88] sm:$0xff]
    %v3932 = vld [vmem:[%s3913 + $0x90] sm:$0xff]
    %v3933 = vld [vmem:[%s3913 + $0x98] sm:$0xff]
    %v3934 = vld [vmem:[%s3913 + $0xa0] sm:$0xff]
    %v3935 = vld [vmem:[%s3913 + $0xa8] sm:$0xff]
    %v3936 = vld [vmem:[%s3913 + $0xb0] sm:$0xff]
    %v3937 = vld [vmem:[%s3913 + $0xb8] sm:$0xff]
    %v3938 = vld [vmem:[%s3913 + $0xc0] sm:$0xff]
    %v3939 = vld [vmem:[%s3913 + $0xc8] sm:$0xff]
    %v3940 = vld [vmem:[%s3913 + $0xd0] sm:$0xff]
    %v3941 = vld [vmem:[%s3913 + $0xd8] sm:$0xff]
    %v3942 = vld [vmem:[%s3913 + $0xe0] sm:$0xff]
    %v3943 = vld [vmem:[%s3913 + $0xe8] sm:$0xff]
    %v3944 = vld [vmem:[%s3913 + $0xf0] sm:$0xff]
    %v3945 = vld [vmem:[%s3913 + $0xf8] sm:$0xff]
    %v3946 = vmul.f32 %v3914, %v2806
    %v3947 = vmul.f32 %v3915, %v2806
    %v3948 = vmul.f32 %v3916, %v2806
    %v3949 = vmul.f32 %v3917, %v2806
    %v3950 = vmul.f32 %v3918, %v2806
    %v3951 = vmul.f32 %v3919, %v2806
    %v3952 = vmul.f32 %v3920, %v2806
    %v3953 = vmul.f32 %v3921, %v2806
    %v3954 = vmul.f32 %v3922, %v2806
    %v3955 = vmul.f32 %v3923, %v2806
    %v3956 = vmul.f32 %v3924, %v2806
    %v3957 = vmul.f32 %v3925, %v2806
    %v3958 = vmul.f32 %v3926, %v2806
    %v3959 = vmul.f32 %v3927, %v2806
    %v3960 = vmul.f32 %v3928, %v2806
    %v3961 = vmul.f32 %v3929, %v2806
    %v3962 = vmul.f32 %v3930, %v2806
    %v3963 = vmul.f32 %v3931, %v2806
    %v3964 = vmul.f32 %v3932, %v2806
    %v3965 = vmul.f32 %v3933, %v2806
    %v3966 = vmul.f32 %v3934, %v2806
    %v3967 = vmul.f32 %v3935, %v2806
    %v3968 = vmul.f32 %v3936, %v2806
    %v3969 = vmul.f32 %v3937, %v2806
    %v3970 = vmul.f32 %v3938, %v2806
    %v3971 = vmul.f32 %v3939, %v2806
    %v3972 = vmul.f32 %v3940, %v2806
    %v3973 = vmul.f32 %v3941, %v2806
    %v3974 = vmul.f32 %v3942, %v2806
    %v3975 = vmul.f32 %v3943, %v2806
    %v3976 = vmul.f32 %v3944, %v2806
    %v3977 = vmul.f32 %v3945, %v2806
    %v3978 = vadd.f32 %v3946, %v2841
    %v3979 = vadd.f32 %v3947, %v2841
    %v3980 = vadd.f32 %v3948, %v2841
    %v3981 = vadd.f32 %v3949, %v2841
    %v3982 = vadd.f32 %v3950, %v2841
    %v3983 = vadd.f32 %v3951, %v2841
    %v3984 = vadd.f32 %v3952, %v2841
    %v3985 = vadd.f32 %v3953, %v2841
    %v3986 = vadd.f32 %v3954, %v2841
    %v3987 = vadd.f32 %v3955, %v2841
    %v3988 = vadd.f32 %v3956, %v2841
    %v3989 = vadd.f32 %v3957, %v2841
    %v3990 = vadd.f32 %v3958, %v2841
    %v3991 = vadd.f32 %v3959, %v2841
    %v3992 = vadd.f32 %v3960, %v2841
    %v3993 = vadd.f32 %v3961, %v2841
    %v3994 = vadd.f32 %v3962, %v2841
    %v3995 = vadd.f32 %v3963, %v2841
    %v3996 = vadd.f32 %v3964, %v2841
    %v3997 = vadd.f32 %v3965, %v2841
    %v3998 = vadd.f32 %v3966, %v2841
    %v3999 = vadd.f32 %v3967, %v2841
    %v4000 = vadd.f32 %v3968, %v2841
    %v4001 = vadd.f32 %v3969, %v2841
    %v4002 = vadd.f32 %v3970, %v2841
    %v4003 = vadd.f32 %v3971, %v2841
    %v4004 = vadd.f32 %v3972, %v2841
    %v4005 = vadd.f32 %v3973, %v2841
    %v4006 = vadd.f32 %v3974, %v2841
    %v4007 = vadd.f32 %v3975, %v2841
    %v4008 = vadd.f32 %v3976, %v2841
    %v4009 = vadd.f32 %v3977, %v2841
    %v4010 = vsel %vm253, %v3978, 0.0
    %v4011 = vsel %vm253, %v3979, 0.0
    %v4012 = vadd.f32 %v4010, %v4011
    %v4013 = vsel %vm253, %v3980, 0.0
    %v4014 = vadd.f32 %v4012, %v4013
    %v4015 = vsel %vm253, %v3981, 0.0
    %v4016 = vadd.f32 %v4014, %v4015
    %v4017 = vsel %vm253, %v3982, 0.0
    %v4018 = vadd.f32 %v4016, %v4017
    %v4019 = vsel %vm253, %v3983, 0.0
    %v4020 = vadd.f32 %v4018, %v4019
    %v4021 = vsel %vm253, %v3984, 0.0
    %v4022 = vadd.f32 %v4020, %v4021
    %v4023 = vsel %vm253, %v3985, 0.0
    %v4024 = vadd.f32 %v4022, %v4023
    %v4025 = vsel %vm253, %v3986, 0.0
    %v4026 = vadd.f32 %v4024, %v4025
    %v4027 = vsel %vm253, %v3987, 0.0
    %v4028 = vadd.f32 %v4026, %v4027
    %v4029 = vsel %vm253, %v3988, 0.0
    %v4030 = vadd.f32 %v4028, %v4029
    %v4031 = vsel %vm253, %v3989, 0.0
    %v4032 = vadd.f32 %v4030, %v4031
    %v4033 = vsel %vm253, %v3990, 0.0
    %v4034 = vadd.f32 %v4032, %v4033
    %v4035 = vsel %vm253, %v3991, 0.0
    %v4036 = vadd.f32 %v4034, %v4035
    %v4037 = vsel %vm253, %v3992, 0.0
    %v4038 = vadd.f32 %v4036, %v4037
    %v4039 = vsel %vm253, %v3993, 0.0
    %v4040 = vadd.f32 %v4038, %v4039
    %v4041 = vsel %vm253, %v3994, 0.0
    %v4042 = vadd.f32 %v4040, %v4041
    %v4043 = vsel %vm253, %v3995, 0.0
    %v4044 = vadd.f32 %v4042, %v4043
    %v4045 = vsel %vm253, %v3996, 0.0
    %v4046 = vadd.f32 %v4044, %v4045
    %v4047 = vsel %vm253, %v3997, 0.0
    %v4048 = vadd.f32 %v4046, %v4047
    %v4049 = vsel %vm253, %v3998, 0.0
    %v4050 = vadd.f32 %v4048, %v4049
    %v4051 = vsel %vm253, %v3999, 0.0
    %v4052 = vadd.f32 %v4050, %v4051
    %v4053 = vsel %vm253, %v4000, 0.0
    %v4054 = vadd.f32 %v4052, %v4053
    %v4055 = vsel %vm253, %v4001, 0.0
    %v4056 = vadd.f32 %v4054, %v4055
    %v4057 = vsel %vm253, %v4002, 0.0
    %v4058 = vadd.f32 %v4056, %v4057
    %v4059 = vsel %vm253, %v4003, 0.0
    %v4060 = vadd.f32 %v4058, %v4059
    %v4061 = vsel %vm253, %v4004, 0.0
    %v4062 = vadd.f32 %v4060, %v4061
    %v4063 = vsel %vm253, %v4005, 0.0
    %v4064 = vadd.f32 %v4062, %v4063
    %v4065 = vsel %vm253, %v4006, 0.0
    %v4066 = vadd.f32 %v4064, %v4065
    %v4067 = vsel %vm253, %v4007, 0.0
    %v4068 = vadd.f32 %v4066, %v4067
    %v4069 = vsel %vm253, %v4008, 0.0
    %v4070 = vadd.f32 %v4068, %v4069
    %v4071 = vsel %vm253, %v4009, 0.0
    %v4072 = vadd.f32 %v4070, %v4071
    %v4073 = vrot.slane %v4072, 4
    %v4074 = vadd.f32 %v4072, %v4073
    %v4075 = vrot.slane %v4074, 2
    %v4076 = vadd.f32 %v4074, %v4075
    %v4077 = vrot.slane %v4076, 1
    %v4078 = vadd.f32 %v4076, %v4077
    %v4079 = vmul.f32 %v4078, %v329
    %v4081 = vsel %vm253, %v4079, 0
    %4083 = vmatpush.msra.mxu0 0.0
    %4084 = vmatpush.msra.mxu0 0.0
    %4085 = vmatpush.msra.mxu0 0.0
    %4086 = vmatpush.msra.mxu0 0.0
    %4087 = vmatpush.msra.mxu0 0.0
    %4088 = vmatpush.msra.mxu0 0.0
    %4089 = vmatpush.msra.mxu0 0.0
    %4090 = vmatpush.msra.mxu0 0.0
    %4091 = vmatpush.msra.mxu0 %v2761
    %4092 = vmatpush.msra.mxu0 %v2760
    %4093 = vmatpush.msra.mxu0 %v2759
    %4094 = vmatpush.msra.mxu0 %v2758
    %4095 = vmatpush.msra.mxu0 %v2757
    %4096 = vmatpush.msra.mxu0 %v2756
    %4097 = vmatpush.msra.mxu0 %v2755
    %4098 = vmatpush.msra.mxu0 %v2754
    %4099 = vmatmul.f32.gmra.mxu0 %v4081
    %v4100 = vpop.f32.mrf.mxu0
    %v4101 = vadd.f32 %v2762, %v4100
    %4102 = vdwg.mxu0
    %v4103 = vmax.f32 %v4101, 0.0
    %v4105 = vsel %vm355, %v4103, 0
    %4107 = vmatpush.msra.mxu0 0.0
    %4108 = vmatpush.msra.mxu0 0.0
    %4109 = vmatpush.msra.mxu0 0.0
    %4110 = vmatpush.msra.mxu0 0.0
    %4111 = vmatpush.msra.mxu0 0.0
    %4112 = vmatpush.msra.mxu0 0.0
    %4113 = vmatpush.msra.mxu0 0.0
    %4114 = vmatpush.msra.mxu0 0.0
    %4115 = vmatpush.msra.mxu0 0.0
    %4116 = vmatpush.msra.mxu0 0.0
    %4117 = vmatpush.msra.mxu0 0.0
    %4118 = vmatpush.msra.mxu0 0.0
    %4119 = vmatpush.msra.mxu0 0.0
    %4120 = vmatpush.msra.mxu0 0.0
    %4121 = vmatpush.msra.mxu0 0.0
    %4122 = vmatpush.msra.mxu0 %v2973
    %4123 = vmatmul.f32.gmra.mxu0 %v4105
    %v4124 = vpop.f32.mrf.mxu0
    %v4125 = vadd.f32 %v2764, %v4124
    %4126 = vdwg.mxu0
    %v4127 = vxor.u32 %v4125, 2147483648
    %v4128 = vmul.f32 %v4127, 1.442695
    %v4129 = vpow.pop %v4128
    %v4130 = vadd.f32 %v4129, 1.0
    %v4131 = vrcp.pop %v4130
    %v4132 = vmul.f32 %v4130, %v4131
    %v4133 = vsub.f32 1.0, %v4132
    %v4134 = vmul.f32 %v4131, %v4133
    %v4135 = vadd.f32 %v4131, %v4134
    %vm4136 = vweird.f32 %v4130
    %vm4137 = vweird.f32 %v4131
    %vm4138 = vmor %vm4136, %vm4137
    %v4139 = vsel %vm4138, %v4131, %v4135
    %v4140 = vand.u32 2147483647, %v4130
    %vm4141 = vcmp.eq.f32.partialorder %v4140, 8.507059e+37
    %v4142 = vand.u32 %v4130, 2147483648
    %v4143 = vor.u32 1.1754944e-38, %v4142
    %v4144 = vsel %vm4141, %v4143, %v4139
    %v4145 = vmul.f32 1.0, %v4144
    %v4146 = vperm.slane %v4145, 0
    %v4147 = vmul.f32 %v3978, %v4146
    %v4148 = vmul.f32 %v3979, %v4146
    %v4149 = vmul.f32 %v3980, %v4146
    %v4150 = vmul.f32 %v3981, %v4146
    %v4151 = vmul.f32 %v3982, %v4146
    %v4152 = vmul.f32 %v3983, %v4146
    %v4153 = vmul.f32 %v3984, %v4146
    %v4154 = vmul.f32 %v3985, %v4146
    %v4155 = vmul.f32 %v3986, %v4146
    %v4156 = vmul.f32 %v3987, %v4146
    %v4157 = vmul.f32 %v3988, %v4146
    %v4158 = vmul.f32 %v3989, %v4146
    %v4159 = vmul.f32 %v3990, %v4146
    %v4160 = vmul.f32 %v3991, %v4146
    %v4161 = vmul.f32 %v3992, %v4146
    %v4162 = vmul.f32 %v3993, %v4146
    %v4163 = vmul.f32 %v3994, %v4146
    %v4164 = vmul.f32 %v3995, %v4146
    %v4165 = vmul.f32 %v3996, %v4146
    %v4166 = vmul.f32 %v3997, %v4146
    %v4167 = vmul.f32 %v3998, %v4146
    %v4168 = vmul.f32 %v3999, %v4146
    %v4169 = vmul.f32 %v4000, %v4146
    %v4170 = vmul.f32 %v4001, %v4146
    %v4171 = vmul.f32 %v4002, %v4146
    %v4172 = vmul.f32 %v4003, %v4146
    %v4173 = vmul.f32 %v4004, %v4146
    %v4174 = vmul.f32 %v4005, %v4146
    %v4175 = vmul.f32 %v4006, %v4146
    %v4176 = vmul.f32 %v4007, %v4146
    %v4177 = vmul.f32 %v4008, %v4146
    %v4178 = vmul.f32 %v4009, %v4146
    %v4179 = vpack.c.bf16 %v4148, %v4147
    %v4180 = vpack.c.bf16 %v4150, %v4149
    %v4181 = vpack.c.bf16 %v4152, %v4151
    %v4182 = vpack.c.bf16 %v4154, %v4153
    %v4183 = vpack.c.bf16 %v4156, %v4155
    %v4184 = vpack.c.bf16 %v4158, %v4157
    %v4185 = vpack.c.bf16 %v4160, %v4159
    %v4186 = vpack.c.bf16 %v4162, %v4161
    %v4187 = vpack.c.bf16 %v4164, %v4163
    %v4188 = vpack.c.bf16 %v4166, %v4165
    %v4189 = vpack.c.bf16 %v4168, %v4167
    %v4190 = vpack.c.bf16 %v4170, %v4169
    %v4191 = vpack.c.bf16 %v4172, %v4171
    %v4192 = vpack.c.bf16 %v4174, %v4173
    %v4193 = vpack.c.bf16 %v4176, %v4175
    %v4194 = vpack.c.bf16 %v4178, %v4177
    %v4196 = vsel %vm253, %v4179, 0
    %v4199 = vsel %vm253, %v4180, 0
    %v4202 = vsel %vm253, %v4181, 0
    %v4205 = vsel %vm253, %v4182, 0
    %v4208 = vsel %vm253, %v4183, 0
    %v4211 = vsel %vm253, %v4184, 0
    %v4214 = vsel %vm253, %v4185, 0
    %v4217 = vsel %vm253, %v4186, 0
    %v4220 = vsel %vm253, %v4187, 0
    %v4223 = vsel %vm253, %v4188, 0
    %v4226 = vsel %vm253, %v4189, 0
    %v4229 = vsel %vm253, %v4190, 0
    %v4232 = vsel %vm253, %v4191, 0
    %v4235 = vsel %vm253, %v4192, 0
    %v4238 = vsel %vm253, %v4193, 0
    %v4241 = vsel %vm253, %v4194, 0
    %4243 = vmatpush.bf16.msra.mxu0 0
    %4244 = vmatpush.bf16.msra.mxu0 0
    %4245 = vmatpush.bf16.msra.mxu0 0
    %4246 = vmatpush.bf16.msra.mxu0 0
    %4247 = vmatpush.bf16.msra.mxu0 %v3066
    %4248 = vmatpush.bf16.msra.mxu0 %v3065
    %4249 = vmatpush.bf16.msra.mxu0 %v3064
    %4250 = vmatpush.bf16.msra.mxu0 %v3063
    %4251 = vmatmul.bf16.gmra.mxu0 %v4196
    %v4252 = vpop.f32.mrf.mxu0
    %v4253 = vadd.f32 0.0, %v4252
    %v4254 = vpop.f32.mrf.mxu0
    %v4255 = vadd.f32 0.0, %v4254
    %4256 = vmatmul.bf16.gmra.mxu0 %v4199
    %v4257 = vpop.f32.mrf.mxu0
    %v4258 = vadd.f32 0.0, %v4257
    %v4259 = vpop.f32.mrf.mxu0
    %v4260 = vadd.f32 0.0, %v4259
    %4261 = vmatmul.bf16.gmra.mxu0 %v4202
    %v4262 = vpop.f32.mrf.mxu0
    %v4263 = vadd.f32 0.0, %v4262
    %v4264 = vpop.f32.mrf.mxu0
    %v4265 = vadd.f32 0.0, %v4264
    %4266 = vmatmul.bf16.gmra.mxu0 %v4205
    %v4267 = vpop.f32.mrf.mxu0
    %v4268 = vadd.f32 0.0, %v4267
    %v4269 = vpop.f32.mrf.mxu0
    %v4270 = vadd.f32 0.0, %v4269
    %4271 = vmatmul.bf16.gmra.mxu0 %v4208
    %v4272 = vpop.f32.mrf.mxu0
    %v4273 = vadd.f32 0.0, %v4272
    %v4274 = vpop.f32.mrf.mxu0
    %v4275 = vadd.f32 0.0, %v4274
    %4276 = vmatmul.bf16.gmra.mxu0 %v4211
    %v4277 = vpop.f32.mrf.mxu0
    %v4278 = vadd.f32 0.0, %v4277
    %v4279 = vpop.f32.mrf.mxu0
    %v4280 = vadd.f32 0.0, %v4279
    %4281 = vmatmul.bf16.gmra.mxu0 %v4214
    %v4282 = vpop.f32.mrf.mxu0
    %v4283 = vadd.f32 0.0, %v4282
    %v4284 = vpop.f32.mrf.mxu0
    %v4285 = vadd.f32 0.0, %v4284
    %4286 = vmatmul.bf16.gmra.mxu0 %v4217
    %v4287 = vpop.f32.mrf.mxu0
    %v4288 = vadd.f32 0.0, %v4287
    %v4289 = vpop.f32.mrf.mxu0
    %v4290 = vadd.f32 0.0, %v4289
    %4291 = vmatmul.bf16.gmra.mxu0 %v4220
    %v4292 = vpop.f32.mrf.mxu0
    %v4293 = vadd.f32 0.0, %v4292
    %v4294 = vpop.f32.mrf.mxu0
    %v4295 = vadd.f32 0.0, %v4294
    %4296 = vmatmul.bf16.gmra.mxu0 %v4223
    %v4297 = vpop.f32.mrf.mxu0
    %v4298 = vadd.f32 0.0, %v4297
    %v4299 = vpop.f32.mrf.mxu0
    %v4300 = vadd.f32 0.0, %v4299
    %4301 = vmatmul.bf16.gmra.mxu0 %v4226
    %v4302 = vpop.f32.mrf.mxu0
    %v4303 = vadd.f32 0.0, %v4302
    %v4304 = vpop.f32.mrf.mxu0
    %v4305 = vadd.f32 0.0, %v4304
    %4306 = vmatmul.bf16.gmra.mxu0 %v4229
    %v4307 = vpop.f32.mrf.mxu0
    %v4308 = vadd.f32 0.0, %v4307
    %v4309 = vpop.f32.mrf.mxu0
    %v4310 = vadd.f32 0.0, %v4309
    %4311 = vmatmul.bf16.gmra.mxu0 %v4232
    %v4312 = vpop.f32.mrf.mxu0
    %v4313 = vadd.f32 0.0, %v4312
    %v4314 = vpop.f32.mrf.mxu0
    %v4315 = vadd.f32 0.0, %v4314
    %4316 = vmatmul.bf16.gmra.mxu0 %v4235
    %v4317 = vpop.f32.mrf.mxu0
    %v4318 = vadd.f32 0.0, %v4317
    %v4319 = vpop.f32.mrf.mxu0
    %v4320 = vadd.f32 0.0, %v4319
    %4321 = vmatmul.bf16.gmra.mxu0 %v4238
    %v4322 = vpop.f32.mrf.mxu0
    %v4323 = vadd.f32 0.0, %v4322
    %v4324 = vpop.f32.mrf.mxu0
    %v4325 = vadd.f32 0.0, %v4324
    %4326 = vmatmul.bf16.gmra.mxu0 %v4241
    %v4327 = vpop.f32.mrf.mxu0
    %v4328 = vadd.f32 0.0, %v4327
    %v4329 = vpop.f32.mrf.mxu0
    %v4330 = vadd.f32 0.0, %v4329
    %4331 = vdwg.mxu0
    %v4332 = vxor.u32 %v4253, 2147483648
    %v4333 = vxor.u32 %v4255, 2147483648
    %v4334 = vxor.u32 %v4258, 2147483648
    %v4335 = vxor.u32 %v4260, 2147483648
    %v4336 = vxor.u32 %v4263, 2147483648
    %v4337 = vxor.u32 %v4265, 2147483648
    %v4338 = vxor.u32 %v4268, 2147483648
    %v4339 = vxor.u32 %v4270, 2147483648
    %v4340 = vxor.u32 %v4273, 2147483648
    %v4341 = vxor.u32 %v4275, 2147483648
    %v4342 = vxor.u32 %v4278, 2147483648
    %v4343 = vxor.u32 %v4280, 2147483648
    %v4344 = vxor.u32 %v4283, 2147483648
    %v4345 = vxor.u32 %v4285, 2147483648
    %v4346 = vxor.u32 %v4288, 2147483648
    %v4347 = vxor.u32 %v4290, 2147483648
    %v4348 = vxor.u32 %v4293, 2147483648
    %v4349 = vxor.u32 %v4295, 2147483648
    %v4350 = vxor.u32 %v4298, 2147483648
    %v4351 = vxor.u32 %v4300, 2147483648
    %v4352 = vxor.u32 %v4303, 2147483648
    %v4353 = vxor.u32 %v4305, 2147483648
    %v4354 = vxor.u32 %v4308, 2147483648
    %v4355 = vxor.u32 %v4310, 2147483648
    %v4356 = vxor.u32 %v4313, 2147483648
    %v4357 = vxor.u32 %v4315, 2147483648
    %v4358 = vxor.u32 %v4318, 2147483648
    %v4359 = vxor.u32 %v4320, 2147483648
    %v4360 = vxor.u32 %v4323, 2147483648
    %v4361 = vxor.u32 %v4325, 2147483648
    %v4362 = vxor.u32 %v4328, 2147483648
    %v4363 = vxor.u32 %v4330, 2147483648
    %v4364 = vmul.f32 %v4332, 1.442695
    %v4365 = vpow.pop %v4364
    %v4366 = vmul.f32 %v4333, 1.442695
    %v4367 = vpow.pop %v4366
    %v4368 = vmul.f32 %v4334, 1.442695
    %v4369 = vpow.pop %v4368
    %v4370 = vmul.f32 %v4335, 1.442695
    %v4371 = vpow.pop %v4370
    %v4372 = vmul.f32 %v4336, 1.442695
    %v4373 = vpow.pop %v4372
    %v4374 = vmul.f32 %v4337, 1.442695
    %v4375 = vpow.pop %v4374
    %v4376 = vmul.f32 %v4338, 1.442695
    %v4377 = vpow.pop %v4376
    %v4378 = vmul.f32 %v4339, 1.442695
    %v4379 = vpow.pop %v4378
    %v4380 = vmul.f32 %v4340, 1.442695
    %v4381 = vpow.pop %v4380
    %v4382 = vmul.f32 %v4341, 1.442695
    %v4383 = vpow.pop %v4382
    %v4384 = vmul.f32 %v4342, 1.442695
    %v4385 = vpow.pop %v4384
    %v4386 = vmul.f32 %v4343, 1.442695
    %v4387 = vpow.pop %v4386
    %v4388 = vmul.f32 %v4344, 1.442695
    %v4389 = vpow.pop %v4388
    %v4390 = vmul.f32 %v4345, 1.442695
    %v4391 = vpow.pop %v4390
    %v4392 = vmul.f32 %v4346, 1.442695
    %v4393 = vpow.pop %v4392
    %v4394 = vmul.f32 %v4347, 1.442695
    %v4395 = vpow.pop %v4394
    %v4396 = vmul.f32 %v4348, 1.442695
    %v4397 = vpow.pop %v4396
    %v4398 = vmul.f32 %v4349, 1.442695
    %v4399 = vpow.pop %v4398
    %v4400 = vmul.f32 %v4350, 1.442695
    %v4401 = vpow.pop %v4400
    %v4402 = vmul.f32 %v4351, 1.442695
    %v4403 = vpow.pop %v4402
    %v4404 = vmul.f32 %v4352, 1.442695
    %v4405 = vpow.pop %v4404
    %v4406 = vmul.f32 %v4353, 1.442695
    %v4407 = vpow.pop %v4406
    %v4408 = vmul.f32 %v4354, 1.442695
    %v4409 = vpow.pop %v4408
    %v4410 = vmul.f32 %v4355, 1.442695
    %v4411 = vpow.pop %v4410
    %v4412 = vmul.f32 %v4356, 1.442695
    %v4413 = vpow.pop %v4412
    %v4414 = vmul.f32 %v4357, 1.442695
    %v4415 = vpow.pop %v4414
    %v4416 = vmul.f32 %v4358, 1.442695
    %v4417 = vpow.pop %v4416
    %v4418 = vmul.f32 %v4359, 1.442695
    %v4419 = vpow.pop %v4418
    %v4420 = vmul.f32 %v4360, 1.442695
    %v4421 = vpow.pop %v4420
    %v4422 = vmul.f32 %v4361, 1.442695
    %v4423 = vpow.pop %v4422
    %v4424 = vmul.f32 %v4362, 1.442695
    %v4425 = vpow.pop %v4424
    %v4426 = vmul.f32 %v4363, 1.442695
    %v4427 = vpow.pop %v4426
    %v4428 = vadd.f32 %v4365, 1.0
    %v4429 = vadd.f32 %v4367, 1.0
    %v4430 = vadd.f32 %v4369, 1.0
    %v4431 = vadd.f32 %v4371, 1.0
    %v4432 = vadd.f32 %v4373, 1.0
    %v4433 = vadd.f32 %v4375, 1.0
    %v4434 = vadd.f32 %v4377, 1.0
    %v4435 = vadd.f32 %v4379, 1.0
    %v4436 = vadd.f32 %v4381, 1.0
    %v4437 = vadd.f32 %v4383, 1.0
    %v4438 = vadd.f32 %v4385, 1.0
    %v4439 = vadd.f32 %v4387, 1.0
    %v4440 = vadd.f32 %v4389, 1.0
    %v4441 = vadd.f32 %v4391, 1.0
    %v4442 = vadd.f32 %v4393, 1.0
    %v4443 = vadd.f32 %v4395, 1.0
    %v4444 = vadd.f32 %v4397, 1.0
    %v4445 = vadd.f32 %v4399, 1.0
    %v4446 = vadd.f32 %v4401, 1.0
    %v4447 = vadd.f32 %v4403, 1.0
    %v4448 = vadd.f32 %v4405, 1.0
    %v4449 = vadd.f32 %v4407, 1.0
    %v4450 = vadd.f32 %v4409, 1.0
    %v4451 = vadd.f32 %v4411, 1.0
    %v4452 = vadd.f32 %v4413, 1.0
    %v4453 = vadd.f32 %v4415, 1.0
    %v4454 = vadd.f32 %v4417, 1.0
    %v4455 = vadd.f32 %v4419, 1.0
    %v4456 = vadd.f32 %v4421, 1.0
    %v4457 = vadd.f32 %v4423, 1.0
    %v4458 = vadd.f32 %v4425, 1.0
    %v4459 = vadd.f32 %v4427, 1.0
    %v4460 = vrcp.pop %v4428
    %v4461 = vmul.f32 %v4428, %v4460
    %v4462 = vsub.f32 1.0, %v4461
    %v4463 = vmul.f32 %v4460, %v4462
    %v4464 = vadd.f32 %v4460, %v4463
    %vm4465 = vweird.f32 %v4428
    %vm4466 = vweird.f32 %v4460
    %vm4467 = vmor %vm4465, %vm4466
    %v4468 = vsel %vm4467, %v4460, %v4464
    %v4469 = vand.u32 2147483647, %v4428
    %vm4470 = vcmp.eq.f32.partialorder %v4469, 8.507059e+37
    %v4471 = vand.u32 %v4428, 2147483648
    %v4472 = vor.u32 1.1754944e-38, %v4471
    %v4473 = vsel %vm4470, %v4472, %v4468
    %v4474 = vmul.f32 1.0, %v4473
    %v4475 = vrcp.pop %v4429
    %v4476 = vmul.f32 %v4429, %v4475
    %v4477 = vsub.f32 1.0, %v4476
    %v4478 = vmul.f32 %v4475, %v4477
    %v4479 = vadd.f32 %v4475, %v4478
    %vm4480 = vweird.f32 %v4429
    %vm4481 = vweird.f32 %v4475
    %vm4482 = vmor %vm4480, %vm4481
    %v4483 = vsel %vm4482, %v4475, %v4479
    %v4484 = vand.u32 2147483647, %v4429
    %vm4485 = vcmp.eq.f32.partialorder %v4484, 8.507059e+37
    %v4486 = vand.u32 %v4429, 2147483648
    %v4487 = vor.u32 1.1754944e-38, %v4486
    %v4488 = vsel %vm4485, %v4487, %v4483
    %v4489 = vmul.f32 1.0, %v4488
    %v4490 = vrcp.pop %v4430
    %v4491 = vmul.f32 %v4430, %v4490
    %v4492 = vsub.f32 1.0, %v4491
    %v4493 = vmul.f32 %v4490, %v4492
    %v4494 = vadd.f32 %v4490, %v4493
    %vm4495 = vweird.f32 %v4430
    %vm4496 = vweird.f32 %v4490
    %vm4497 = vmor %vm4495, %vm4496
    %v4498 = vsel %vm4497, %v4490, %v4494
    %v4499 = vand.u32 2147483647, %v4430
    %vm4500 = vcmp.eq.f32.partialorder %v4499, 8.507059e+37
    %v4501 = vand.u32 %v4430, 2147483648
    %v4502 = vor.u32 1.1754944e-38, %v4501
    %v4503 = vsel %vm4500, %v4502, %v4498
    %v4504 = vmul.f32 1.0, %v4503
    %v4505 = vrcp.pop %v4431
    %v4506 = vmul.f32 %v4431, %v4505
    %v4507 = vsub.f32 1.0, %v4506
    %v4508 = vmul.f32 %v4505, %v4507
    %v4509 = vadd.f32 %v4505, %v4508
    %vm4510 = vweird.f32 %v4431
    %vm4511 = vweird.f32 %v4505
    %vm4512 = vmor %vm4510, %vm4511
    %v4513 = vsel %vm4512, %v4505, %v4509
    %v4514 = vand.u32 2147483647, %v4431
    %vm4515 = vcmp.eq.f32.partialorder %v4514, 8.507059e+37
    %v4516 = vand.u32 %v4431, 2147483648
    %v4517 = vor.u32 1.1754944e-38, %v4516
    %v4518 = vsel %vm4515, %v4517, %v4513
    %v4519 = vmul.f32 1.0, %v4518
    %v4520 = vrcp.pop %v4432
    %v4521 = vmul.f32 %v4432, %v4520
    %v4522 = vsub.f32 1.0, %v4521
    %v4523 = vmul.f32 %v4520, %v4522
    %v4524 = vadd.f32 %v4520, %v4523
    %vm4525 = vweird.f32 %v4432
    %vm4526 = vweird.f32 %v4520
    %vm4527 = vmor %vm4525, %vm4526
    %v4528 = vsel %vm4527, %v4520, %v4524
    %v4529 = vand.u32 2147483647, %v4432
    %vm4530 = vcmp.eq.f32.partialorder %v4529, 8.507059e+37
    %v4531 = vand.u32 %v4432, 2147483648
    %v4532 = vor.u32 1.1754944e-38, %v4531
    %v4533 = vsel %vm4530, %v4532, %v4528
    %v4534 = vmul.f32 1.0, %v4533
    %v4535 = vrcp.pop %v4433
    %v4536 = vmul.f32 %v4433, %v4535
    %v4537 = vsub.f32 1.0, %v4536
    %v4538 = vmul.f32 %v4535, %v4537
    %v4539 = vadd.f32 %v4535, %v4538
    %vm4540 = vweird.f32 %v4433
    %vm4541 = vweird.f32 %v4535
    %vm4542 = vmor %vm4540, %vm4541
    %v4543 = vsel %vm4542, %v4535, %v4539
    %v4544 = vand.u32 2147483647, %v4433
    %vm4545 = vcmp.eq.f32.partialorder %v4544, 8.507059e+37
    %v4546 = vand.u32 %v4433, 2147483648
    %v4547 = vor.u32 1.1754944e-38, %v4546
    %v4548 = vsel %vm4545, %v4547, %v4543
    %v4549 = vmul.f32 1.0, %v4548
    %v4550 = vrcp.pop %v4434
    %v4551 = vmul.f32 %v4434, %v4550
    %v4552 = vsub.f32 1.0, %v4551
    %v4553 = vmul.f32 %v4550, %v4552
    %v4554 = vadd.f32 %v4550, %v4553
    %vm4555 = vweird.f32 %v4434
    %vm4556 = vweird.f32 %v4550
    %vm4557 = vmor %vm4555, %vm4556
    %v4558 = vsel %vm4557, %v4550, %v4554
    %v4559 = vand.u32 2147483647, %v4434
    %vm4560 = vcmp.eq.f32.partialorder %v4559, 8.507059e+37
    %v4561 = vand.u32 %v4434, 2147483648
    %v4562 = vor.u32 1.1754944e-38, %v4561
    %v4563 = vsel %vm4560, %v4562, %v4558
    %v4564 = vmul.f32 1.0, %v4563
    %v4565 = vrcp.pop %v4435
    %v4566 = vmul.f32 %v4435, %v4565
    %v4567 = vsub.f32 1.0, %v4566
    %v4568 = vmul.f32 %v4565, %v4567
    %v4569 = vadd.f32 %v4565, %v4568
    %vm4570 = vweird.f32 %v4435
    %vm4571 = vweird.f32 %v4565
    %vm4572 = vmor %vm4570, %vm4571
    %v4573 = vsel %vm4572, %v4565, %v4569
    %v4574 = vand.u32 2147483647, %v4435
    %vm4575 = vcmp.eq.f32.partialorder %v4574, 8.507059e+37
    %v4576 = vand.u32 %v4435, 2147483648
    %v4577 = vor.u32 1.1754944e-38, %v4576
    %v4578 = vsel %vm4575, %v4577, %v4573
    %v4579 = vmul.f32 1.0, %v4578
    %v4580 = vrcp.pop %v4436
    %v4581 = vmul.f32 %v4436, %v4580
    %v4582 = vsub.f32 1.0, %v4581
    %v4583 = vmul.f32 %v4580, %v4582
    %v4584 = vadd.f32 %v4580, %v4583
    %vm4585 = vweird.f32 %v4436
    %vm4586 = vweird.f32 %v4580
    %vm4587 = vmor %vm4585, %vm4586
    %v4588 = vsel %vm4587, %v4580, %v4584
    %v4589 = vand.u32 2147483647, %v4436
    %vm4590 = vcmp.eq.f32.partialorder %v4589, 8.507059e+37
    %v4591 = vand.u32 %v4436, 2147483648
    %v4592 = vor.u32 1.1754944e-38, %v4591
    %v4593 = vsel %vm4590, %v4592, %v4588
    %v4594 = vmul.f32 1.0, %v4593
    %v4595 = vrcp.pop %v4437
    %v4596 = vmul.f32 %v4437, %v4595
    %v4597 = vsub.f32 1.0, %v4596
    %v4598 = vmul.f32 %v4595, %v4597
    %v4599 = vadd.f32 %v4595, %v4598
    %vm4600 = vweird.f32 %v4437
    %vm4601 = vweird.f32 %v4595
    %vm4602 = vmor %vm4600, %vm4601
    %v4603 = vsel %vm4602, %v4595, %v4599
    %v4604 = vand.u32 2147483647, %v4437
    %vm4605 = vcmp.eq.f32.partialorder %v4604, 8.507059e+37
    %v4606 = vand.u32 %v4437, 2147483648
    %v4607 = vor.u32 1.1754944e-38, %v4606
    %v4608 = vsel %vm4605, %v4607, %v4603
    %v4609 = vmul.f32 1.0, %v4608
    %v4610 = vrcp.pop %v4438
    %v4611 = vmul.f32 %v4438, %v4610
    %v4612 = vsub.f32 1.0, %v4611
    %v4613 = vmul.f32 %v4610, %v4612
    %v4614 = vadd.f32 %v4610, %v4613
    %vm4615 = vweird.f32 %v4438
    %vm4616 = vweird.f32 %v4610
    %vm4617 = vmor %vm4615, %vm4616
    %v4618 = vsel %vm4617, %v4610, %v4614
    %v4619 = vand.u32 2147483647, %v4438
    %vm4620 = vcmp.eq.f32.partialorder %v4619, 8.507059e+37
    %v4621 = vand.u32 %v4438, 2147483648
    %v4622 = vor.u32 1.1754944e-38, %v4621
    %v4623 = vsel %vm4620, %v4622, %v4618
    %v4624 = vmul.f32 1.0, %v4623
    %v4625 = vrcp.pop %v4439
    %v4626 = vmul.f32 %v4439, %v4625
    %v4627 = vsub.f32 1.0, %v4626
    %v4628 = vmul.f32 %v4625, %v4627
    %v4629 = vadd.f32 %v4625, %v4628
    %vm4630 = vweird.f32 %v4439
    %vm4631 = vweird.f32 %v4625
    %vm4632 = vmor %vm4630, %vm4631
    %v4633 = vsel %vm4632, %v4625, %v4629
    %v4634 = vand.u32 2147483647, %v4439
    %vm4635 = vcmp.eq.f32.partialorder %v4634, 8.507059e+37
    %v4636 = vand.u32 %v4439, 2147483648
    %v4637 = vor.u32 1.1754944e-38, %v4636
    %v4638 = vsel %vm4635, %v4637, %v4633
    %v4639 = vmul.f32 1.0, %v4638
    %v4640 = vrcp.pop %v4440
    %v4641 = vmul.f32 %v4440, %v4640
    %v4642 = vsub.f32 1.0, %v4641
    %v4643 = vmul.f32 %v4640, %v4642
    %v4644 = vadd.f32 %v4640, %v4643
    %vm4645 = vweird.f32 %v4440
    %vm4646 = vweird.f32 %v4640
    %vm4647 = vmor %vm4645, %vm4646
    %v4648 = vsel %vm4647, %v4640, %v4644
    %v4649 = vand.u32 2147483647, %v4440
    %vm4650 = vcmp.eq.f32.partialorder %v4649, 8.507059e+37
    %v4651 = vand.u32 %v4440, 2147483648
    %v4652 = vor.u32 1.1754944e-38, %v4651
    %v4653 = vsel %vm4650, %v4652, %v4648
    %v4654 = vmul.f32 1.0, %v4653
    %v4655 = vrcp.pop %v4441
    %v4656 = vmul.f32 %v4441, %v4655
    %v4657 = vsub.f32 1.0, %v4656
    %v4658 = vmul.f32 %v4655, %v4657
    %v4659 = vadd.f32 %v4655, %v4658
    %vm4660 = vweird.f32 %v4441
    %vm4661 = vweird.f32 %v4655
    %vm4662 = vmor %vm4660, %vm4661
    %v4663 = vsel %vm4662, %v4655, %v4659
    %v4664 = vand.u32 2147483647, %v4441
    %vm4665 = vcmp.eq.f32.partialorder %v4664, 8.507059e+37
    %v4666 = vand.u32 %v4441, 2147483648
    %v4667 = vor.u32 1.1754944e-38, %v4666
    %v4668 = vsel %vm4665, %v4667, %v4663
    %v4669 = vmul.f32 1.0, %v4668
    %v4670 = vrcp.pop %v4442
    %v4671 = vmul.f32 %v4442, %v4670
    %v4672 = vsub.f32 1.0, %v4671
    %v4673 = vmul.f32 %v4670, %v4672
    %v4674 = vadd.f32 %v4670, %v4673
    %vm4675 = vweird.f32 %v4442
    %vm4676 = vweird.f32 %v4670
    %vm4677 = vmor %vm4675, %vm4676
    %v4678 = vsel %vm4677, %v4670, %v4674
    %v4679 = vand.u32 2147483647, %v4442
    %vm4680 = vcmp.eq.f32.partialorder %v4679, 8.507059e+37
    %v4681 = vand.u32 %v4442, 2147483648
    %v4682 = vor.u32 1.1754944e-38, %v4681
    %v4683 = vsel %vm4680, %v4682, %v4678
    %v4684 = vmul.f32 1.0, %v4683
    %v4685 = vrcp.pop %v4443
    %v4686 = vmul.f32 %v4443, %v4685
    %v4687 = vsub.f32 1.0, %v4686
    %v4688 = vmul.f32 %v4685, %v4687
    %v4689 = vadd.f32 %v4685, %v4688
    %vm4690 = vweird.f32 %v4443
    %vm4691 = vweird.f32 %v4685
    %vm4692 = vmor %vm4690, %vm4691
    %v4693 = vsel %vm4692, %v4685, %v4689
    %v4694 = vand.u32 2147483647, %v4443
    %vm4695 = vcmp.eq.f32.partialorder %v4694, 8.507059e+37
    %v4696 = vand.u32 %v4443, 2147483648
    %v4697 = vor.u32 1.1754944e-38, %v4696
    %v4698 = vsel %vm4695, %v4697, %v4693
    %v4699 = vmul.f32 1.0, %v4698
    %v4700 = vrcp.pop %v4444
    %v4701 = vmul.f32 %v4444, %v4700
    %v4702 = vsub.f32 1.0, %v4701
    %v4703 = vmul.f32 %v4700, %v4702
    %v4704 = vadd.f32 %v4700, %v4703
    %vm4705 = vweird.f32 %v4444
    %vm4706 = vweird.f32 %v4700
    %vm4707 = vmor %vm4705, %vm4706
    %v4708 = vsel %vm4707, %v4700, %v4704
    %v4709 = vand.u32 2147483647, %v4444
    %vm4710 = vcmp.eq.f32.partialorder %v4709, 8.507059e+37
    %v4711 = vand.u32 %v4444, 2147483648
    %v4712 = vor.u32 1.1754944e-38, %v4711
    %v4713 = vsel %vm4710, %v4712, %v4708
    %v4714 = vmul.f32 1.0, %v4713
    %v4715 = vrcp.pop %v4445
    %v4716 = vmul.f32 %v4445, %v4715
    %v4717 = vsub.f32 1.0, %v4716
    %v4718 = vmul.f32 %v4715, %v4717
    %v4719 = vadd.f32 %v4715, %v4718
    %vm4720 = vweird.f32 %v4445
    %vm4721 = vweird.f32 %v4715
    %vm4722 = vmor %vm4720, %vm4721
    %v4723 = vsel %vm4722, %v4715, %v4719
    %v4724 = vand.u32 2147483647, %v4445
    %vm4725 = vcmp.eq.f32.partialorder %v4724, 8.507059e+37
    %v4726 = vand.u32 %v4445, 2147483648
    %v4727 = vor.u32 1.1754944e-38, %v4726
    %v4728 = vsel %vm4725, %v4727, %v4723
    %v4729 = vmul.f32 1.0, %v4728
    %v4730 = vrcp.pop %v4446
    %v4731 = vmul.f32 %v4446, %v4730
    %v4732 = vsub.f32 1.0, %v4731
    %v4733 = vmul.f32 %v4730, %v4732
    %v4734 = vadd.f32 %v4730, %v4733
    %vm4735 = vweird.f32 %v4446
    %vm4736 = vweird.f32 %v4730
    %vm4737 = vmor %vm4735, %vm4736
    %v4738 = vsel %vm4737, %v4730, %v4734
    %v4739 = vand.u32 2147483647, %v4446
    %vm4740 = vcmp.eq.f32.partialorder %v4739, 8.507059e+37
    %v4741 = vand.u32 %v4446, 2147483648
    %v4742 = vor.u32 1.1754944e-38, %v4741
    %v4743 = vsel %vm4740, %v4742, %v4738
    %v4744 = vmul.f32 1.0, %v4743
    %v4745 = vrcp.pop %v4447
    %v4746 = vmul.f32 %v4447, %v4745
    %v4747 = vsub.f32 1.0, %v4746
    %v4748 = vmul.f32 %v4745, %v4747
    %v4749 = vadd.f32 %v4745, %v4748
    %vm4750 = vweird.f32 %v4447
    %vm4751 = vweird.f32 %v4745
    %vm4752 = vmor %vm4750, %vm4751
    %v4753 = vsel %vm4752, %v4745, %v4749
    %v4754 = vand.u32 2147483647, %v4447
    %vm4755 = vcmp.eq.f32.partialorder %v4754, 8.507059e+37
    %v4756 = vand.u32 %v4447, 2147483648
    %v4757 = vor.u32 1.1754944e-38, %v4756
    %v4758 = vsel %vm4755, %v4757, %v4753
    %v4759 = vmul.f32 1.0, %v4758
    %v4760 = vrcp.pop %v4448
    %v4761 = vmul.f32 %v4448, %v4760
    %v4762 = vsub.f32 1.0, %v4761
    %v4763 = vmul.f32 %v4760, %v4762
    %v4764 = vadd.f32 %v4760, %v4763
    %vm4765 = vweird.f32 %v4448
    %vm4766 = vweird.f32 %v4760
    %vm4767 = vmor %vm4765, %vm4766
    %v4768 = vsel %vm4767, %v4760, %v4764
    %v4769 = vand.u32 2147483647, %v4448
    %vm4770 = vcmp.eq.f32.partialorder %v4769, 8.507059e+37
    %v4771 = vand.u32 %v4448, 2147483648
    %v4772 = vor.u32 1.1754944e-38, %v4771
    %v4773 = vsel %vm4770, %v4772, %v4768
    %v4774 = vmul.f32 1.0, %v4773
    %v4775 = vrcp.pop %v4449
    %v4776 = vmul.f32 %v4449, %v4775
    %v4777 = vsub.f32 1.0, %v4776
    %v4778 = vmul.f32 %v4775, %v4777
    %v4779 = vadd.f32 %v4775, %v4778
    %vm4780 = vweird.f32 %v4449
    %vm4781 = vweird.f32 %v4775
    %vm4782 = vmor %vm4780, %vm4781
    %v4783 = vsel %vm4782, %v4775, %v4779
    %v4784 = vand.u32 2147483647, %v4449
    %vm4785 = vcmp.eq.f32.partialorder %v4784, 8.507059e+37
    %v4786 = vand.u32 %v4449, 2147483648
    %v4787 = vor.u32 1.1754944e-38, %v4786
    %v4788 = vsel %vm4785, %v4787, %v4783
    %v4789 = vmul.f32 1.0, %v4788
    %v4790 = vrcp.pop %v4450
    %v4791 = vmul.f32 %v4450, %v4790
    %v4792 = vsub.f32 1.0, %v4791
    %v4793 = vmul.f32 %v4790, %v4792
    %v4794 = vadd.f32 %v4790, %v4793
    %vm4795 = vweird.f32 %v4450
    %vm4796 = vweird.f32 %v4790
    %vm4797 = vmor %vm4795, %vm4796
    %v4798 = vsel %vm4797, %v4790, %v4794
    %v4799 = vand.u32 2147483647, %v4450
    %vm4800 = vcmp.eq.f32.partialorder %v4799, 8.507059e+37
    %v4801 = vand.u32 %v4450, 2147483648
    %v4802 = vor.u32 1.1754944e-38, %v4801
    %v4803 = vsel %vm4800, %v4802, %v4798
    %v4804 = vmul.f32 1.0, %v4803
    %v4805 = vrcp.pop %v4451
    %v4806 = vmul.f32 %v4451, %v4805
    %v4807 = vsub.f32 1.0, %v4806
    %v4808 = vmul.f32 %v4805, %v4807
    %v4809 = vadd.f32 %v4805, %v4808
    %vm4810 = vweird.f32 %v4451
    %vm4811 = vweird.f32 %v4805
    %vm4812 = vmor %vm4810, %vm4811
    %v4813 = vsel %vm4812, %v4805, %v4809
    %v4814 = vand.u32 2147483647, %v4451
    %vm4815 = vcmp.eq.f32.partialorder %v4814, 8.507059e+37
    %v4816 = vand.u32 %v4451, 2147483648
    %v4817 = vor.u32 1.1754944e-38, %v4816
    %v4818 = vsel %vm4815, %v4817, %v4813
    %v4819 = vmul.f32 1.0, %v4818
    %v4820 = vrcp.pop %v4452
    %v4821 = vmul.f32 %v4452, %v4820
    %v4822 = vsub.f32 1.0, %v4821
    %v4823 = vmul.f32 %v4820, %v4822
    %v4824 = vadd.f32 %v4820, %v4823
    %vm4825 = vweird.f32 %v4452
    %vm4826 = vweird.f32 %v4820
    %vm4827 = vmor %vm4825, %vm4826
    %v4828 = vsel %vm4827, %v4820, %v4824
    %v4829 = vand.u32 2147483647, %v4452
    %vm4830 = vcmp.eq.f32.partialorder %v4829, 8.507059e+37
    %v4831 = vand.u32 %v4452, 2147483648
    %v4832 = vor.u32 1.1754944e-38, %v4831
    %v4833 = vsel %vm4830, %v4832, %v4828
    %v4834 = vmul.f32 1.0, %v4833
    %v4835 = vrcp.pop %v4453
    %v4836 = vmul.f32 %v4453, %v4835
    %v4837 = vsub.f32 1.0, %v4836
    %v4838 = vmul.f32 %v4835, %v4837
    %v4839 = vadd.f32 %v4835, %v4838
    %vm4840 = vweird.f32 %v4453
    %vm4841 = vweird.f32 %v4835
    %vm4842 = vmor %vm4840, %vm4841
    %v4843 = vsel %vm4842, %v4835, %v4839
    %v4844 = vand.u32 2147483647, %v4453
    %vm4845 = vcmp.eq.f32.partialorder %v4844, 8.507059e+37
    %v4846 = vand.u32 %v4453, 2147483648
    %v4847 = vor.u32 1.1754944e-38, %v4846
    %v4848 = vsel %vm4845, %v4847, %v4843
    %v4849 = vmul.f32 1.0, %v4848
    %v4850 = vrcp.pop %v4454
    %v4851 = vmul.f32 %v4454, %v4850
    %v4852 = vsub.f32 1.0, %v4851
    %v4853 = vmul.f32 %v4850, %v4852
    %v4854 = vadd.f32 %v4850, %v4853
    %vm4855 = vweird.f32 %v4454
    %vm4856 = vweird.f32 %v4850
    %vm4857 = vmor %vm4855, %vm4856
    %v4858 = vsel %vm4857, %v4850, %v4854
    %v4859 = vand.u32 2147483647, %v4454
    %vm4860 = vcmp.eq.f32.partialorder %v4859, 8.507059e+37
    %v4861 = vand.u32 %v4454, 2147483648
    %v4862 = vor.u32 1.1754944e-38, %v4861
    %v4863 = vsel %vm4860, %v4862, %v4858
    %v4864 = vmul.f32 1.0, %v4863
    %v4865 = vrcp.pop %v4455
    %v4866 = vmul.f32 %v4455, %v4865
    %v4867 = vsub.f32 1.0, %v4866
    %v4868 = vmul.f32 %v4865, %v4867
    %v4869 = vadd.f32 %v4865, %v4868
    %vm4870 = vweird.f32 %v4455
    %vm4871 = vweird.f32 %v4865
    %vm4872 = vmor %vm4870, %vm4871
    %v4873 = vsel %vm4872, %v4865, %v4869
    %v4874 = vand.u32 2147483647, %v4455
    %vm4875 = vcmp.eq.f32.partialorder %v4874, 8.507059e+37
    %v4876 = vand.u32 %v4455, 2147483648
    %v4877 = vor.u32 1.1754944e-38, %v4876
    %v4878 = vsel %vm4875, %v4877, %v4873
    %v4879 = vmul.f32 1.0, %v4878
    %v4880 = vrcp.pop %v4456
    %v4881 = vmul.f32 %v4456, %v4880
    %v4882 = vsub.f32 1.0, %v4881
    %v4883 = vmul.f32 %v4880, %v4882
    %v4884 = vadd.f32 %v4880, %v4883
    %vm4885 = vweird.f32 %v4456
    %vm4886 = vweird.f32 %v4880
    %vm4887 = vmor %vm4885, %vm4886
    %v4888 = vsel %vm4887, %v4880, %v4884
    %v4889 = vand.u32 2147483647, %v4456
    %vm4890 = vcmp.eq.f32.partialorder %v4889, 8.507059e+37
    %v4891 = vand.u32 %v4456, 2147483648
    %v4892 = vor.u32 1.1754944e-38, %v4891
    %v4893 = vsel %vm4890, %v4892, %v4888
    %v4894 = vmul.f32 1.0, %v4893
    %v4895 = vrcp.pop %v4457
    %v4896 = vmul.f32 %v4457, %v4895
    %v4897 = vsub.f32 1.0, %v4896
    %v4898 = vmul.f32 %v4895, %v4897
    %v4899 = vadd.f32 %v4895, %v4898
    %vm4900 = vweird.f32 %v4457
    %vm4901 = vweird.f32 %v4895
    %vm4902 = vmor %vm4900, %vm4901
    %v4903 = vsel %vm4902, %v4895, %v4899
    %v4904 = vand.u32 2147483647, %v4457
    %vm4905 = vcmp.eq.f32.partialorder %v4904, 8.507059e+37
    %v4906 = vand.u32 %v4457, 2147483648
    %v4907 = vor.u32 1.1754944e-38, %v4906
    %v4908 = vsel %vm4905, %v4907, %v4903
    %v4909 = vmul.f32 1.0, %v4908
    %v4910 = vrcp.pop %v4458
    %v4911 = vmul.f32 %v4458, %v4910
    %v4912 = vsub.f32 1.0, %v4911
    %v4913 = vmul.f32 %v4910, %v4912
    %v4914 = vadd.f32 %v4910, %v4913
    %vm4915 = vweird.f32 %v4458
    %vm4916 = vweird.f32 %v4910
    %vm4917 = vmor %vm4915, %vm4916
    %v4918 = vsel %vm4917, %v4910, %v4914
    %v4919 = vand.u32 2147483647, %v4458
    %vm4920 = vcmp.eq.f32.partialorder %v4919, 8.507059e+37
    %v4921 = vand.u32 %v4458, 2147483648
    %v4922 = vor.u32 1.1754944e-38, %v4921
    %v4923 = vsel %vm4920, %v4922, %v4918
    %v4924 = vmul.f32 1.0, %v4923
    %v4925 = vrcp.pop %v4459
    %v4926 = vmul.f32 %v4459, %v4925
    %v4927 = vsub.f32 1.0, %v4926
    %v4928 = vmul.f32 %v4925, %v4927
    %v4929 = vadd.f32 %v4925, %v4928
    %vm4930 = vweird.f32 %v4459
    %vm4931 = vweird.f32 %v4925
    %vm4932 = vmor %vm4930, %vm4931
    %v4933 = vsel %vm4932, %v4925, %v4929
    %v4934 = vand.u32 2147483647, %v4459
    %vm4935 = vcmp.eq.f32.partialorder %v4934, 8.507059e+37
    %v4936 = vand.u32 %v4459, 2147483648
    %v4937 = vor.u32 1.1754944e-38, %v4936
    %v4938 = vsel %vm4935, %v4937, %v4933
    %v4939 = vmul.f32 1.0, %v4938
    %v4940 = vmul.f32 %v4474, %v2492
    %v4941 = vmul.f32 %v4489, %v2497
    %v4942 = vmul.f32 %v4504, %v2502
    %v4943 = vmul.f32 %v4519, %v2507
    %v4944 = vmul.f32 %v4534, %v2512
    %v4945 = vmul.f32 %v4549, %v2517
    %v4946 = vmul.f32 %v4564, %v2522
    %v4947 = vmul.f32 %v4579, %v2527
    %v4948 = vmul.f32 %v4594, %v2532
    %v4949 = vmul.f32 %v4609, %v2537
    %v4950 = vmul.f32 %v4624, %v2542
    %v4951 = vmul.f32 %v4639, %v2547
    %v4952 = vmul.f32 %v4654, %v2552
    %v4953 = vmul.f32 %v4669, %v2557
    %v4954 = vmul.f32 %v4684, %v2562
    %v4955 = vmul.f32 %v4699, %v2567
    %v4956 = vmul.f32 %v4714, %v2572
    %v4957 = vmul.f32 %v4729, %v2577
    %v4958 = vmul.f32 %v4744, %v2582
    %v4959 = vmul.f32 %v4759, %v2587
    %v4960 = vmul.f32 %v4774, %v2592
    %v4961 = vmul.f32 %v4789, %v2597
    %v4962 = vmul.f32 %v4804, %v2602
    %v4963 = vmul.f32 %v4819, %v2607
    %v4964 = vmul.f32 %v4834, %v2612
    %v4965 = vmul.f32 %v4849, %v2617
    %v4966 = vmul.f32 %v4864, %v2622
    %v4967 = vmul.f32 %v4879, %v2627
    %v4968 = vmul.f32 %v4894, %v2632
    %v4969 = vmul.f32 %v4909, %v2637
    %v4970 = vmul.f32 %v4924, %v2642
    %v4971 = vmul.f32 %v4939, %v2647
    %v4972 = vsel %vm1392, %v4940, 0.0
    %v4973 = vsel %vm1392, %v4941, 0.0
    %v4974 = vadd.f32 %v4972, %v4973
    %v4975 = vsel %vm1392, %v4942, 0.0
    %v4976 = vadd.f32 %v4974, %v4975
    %v4977 = vsel %vm1392, %v4943, 0.0
    %v4978 = vadd.f32 %v4976, %v4977
    %v4979 = vsel %vm1392, %v4944, 0.0
    %v4980 = vadd.f32 %v4978, %v4979
    %v4981 = vsel %vm1392, %v4945, 0.0
    %v4982 = vadd.f32 %v4980, %v4981
    %v4983 = vsel %vm1392, %v4946, 0.0
    %v4984 = vadd.f32 %v4982, %v4983
    %v4985 = vsel %vm1392, %v4947, 0.0
    %v4986 = vadd.f32 %v4984, %v4985
    %v4987 = vsel %vm1392, %v4948, 0.0
    %v4988 = vadd.f32 %v4986, %v4987
    %v4989 = vsel %vm1392, %v4949, 0.0
    %v4990 = vadd.f32 %v4988, %v4989
    %v4991 = vsel %vm1392, %v4950, 0.0
    %v4992 = vadd.f32 %v4990, %v4991
    %v4993 = vsel %vm1392, %v4951, 0.0
    %v4994 = vadd.f32 %v4992, %v4993
    %v4995 = vsel %vm1392, %v4952, 0.0
    %v4996 = vadd.f32 %v4994, %v4995
    %v4997 = vsel %vm1392, %v4953, 0.0
    %v4998 = vadd.f32 %v4996, %v4997
    %v4999 = vsel %vm1392, %v4954, 0.0
    %v5000 = vadd.f32 %v4998, %v4999
    %v5001 = vsel %vm1392, %v4955, 0.0
    %v5002 = vadd.f32 %v5000, %v5001
    %v5003 = vsel %vm1392, %v4956, 0.0
    %v5004 = vadd.f32 %v5002, %v5003
    %v5005 = vsel %vm1392, %v4957, 0.0
    %v5006 = vadd.f32 %v5004, %v5005
    %v5007 = vsel %vm1392, %v4958, 0.0
    %v5008 = vadd.f32 %v5006, %v5007
    %v5009 = vsel %vm1392, %v4959, 0.0
    %v5010 = vadd.f32 %v5008, %v5009
    %v5011 = vsel %vm1392, %v4960, 0.0
    %v5012 = vadd.f32 %v5010, %v5011
    %v5013 = vsel %vm1392, %v4961, 0.0
    %v5014 = vadd.f32 %v5012, %v5013
    %v5015 = vsel %vm1392, %v4962, 0.0
    %v5016 = vadd.f32 %v5014, %v5015
    %v5017 = vsel %vm1392, %v4963, 0.0
    %v5018 = vadd.f32 %v5016, %v5017
    %v5019 = vsel %vm1392, %v4964, 0.0
    %v5020 = vadd.f32 %v5018, %v5019
    %v5021 = vsel %vm1392, %v4965, 0.0
    %v5022 = vadd.f32 %v5020, %v5021
    %v5023 = vsel %vm1392, %v4966, 0.0
    %v5024 = vadd.f32 %v5022, %v5023
    %v5025 = vsel %vm1392, %v4967, 0.0
    %v5026 = vadd.f32 %v5024, %v5025
    %v5027 = vsel %vm1392, %v4968, 0.0
    %v5028 = vadd.f32 %v5026, %v5027
    %v5029 = vsel %vm1392, %v4969, 0.0
    %v5030 = vadd.f32 %v5028, %v5029
    %v5031 = vsel %vm1392, %v4970, 0.0
    %v5032 = vadd.f32 %v5030, %v5031
    %v5033 = vsel %vm1392, %v4971, 0.0
    %v5034 = vadd.f32 %v5032, %v5033
    %v5035 = vrot.slane %v5034, 4
    %v5036 = vadd.f32 %v5034, %v5035
    %v5037 = vrot.slane %v5036, 2
    %v5038 = vadd.f32 %v5036, %v5037
    %v5039 = vrot.slane %v5038, 1
    %v5040 = vadd.f32 %v5038, %v5039
    %v5041 = vsel %vm2750, %v3912, %v5040
    %v5042 = vadd.f32 %v2751, %v5041
    %v5043 = vmul.f32 %v5042, 0.5
    %vm5044 = vcmask 74752
    %5045 = vst.msk [vmem:[#allocation2] sm:$0x3] %vm5044, %v2751
    %5046 = vst.msk [vmem:[#allocation4] sm:$0x3] %vm5044, %v5041
    %5047 = vst.msk [vmem:[%s20] sm:$0x3] %vm5044, %v5043
    %v5048 = vld [vmem:[%s3] sm:$0x3]
    %v5049 = vsub.f32 %v2751, %v5048
    %v5050 = vand.u32 2147483647, %v5049
    %vm5051 = vcmp.lt.f32.partialorder %v5050, 1.0
    %v5052 = vmul.f32 %v5049, 0.5
    %v5053 = vmul.f32 %v5052, %v5049
    %v5054 = vsub.f32 %v5050, 0.5
    %v5055 = vsel %vm5051, %v5053, %v5054
    %v5056 = vsel %vm5044, %v5055, 0.0
    %5057 = vadd.xlane.f32.xlu0 %v5056
    %v5058 = vpop.xlane.xlu0 %5057
    %v5059 = vrot.slane %v5058, 4
    %v5060 = vadd.f32 %v5058, %v5059
    %v5061 = vrot.slane %v5060, 2
    %v5062 = vadd.f32 %v5060, %v5061
    %v5063 = vrot.slane %v5062, 1
    %v5064 = vadd.f32 %v5062, %v5063
    %s5065 = vtos %v5064
    %v5066 = vstv %s5065
    %v5067 = vrcp.pop 20.0
    %v5068 = vmul.f32 20.0, %v5067
    %v5069 = vsub.f32 1.0, %v5068
    %v5070 = vmul.f32 %v5067, %v5069
    %v5071 = vadd.f32 %v5067, %v5070
    %vm5072 = vweird.f32 %v5067
    %v5073 = vsel %vm5072, %v5067, %v5071
    %v5074 = vmul.f32 %v5066, %v5073
    %v5075 = vsub.f32 %v5041, %v5048
    %v5076 = vand.u32 2147483647, %v5075
    %vm5077 = vcmp.lt.f32.partialorder %v5076, 1.0
    %v5078 = vmul.f32 %v5075, 0.5
    %v5079 = vmul.f32 %v5078, %v5075
    %v5080 = vsub.f32 %v5076, 0.5
    %v5081 = vsel %vm5077, %v5079, %v5080
    %v5082 = vsel %vm5044, %v5081, 0.0
    %5083 = vadd.xlane.f32.xlu0 %v5082
    %v5084 = vpop.xlane.xlu0 %5083
    %v5085 = vrot.slane %v5084, 4
    %v5086 = vadd.f32 %v5084, %v5085
    %v5087 = vrot.slane %v5086, 2
    %v5088 = vadd.f32 %v5086, %v5087
    %v5089 = vrot.slane %v5088, 1
    %v5090 = vadd.f32 %v5088, %v5089
    %s5091 = vtos %v5090
    %v5092 = vstv %s5091
    %v5093 = vmul.f32 %v5092, %v5073
    %v5094 = vadd.f32 %v5074, %v5093
    %v5095 = vsub.f32 %v5043, %v5048
    %v5096 = vand.u32 2147483647, %v5095
    %vm5097 = vcmp.lt.f32.partialorder %v5096, 1.0
    %v5098 = vmul.f32 %v5095, 0.5
    %v5099 = vmul.f32 %v5098, %v5095
    %v5100 = vsub.f32 %v5096, 0.5
    %v5101 = vsel %vm5097, %v5099, %v5100
    %v5102 = vsel %vm5044, %v5101, 0.0
    %5103 = vadd.xlane.f32.xlu0 %v5102
    %v5104 = vpop.xlane.xlu0 %5103
    %v5105 = vrot.slane %v5104, 4
    %v5106 = vadd.f32 %v5104, %v5105
    %v5107 = vrot.slane %v5106, 2
    %v5108 = vadd.f32 %v5106, %v5107
    %v5109 = vrot.slane %v5108, 1
    %v5110 = vadd.f32 %v5108, %v5109
    %s5111 = vtos %v5110
    %v5112 = vstv %s5111
    %v5113 = vmul.f32 %v5112, %v5073
    %v5114 = vadd.f32 %v5094, %v5113
    %vm5115 = vcmask 0
    %5116 = vst.msk [vmem:[#allocation6] sm:$0x1] %vm5115, %v5114
    // Predicated region
    $region74: #{can_forward.2} parent=1 // pred_check
      _
    $region75: #{can_forward.2} parent=1 // pred_check_branch
      %5118 = sbr.rel (0) target = $region77
    $region76: #{can_forward.2} parent=1 // pred_region
      %5120 = vsyncadd [#allocation3], 0
      %s5122 = sshll.u32 [#allocation2], 4
      %s5123 = int_to_ptr.vmem [resolvable:$true] %s5122
      %s5124 = sshll.u32 %s18, 4
      %s5125 = int_to_ptr.hbm [resolvable:$true] %s5124
      %5127 = dma.vmem_to_hbm [thread:$0]  %s5123, 32, %s5125, [#allocation3]
    $region77: #{can_forward.2} parent=1 // pred_fallthru
      _
    // Predicated region
    $region78: #{can_forward.2} parent=1 // pred_check
      _
    $region79: #{can_forward.2} parent=1 // pred_check_branch
      %5129 = sbr.rel (0) target = $region81
    $region80: #{can_forward.2} parent=1 // pred_region
      %5131 = vsyncadd [#allocation5], 0
      %s5133 = sshll.u32 [#allocation4], 4
      %s5134 = int_to_ptr.vmem [resolvable:$true] %s5133
      %s5135 = sshll.u32 %s19, 4
      %s5136 = int_to_ptr.hbm [resolvable:$true] %s5135
      %5138 = dma.vmem_to_hbm [thread:$0]  %s5134, 32, %s5136, [#allocation5]
    $region81: #{can_forward.2} parent=1 // pred_fallthru
      _
    // Predicated region
    $region82: #{can_forward.2} parent=1 // pred_check
      _
    $region83: #{can_forward.2} parent=1 // pred_check_branch
      %5140 = sbr.rel (0) target = $region85
    $region84: #{can_forward.2} parent=1 // pred_region
      _
    $region85: #{can_forward.2} parent=1 // pred_fallthru
      _
    // Predicated region
    $region86: #{can_forward.2} parent=1 // pred_check
      _
    $region87: #{can_forward.2} parent=1 // pred_check_branch
      %5142 = sbr.rel (0) target = $region89
    $region88: #{can_forward.2} parent=1 // pred_region
      %5144 = vsyncadd [#allocation5], 0
      %s5146 = sshll.u32 [#allocation6], 4
      %s5147 = int_to_ptr.vmem [resolvable:$true] %s5146
      %s5148 = sshll.u32 %s21, 4
      %s5149 = int_to_ptr.hbm [resolvable:$true] %s5148
      %5151 = dma.vmem_to_hbm [thread:$0]  %s5147, 16, %s5149, [#allocation5]
    $region89: #{can_forward.2} parent=1 // pred_fallthru
      _
    // Predicated region
    $region90: #{can_forward.2} parent=1 // pred_check
      _
    $region91: #{can_forward.2} parent=1 // pred_check_branch
      %5153 = sbr.rel (0) target = $region93
    $region92: #{can_forward.2} parent=1 // pred_region
      %5155 = dma.done [#allocation3], 32
    $region93: #{can_forward.2} parent=1 // pred_fallthru
      _
    // Predicated region
    $region94: #{can_forward.2} parent=1 // pred_check
      _
    $region95: #{can_forward.2} parent=1 // pred_check_branch
      %5157 = sbr.rel (0) target = $region97
    $region96: #{can_forward.2} parent=1 // pred_region
      %5159 = dma.done [#allocation5], 32
    $region97: #{can_forward.2} parent=1 // pred_fallthru
      _
    // Predicated region
    $region98: #{can_forward.2} parent=1 // pred_check
      _
    $region99: #{can_forward.2} parent=1 // pred_check_branch
      %5161 = sbr.rel (0) target = $region101
    $region100: #{can_forward.2} parent=1 // pred_region
      _
    $region101: #{can_forward.2} parent=1 // pred_fallthru
      _
    // Predicated region
    $region102: #{can_forward.2} parent=1 // pred_check
      _
    $region103: #{can_forward.2} parent=1 // pred_check_branch
      %5163 = sbr.rel (0) target = $region105
    $region104: #{can_forward.2} parent=1 // pred_region
      %5165 = dma.done [#allocation5], 16
    $region105: #{can_forward.2} parent=1 // pred_fallthru
      _
    %5166 = vsyncpa [#allocation3], 1
    %5167 = vsyncpa [#allocation5], 1

// kernel: can_forward.3
$region0: #{can_forward.3}
  #allocation0 [shape = 'u32[]', space=smem, size = 0x4, offset = 0x4, fixed_abs, tag = 'smem constant byte address 0x4 - core index']
  #allocation1 [shape = 'u32[72,128]{1,0:T(1,128)}', space=vmem, size = 0x9000, scoped, tag = 'internal scratch']
  #allocation2 [shape = 'f32[2,32]{1,0:T(2,128)}', space=vmem, size = 0x400, scoped, tag = 'scratch operand']
  #allocation3 [shape = 'f32[1,1]{1,0:T(1,128)}', space=vmem, size = 0x200, scoped, tag = 'scratch operand']
  #allocation4 [shape = 'f32[1,1]{1,0:T(1,128)}', space=vmem, size = 0x200, scoped, tag = 'scratch operand']
  %s0 = inlined_call_operand.vmem [shape: f32[2,256,32], index: 0, kind: input, shape index: {}]
  %s1 = inlined_call_operand.vmem [shape: f32[2,256,32], index: 1, kind: input, shape index: {}]
  %s2 = inlined_call_operand.vmem [shape: f32[2,256], index: 2, kind: input, shape index: {}]
  %s3 = inlined_call_operand.vmem [shape: f32[2,10], index: 3, kind: input, shape index: {}]
  %s4 = inlined_call_operand.vmem [shape: f32[2,32], index: 4, kind: input, shape index: {}]
  %s5 = inlined_call_operand.vmem [shape: f32[16,32], index: 5, kind: input, shape index: {}]
  %s6 = inlined_call_operand.vmem [shape: f32[32,32], index: 6, kind: input, shape index: {}]
  %s7 = inlined_call_operand.vmem [shape: f32[10,32], index: 7, kind: input, shape index: {}]
  %s8 = inlined_call_operand.vmem [shape: f32[1,32], index: 8, kind: input, shape index: {}]
  %s9 = inlined_call_operand.vmem [shape: f32[32,32], index: 9, kind: input, shape index: {}]
  %s10 = inlined_call_operand.vmem [shape: f32[1,32], index: 10, kind: input, shape index: {}]
  %s11 = inlined_call_operand.vmem [shape: f32[1,32], index: 11, kind: input, shape index: {}]
  %s12 = inlined_call_operand.vmem [shape: f32[32,10], index: 12, kind: input, shape index: {}]
  %s13 = inlined_call_operand.vmem [shape: f32[32,10], index: 13, kind: input, shape index: {}]
  %s14 = inlined_call_operand.vmem [shape: f32[10,10], index: 14, kind: input, shape index: {}]
  %s15 = inlined_call_operand.vmem [shape: f32[1,10], index: 15, kind: input, shape index: {}]
  %s16 = inlined_call_operand.vmem [shape: f32[6,2,16], index: 16, kind: input, shape index: {}]
  %s17 = inlined_call_operand.vmem [shape: f32[6,2,10], index: 17, kind: input, shape index: {}]
  %s18 = inlined_call_operand.vmem [shape: f32[6,2,1], index: 18, kind: input, shape index: {}]
  %s19 = inlined_call_operand.hbm [shape: f32[6,2,10], index: 19, kind: output, shape index: {0}]
  %s20 = inlined_call_operand.hbm [shape: f32[1,1], index: 20, kind: output, shape index: {1}]
  %21 = xla_tuple %s19, %s20
  %s22 = sld [smem:[#allocation0]]
  $region125: #{can_forward.3} parent=0
    _
  %s24 = ssub.s32 1, %s22
  %s25 = scalar_select 0, %s24, %s22
  $region1: #{can_forward.3} parent=0
    #allocation5 [shape = 'u8[2048]{0}', space=vmem, size = 0x800, scoped, tag = 'output window, operand 0']
    #allocation6 [shape = 's32[2]{0}', space=sflag, size = 0x8, scoped, tag = 'scoped memory for can_forward.3']
    #allocation7 [shape = 'u8[512]{0}', space=vmem, size = 0x400, scoped, tag = 'output window, operand 1, single buffered']
    #allocation8 [shape = 's32[1]{0}', space=sflag, size = 0x4, scoped, tag = 'scoped memory for can_forward.3']
    %26 = vsyncpa [#allocation6], 0
    %s27 = scalar_lea.sflag [#allocation6], 1
    %28 = vsyncpa %s27, 0
    %29 = vsyncpa [#allocation8], 0
    loop: start=0, step=1, limit=8
    $region2: #{can_forward.3} parent=1 // loop_pre_header
      _
    $region3: #{can_forward.3} parent=1 // loop_header
      %s31 = sphi 0, %s35
      %p32 = scmp.ge.s32.totalorder %s31, 8
      %s39 = sphi 0, %s39
      %s41 = sphi 0, %s39
      %s42 = sphi 0, %s41
      %s56 = sphi 0, %s42
      %s60 = sphi 0, %s60
      %s62 = sphi 0, %s60
      %s63 = sphi 0, %s62
      %s77 = sphi 0, %s63
      %s81 = sphi 0, %s81
      %s83 = sphi 0, %s81
      %s84 = sphi 0, %s83
      %s98 = sphi 0, %s84
      %s102 = sphi 0, %s102
      %s104 = sphi 0, %s102
      %s105 = sphi 0, %s104
      %s119 = sphi 0, %s105
      %s123 = sphi 0, %s123
      %s125 = sphi 0, %s123
      %s126 = sphi 0, %s125
      %s140 = sphi 0, %s126
      %s144 = sphi 0, %s144
      %s146 = sphi 0, %s144
      %s147 = sphi 0, %s146
      %s161 = sphi 0, %s147
      %s165 = sphi 0, %s165
      %s167 = sphi 0, %s165
      %s168 = sphi 0, %s167
      %s182 = sphi 0, %s168
      %s186 = sphi 0, %s186
      %s188 = sphi 0, %s186
      %s189 = sphi 0, %s188
      %s203 = sphi 0, %s189
      %s207 = sphi 0, %s207
      %s209 = sphi 0, %s207
      %s210 = sphi 0, %s209
      %s224 = sphi 0, %s210
      %s228 = sphi 0, %s228
      %s230 = sphi 0, %s228
      %s231 = sphi 0, %s230
      %s245 = sphi 0, %s231
      %s249 = sphi 0, %s249
      %s251 = sphi 0, %s249
      %s252 = sphi 0, %s251
      %s266 = sphi 0, %s252
      %s270 = sphi 0, %s270
      %s272 = sphi 0, %s270
      %s273 = sphi 0, %s272
      %s287 = sphi 0, %s273
      %s291 = sphi 0, %s291
      %s293 = sphi 0, %s291
      %s294 = sphi 0, %s293
      %s308 = sphi 0, %s294
      %s312 = sphi 0, %s312
      %s314 = sphi 0, %s312
      %s315 = sphi 0, %s314
      %s329 = sphi 0, %s315
      %s333 = sphi 0, %s333
      %s335 = sphi 0, %s333
      %s336 = sphi 0, %s335
      %s350 = sphi 0, %s336
      %s354 = sphi 0, %s354
      %s356 = sphi 0, %s354
      %s357 = sphi 0, %s356
      %s371 = sphi 0, %s357
      %s377 = sphi 0, %s379
      %s380 = sphi 0, %s377
      %s381 = sphi 0, %s380
      %s397 = sphi 0, %s381
      %s403 = sphi 0, %s405
      %s406 = sphi 0, %s403
      %s407 = sphi 0, %s406
      %s423 = sphi 0, %s407
      %s429 = sphi 0, %s431
      %s432 = sphi 0, %s429
      %s433 = sphi 0, %s432
      %s449 = sphi 0, %s433
      %s455 = sphi 0, %s457
      %s458 = sphi 0, %s455
      %s459 = sphi 0, %s458
      %s475 = sphi 0, %s459
      %s479 = sphi 0, %s479
      %s481 = sphi 0, %s479
      %s482 = sphi 0, %s481
      %s496 = sphi 0, %s482
    $region4: #{can_forward.3} parent=1 // loop_header_branch
      %34 = sbr.rel (%p32) target = $region8
    $region5: #{can_forward.3} parent=1 // loop_body
      %s36 = ssub.s32 %s31, 1
      %s37 = ssub.s32 %s31, 2
      %s38 = sadd.s32 %s31, 1
      %s40 = sadd.s32 %s39, 1
      %p43 = scmp.eq.s32.totalorder %s31, 5
      %p44 = scmp.ne.s32.totalorder %s39, %s41
      %p45 = scmp.eq.s32.totalorder %s31, 0
      %p46 = por %p44, %p45
      %p47 = scmp.ne.s32.totalorder %s39, %s41
      %p48 = scmp.eq.s32.totalorder %s36, 5
      %p49 = por %p47, %p48
      %p50 = scmp.ne.s32.totalorder %s41, %s42
      %p51 = scmp.eq.s32.totalorder %s36, 0
      %p52 = por %p50, %p51
      %p53 = scmp.ne.s32.totalorder %s41, %s42
      %p54 = scmp.eq.s32.totalorder %s37, 5
      %p55 = por %p53, %p54
      %p57 = scmp.ne.s32.totalorder %s42, %s56
      %p58 = scmp.eq.s32.totalorder %s37, 0
      %p59 = por %p57, %p58
      %s61 = sadd.s32 %s60, 1
      %p64 = scmp.eq.s32.totalorder %s31, 5
      %p65 = scmp.ne.s32.totalorder %s60, %s62
      %p66 = scmp.eq.s32.totalorder %s31, 0
      %p67 = por %p65, %p66
      %p68 = scmp.ne.s32.totalorder %s60, %s62
      %p69 = scmp.eq.s32.totalorder %s36, 5
      %p70 = por %p68, %p69
      %p71 = scmp.ne.s32.totalorder %s62, %s63
      %p72 = scmp.eq.s32.totalorder %s36, 0
      %p73 = por %p71, %p72
      %p74 = scmp.ne.s32.totalorder %s62, %s63
      %p75 = scmp.eq.s32.totalorder %s37, 5
      %p76 = por %p74, %p75
      %p78 = scmp.ne.s32.totalorder %s63, %s77
      %p79 = scmp.eq.s32.totalorder %s37, 0
      %p80 = por %p78, %p79
      %s82 = sadd.s32 %s81, 1
      %p85 = scmp.eq.s32.totalorder %s31, 5
      %p86 = scmp.ne.s32.totalorder %s81, %s83
      %p87 = scmp.eq.s32.totalorder %s31, 0
      %p88 = por %p86, %p87
      %p89 = scmp.ne.s32.totalorder %s81, %s83
      %p90 = scmp.eq.s32.totalorder %s36, 5
      %p91 = por %p89, %p90
      %p92 = scmp.ne.s32.totalorder %s83, %s84
      %p93 = scmp.eq.s32.totalorder %s36, 0
      %p94 = por %p92, %p93
      %p95 = scmp.ne.s32.totalorder %s83, %s84
      %p96 = scmp.eq.s32.totalorder %s37, 5
      %p97 = por %p95, %p96
      %p99 = scmp.ne.s32.totalorder %s84, %s98
      %p100 = scmp.eq.s32.totalorder %s37, 0
      %p101 = por %p99, %p100
      %s103 = sadd.s32 %s102, 1
      %p106 = scmp.eq.s32.totalorder %s31, 5
      %p107 = scmp.ne.s32.totalorder %s102, %s104
      %p108 = scmp.eq.s32.totalorder %s31, 0
      %p109 = por %p107, %p108
      %p110 = scmp.ne.s32.totalorder %s102, %s104
      %p111 = scmp.eq.s32.totalorder %s36, 5
      %p112 = por %p110, %p111
      %p113 = scmp.ne.s32.totalorder %s104, %s105
      %p114 = scmp.eq.s32.totalorder %s36, 0
      %p115 = por %p113, %p114
      %p116 = scmp.ne.s32.totalorder %s104, %s105
      %p117 = scmp.eq.s32.totalorder %s37, 5
      %p118 = por %p116, %p117
      %p120 = scmp.ne.s32.totalorder %s105, %s119
      %p121 = scmp.eq.s32.totalorder %s37, 0
      %p122 = por %p120, %p121
      %s124 = sadd.s32 %s123, 1
      %p127 = scmp.eq.s32.totalorder %s31, 5
      %p128 = scmp.ne.s32.totalorder %s123, %s125
      %p129 = scmp.eq.s32.totalorder %s31, 0
      %p130 = por %p128, %p129
      %p131 = scmp.ne.s32.totalorder %s123, %s125
      %p132 = scmp.eq.s32.totalorder %s36, 5
      %p133 = por %p131, %p132
      %p134 = scmp.ne.s32.totalorder %s125, %s126
      %p135 = scmp.eq.s32.totalorder %s36, 0
      %p136 = por %p134, %p135
      %p137 = scmp.ne.s32.totalorder %s125, %s126
      %p138 = scmp.eq.s32.totalorder %s37, 5
      %p139 = por %p137, %p138
      %p141 = scmp.ne.s32.totalorder %s126, %s140
      %p142 = scmp.eq.s32.totalorder %s37, 0
      %p143 = por %p141, %p142
      %s145 = sadd.s32 %s144, 1
      %p148 = scmp.eq.s32.totalorder %s31, 5
      %p149 = scmp.ne.s32.totalorder %s144, %s146
      %p150 = scmp.eq.s32.totalorder %s31, 0
      %p151 = por %p149, %p150
      %p152 = scmp.ne.s32.totalorder %s144, %s146
      %p153 = scmp.eq.s32.totalorder %s36, 5
      %p154 = por %p152, %p153
      %p155 = scmp.ne.s32.totalorder %s146, %s147
      %p156 = scmp.eq.s32.totalorder %s36, 0
      %p157 = por %p155, %p156
      %p158 = scmp.ne.s32.totalorder %s146, %s147
      %p159 = scmp.eq.s32.totalorder %s37, 5
      %p160 = por %p158, %p159
      %p162 = scmp.ne.s32.totalorder %s147, %s161
      %p163 = scmp.eq.s32.totalorder %s37, 0
      %p164 = por %p162, %p163
      %s166 = sadd.s32 %s165, 1
      %p169 = scmp.eq.s32.totalorder %s31, 5
      %p170 = scmp.ne.s32.totalorder %s165, %s167
      %p171 = scmp.eq.s32.totalorder %s31, 0
      %p172 = por %p170, %p171
      %p173 = scmp.ne.s32.totalorder %s165, %s167
      %p174 = scmp.eq.s32.totalorder %s36, 5
      %p175 = por %p173, %p174
      %p176 = scmp.ne.s32.totalorder %s167, %s168
      %p177 = scmp.eq.s32.totalorder %s36, 0
      %p178 = por %p176, %p177
      %p179 = scmp.ne.s32.totalorder %s167, %s168
      %p180 = scmp.eq.s32.totalorder %s37, 5
      %p181 = por %p179, %p180
      %p183 = scmp.ne.s32.totalorder %s168, %s182
      %p184 = scmp.eq.s32.totalorder %s37, 0
      %p185 = por %p183, %p184
      %s187 = sadd.s32 %s186, 1
      %p190 = scmp.eq.s32.totalorder %s31, 5
      %p191 = scmp.ne.s32.totalorder %s186, %s188
      %p192 = scmp.eq.s32.totalorder %s31, 0
      %p193 = por %p191, %p192
      %p194 = scmp.ne.s32.totalorder %s186, %s188
      %p195 = scmp.eq.s32.totalorder %s36, 5
      %p196 = por %p194, %p195
      %p197 = scmp.ne.s32.totalorder %s188, %s189
      %p198 = scmp.eq.s32.totalorder %s36, 0
      %p199 = por %p197, %p198
      %p200 = scmp.ne.s32.totalorder %s188, %s189
      %p201 = scmp.eq.s32.totalorder %s37, 5
      %p202 = por %p200, %p201
      %p204 = scmp.ne.s32.totalorder %s189, %s203
      %p205 = scmp.eq.s32.totalorder %s37, 0
      %p206 = por %p204, %p205
      %s208 = sadd.s32 %s207, 1
      %p211 = scmp.eq.s32.totalorder %s31, 5
      %p212 = scmp.ne.s32.totalorder %s207, %s209
      %p213 = scmp.eq.s32.totalorder %s31, 0
      %p214 = por %p212, %p213
      %p215 = scmp.ne.s32.totalorder %s207, %s209
      %p216 = scmp.eq.s32.totalorder %s36, 5
      %p217 = por %p215, %p216
      %p218 = scmp.ne.s32.totalorder %s209, %s210
      %p219 = scmp.eq.s32.totalorder %s36, 0
      %p220 = por %p218, %p219
      %p221 = scmp.ne.s32.totalorder %s209, %s210
      %p222 = scmp.eq.s32.totalorder %s37, 5
      %p223 = por %p221, %p222
      %p225 = scmp.ne.s32.totalorder %s210, %s224
      %p226 = scmp.eq.s32.totalorder %s37, 0
      %p227 = por %p225, %p226
      %s229 = sadd.s32 %s228, 1
      %p232 = scmp.eq.s32.totalorder %s31, 5
      %p233 = scmp.ne.s32.totalorder %s228, %s230
      %p234 = scmp.eq.s32.totalorder %s31, 0
      %p235 = por %p233, %p234
      %p236 = scmp.ne.s32.totalorder %s228, %s230
      %p237 = scmp.eq.s32.totalorder %s36, 5
      %p238 = por %p236, %p237
      %p239 = scmp.ne.s32.totalorder %s230, %s231
      %p240 = scmp.eq.s32.totalorder %s36, 0
      %p241 = por %p239, %p240
      %p242 = scmp.ne.s32.totalorder %s230, %s231
      %p243 = scmp.eq.s32.totalorder %s37, 5
      %p244 = por %p242, %p243
      %p246 = scmp.ne.s32.totalorder %s231, %s245
      %p247 = scmp.eq.s32.totalorder %s37, 0
      %p248 = por %p246, %p247
      %s250 = sadd.s32 %s249, 1
      %p253 = scmp.eq.s32.totalorder %s31, 5
      %p254 = scmp.ne.s32.totalorder %s249, %s251
      %p255 = scmp.eq.s32.totalorder %s31, 0
      %p256 = por %p254, %p255
      %p257 = scmp.ne.s32.totalorder %s249, %s251
      %p258 = scmp.eq.s32.totalorder %s36, 5
      %p259 = por %p257, %p258
      %p260 = scmp.ne.s32.totalorder %s251, %s252
      %p261 = scmp.eq.s32.totalorder %s36, 0
      %p262 = por %p260, %p261
      %p263 = scmp.ne.s32.totalorder %s251, %s252
      %p264 = scmp.eq.s32.totalorder %s37, 5
      %p265 = por %p263, %p264
      %p267 = scmp.ne.s32.totalorder %s252, %s266
      %p268 = scmp.eq.s32.totalorder %s37, 0
      %p269 = por %p267, %p268
      %s271 = sadd.s32 %s270, 1
      %p274 = scmp.eq.s32.totalorder %s31, 5
      %p275 = scmp.ne.s32.totalorder %s270, %s272
      %p276 = scmp.eq.s32.totalorder %s31, 0
      %p277 = por %p275, %p276
      %p278 = scmp.ne.s32.totalorder %s270, %s272
      %p279 = scmp.eq.s32.totalorder %s36, 5
      %p280 = por %p278, %p279
      %p281 = scmp.ne.s32.totalorder %s272, %s273
      %p282 = scmp.eq.s32.totalorder %s36, 0
      %p283 = por %p281, %p282
      %p284 = scmp.ne.s32.totalorder %s272, %s273
      %p285 = scmp.eq.s32.totalorder %s37, 5
      %p286 = por %p284, %p285
      %p288 = scmp.ne.s32.totalorder %s273, %s287
      %p289 = scmp.eq.s32.totalorder %s37, 0
      %p290 = por %p288, %p289
      %s292 = sadd.s32 %s291, 1
      %p295 = scmp.eq.s32.totalorder %s31, 5
      %p296 = scmp.ne.s32.totalorder %s291, %s293
      %p297 = scmp.eq.s32.totalorder %s31, 0
      %p298 = por %p296, %p297
      %p299 = scmp.ne.s32.totalorder %s291, %s293
      %p300 = scmp.eq.s32.totalorder %s36, 5
      %p301 = por %p299, %p300
      %p302 = scmp.ne.s32.totalorder %s293, %s294
      %p303 = scmp.eq.s32.totalorder %s36, 0
      %p304 = por %p302, %p303
      %p305 = scmp.ne.s32.totalorder %s293, %s294
      %p306 = scmp.eq.s32.totalorder %s37, 5
      %p307 = por %p305, %p306
      %p309 = scmp.ne.s32.totalorder %s294, %s308
      %p310 = scmp.eq.s32.totalorder %s37, 0
      %p311 = por %p309, %p310
      %s313 = sadd.s32 %s312, 1
      %p316 = scmp.eq.s32.totalorder %s31, 5
      %p317 = scmp.ne.s32.totalorder %s312, %s314
      %p318 = scmp.eq.s32.totalorder %s31, 0
      %p319 = por %p317, %p318
      %p320 = scmp.ne.s32.totalorder %s312, %s314
      %p321 = scmp.eq.s32.totalorder %s36, 5
      %p322 = por %p320, %p321
      %p323 = scmp.ne.s32.totalorder %s314, %s315
      %p324 = scmp.eq.s32.totalorder %s36, 0
      %p325 = por %p323, %p324
      %p326 = scmp.ne.s32.totalorder %s314, %s315
      %p327 = scmp.eq.s32.totalorder %s37, 5
      %p328 = por %p326, %p327
      %p330 = scmp.ne.s32.totalorder %s315, %s329
      %p331 = scmp.eq.s32.totalorder %s37, 0
      %p332 = por %p330, %p331
      %s334 = sadd.s32 %s333, 1
      %p337 = scmp.eq.s32.totalorder %s31, 5
      %p338 = scmp.ne.s32.totalorder %s333, %s335
      %p339 = scmp.eq.s32.totalorder %s31, 0
      %p340 = por %p338, %p339
      %p341 = scmp.ne.s32.totalorder %s333, %s335
      %p342 = scmp.eq.s32.totalorder %s36, 5
      %p343 = por %p341, %p342
      %p344 = scmp.ne.s32.totalorder %s335, %s336
      %p345 = scmp.eq.s32.totalorder %s36, 0
      %p346 = por %p344, %p345
      %p347 = scmp.ne.s32.totalorder %s335, %s336
      %p348 = scmp.eq.s32.totalorder %s37, 5
      %p349 = por %p347, %p348
      %p351 = scmp.ne.s32.totalorder %s336, %s350
      %p352 = scmp.eq.s32.totalorder %s37, 0
      %p353 = por %p351, %p352
      %s355 = sadd.s32 %s354, 1
      %p358 = scmp.eq.s32.totalorder %s31, 5
      %p359 = scmp.ne.s32.totalorder %s354, %s356
      %p360 = scmp.eq.s32.totalorder %s31, 0
      %p361 = por %p359, %p360
      %p362 = scmp.ne.s32.totalorder %s354, %s356
      %p363 = scmp.eq.s32.totalorder %s36, 5
      %p364 = por %p362, %p363
      %p365 = scmp.ne.s32.totalorder %s356, %s357
      %p366 = scmp.eq.s32.totalorder %s36, 0
      %p367 = por %p365, %p366
      %p368 = scmp.ne.s32.totalorder %s356, %s357
      %p369 = scmp.eq.s32.totalorder %s37, 5
      %p370 = por %p368, %p369
      %p372 = scmp.ne.s32.totalorder %s357, %s371
      %p373 = scmp.eq.s32.totalorder %s37, 0
      %p374 = por %p372, %p373
      %s375 = ssub.s32 %s31, %s38
      %p376 = scmp.eq.s32.totalorder %s375, 0
      %s378 = sadd.s32 %s377, 1
      %s379 = scalar_select %p376, %s377, %s378
      %p382 = pneg %p376
      %p383 = scmp.eq.s32.totalorder %s31, 5
      %p384 = por %p382, %p383
      %p385 = scmp.ne.s32.totalorder %s377, %s380
      %p386 = scmp.eq.s32.totalorder %s31, 0
      %p387 = por %p385, %p386
      %p388 = scmp.ne.s32.totalorder %s377, %s380
      %p389 = scmp.eq.s32.totalorder %s36, 5
      %p390 = por %p388, %p389
      %p391 = scmp.ne.s32.totalorder %s380, %s381
      %p392 = scmp.eq.s32.totalorder %s36, 0
      %p393 = por %p391, %p392
      %p394 = scmp.ne.s32.totalorder %s380, %s381
      %p395 = scmp.eq.s32.totalorder %s37, 5
      %p396 = por %p394, %p395
      %p398 = scmp.ne.s32.totalorder %s381, %s397
      %p399 = scmp.eq.s32.totalorder %s37, 0
      %p400 = por %p398, %p399
      %s401 = ssub.s32 %s31, %s38
      %p402 = scmp.eq.s32.totalorder %s401, 0
      %s404 = sadd.s32 %s403, 1
      %s405 = scalar_select %p402, %s403, %s404
      %p408 = pneg %p402
      %p409 = scmp.eq.s32.totalorder %s31, 5
      %p410 = por %p408, %p409
      %p411 = scmp.ne.s32.totalorder %s403, %s406
      %p412 = scmp.eq.s32.totalorder %s31, 0
      %p413 = por %p411, %p412
      %p414 = scmp.ne.s32.totalorder %s403, %s406
      %p415 = scmp.eq.s32.totalorder %s36, 5
      %p416 = por %p414, %p415
      %p417 = scmp.ne.s32.totalorder %s406, %s407
      %p418 = scmp.eq.s32.totalorder %s36, 0
      %p419 = por %p417, %p418
      %p420 = scmp.ne.s32.totalorder %s406, %s407
      %p421 = scmp.eq.s32.totalorder %s37, 5
      %p422 = por %p420, %p421
      %p424 = scmp.ne.s32.totalorder %s407, %s423
      %p425 = scmp.eq.s32.totalorder %s37, 0
      %p426 = por %p424, %p425
      %s427 = ssub.s32 %s31, %s38
      %p428 = scmp.eq.s32.totalorder %s427, 0
      %s430 = sadd.s32 %s429, 1
      %s431 = scalar_select %p428, %s429, %s430
      %p434 = pneg %p428
      %p435 = scmp.eq.s32.totalorder %s31, 5
      %p436 = por %p434, %p435
      %p437 = scmp.ne.s32.totalorder %s429, %s432
      %p438 = scmp.eq.s32.totalorder %s31, 0
      %p439 = por %p437, %p438
      %p440 = scmp.ne.s32.totalorder %s429, %s432
      %p441 = scmp.eq.s32.totalorder %s36, 5
      %p442 = por %p440, %p441
      %p443 = scmp.ne.s32.totalorder %s432, %s433
      %p444 = scmp.eq.s32.totalorder %s36, 0
      %p445 = por %p443, %p444
      %p446 = scmp.ne.s32.totalorder %s432, %s433
      %p447 = scmp.eq.s32.totalorder %s37, 5
      %p448 = por %p446, %p447
      %p450 = scmp.ne.s32.totalorder %s433, %s449
      %p451 = scmp.eq.s32.totalorder %s37, 0
      %p452 = por %p450, %p451
      %s453 = ssub.s32 %s31, %s38
      %p454 = scmp.eq.s32.totalorder %s453, 0
      %s456 = sadd.s32 %s455, 1
      %s457 = scalar_select %p454, %s455, %s456
      %p460 = pneg %p454
      %p461 = scmp.eq.s32.totalorder %s31, 5
      %p462 = por %p460, %p461
      %p463 = scmp.ne.s32.totalorder %s455, %s458
      %p464 = scmp.eq.s32.totalorder %s31, 0
      %p465 = por %p463, %p464
      %p466 = scmp.ne.s32.totalorder %s455, %s458
      %p467 = scmp.eq.s32.totalorder %s36, 5
      %p468 = por %p466, %p467
      %p469 = scmp.ne.s32.totalorder %s458, %s459
      %p470 = scmp.eq.s32.totalorder %s36, 0
      %p471 = por %p469, %p470
      %p472 = scmp.ne.s32.totalorder %s458, %s459
      %p473 = scmp.eq.s32.totalorder %s37, 5
      %p474 = por %p472, %p473
      %p476 = scmp.ne.s32.totalorder %s459, %s475
      %p477 = scmp.eq.s32.totalorder %s37, 0
      %p478 = por %p476, %p477
      %s480 = sadd.s32 %s479, 1
      %p483 = scmp.eq.s32.totalorder %s31, 5
      %p484 = scmp.ne.s32.totalorder %s479, %s481
      %p485 = scmp.eq.s32.totalorder %s31, 0
      %p486 = por %p484, %p485
      %p487 = scmp.ne.s32.totalorder %s479, %s481
      %p488 = scmp.eq.s32.totalorder %s36, 5
      %p489 = por %p487, %p488
      %p490 = scmp.ne.s32.totalorder %s481, %s482
      %p491 = scmp.eq.s32.totalorder %s36, 0
      %p492 = por %p490, %p491
      %p493 = scmp.ne.s32.totalorder %s481, %s482
      %p494 = scmp.eq.s32.totalorder %s37, 5
      %p495 = por %p493, %p494
      %p497 = scmp.ne.s32.totalorder %s482, %s496
      %p498 = scmp.eq.s32.totalorder %s37, 0
      %p499 = por %p497, %p498
      %p500 = scmp.le.s32.totalorder 1, %s31
      %p501 = scmp.lt.s32.totalorder %s31, 7
      %p502 = pnand %p500, %p501
      %p503 = pneg %p502
      // Predicated region
      $region9: #{can_forward.3} parent=5 // pred_check
        _
      $region10: #{can_forward.3} parent=5 // pred_check_branch
        %505 = sbr.rel (%p502) target = $region12
      $region11: #{can_forward.3} parent=5 // pred_region
        %s506 = ssub.s32 %s31, 1
        // Predicated region
        $region13: #{can_forward.3} parent=11 // pred_check
          %p507 = pneg %p52
        $region14: #{can_forward.3} parent=11 // pred_check_branch
          %509 = sbr.rel (%p507) target = $region16
        $region15: #{can_forward.3} parent=11 // pred_region
          _
        $region16: #{can_forward.3} parent=11 // pred_fallthru
          _
        // Predicated region
        $region17: #{can_forward.3} parent=11 // pred_check
          %p510 = pneg %p73
        $region18: #{can_forward.3} parent=11 // pred_check_branch
          %512 = sbr.rel (%p510) target = $region20
        $region19: #{can_forward.3} parent=11 // pred_region
          _
        $region20: #{can_forward.3} parent=11 // pred_fallthru
          _
        // Predicated region
        $region21: #{can_forward.3} parent=11 // pred_check
          %p513 = pneg %p94
        $region22: #{can_forward.3} parent=11 // pred_check_branch
          %515 = sbr.rel (%p513) target = $region24
        $region23: #{can_forward.3} parent=11 // pred_region
          _
        $region24: #{can_forward.3} parent=11 // pred_fallthru
          _
        // Predicated region
        $region25: #{can_forward.3} parent=11 // pred_check
          %p516 = pneg %p115
        $region26: #{can_forward.3} parent=11 // pred_check_branch
          %518 = sbr.rel (%p516) target = $region28
        $region27: #{can_forward.3} parent=11 // pred_region
          _
        $region28: #{can_forward.3} parent=11 // pred_fallthru
          _
        // Predicated region
        $region29: #{can_forward.3} parent=11 // pred_check
          %p519 = pneg %p136
        $region30: #{can_forward.3} parent=11 // pred_check_branch
          %521 = sbr.rel (%p519) target = $region32
        $region31: #{can_forward.3} parent=11 // pred_region
          _
        $region32: #{can_forward.3} parent=11 // pred_fallthru
          _
        // Predicated region
        $region33: #{can_forward.3} parent=11 // pred_check
          %p522 = pneg %p157
        $region34: #{can_forward.3} parent=11 // pred_check_branch
          %524 = sbr.rel (%p522) target = $region36
        $region35: #{can_forward.3} parent=11 // pred_region
          _
        $region36: #{can_forward.3} parent=11 // pred_fallthru
          _
        // Predicated region
        $region37: #{can_forward.3} parent=11 // pred_check
          %p525 = pneg %p178
        $region38: #{can_forward.3} parent=11 // pred_check_branch
          %527 = sbr.rel (%p525) target = $region40
        $region39: #{can_forward.3} parent=11 // pred_region
          _
        $region40: #{can_forward.3} parent=11 // pred_fallthru
          _
        // Predicated region
        $region41: #{can_forward.3} parent=11 // pred_check
          %p528 = pneg %p199
        $region42: #{can_forward.3} parent=11 // pred_check_branch
          %530 = sbr.rel (%p528) target = $region44
        $region43: #{can_forward.3} parent=11 // pred_region
          _
        $region44: #{can_forward.3} parent=11 // pred_fallthru
          _
        // Predicated region
        $region45: #{can_forward.3} parent=11 // pred_check
          %p531 = pneg %p220
        $region46: #{can_forward.3} parent=11 // pred_check_branch
          %533 = sbr.rel (%p531) target = $region48
        $region47: #{can_forward.3} parent=11 // pred_region
          _
        $region48: #{can_forward.3} parent=11 // pred_fallthru
          _
        // Predicated region
        $region49: #{can_forward.3} parent=11 // pred_check
          %p534 = pneg %p241
        $region50: #{can_forward.3} parent=11 // pred_check_branch
          %536 = sbr.rel (%p534) target = $region52
        $region51: #{can_forward.3} parent=11 // pred_region
          _
        $region52: #{can_forward.3} parent=11 // pred_fallthru
          _
        // Predicated region
        $region53: #{can_forward.3} parent=11 // pred_check
          %p537 = pneg %p262
        $region54: #{can_forward.3} parent=11 // pred_check_branch
          %539 = sbr.rel (%p537) target = $region56
        $region55: #{can_forward.3} parent=11 // pred_region
          _
        $region56: #{can_forward.3} parent=11 // pred_fallthru
          _
        // Predicated region
        $region57: #{can_forward.3} parent=11 // pred_check
          %p540 = pneg %p283
        $region58: #{can_forward.3} parent=11 // pred_check_branch
          %542 = sbr.rel (%p540) target = $region60
        $region59: #{can_forward.3} parent=11 // pred_region
          _
        $region60: #{can_forward.3} parent=11 // pred_fallthru
          _
        // Predicated region
        $region61: #{can_forward.3} parent=11 // pred_check
          %p543 = pneg %p304
        $region62: #{can_forward.3} parent=11 // pred_check_branch
          %545 = sbr.rel (%p543) target = $region64
        $region63: #{can_forward.3} parent=11 // pred_region
          _
        $region64: #{can_forward.3} parent=11 // pred_fallthru
          _
        // Predicated region
        $region65: #{can_forward.3} parent=11 // pred_check
          %p546 = pneg %p325
        $region66: #{can_forward.3} parent=11 // pred_check_branch
          %548 = sbr.rel (%p546) target = $region68
        $region67: #{can_forward.3} parent=11 // pred_region
          _
        $region68: #{can_forward.3} parent=11 // pred_fallthru
          _
        // Predicated region
        $region69: #{can_forward.3} parent=11 // pred_check
          %p549 = pneg %p346
        $region70: #{can_forward.3} parent=11 // pred_check_branch
          %551 = sbr.rel (%p549) target = $region72
        $region71: #{can_forward.3} parent=11 // pred_region
          _
        $region72: #{can_forward.3} parent=11 // pred_fallthru
          _
        // Predicated region
        $region73: #{can_forward.3} parent=11 // pred_check
          %p552 = pneg %p367
        $region74: #{can_forward.3} parent=11 // pred_check_branch
          %554 = sbr.rel (%p552) target = $region76
        $region75: #{can_forward.3} parent=11 // pred_region
          _
        $region76: #{can_forward.3} parent=11 // pred_fallthru
          _
      $region12: #{can_forward.3} parent=5 // pred_fallthru
        _
      %p555 = scmp.lt.s32.totalorder %s31, 6
      // Predicated region
      $region77: #{can_forward.3} parent=5 // pred_check
        %p556 = pneg %p555
      $region78: #{can_forward.3} parent=5 // pred_check_branch
        %558 = sbr.rel (%p556) target = $region80
      $region79: #{can_forward.3} parent=5 // pred_region
        // Predicated region
        $region81: #{can_forward.3} parent=79 // pred_check
          %p559 = pneg %p387
        $region82: #{can_forward.3} parent=79 // pred_check_branch
          %561 = sbr.rel (%p559) target = $region84
        $region83: #{can_forward.3} parent=79 // pred_region
          %p562 = scmp.lt.s32.totalorder %s31, 5
          %s563 = scalar_select %p562, %s31, 5
          %s564 = smul.addr %s563, 2
          %s565 = scalar_lea.vmem %s16, %s564
        $region84: #{can_forward.3} parent=79 // pred_fallthru
          _
        // Predicated region
        $region85: #{can_forward.3} parent=79 // pred_check
          %p566 = pneg %p413
        $region86: #{can_forward.3} parent=79 // pred_check_branch
          %568 = sbr.rel (%p566) target = $region88
        $region87: #{can_forward.3} parent=79 // pred_region
          %p569 = scmp.lt.s32.totalorder %s31, 5
          %s570 = scalar_select %p569, %s31, 5
          %s571 = smul.addr %s570, 2
          %s572 = scalar_lea.vmem %s17, %s571
        $region88: #{can_forward.3} parent=79 // pred_fallthru
          _
        // Predicated region
        $region89: #{can_forward.3} parent=79 // pred_check
          %p573 = pneg %p439
        $region90: #{can_forward.3} parent=79 // pred_check_branch
          %575 = sbr.rel (%p573) target = $region92
        $region91: #{can_forward.3} parent=79 // pred_region
          %p576 = scmp.lt.s32.totalorder %s31, 5
          %s577 = scalar_select %p576, %s31, 5
          %s578 = smul.addr %s577, 2
          %s579 = scalar_lea.vmem %s18, %s578
        $region92: #{can_forward.3} parent=79 // pred_fallthru
          _
      $region80: #{can_forward.3} parent=5 // pred_fallthru
        _
      %p580 = scmp.le.s32.totalorder 1, %s31
      %p581 = scmp.lt.s32.totalorder %s31, 7
      %p582 = pnand %p580, %p581
      %p583 = pneg %p582
      // Predicated region
      $region93: #{can_forward.3} parent=5 // pred_check
        _
      $region94: #{can_forward.3} parent=5 // pred_check_branch
        %585 = sbr.rel (%p582) target = $region96
      $region95: #{can_forward.3} parent=5 // pred_region
        %s586 = ssub.s32 %s31, 1
        %p587 = pneg %p52
        %p588 = pneg %p49
        %p589 = pneg %p73
        %p590 = pneg %p70
        %p591 = pneg %p94
        %p592 = pneg %p91
        %p593 = pneg %p115
        %p594 = pneg %p112
        %p595 = pneg %p136
        %p596 = pneg %p133
        %p597 = pneg %p157
        %p598 = pneg %p154
        %p599 = pneg %p178
        %p600 = pneg %p175
        %p601 = pneg %p199
        %p602 = pneg %p196
        %p603 = pneg %p220
        %p604 = pneg %p217
        %p605 = pneg %p241
        %p606 = pneg %p238
        %p607 = pneg %p262
        %p608 = pneg %p259
        %p609 = pneg %p283
        %p610 = pneg %p280
        %p611 = pneg %p304
        %p612 = pneg %p301
        %p613 = pneg %p325
        %p614 = pneg %p322
        %p615 = pneg %p346
        %p616 = pneg %p343
        %p617 = pneg %p367
        %p618 = pneg %p364
        %p619 = scmp.lt.s32.totalorder %s36, 5
        %s620 = scalar_select %p619, %s36, 5
        %s621 = smul.addr %s620, 2
        %s622 = scalar_lea.vmem %s16, %s621
        %p623 = pneg %p393
        %p624 = pneg %p390
        %p625 = scmp.lt.s32.totalorder %s36, 5
        %s626 = scalar_select %p625, %s36, 5
        %s627 = smul.addr %s626, 2
        %s628 = scalar_lea.vmem %s17, %s627
        %p629 = pneg %p419
        %p630 = pneg %p416
        %p631 = scmp.lt.s32.totalorder %s36, 5
        %s632 = scalar_select %p631, %s36, 5
        %s633 = smul.addr %s632, 2
        %s634 = scalar_lea.vmem %s18, %s633
        %p635 = pneg %p445
        %p636 = pneg %p442
        %p637 = pneg %p471
        %p638 = pneg %p468
        %s639 = sand.u32 %s458, 1
        %s640 = scalar_lea.sflag [#allocation6], %s639
        %s641 = sand.u32 %s458, 1
        %s642 = smul.addr %s641, 2
        %s643 = scalar_lea.vmem [#allocation5], %s642
        %p644 = pneg %p492
        %p645 = pneg %p489
        %p646 = scmp.lt.s32.totalorder %s36, 5
        %s647 = scalar_select %p646, %s36, 5
        %s648 = smul.addr %s647, 2
        %s649 = scalar_lea.vmem %s16, %s648
        %p650 = scmp.lt.s32.totalorder %s36, 5
        %s651 = scalar_select %p650, %s36, 5
        %s652 = smul.addr %s651, 2
        %s653 = scalar_lea.vmem %s17, %s652
        %p654 = scmp.lt.s32.totalorder %s36, 5
        %s655 = scalar_select %p654, %s36, 5
        %s656 = smul.addr %s655, 2
        %s657 = scalar_lea.vmem %s18, %s656
        %p658 = scmp.eq.s32.totalorder %s36, 0
        // Predicated region
        $region97: #{can_forward.3} parent=95 // pred_check
          %p659 = pneg %p658
        $region98: #{can_forward.3} parent=95 // pred_check_branch
          %661 = sbr.rel (%p659) target = $region100
        $region99: #{can_forward.3} parent=95 // pred_region
          %v662 = vld [vmem:[%s4] sm:$0x3]
          %vm663 = vcmask 254976
          %664 = vst.msk [vmem:[#allocation2] sm:$0x3] %vm663, %v662
          %vm665 = vcmask 0
          %666 = vst.msk [vmem:[#allocation3] sm:$0x1] %vm665, 0.0
          %667 = vst.msk [vmem:[#allocation4] sm:$0x1] %vm665, 0.0
        $region100: #{can_forward.3} parent=95 // pred_fallthru
          _
        %v668 = vld [vmem:[%s649] sm:$0x3]
        %v669 = vld [vmem:[%s3] sm:$0x3]
        %v670 = vld [vmem:[#allocation2] sm:$0x3]
        %v671 = vld [vmem:[%s5] sm:$0xff]
        %v672 = vld [vmem:[%s5 + $0x8] sm:$0xff]
        %v673 = vld [vmem:[%s6] sm:$0xff]
        %v674 = vld [vmem:[%s6 + $0x8] sm:$0xff]
        %v675 = vld [vmem:[%s6 + $0x10] sm:$0xff]
        %v676 = vld [vmem:[%s6 + $0x18] sm:$0xff]
        %vm677 = vcmask 261120
        %v679 = vsel %vm677, %v670, 0
        %681 = vmatpush.msra.mxu0 0.0
        %682 = vmatpush.msra.mxu0 0.0
        %683 = vmatpush.msra.mxu0 0.0
        %684 = vmatpush.msra.mxu0 0.0
        %685 = vmatpush.msra.mxu0 0.0
        %686 = vmatpush.msra.mxu0 0.0
        %687 = vmatpush.msra.mxu0 0.0
        %688 = vmatpush.msra.mxu0 0.0
        %689 = vmatpush.msra.mxu0 0.0
        %690 = vmatpush.msra.mxu0 0.0
        %691 = vmatpush.msra.mxu0 0.0
        %692 = vmatpush.msra.mxu0 0.0
        %693 = vmatpush.msra.mxu0 %v676
        %694 = vmatpush.msra.mxu0 %v675
        %695 = vmatpush.msra.mxu0 %v674
        %696 = vmatpush.msra.mxu0 %v673
        %697 = vmatmul.f32.gmra.mxu0 %v679
        %v698 = vpop.f32.mrf.mxu0
        %v699 = vadd.f32 0.0, %v698
        %700 = vdwg.mxu0
        %vm701 = vcmask 130048
        %v703 = vsel %vm701, %v668, 0
        %705 = vmatpush.msra.mxu0 0.0
        %706 = vmatpush.msra.mxu0 0.0
        %707 = vmatpush.msra.mxu0 0.0
        %708 = vmatpush.msra.mxu0 0.0
        %709 = vmatpush.msra.mxu0 0.0
        %710 = vmatpush.msra.mxu0 0.0
        %711 = vmatpush.msra.mxu0 0.0
        %712 = vmatpush.msra.mxu0 0.0
        %713 = vmatpush.msra.mxu0 0.0
        %714 = vmatpush.msra.mxu0 0.0
        %715 = vmatpush.msra.mxu0 0.0
        %716 = vmatpush.msra.mxu0 0.0
        %717 = vmatpush.msra.mxu0 0.0
        %718 = vmatpush.msra.mxu0 0.0
        %719 = vmatpush.msra.mxu0 %v672
        %720 = vmatpush.msra.mxu0 %v671
        %721 = vmatmul.f32.gmra.mxu0 %v703
        %v722 = vpop.f32.mrf.mxu0
        %v723 = vadd.f32 %v699, %v722
        %724 = vdwg.mxu0
        %v725 = vld [vmem:[%s7] sm:$0xff]
        %v726 = vld [vmem:[%s7 + $0x8] sm:$0x3]
        %vm727 = vcmask 80896
        %v729 = vsel %vm727, %v669, 0
        %vm731 = vcmask 1041408
        %v733 = vsel %vm731, %v726, 0
        %735 = vmatpush.msra.mxu0 0.0
        %736 = vmatpush.msra.mxu0 0.0
        %737 = vmatpush.msra.mxu0 0.0
        %738 = vmatpush.msra.mxu0 0.0
        %739 = vmatpush.msra.mxu0 0.0
        %740 = vmatpush.msra.mxu0 0.0
        %741 = vmatpush.msra.mxu0 0.0
        %742 = vmatpush.msra.mxu0 0.0
        %743 = vmatpush.msra.mxu0 0.0
        %744 = vmatpush.msra.mxu0 0.0
        %745 = vmatpush.msra.mxu0 0.0
        %746 = vmatpush.msra.mxu0 0.0
        %747 = vmatpush.msra.mxu0 0.0
        %748 = vmatpush.msra.mxu0 0.0
        %749 = vmatpush.msra.mxu0 %v733
        %750 = vmatpush.msra.mxu0 %v725
        %751 = vmatmul.f32.gmra.mxu0 %v729
        %v752 = vpop.f32.mrf.mxu0
        %v753 = vadd.f32 0.0, %v752
        %754 = vdwg.mxu0
        %v755 = vadd.f32 %v723, %v753
        %v756 = vld [vmem:[%s8] sm:$0x1]
        %v758 = vperm.slane %v756, 0
        %v760 = vadd.f32 %v755, %v758
        %v761 = vtanh.pop %v760
        %vm762 = vcmask 254976
        %763 = vst.msk [vmem:[#allocation2] sm:$0x3] %vm762, %v761
        %v764 = vld [vmem:[%s9] sm:$0xff]
        %v765 = vld [vmem:[%s9 + $0x8] sm:$0xff]
        %v766 = vld [vmem:[%s9 + $0x10] sm:$0xff]
        %v767 = vld [vmem:[%s9 + $0x18] sm:$0xff]
        %v768 = vld [vmem:[%s10] sm:$0x1]
        %v770 = vperm.slane %v768, 0
        %v773 = vsel %vm677, %v761, 0
        %775 = vmatpush.msra.mxu0 0.0
        %776 = vmatpush.msra.mxu0 0.0
        %777 = vmatpush.msra.mxu0 0.0
        %778 = vmatpush.msra.mxu0 0.0
        %779 = vmatpush.msra.mxu0 0.0
        %780 = vmatpush.msra.mxu0 0.0
        %781 = vmatpush.msra.mxu0 0.0
        %782 = vmatpush.msra.mxu0 0.0
        %783 = vmatpush.msra.mxu0 0.0
        %784 = vmatpush.msra.mxu0 0.0
        %785 = vmatpush.msra.mxu0 0.0
        %786 = vmatpush.msra.mxu0 0.0
        %787 = vmatpush.msra.mxu0 %v767
        %788 = vmatpush.msra.mxu0 %v766
        %789 = vmatpush.msra.mxu0 %v765
        %790 = vmatpush.msra.mxu0 %v764
        %791 = vmatmul.f32.gmra.mxu0 %v773
        %v792 = vpop.f32.mrf.mxu0
        %v793 = vadd.f32 %v770, %v792
        %794 = vdwg.mxu0
        %v795 = vld [vmem:[%s1] sm:$0xff]
        %v796 = vld [vmem:[%s1 + $0x8] sm:$0xff]
        %v797 = vld [vmem:[%s1 + $0x10] sm:$0xff]
        %v798 = vld [vmem:[%s1 + $0x18] sm:$0xff]
        %v799 = vld [vmem:[%s1 + $0x20] sm:$0xff]
        %v800 = vld [vmem:[%s1 + $0x28] sm:$0xff]
        %v801 = vld [vmem:[%s1 + $0x30] sm:$0xff]
        %v802 = vld [vmem:[%s1 + $0x38] sm:$0xff]
        %v803 = vld [vmem:[%s1 + $0x40] sm:$0xff]
        %v804 = vld [vmem:[%s1 + $0x48] sm:$0xff]
        %v805 = vld [vmem:[%s1 + $0x50] sm:$0xff]
        %v806 = vld [vmem:[%s1 + $0x58] sm:$0xff]
        %v807 = vld [vmem:[%s1 + $0x60] sm:$0xff]
        %v808 = vld [vmem:[%s1 + $0x68] sm:$0xff]
        %v809 = vld [vmem:[%s1 + $0x70] sm:$0xff]
        %v810 = vld [vmem:[%s1 + $0x78] sm:$0xff]
        %v811 = vld [vmem:[%s1 + $0x80] sm:$0xff]
        %v812 = vld [vmem:[%s1 + $0x88] sm:$0xff]
        %v813 = vld [vmem:[%s1 + $0x90] sm:$0xff]
        %v814 = vld [vmem:[%s1 + $0x98] sm:$0xff]
        %v815 = vld [vmem:[%s1 + $0xa0] sm:$0xff]
        %v816 = vld [vmem:[%s1 + $0xa8] sm:$0xff]
        %v817 = vld [vmem:[%s1 + $0xb0] sm:$0xff]
        %v818 = vld [vmem:[%s1 + $0xb8] sm:$0xff]
        %v819 = vld [vmem:[%s1 + $0xc0] sm:$0xff]
        %v820 = vld [vmem:[%s1 + $0xc8] sm:$0xff]
        %v821 = vld [vmem:[%s1 + $0xd0] sm:$0xff]
        %v822 = vld [vmem:[%s1 + $0xd8] sm:$0xff]
        %v823 = vld [vmem:[%s1 + $0xe0] sm:$0xff]
        %v824 = vld [vmem:[%s1 + $0xe8] sm:$0xff]
        %v825 = vld [vmem:[%s1 + $0xf0] sm:$0xff]
        %v826 = vld [vmem:[%s1 + $0xf8] sm:$0xff]
        %v827 = vld [vmem:[%s1 + $0x100] sm:$0xff]
        %v828 = vld [vmem:[%s1 + $0x108] sm:$0xff]
        %v829 = vld [vmem:[%s1 + $0x110] sm:$0xff]
        %v830 = vld [vmem:[%s1 + $0x118] sm:$0xff]
        %v831 = vld [vmem:[%s1 + $0x120] sm:$0xff]
        %v832 = vld [vmem:[%s1 + $0x128] sm:$0xff]
        %v833 = vld [vmem:[%s1 + $0x130] sm:$0xff]
        %v834 = vld [vmem:[%s1 + $0x138] sm:$0xff]
        %v835 = vld [vmem:[%s1 + $0x140] sm:$0xff]
        %v836 = vld [vmem:[%s1 + $0x148] sm:$0xff]
        %v837 = vld [vmem:[%s1 + $0x150] sm:$0xff]
        %v838 = vld [vmem:[%s1 + $0x158] sm:$0xff]
        %v839 = vld [vmem:[%s1 + $0x160] sm:$0xff]
        %v840 = vld [vmem:[%s1 + $0x168] sm:$0xff]
        %v841 = vld [vmem:[%s1 + $0x170] sm:$0xff]
        %v842 = vld [vmem:[%s1 + $0x178] sm:$0xff]
        %v843 = vld [vmem:[%s1 + $0x180] sm:$0xff]
        %v844 = vld [vmem:[%s1 + $0x188] sm:$0xff]
        %v845 = vld [vmem:[%s1 + $0x190] sm:$0xff]
        %v846 = vld [vmem:[%s1 + $0x198] sm:$0xff]
        %v847 = vld [vmem:[%s1 + $0x1a0] sm:$0xff]
        %v848 = vld [vmem:[%s1 + $0x1a8] sm:$0xff]
        %v849 = vld [vmem:[%s1 + $0x1b0] sm:$0xff]
        %v850 = vld [vmem:[%s1 + $0x1b8] sm:$0xff]
        %v851 = vld [vmem:[%s1 + $0x1c0] sm:$0xff]
        %v852 = vld [vmem:[%s1 + $0x1c8] sm:$0xff]
        %v853 = vld [vmem:[%s1 + $0x1d0] sm:$0xff]
        %v854 = vld [vmem:[%s1 + $0x1d8] sm:$0xff]
        %v855 = vld [vmem:[%s1 + $0x1e0] sm:$0xff]
        %v856 = vld [vmem:[%s1 + $0x1e8] sm:$0xff]
        %v857 = vld [vmem:[%s1 + $0x1f0] sm:$0xff]
        %v858 = vld [vmem:[%s1 + $0x1f8] sm:$0xff]
        %v860 = vrot.slane %v793, 1
        %v861 = vperm.slane %v793, 0
        %v862 = vperm.slane %v860, 0
        %v865 = vadd.f32 %v795, %v861
        %v866 = vadd.f32 %v796, %v861
        %v867 = vadd.f32 %v797, %v861
        %v868 = vadd.f32 %v798, %v861
        %v869 = vadd.f32 %v799, %v861
        %v870 = vadd.f32 %v800, %v861
        %v871 = vadd.f32 %v801, %v861
        %v872 = vadd.f32 %v802, %v861
        %v873 = vadd.f32 %v803, %v861
        %v874 = vadd.f32 %v804, %v861
        %v875 = vadd.f32 %v805, %v861
        %v876 = vadd.f32 %v806, %v861
        %v877 = vadd.f32 %v807, %v861
        %v878 = vadd.f32 %v808, %v861
        %v879 = vadd.f32 %v809, %v861
        %v880 = vadd.f32 %v810, %v861
        %v881 = vadd.f32 %v811, %v861
        %v882 = vadd.f32 %v812, %v861
        %v883 = vadd.f32 %v813, %v861
        %v884 = vadd.f32 %v814, %v861
        %v885 = vadd.f32 %v815, %v861
        %v886 = vadd.f32 %v816, %v861
        %v887 = vadd.f32 %v817, %v861
        %v888 = vadd.f32 %v818, %v861
        %v889 = vadd.f32 %v819, %v861
        %v890 = vadd.f32 %v820, %v861
        %v891 = vadd.f32 %v821, %v861
        %v892 = vadd.f32 %v822, %v861
        %v893 = vadd.f32 %v823, %v861
        %v894 = vadd.f32 %v824, %v861
        %v895 = vadd.f32 %v825, %v861
        %v896 = vadd.f32 %v826, %v861
        %v897 = vadd.f32 %v827, %v862
        %v898 = vadd.f32 %v828, %v862
        %v899 = vadd.f32 %v829, %v862
        %v900 = vadd.f32 %v830, %v862
        %v901 = vadd.f32 %v831, %v862
        %v902 = vadd.f32 %v832, %v862
        %v903 = vadd.f32 %v833, %v862
        %v904 = vadd.f32 %v834, %v862
        %v905 = vadd.f32 %v835, %v862
        %v906 = vadd.f32 %v836, %v862
        %v907 = vadd.f32 %v837, %v862
        %v908 = vadd.f32 %v838, %v862
        %v909 = vadd.f32 %v839, %v862
        %v910 = vadd.f32 %v840, %v862
        %v911 = vadd.f32 %v841, %v862
        %v912 = vadd.f32 %v842, %v862
        %v913 = vadd.f32 %v843, %v862
        %v914 = vadd.f32 %v844, %v862
        %v915 = vadd.f32 %v845, %v862
        %v916 = vadd.f32 %v846, %v862
        %v917 = vadd.f32 %v847, %v862
        %v918 = vadd.f32 %v848, %v862
        %v919 = vadd.f32 %v849, %v862
        %v920 = vadd.f32 %v850, %v862
        %v921 = vadd.f32 %v851, %v862
        %v922 = vadd.f32 %v852, %v862
        %v923 = vadd.f32 %v853, %v862
        %v924 = vadd.f32 %v854, %v862
        %v925 = vadd.f32 %v855, %v862
        %v926 = vadd.f32 %v856, %v862
        %v927 = vadd.f32 %v857, %v862
        %v928 = vadd.f32 %v858, %v862
        %v929 = vtanh.pop %v865
        %v930 = vtanh.pop %v866
        %v931 = vtanh.pop %v867
        %v932 = vtanh.pop %v868
        %v933 = vtanh.pop %v869
        %v934 = vtanh.pop %v870
        %v935 = vtanh.pop %v871
        %v936 = vtanh.pop %v872
        %v937 = vtanh.pop %v873
        %v938 = vtanh.pop %v874
        %v939 = vtanh.pop %v875
        %v940 = vtanh.pop %v876
        %v941 = vtanh.pop %v877
        %v942 = vtanh.pop %v878
        %v943 = vtanh.pop %v879
        %v944 = vtanh.pop %v880
        %v945 = vtanh.pop %v881
        %v946 = vtanh.pop %v882
        %v947 = vtanh.pop %v883
        %v948 = vtanh.pop %v884
        %v949 = vtanh.pop %v885
        %v950 = vtanh.pop %v886
        %v951 = vtanh.pop %v887
        %v952 = vtanh.pop %v888
        %v953 = vtanh.pop %v889
        %v954 = vtanh.pop %v890
        %v955 = vtanh.pop %v891
        %v956 = vtanh.pop %v892
        %v957 = vtanh.pop %v893
        %v958 = vtanh.pop %v894
        %v959 = vtanh.pop %v895
        %v960 = vtanh.pop %v896
        %v961 = vtanh.pop %v897
        %v962 = vtanh.pop %v898
        %v963 = vtanh.pop %v899
        %v964 = vtanh.pop %v900
        %v965 = vtanh.pop %v901
        %v966 = vtanh.pop %v902
        %v967 = vtanh.pop %v903
        %v968 = vtanh.pop %v904
        %v969 = vtanh.pop %v905
        %v970 = vtanh.pop %v906
        %v971 = vtanh.pop %v907
        %v972 = vtanh.pop %v908
        %v973 = vtanh.pop %v909
        %v974 = vtanh.pop %v910
        %v975 = vtanh.pop %v911
        %v976 = vtanh.pop %v912
        %v977 = vtanh.pop %v913
        %v978 = vtanh.pop %v914
        %v979 = vtanh.pop %v915
        %v980 = vtanh.pop %v916
        %v981 = vtanh.pop %v917
        %v982 = vtanh.pop %v918
        %v983 = vtanh.pop %v919
        %v984 = vtanh.pop %v920
        %v985 = vtanh.pop %v921
        %v986 = vtanh.pop %v922
        %v987 = vtanh.pop %v923
        %v988 = vtanh.pop %v924
        %v989 = vtanh.pop %v925
        %v990 = vtanh.pop %v926
        %v991 = vtanh.pop %v927
        %v992 = vtanh.pop %v928
        %v993 = vld [vmem:[%s11] sm:$0x1]
        %v995 = vperm.slane %v993, 0
        %v997 = vmul.f32 %v929, %v995
        %v998 = vmul.f32 %v930, %v995
        %v999 = vmul.f32 %v931, %v995
        %v1000 = vmul.f32 %v932, %v995
        %v1001 = vmul.f32 %v933, %v995
        %v1002 = vmul.f32 %v934, %v995
        %v1003 = vmul.f32 %v935, %v995
        %v1004 = vmul.f32 %v936, %v995
        %v1005 = vmul.f32 %v937, %v995
        %v1006 = vmul.f32 %v938, %v995
        %v1007 = vmul.f32 %v939, %v995
        %v1008 = vmul.f32 %v940, %v995
        %v1009 = vmul.f32 %v941, %v995
        %v1010 = vmul.f32 %v942, %v995
        %v1011 = vmul.f32 %v943, %v995
        %v1012 = vmul.f32 %v944, %v995
        %v1013 = vmul.f32 %v945, %v995
        %v1014 = vmul.f32 %v946, %v995
        %v1015 = vmul.f32 %v947, %v995
        %v1016 = vmul.f32 %v948, %v995
        %v1017 = vmul.f32 %v949, %v995
        %v1018 = vmul.f32 %v950, %v995
        %v1019 = vmul.f32 %v951, %v995
        %v1020 = vmul.f32 %v952, %v995
        %v1021 = vmul.f32 %v953, %v995
        %v1022 = vmul.f32 %v954, %v995
        %v1023 = vmul.f32 %v955, %v995
        %v1024 = vmul.f32 %v956, %v995
        %v1025 = vmul.f32 %v957, %v995
        %v1026 = vmul.f32 %v958, %v995
        %v1027 = vmul.f32 %v959, %v995
        %v1028 = vmul.f32 %v960, %v995
        %v1029 = vmul.f32 %v961, %v995
        %v1030 = vmul.f32 %v962, %v995
        %v1031 = vmul.f32 %v963, %v995
        %v1032 = vmul.f32 %v964, %v995
        %v1033 = vmul.f32 %v965, %v995
        %v1034 = vmul.f32 %v966, %v995
        %v1035 = vmul.f32 %v967, %v995
        %v1036 = vmul.f32 %v968, %v995
        %v1037 = vmul.f32 %v969, %v995
        %v1038 = vmul.f32 %v970, %v995
        %v1039 = vmul.f32 %v971, %v995
        %v1040 = vmul.f32 %v972, %v995
        %v1041 = vmul.f32 %v973, %v995
        %v1042 = vmul.f32 %v974, %v995
        %v1043 = vmul.f32 %v975, %v995
        %v1044 = vmul.f32 %v976, %v995
        %v1045 = vmul.f32 %v977, %v995
        %v1046 = vmul.f32 %v978, %v995
        %v1047 = vmul.f32 %v979, %v995
        %v1048 = vmul.f32 %v980, %v995
        %v1049 = vmul.f32 %v981, %v995
        %v1050 = vmul.f32 %v982, %v995
        %v1051 = vmul.f32 %v983, %v995
        %v1052 = vmul.f32 %v984, %v995
        %v1053 = vmul.f32 %v985, %v995
        %v1054 = vmul.f32 %v986, %v995
        %v1055 = vmul.f32 %v987, %v995
        %v1056 = vmul.f32 %v988, %v995
        %v1057 = vmul.f32 %v989, %v995
        %v1058 = vmul.f32 %v990, %v995
        %v1059 = vmul.f32 %v991, %v995
        %v1060 = vmul.f32 %v992, %v995
        %v1061 = vsel %vm677, %v997, 0.0
        %1062 = vadd.xlane.f32.xlu0 %v1061
        %v1063 = vpop.xlane.xlu0 %1062
        %v1064 = vsel %vm677, %v998, 0.0
        %1065 = vadd.xlane.f32.xlu0 %v1064
        %v1066 = vpop.xlane.xlu0 %1065
        %v1067 = vsel %vm677, %v999, 0.0
        %1068 = vadd.xlane.f32.xlu0 %v1067
        %v1069 = vpop.xlane.xlu0 %1068
        %v1070 = vsel %vm677, %v1000, 0.0
        %1071 = vadd.xlane.f32.xlu0 %v1070
        %v1072 = vpop.xlane.xlu0 %1071
        %v1073 = vsel %vm677, %v1001, 0.0
        %1074 = vadd.xlane.f32.xlu0 %v1073
        %v1075 = vpop.xlane.xlu0 %1074
        %v1076 = vsel %vm677, %v1002, 0.0
        %1077 = vadd.xlane.f32.xlu0 %v1076
        %v1078 = vpop.xlane.xlu0 %1077
        %v1079 = vsel %vm677, %v1003, 0.0
        %1080 = vadd.xlane.f32.xlu0 %v1079
        %v1081 = vpop.xlane.xlu0 %1080
        %v1082 = vsel %vm677, %v1004, 0.0
        %1083 = vadd.xlane.f32.xlu0 %v1082
        %v1084 = vpop.xlane.xlu0 %1083
        %v1085 = vsel %vm677, %v1005, 0.0
        %1086 = vadd.xlane.f32.xlu0 %v1085
        %v1087 = vpop.xlane.xlu0 %1086
        %v1088 = vsel %vm677, %v1006, 0.0
        %1089 = vadd.xlane.f32.xlu0 %v1088
        %v1090 = vpop.xlane.xlu0 %1089
        %v1091 = vsel %vm677, %v1007, 0.0
        %1092 = vadd.xlane.f32.xlu0 %v1091
        %v1093 = vpop.xlane.xlu0 %1092
        %v1094 = vsel %vm677, %v1008, 0.0
        %1095 = vadd.xlane.f32.xlu0 %v1094
        %v1096 = vpop.xlane.xlu0 %1095
        %v1097 = vsel %vm677, %v1009, 0.0
        %1098 = vadd.xlane.f32.xlu0 %v1097
        %v1099 = vpop.xlane.xlu0 %1098
        %v1100 = vsel %vm677, %v1010, 0.0
        %1101 = vadd.xlane.f32.xlu0 %v1100
        %v1102 = vpop.xlane.xlu0 %1101
        %v1103 = vsel %vm677, %v1011, 0.0
        %1104 = vadd.xlane.f32.xlu0 %v1103
        %v1105 = vpop.xlane.xlu0 %1104
        %v1106 = vsel %vm677, %v1012, 0.0
        %1107 = vadd.xlane.f32.xlu0 %v1106
        %v1108 = vpop.xlane.xlu0 %1107
        %v1109 = vsel %vm677, %v1013, 0.0
        %1110 = vadd.xlane.f32.xlu0 %v1109
        %v1111 = vpop.xlane.xlu0 %1110
        %v1112 = vsel %vm677, %v1014, 0.0
        %1113 = vadd.xlane.f32.xlu0 %v1112
        %v1114 = vpop.xlane.xlu0 %1113
        %v1115 = vsel %vm677, %v1015, 0.0
        %1116 = vadd.xlane.f32.xlu0 %v1115
        %v1117 = vpop.xlane.xlu0 %1116
        %v1118 = vsel %vm677, %v1016, 0.0
        %1119 = vadd.xlane.f32.xlu0 %v1118
        %v1120 = vpop.xlane.xlu0 %1119
        %v1121 = vsel %vm677, %v1017, 0.0
        %1122 = vadd.xlane.f32.xlu0 %v1121
        %v1123 = vpop.xlane.xlu0 %1122
        %v1124 = vsel %vm677, %v1018, 0.0
        %1125 = vadd.xlane.f32.xlu0 %v1124
        %v1126 = vpop.xlane.xlu0 %1125
        %v1127 = vsel %vm677, %v1019, 0.0
        %1128 = vadd.xlane.f32.xlu0 %v1127
        %v1129 = vpop.xlane.xlu0 %1128
        %v1130 = vsel %vm677, %v1020, 0.0
        %1131 = vadd.xlane.f32.xlu0 %v1130
        %v1132 = vpop.xlane.xlu0 %1131
        %v1133 = vsel %vm677, %v1021, 0.0
        %1134 = vadd.xlane.f32.xlu0 %v1133
        %v1135 = vpop.xlane.xlu0 %1134
        %v1136 = vsel %vm677, %v1022, 0.0
        %1137 = vadd.xlane.f32.xlu0 %v1136
        %v1138 = vpop.xlane.xlu0 %1137
        %v1139 = vsel %vm677, %v1023, 0.0
        %1140 = vadd.xlane.f32.xlu0 %v1139
        %v1141 = vpop.xlane.xlu0 %1140
        %v1142 = vsel %vm677, %v1024, 0.0
        %1143 = vadd.xlane.f32.xlu0 %v1142
        %v1144 = vpop.xlane.xlu0 %1143
        %v1145 = vsel %vm677, %v1025, 0.0
        %1146 = vadd.xlane.f32.xlu0 %v1145
        %v1147 = vpop.xlane.xlu0 %1146
        %v1148 = vsel %vm677, %v1026, 0.0
        %1149 = vadd.xlane.f32.xlu0 %v1148
        %v1150 = vpop.xlane.xlu0 %1149
        %v1151 = vsel %vm677, %v1027, 0.0
        %1152 = vadd.xlane.f32.xlu0 %v1151
        %v1153 = vpop.xlane.xlu0 %1152
        %v1154 = vsel %vm677, %v1028, 0.0
        %1155 = vadd.xlane.f32.xlu0 %v1154
        %v1156 = vpop.xlane.xlu0 %1155
        %v1157 = vsel %vm677, %v1029, 0.0
        %1158 = vadd.xlane.f32.xlu0 %v1157
        %v1159 = vpop.xlane.xlu0 %1158
        %v1160 = vsel %vm677, %v1030, 0.0
        %1161 = vadd.xlane.f32.xlu0 %v1160
        %v1162 = vpop.xlane.xlu0 %1161
        %v1163 = vsel %vm677, %v1031, 0.0
        %1164 = vadd.xlane.f32.xlu0 %v1163
        %v1165 = vpop.xlane.xlu0 %1164
        %v1166 = vsel %vm677, %v1032, 0.0
        %1167 = vadd.xlane.f32.xlu0 %v1166
        %v1168 = vpop.xlane.xlu0 %1167
        %v1169 = vsel %vm677, %v1033, 0.0
        %1170 = vadd.xlane.f32.xlu0 %v1169
        %v1171 = vpop.xlane.xlu0 %1170
        %v1172 = vsel %vm677, %v1034, 0.0
        %1173 = vadd.xlane.f32.xlu0 %v1172
        %v1174 = vpop.xlane.xlu0 %1173
        %v1175 = vsel %vm677, %v1035, 0.0
        %1176 = vadd.xlane.f32.xlu0 %v1175
        %v1177 = vpop.xlane.xlu0 %1176
        %v1178 = vsel %vm677, %v1036, 0.0
        %1179 = vadd.xlane.f32.xlu0 %v1178
        %v1180 = vpop.xlane.xlu0 %1179
        %v1181 = vsel %vm677, %v1037, 0.0
        %1182 = vadd.xlane.f32.xlu0 %v1181
        %v1183 = vpop.xlane.xlu0 %1182
        %v1184 = vsel %vm677, %v1038, 0.0
        %1185 = vadd.xlane.f32.xlu0 %v1184
        %v1186 = vpop.xlane.xlu0 %1185
        %v1187 = vsel %vm677, %v1039, 0.0
        %1188 = vadd.xlane.f32.xlu0 %v1187
        %v1189 = vpop.xlane.xlu0 %1188
        %v1190 = vsel %vm677, %v1040, 0.0
        %1191 = vadd.xlane.f32.xlu0 %v1190
        %v1192 = vpop.xlane.xlu0 %1191
        %v1193 = vsel %vm677, %v1041, 0.0
        %1194 = vadd.xlane.f32.xlu0 %v1193
        %v1195 = vpop.xlane.xlu0 %1194
        %v1196 = vsel %vm677, %v1042, 0.0
        %1197 = vadd.xlane.f32.xlu0 %v1196
        %v1198 = vpop.xlane.xlu0 %1197
        %v1199 = vsel %vm677, %v1043, 0.0
        %1200 = vadd.xlane.f32.xlu0 %v1199
        %v1201 = vpop.xlane.xlu0 %1200
        %v1202 = vsel %vm677, %v1044, 0.0
        %1203 = vadd.xlane.f32.xlu0 %v1202
        %v1204 = vpop.xlane.xlu0 %1203
        %v1205 = vsel %vm677, %v1045, 0.0
        %1206 = vadd.xlane.f32.xlu0 %v1205
        %v1207 = vpop.xlane.xlu0 %1206
        %v1208 = vsel %vm677, %v1046, 0.0
        %1209 = vadd.xlane.f32.xlu0 %v1208
        %v1210 = vpop.xlane.xlu0 %1209
        %v1211 = vsel %vm677, %v1047, 0.0
        %1212 = vadd.xlane.f32.xlu0 %v1211
        %v1213 = vpop.xlane.xlu0 %1212
        %v1214 = vsel %vm677, %v1048, 0.0
        %1215 = vadd.xlane.f32.xlu0 %v1214
        %v1216 = vpop.xlane.xlu0 %1215
        %v1217 = vsel %vm677, %v1049, 0.0
        %1218 = vadd.xlane.f32.xlu0 %v1217
        %v1219 = vpop.xlane.xlu0 %1218
        %v1220 = vsel %vm677, %v1050, 0.0
        %1221 = vadd.xlane.f32.xlu0 %v1220
        %v1222 = vpop.xlane.xlu0 %1221
        %v1223 = vsel %vm677, %v1051, 0.0
        %1224 = vadd.xlane.f32.xlu0 %v1223
        %v1225 = vpop.xlane.xlu0 %1224
        %v1226 = vsel %vm677, %v1052, 0.0
        %1227 = vadd.xlane.f32.xlu0 %v1226
        %v1228 = vpop.xlane.xlu0 %1227
        %v1229 = vsel %vm677, %v1053, 0.0
        %1230 = vadd.xlane.f32.xlu0 %v1229
        %v1231 = vpop.xlane.xlu0 %1230
        %v1232 = vsel %vm677, %v1054, 0.0
        %1233 = vadd.xlane.f32.xlu0 %v1232
        %v1234 = vpop.xlane.xlu0 %1233
        %v1235 = vsel %vm677, %v1055, 0.0
        %1236 = vadd.xlane.f32.xlu0 %v1235
        %v1237 = vpop.xlane.xlu0 %1236
        %v1238 = vsel %vm677, %v1056, 0.0
        %1239 = vadd.xlane.f32.xlu0 %v1238
        %v1240 = vpop.xlane.xlu0 %1239
        %v1241 = vsel %vm677, %v1057, 0.0
        %1242 = vadd.xlane.f32.xlu0 %v1241
        %v1243 = vpop.xlane.xlu0 %1242
        %v1244 = vsel %vm677, %v1058, 0.0
        %1245 = vadd.xlane.f32.xlu0 %v1244
        %v1246 = vpop.xlane.xlu0 %1245
        %v1247 = vsel %vm677, %v1059, 0.0
        %1248 = vadd.xlane.f32.xlu0 %v1247
        %v1249 = vpop.xlane.xlu0 %1248
        %v1250 = vsel %vm677, %v1060, 0.0
        %1251 = vadd.xlane.f32.xlu0 %v1250
        %v1252 = vpop.xlane.xlu0 %1251
        %v1253 = vld [vmem:[%s2] sm:$0xf]
        %vm1254 = vcmp.gt.f32.partialorder %v1253, 0.5
        %v1320 = vunpack.c.l.s4 269488144
        %v1321 = vunpack.c.0.s8 %v1320
        %v1322 = vperm.slane %v1063, %v1321
        %v1324 = vunpack.c.l.s4 842150450
        %v1325 = vunpack.c.0.s8 %v1324
        %v1326 = vperm.slane %v1063, %v1325
        %v1328 = vunpack.c.l.s4 1414812756
        %v1329 = vunpack.c.0.s8 %v1328
        %v1330 = vperm.slane %v1063, %v1329
        %v1332 = vunpack.c.l.s4 1987475062
        %v1333 = vunpack.c.0.s8 %v1332
        %v1334 = vperm.slane %v1063, %v1333
        %v1336 = vunpack.c.l.s4 269488144
        %v1337 = vunpack.c.0.s8 %v1336
        %v1338 = vperm.slane %v1066, %v1337
        %v1340 = vunpack.c.l.s4 842150450
        %v1341 = vunpack.c.0.s8 %v1340
        %v1342 = vperm.slane %v1066, %v1341
        %v1344 = vunpack.c.l.s4 1414812756
        %v1345 = vunpack.c.0.s8 %v1344
        %v1346 = vperm.slane %v1066, %v1345
        %v1348 = vunpack.c.l.s4 1987475062
        %v1349 = vunpack.c.0.s8 %v1348
        %v1350 = vperm.slane %v1066, %v1349
        %v1352 = vunpack.c.l.s4 269488144
        %v1353 = vunpack.c.0.s8 %v1352
        %v1354 = vperm.slane %v1069, %v1353
        %v1356 = vunpack.c.l.s4 842150450
        %v1357 = vunpack.c.0.s8 %v1356
        %v1358 = vperm.slane %v1069, %v1357
        %v1360 = vunpack.c.l.s4 1414812756
        %v1361 = vunpack.c.0.s8 %v1360
        %v1362 = vperm.slane %v1069, %v1361
        %v1364 = vunpack.c.l.s4 1987475062
        %v1365 = vunpack.c.0.s8 %v1364
        %v1366 = vperm.slane %v1069, %v1365
        %v1368 = vunpack.c.l.s4 269488144
        %v1369 = vunpack.c.0.s8 %v1368
        %v1370 = vperm.slane %v1072, %v1369
        %v1372 = vunpack.c.l.s4 842150450
        %v1373 = vunpack.c.0.s8 %v1372
        %v1374 = vperm.slane %v1072, %v1373
        %v1376 = vunpack.c.l.s4 1414812756
        %v1377 = vunpack.c.0.s8 %v1376
        %v1378 = vperm.slane %v1072, %v1377
        %v1380 = vunpack.c.l.s4 1987475062
        %v1381 = vunpack.c.0.s8 %v1380
        %v1382 = vperm.slane %v1072, %v1381
        %v1384 = vunpack.c.l.s4 269488144
        %v1385 = vunpack.c.0.s8 %v1384
        %v1386 = vperm.slane %v1075, %v1385
        %v1388 = vunpack.c.l.s4 842150450
        %v1389 = vunpack.c.0.s8 %v1388
        %v1390 = vperm.slane %v1075, %v1389
        %v1392 = vunpack.c.l.s4 1414812756
        %v1393 = vunpack.c.0.s8 %v1392
        %v1394 = vperm.slane %v1075, %v1393
        %v1396 = vunpack.c.l.s4 1987475062
        %v1397 = vunpack.c.0.s8 %v1396
        %v1398 = vperm.slane %v1075, %v1397
        %v1400 = vunpack.c.l.s4 269488144
        %v1401 = vunpack.c.0.s8 %v1400
        %v1402 = vperm.slane %v1078, %v1401
        %v1404 = vunpack.c.l.s4 842150450
        %v1405 = vunpack.c.0.s8 %v1404
        %v1406 = vperm.slane %v1078, %v1405
        %v1408 = vunpack.c.l.s4 1414812756
        %v1409 = vunpack.c.0.s8 %v1408
        %v1410 = vperm.slane %v1078, %v1409
        %v1412 = vunpack.c.l.s4 1987475062
        %v1413 = vunpack.c.0.s8 %v1412
        %v1414 = vperm.slane %v1078, %v1413
        %v1416 = vunpack.c.l.s4 269488144
        %v1417 = vunpack.c.0.s8 %v1416
        %v1418 = vperm.slane %v1081, %v1417
        %v1420 = vunpack.c.l.s4 842150450
        %v1421 = vunpack.c.0.s8 %v1420
        %v1422 = vperm.slane %v1081, %v1421
        %v1424 = vunpack.c.l.s4 1414812756
        %v1425 = vunpack.c.0.s8 %v1424
        %v1426 = vperm.slane %v1081, %v1425
        %v1428 = vunpack.c.l.s4 1987475062
        %v1429 = vunpack.c.0.s8 %v1428
        %v1430 = vperm.slane %v1081, %v1429
        %v1432 = vunpack.c.l.s4 269488144
        %v1433 = vunpack.c.0.s8 %v1432
        %v1434 = vperm.slane %v1084, %v1433
        %v1436 = vunpack.c.l.s4 842150450
        %v1437 = vunpack.c.0.s8 %v1436
        %v1438 = vperm.slane %v1084, %v1437
        %v1440 = vunpack.c.l.s4 1414812756
        %v1441 = vunpack.c.0.s8 %v1440
        %v1442 = vperm.slane %v1084, %v1441
        %v1444 = vunpack.c.l.s4 1987475062
        %v1445 = vunpack.c.0.s8 %v1444
        %v1446 = vperm.slane %v1084, %v1445
        %v1448 = vunpack.c.l.s4 269488144
        %v1449 = vunpack.c.0.s8 %v1448
        %v1450 = vperm.slane %v1087, %v1449
        %v1452 = vunpack.c.l.s4 842150450
        %v1453 = vunpack.c.0.s8 %v1452
        %v1454 = vperm.slane %v1087, %v1453
        %v1456 = vunpack.c.l.s4 1414812756
        %v1457 = vunpack.c.0.s8 %v1456
        %v1458 = vperm.slane %v1087, %v1457
        %v1460 = vunpack.c.l.s4 1987475062
        %v1461 = vunpack.c.0.s8 %v1460
        %v1462 = vperm.slane %v1087, %v1461
        %v1464 = vunpack.c.l.s4 269488144
        %v1465 = vunpack.c.0.s8 %v1464
        %v1466 = vperm.slane %v1090, %v1465
        %v1468 = vunpack.c.l.s4 842150450
        %v1469 = vunpack.c.0.s8 %v1468
        %v1470 = vperm.slane %v1090, %v1469
        %v1472 = vunpack.c.l.s4 1414812756
        %v1473 = vunpack.c.0.s8 %v1472
        %v1474 = vperm.slane %v1090, %v1473
        %v1476 = vunpack.c.l.s4 1987475062
        %v1477 = vunpack.c.0.s8 %v1476
        %v1478 = vperm.slane %v1090, %v1477
        %v1480 = vunpack.c.l.s4 269488144
        %v1481 = vunpack.c.0.s8 %v1480
        %v1482 = vperm.slane %v1093, %v1481
        %v1484 = vunpack.c.l.s4 842150450
        %v1485 = vunpack.c.0.s8 %v1484
        %v1486 = vperm.slane %v1093, %v1485
        %v1488 = vunpack.c.l.s4 1414812756
        %v1489 = vunpack.c.0.s8 %v1488
        %v1490 = vperm.slane %v1093, %v1489
        %v1492 = vunpack.c.l.s4 1987475062
        %v1493 = vunpack.c.0.s8 %v1492
        %v1494 = vperm.slane %v1093, %v1493
        %v1496 = vunpack.c.l.s4 269488144
        %v1497 = vunpack.c.0.s8 %v1496
        %v1498 = vperm.slane %v1096, %v1497
        %v1500 = vunpack.c.l.s4 842150450
        %v1501 = vunpack.c.0.s8 %v1500
        %v1502 = vperm.slane %v1096, %v1501
        %v1504 = vunpack.c.l.s4 1414812756
        %v1505 = vunpack.c.0.s8 %v1504
        %v1506 = vperm.slane %v1096, %v1505
        %v1508 = vunpack.c.l.s4 1987475062
        %v1509 = vunpack.c.0.s8 %v1508
        %v1510 = vperm.slane %v1096, %v1509
        %v1512 = vunpack.c.l.s4 269488144
        %v1513 = vunpack.c.0.s8 %v1512
        %v1514 = vperm.slane %v1099, %v1513
        %v1516 = vunpack.c.l.s4 842150450
        %v1517 = vunpack.c.0.s8 %v1516
        %v1518 = vperm.slane %v1099, %v1517
        %v1520 = vunpack.c.l.s4 1414812756
        %v1521 = vunpack.c.0.s8 %v1520
        %v1522 = vperm.slane %v1099, %v1521
        %v1524 = vunpack.c.l.s4 1987475062
        %v1525 = vunpack.c.0.s8 %v1524
        %v1526 = vperm.slane %v1099, %v1525
        %v1528 = vunpack.c.l.s4 269488144
        %v1529 = vunpack.c.0.s8 %v1528
        %v1530 = vperm.slane %v1102, %v1529
        %v1532 = vunpack.c.l.s4 842150450
        %v1533 = vunpack.c.0.s8 %v1532
        %v1534 = vperm.slane %v1102, %v1533
        %v1536 = vunpack.c.l.s4 1414812756
        %v1537 = vunpack.c.0.s8 %v1536
        %v1538 = vperm.slane %v1102, %v1537
        %v1540 = vunpack.c.l.s4 1987475062
        %v1541 = vunpack.c.0.s8 %v1540
        %v1542 = vperm.slane %v1102, %v1541
        %v1544 = vunpack.c.l.s4 269488144
        %v1545 = vunpack.c.0.s8 %v1544
        %v1546 = vperm.slane %v1105, %v1545
        %v1548 = vunpack.c.l.s4 842150450
        %v1549 = vunpack.c.0.s8 %v1548
        %v1550 = vperm.slane %v1105, %v1549
        %v1552 = vunpack.c.l.s4 1414812756
        %v1553 = vunpack.c.0.s8 %v1552
        %v1554 = vperm.slane %v1105, %v1553
        %v1556 = vunpack.c.l.s4 1987475062
        %v1557 = vunpack.c.0.s8 %v1556
        %v1558 = vperm.slane %v1105, %v1557
        %v1560 = vunpack.c.l.s4 269488144
        %v1561 = vunpack.c.0.s8 %v1560
        %v1562 = vperm.slane %v1108, %v1561
        %v1564 = vunpack.c.l.s4 842150450
        %v1565 = vunpack.c.0.s8 %v1564
        %v1566 = vperm.slane %v1108, %v1565
        %v1568 = vunpack.c.l.s4 1414812756
        %v1569 = vunpack.c.0.s8 %v1568
        %v1570 = vperm.slane %v1108, %v1569
        %v1572 = vunpack.c.l.s4 1987475062
        %v1573 = vunpack.c.0.s8 %v1572
        %v1574 = vperm.slane %v1108, %v1573
        %v1576 = vunpack.c.l.s4 269488144
        %v1577 = vunpack.c.0.s8 %v1576
        %v1578 = vperm.slane %v1111, %v1577
        %v1580 = vunpack.c.l.s4 842150450
        %v1581 = vunpack.c.0.s8 %v1580
        %v1582 = vperm.slane %v1111, %v1581
        %v1584 = vunpack.c.l.s4 1414812756
        %v1585 = vunpack.c.0.s8 %v1584
        %v1586 = vperm.slane %v1111, %v1585
        %v1588 = vunpack.c.l.s4 1987475062
        %v1589 = vunpack.c.0.s8 %v1588
        %v1590 = vperm.slane %v1111, %v1589
        %v1592 = vunpack.c.l.s4 269488144
        %v1593 = vunpack.c.0.s8 %v1592
        %v1594 = vperm.slane %v1114, %v1593
        %v1596 = vunpack.c.l.s4 842150450
        %v1597 = vunpack.c.0.s8 %v1596
        %v1598 = vperm.slane %v1114, %v1597
        %v1600 = vunpack.c.l.s4 1414812756
        %v1601 = vunpack.c.0.s8 %v1600
        %v1602 = vperm.slane %v1114, %v1601
        %v1604 = vunpack.c.l.s4 1987475062
        %v1605 = vunpack.c.0.s8 %v1604
        %v1606 = vperm.slane %v1114, %v1605
        %v1608 = vunpack.c.l.s4 269488144
        %v1609 = vunpack.c.0.s8 %v1608
        %v1610 = vperm.slane %v1117, %v1609
        %v1612 = vunpack.c.l.s4 842150450
        %v1613 = vunpack.c.0.s8 %v1612
        %v1614 = vperm.slane %v1117, %v1613
        %v1616 = vunpack.c.l.s4 1414812756
        %v1617 = vunpack.c.0.s8 %v1616
        %v1618 = vperm.slane %v1117, %v1617
        %v1620 = vunpack.c.l.s4 1987475062
        %v1621 = vunpack.c.0.s8 %v1620
        %v1622 = vperm.slane %v1117, %v1621
        %v1624 = vunpack.c.l.s4 269488144
        %v1625 = vunpack.c.0.s8 %v1624
        %v1626 = vperm.slane %v1120, %v1625
        %v1628 = vunpack.c.l.s4 842150450
        %v1629 = vunpack.c.0.s8 %v1628
        %v1630 = vperm.slane %v1120, %v1629
        %v1632 = vunpack.c.l.s4 1414812756
        %v1633 = vunpack.c.0.s8 %v1632
        %v1634 = vperm.slane %v1120, %v1633
        %v1636 = vunpack.c.l.s4 1987475062
        %v1637 = vunpack.c.0.s8 %v1636
        %v1638 = vperm.slane %v1120, %v1637
        %v1640 = vunpack.c.l.s4 269488144
        %v1641 = vunpack.c.0.s8 %v1640
        %v1642 = vperm.slane %v1123, %v1641
        %v1644 = vunpack.c.l.s4 842150450
        %v1645 = vunpack.c.0.s8 %v1644
        %v1646 = vperm.slane %v1123, %v1645
        %v1648 = vunpack.c.l.s4 1414812756
        %v1649 = vunpack.c.0.s8 %v1648
        %v1650 = vperm.slane %v1123, %v1649
        %v1652 = vunpack.c.l.s4 1987475062
        %v1653 = vunpack.c.0.s8 %v1652
        %v1654 = vperm.slane %v1123, %v1653
        %v1656 = vunpack.c.l.s4 269488144
        %v1657 = vunpack.c.0.s8 %v1656
        %v1658 = vperm.slane %v1126, %v1657
        %v1660 = vunpack.c.l.s4 842150450
        %v1661 = vunpack.c.0.s8 %v1660
        %v1662 = vperm.slane %v1126, %v1661
        %v1664 = vunpack.c.l.s4 1414812756
        %v1665 = vunpack.c.0.s8 %v1664
        %v1666 = vperm.slane %v1126, %v1665
        %v1668 = vunpack.c.l.s4 1987475062
        %v1669 = vunpack.c.0.s8 %v1668
        %v1670 = vperm.slane %v1126, %v1669
        %v1672 = vunpack.c.l.s4 269488144
        %v1673 = vunpack.c.0.s8 %v1672
        %v1674 = vperm.slane %v1129, %v1673
        %v1676 = vunpack.c.l.s4 842150450
        %v1677 = vunpack.c.0.s8 %v1676
        %v1678 = vperm.slane %v1129, %v1677
        %v1680 = vunpack.c.l.s4 1414812756
        %v1681 = vunpack.c.0.s8 %v1680
        %v1682 = vperm.slane %v1129, %v1681
        %v1684 = vunpack.c.l.s4 1987475062
        %v1685 = vunpack.c.0.s8 %v1684
        %v1686 = vperm.slane %v1129, %v1685
        %v1688 = vunpack.c.l.s4 269488144
        %v1689 = vunpack.c.0.s8 %v1688
        %v1690 = vperm.slane %v1132, %v1689
        %v1692 = vunpack.c.l.s4 842150450
        %v1693 = vunpack.c.0.s8 %v1692
        %v1694 = vperm.slane %v1132, %v1693
        %v1696 = vunpack.c.l.s4 1414812756
        %v1697 = vunpack.c.0.s8 %v1696
        %v1698 = vperm.slane %v1132, %v1697
        %v1700 = vunpack.c.l.s4 1987475062
        %v1701 = vunpack.c.0.s8 %v1700
        %v1702 = vperm.slane %v1132, %v1701
        %v1704 = vunpack.c.l.s4 269488144
        %v1705 = vunpack.c.0.s8 %v1704
        %v1706 = vperm.slane %v1135, %v1705
        %v1708 = vunpack.c.l.s4 842150450
        %v1709 = vunpack.c.0.s8 %v1708
        %v1710 = vperm.slane %v1135, %v1709
        %v1712 = vunpack.c.l.s4 1414812756
        %v1713 = vunpack.c.0.s8 %v1712
        %v1714 = vperm.slane %v1135, %v1713
        %v1716 = vunpack.c.l.s4 1987475062
        %v1717 = vunpack.c.0.s8 %v1716
        %v1718 = vperm.slane %v1135, %v1717
        %v1720 = vunpack.c.l.s4 269488144
        %v1721 = vunpack.c.0.s8 %v1720
        %v1722 = vperm.slane %v1138, %v1721
        %v1724 = vunpack.c.l.s4 842150450
        %v1725 = vunpack.c.0.s8 %v1724
        %v1726 = vperm.slane %v1138, %v1725
        %v1728 = vunpack.c.l.s4 1414812756
        %v1729 = vunpack.c.0.s8 %v1728
        %v1730 = vperm.slane %v1138, %v1729
        %v1732 = vunpack.c.l.s4 1987475062
        %v1733 = vunpack.c.0.s8 %v1732
        %v1734 = vperm.slane %v1138, %v1733
        %v1736 = vunpack.c.l.s4 269488144
        %v1737 = vunpack.c.0.s8 %v1736
        %v1738 = vperm.slane %v1141, %v1737
        %v1740 = vunpack.c.l.s4 842150450
        %v1741 = vunpack.c.0.s8 %v1740
        %v1742 = vperm.slane %v1141, %v1741
        %v1744 = vunpack.c.l.s4 1414812756
        %v1745 = vunpack.c.0.s8 %v1744
        %v1746 = vperm.slane %v1141, %v1745
        %v1748 = vunpack.c.l.s4 1987475062
        %v1749 = vunpack.c.0.s8 %v1748
        %v1750 = vperm.slane %v1141, %v1749
        %v1752 = vunpack.c.l.s4 269488144
        %v1753 = vunpack.c.0.s8 %v1752
        %v1754 = vperm.slane %v1144, %v1753
        %v1756 = vunpack.c.l.s4 842150450
        %v1757 = vunpack.c.0.s8 %v1756
        %v1758 = vperm.slane %v1144, %v1757
        %v1760 = vunpack.c.l.s4 1414812756
        %v1761 = vunpack.c.0.s8 %v1760
        %v1762 = vperm.slane %v1144, %v1761
        %v1764 = vunpack.c.l.s4 1987475062
        %v1765 = vunpack.c.0.s8 %v1764
        %v1766 = vperm.slane %v1144, %v1765
        %v1768 = vunpack.c.l.s4 269488144
        %v1769 = vunpack.c.0.s8 %v1768
        %v1770 = vperm.slane %v1147, %v1769
        %v1772 = vunpack.c.l.s4 842150450
        %v1773 = vunpack.c.0.s8 %v1772
        %v1774 = vperm.slane %v1147, %v1773
        %v1776 = vunpack.c.l.s4 1414812756
        %v1777 = vunpack.c.0.s8 %v1776
        %v1778 = vperm.slane %v1147, %v1777
        %v1780 = vunpack.c.l.s4 1987475062
        %v1781 = vunpack.c.0.s8 %v1780
        %v1782 = vperm.slane %v1147, %v1781
        %v1784 = vunpack.c.l.s4 269488144
        %v1785 = vunpack.c.0.s8 %v1784
        %v1786 = vperm.slane %v1150, %v1785
        %v1788 = vunpack.c.l.s4 842150450
        %v1789 = vunpack.c.0.s8 %v1788
        %v1790 = vperm.slane %v1150, %v1789
        %v1792 = vunpack.c.l.s4 1414812756
        %v1793 = vunpack.c.0.s8 %v1792
        %v1794 = vperm.slane %v1150, %v1793
        %v1796 = vunpack.c.l.s4 1987475062
        %v1797 = vunpack.c.0.s8 %v1796
        %v1798 = vperm.slane %v1150, %v1797
        %v1800 = vunpack.c.l.s4 269488144
        %v1801 = vunpack.c.0.s8 %v1800
        %v1802 = vperm.slane %v1153, %v1801
        %v1804 = vunpack.c.l.s4 842150450
        %v1805 = vunpack.c.0.s8 %v1804
        %v1806 = vperm.slane %v1153, %v1805
        %v1808 = vunpack.c.l.s4 1414812756
        %v1809 = vunpack.c.0.s8 %v1808
        %v1810 = vperm.slane %v1153, %v1809
        %v1812 = vunpack.c.l.s4 1987475062
        %v1813 = vunpack.c.0.s8 %v1812
        %v1814 = vperm.slane %v1153, %v1813
        %v1816 = vunpack.c.l.s4 269488144
        %v1817 = vunpack.c.0.s8 %v1816
        %v1818 = vperm.slane %v1156, %v1817
        %v1820 = vunpack.c.l.s4 842150450
        %v1821 = vunpack.c.0.s8 %v1820
        %v1822 = vperm.slane %v1156, %v1821
        %v1824 = vunpack.c.l.s4 1414812756
        %v1825 = vunpack.c.0.s8 %v1824
        %v1826 = vperm.slane %v1156, %v1825
        %v1828 = vunpack.c.l.s4 1987475062
        %v1829 = vunpack.c.0.s8 %v1828
        %v1830 = vperm.slane %v1156, %v1829
        %v1832 = vunpack.c.l.s4 269488144
        %v1833 = vunpack.c.0.s8 %v1832
        %v1834 = vperm.slane %v1159, %v1833
        %v1836 = vunpack.c.l.s4 842150450
        %v1837 = vunpack.c.0.s8 %v1836
        %v1838 = vperm.slane %v1159, %v1837
        %v1840 = vunpack.c.l.s4 1414812756
        %v1841 = vunpack.c.0.s8 %v1840
        %v1842 = vperm.slane %v1159, %v1841
        %v1844 = vunpack.c.l.s4 1987475062
        %v1845 = vunpack.c.0.s8 %v1844
        %v1846 = vperm.slane %v1159, %v1845
        %v1848 = vunpack.c.l.s4 269488144
        %v1849 = vunpack.c.0.s8 %v1848
        %v1850 = vperm.slane %v1162, %v1849
        %v1852 = vunpack.c.l.s4 842150450
        %v1853 = vunpack.c.0.s8 %v1852
        %v1854 = vperm.slane %v1162, %v1853
        %v1856 = vunpack.c.l.s4 1414812756
        %v1857 = vunpack.c.0.s8 %v1856
        %v1858 = vperm.slane %v1162, %v1857
        %v1860 = vunpack.c.l.s4 1987475062
        %v1861 = vunpack.c.0.s8 %v1860
        %v1862 = vperm.slane %v1162, %v1861
        %v1864 = vunpack.c.l.s4 269488144
        %v1865 = vunpack.c.0.s8 %v1864
        %v1866 = vperm.slane %v1165, %v1865
        %v1868 = vunpack.c.l.s4 842150450
        %v1869 = vunpack.c.0.s8 %v1868
        %v1870 = vperm.slane %v1165, %v1869
        %v1872 = vunpack.c.l.s4 1414812756
        %v1873 = vunpack.c.0.s8 %v1872
        %v1874 = vperm.slane %v1165, %v1873
        %v1876 = vunpack.c.l.s4 1987475062
        %v1877 = vunpack.c.0.s8 %v1876
        %v1878 = vperm.slane %v1165, %v1877
        %v1880 = vunpack.c.l.s4 269488144
        %v1881 = vunpack.c.0.s8 %v1880
        %v1882 = vperm.slane %v1168, %v1881
        %v1884 = vunpack.c.l.s4 842150450
        %v1885 = vunpack.c.0.s8 %v1884
        %v1886 = vperm.slane %v1168, %v1885
        %v1888 = vunpack.c.l.s4 1414812756
        %v1889 = vunpack.c.0.s8 %v1888
        %v1890 = vperm.slane %v1168, %v1889
        %v1892 = vunpack.c.l.s4 1987475062
        %v1893 = vunpack.c.0.s8 %v1892
        %v1894 = vperm.slane %v1168, %v1893
        %v1896 = vunpack.c.l.s4 269488144
        %v1897 = vunpack.c.0.s8 %v1896
        %v1898 = vperm.slane %v1171, %v1897
        %v1900 = vunpack.c.l.s4 842150450
        %v1901 = vunpack.c.0.s8 %v1900
        %v1902 = vperm.slane %v1171, %v1901
        %v1904 = vunpack.c.l.s4 1414812756
        %v1905 = vunpack.c.0.s8 %v1904
        %v1906 = vperm.slane %v1171, %v1905
        %v1908 = vunpack.c.l.s4 1987475062
        %v1909 = vunpack.c.0.s8 %v1908
        %v1910 = vperm.slane %v1171, %v1909
        %v1912 = vunpack.c.l.s4 269488144
        %v1913 = vunpack.c.0.s8 %v1912
        %v1914 = vperm.slane %v1174, %v1913
        %v1916 = vunpack.c.l.s4 842150450
        %v1917 = vunpack.c.0.s8 %v1916
        %v1918 = vperm.slane %v1174, %v1917
        %v1920 = vunpack.c.l.s4 1414812756
        %v1921 = vunpack.c.0.s8 %v1920
        %v1922 = vperm.slane %v1174, %v1921
        %v1924 = vunpack.c.l.s4 1987475062
        %v1925 = vunpack.c.0.s8 %v1924
        %v1926 = vperm.slane %v1174, %v1925
        %v1928 = vunpack.c.l.s4 269488144
        %v1929 = vunpack.c.0.s8 %v1928
        %v1930 = vperm.slane %v1177, %v1929
        %v1932 = vunpack.c.l.s4 842150450
        %v1933 = vunpack.c.0.s8 %v1932
        %v1934 = vperm.slane %v1177, %v1933
        %v1936 = vunpack.c.l.s4 1414812756
        %v1937 = vunpack.c.0.s8 %v1936
        %v1938 = vperm.slane %v1177, %v1937
        %v1940 = vunpack.c.l.s4 1987475062
        %v1941 = vunpack.c.0.s8 %v1940
        %v1942 = vperm.slane %v1177, %v1941
        %v1944 = vunpack.c.l.s4 269488144
        %v1945 = vunpack.c.0.s8 %v1944
        %v1946 = vperm.slane %v1180, %v1945
        %v1948 = vunpack.c.l.s4 842150450
        %v1949 = vunpack.c.0.s8 %v1948
        %v1950 = vperm.slane %v1180, %v1949
        %v1952 = vunpack.c.l.s4 1414812756
        %v1953 = vunpack.c.0.s8 %v1952
        %v1954 = vperm.slane %v1180, %v1953
        %v1956 = vunpack.c.l.s4 1987475062
        %v1957 = vunpack.c.0.s8 %v1956
        %v1958 = vperm.slane %v1180, %v1957
        %v1960 = vunpack.c.l.s4 269488144
        %v1961 = vunpack.c.0.s8 %v1960
        %v1962 = vperm.slane %v1183, %v1961
        %v1964 = vunpack.c.l.s4 842150450
        %v1965 = vunpack.c.0.s8 %v1964
        %v1966 = vperm.slane %v1183, %v1965
        %v1968 = vunpack.c.l.s4 1414812756
        %v1969 = vunpack.c.0.s8 %v1968
        %v1970 = vperm.slane %v1183, %v1969
        %v1972 = vunpack.c.l.s4 1987475062
        %v1973 = vunpack.c.0.s8 %v1972
        %v1974 = vperm.slane %v1183, %v1973
        %v1976 = vunpack.c.l.s4 269488144
        %v1977 = vunpack.c.0.s8 %v1976
        %v1978 = vperm.slane %v1186, %v1977
        %v1980 = vunpack.c.l.s4 842150450
        %v1981 = vunpack.c.0.s8 %v1980
        %v1982 = vperm.slane %v1186, %v1981
        %v1984 = vunpack.c.l.s4 1414812756
        %v1985 = vunpack.c.0.s8 %v1984
        %v1986 = vperm.slane %v1186, %v1985
        %v1988 = vunpack.c.l.s4 1987475062
        %v1989 = vunpack.c.0.s8 %v1988
        %v1990 = vperm.slane %v1186, %v1989
        %v1992 = vunpack.c.l.s4 269488144
        %v1993 = vunpack.c.0.s8 %v1992
        %v1994 = vperm.slane %v1189, %v1993
        %v1996 = vunpack.c.l.s4 842150450
        %v1997 = vunpack.c.0.s8 %v1996
        %v1998 = vperm.slane %v1189, %v1997
        %v2000 = vunpack.c.l.s4 1414812756
        %v2001 = vunpack.c.0.s8 %v2000
        %v2002 = vperm.slane %v1189, %v2001
        %v2004 = vunpack.c.l.s4 1987475062
        %v2005 = vunpack.c.0.s8 %v2004
        %v2006 = vperm.slane %v1189, %v2005
        %v2008 = vunpack.c.l.s4 269488144
        %v2009 = vunpack.c.0.s8 %v2008
        %v2010 = vperm.slane %v1192, %v2009
        %v2012 = vunpack.c.l.s4 842150450
        %v2013 = vunpack.c.0.s8 %v2012
        %v2014 = vperm.slane %v1192, %v2013
        %v2016 = vunpack.c.l.s4 1414812756
        %v2017 = vunpack.c.0.s8 %v2016
        %v2018 = vperm.slane %v1192, %v2017
        %v2020 = vunpack.c.l.s4 1987475062
        %v2021 = vunpack.c.0.s8 %v2020
        %v2022 = vperm.slane %v1192, %v2021
        %v2024 = vunpack.c.l.s4 269488144
        %v2025 = vunpack.c.0.s8 %v2024
        %v2026 = vperm.slane %v1195, %v2025
        %v2028 = vunpack.c.l.s4 842150450
        %v2029 = vunpack.c.0.s8 %v2028
        %v2030 = vperm.slane %v1195, %v2029
        %v2032 = vunpack.c.l.s4 1414812756
        %v2033 = vunpack.c.0.s8 %v2032
        %v2034 = vperm.slane %v1195, %v2033
        %v2036 = vunpack.c.l.s4 1987475062
        %v2037 = vunpack.c.0.s8 %v2036
        %v2038 = vperm.slane %v1195, %v2037
        %v2040 = vunpack.c.l.s4 269488144
        %v2041 = vunpack.c.0.s8 %v2040
        %v2042 = vperm.slane %v1198, %v2041
        %v2044 = vunpack.c.l.s4 842150450
        %v2045 = vunpack.c.0.s8 %v2044
        %v2046 = vperm.slane %v1198, %v2045
        %v2048 = vunpack.c.l.s4 1414812756
        %v2049 = vunpack.c.0.s8 %v2048
        %v2050 = vperm.slane %v1198, %v2049
        %v2052 = vunpack.c.l.s4 1987475062
        %v2053 = vunpack.c.0.s8 %v2052
        %v2054 = vperm.slane %v1198, %v2053
        %v2056 = vunpack.c.l.s4 269488144
        %v2057 = vunpack.c.0.s8 %v2056
        %v2058 = vperm.slane %v1201, %v2057
        %v2060 = vunpack.c.l.s4 842150450
        %v2061 = vunpack.c.0.s8 %v2060
        %v2062 = vperm.slane %v1201, %v2061
        %v2064 = vunpack.c.l.s4 1414812756
        %v2065 = vunpack.c.0.s8 %v2064
        %v2066 = vperm.slane %v1201, %v2065
        %v2068 = vunpack.c.l.s4 1987475062
        %v2069 = vunpack.c.0.s8 %v2068
        %v2070 = vperm.slane %v1201, %v2069
        %v2072 = vunpack.c.l.s4 269488144
        %v2073 = vunpack.c.0.s8 %v2072
        %v2074 = vperm.slane %v1204, %v2073
        %v2076 = vunpack.c.l.s4 842150450
        %v2077 = vunpack.c.0.s8 %v2076
        %v2078 = vperm.slane %v1204, %v2077
        %v2080 = vunpack.c.l.s4 1414812756
        %v2081 = vunpack.c.0.s8 %v2080
        %v2082 = vperm.slane %v1204, %v2081
        %v2084 = vunpack.c.l.s4 1987475062
        %v2085 = vunpack.c.0.s8 %v2084
        %v2086 = vperm.slane %v1204, %v2085
        %v2088 = vunpack.c.l.s4 269488144
        %v2089 = vunpack.c.0.s8 %v2088
        %v2090 = vperm.slane %v1207, %v2089
        %v2092 = vunpack.c.l.s4 842150450
        %v2093 = vunpack.c.0.s8 %v2092
        %v2094 = vperm.slane %v1207, %v2093
        %v2096 = vunpack.c.l.s4 1414812756
        %v2097 = vunpack.c.0.s8 %v2096
        %v2098 = vperm.slane %v1207, %v2097
        %v2100 = vunpack.c.l.s4 1987475062
        %v2101 = vunpack.c.0.s8 %v2100
        %v2102 = vperm.slane %v1207, %v2101
        %v2104 = vunpack.c.l.s4 269488144
        %v2105 = vunpack.c.0.s8 %v2104
        %v2106 = vperm.slane %v1210, %v2105
        %v2108 = vunpack.c.l.s4 842150450
        %v2109 = vunpack.c.0.s8 %v2108
        %v2110 = vperm.slane %v1210, %v2109
        %v2112 = vunpack.c.l.s4 1414812756
        %v2113 = vunpack.c.0.s8 %v2112
        %v2114 = vperm.slane %v1210, %v2113
        %v2116 = vunpack.c.l.s4 1987475062
        %v2117 = vunpack.c.0.s8 %v2116
        %v2118 = vperm.slane %v1210, %v2117
        %v2120 = vunpack.c.l.s4 269488144
        %v2121 = vunpack.c.0.s8 %v2120
        %v2122 = vperm.slane %v1213, %v2121
        %v2124 = vunpack.c.l.s4 842150450
        %v2125 = vunpack.c.0.s8 %v2124
        %v2126 = vperm.slane %v1213, %v2125
        %v2128 = vunpack.c.l.s4 1414812756
        %v2129 = vunpack.c.0.s8 %v2128
        %v2130 = vperm.slane %v1213, %v2129
        %v2132 = vunpack.c.l.s4 1987475062
        %v2133 = vunpack.c.0.s8 %v2132
        %v2134 = vperm.slane %v1213, %v2133
        %v2136 = vunpack.c.l.s4 269488144
        %v2137 = vunpack.c.0.s8 %v2136
        %v2138 = vperm.slane %v1216, %v2137
        %v2140 = vunpack.c.l.s4 842150450
        %v2141 = vunpack.c.0.s8 %v2140
        %v2142 = vperm.slane %v1216, %v2141
        %v2144 = vunpack.c.l.s4 1414812756
        %v2145 = vunpack.c.0.s8 %v2144
        %v2146 = vperm.slane %v1216, %v2145
        %v2148 = vunpack.c.l.s4 1987475062
        %v2149 = vunpack.c.0.s8 %v2148
        %v2150 = vperm.slane %v1216, %v2149
        %v2152 = vunpack.c.l.s4 269488144
        %v2153 = vunpack.c.0.s8 %v2152
        %v2154 = vperm.slane %v1219, %v2153
        %v2156 = vunpack.c.l.s4 842150450
        %v2157 = vunpack.c.0.s8 %v2156
        %v2158 = vperm.slane %v1219, %v2157
        %v2160 = vunpack.c.l.s4 1414812756
        %v2161 = vunpack.c.0.s8 %v2160
        %v2162 = vperm.slane %v1219, %v2161
        %v2164 = vunpack.c.l.s4 1987475062
        %v2165 = vunpack.c.0.s8 %v2164
        %v2166 = vperm.slane %v1219, %v2165
        %v2168 = vunpack.c.l.s4 269488144
        %v2169 = vunpack.c.0.s8 %v2168
        %v2170 = vperm.slane %v1222, %v2169
        %v2172 = vunpack.c.l.s4 842150450
        %v2173 = vunpack.c.0.s8 %v2172
        %v2174 = vperm.slane %v1222, %v2173
        %v2176 = vunpack.c.l.s4 1414812756
        %v2177 = vunpack.c.0.s8 %v2176
        %v2178 = vperm.slane %v1222, %v2177
        %v2180 = vunpack.c.l.s4 1987475062
        %v2181 = vunpack.c.0.s8 %v2180
        %v2182 = vperm.slane %v1222, %v2181
        %v2184 = vunpack.c.l.s4 269488144
        %v2185 = vunpack.c.0.s8 %v2184
        %v2186 = vperm.slane %v1225, %v2185
        %v2188 = vunpack.c.l.s4 842150450
        %v2189 = vunpack.c.0.s8 %v2188
        %v2190 = vperm.slane %v1225, %v2189
        %v2192 = vunpack.c.l.s4 1414812756
        %v2193 = vunpack.c.0.s8 %v2192
        %v2194 = vperm.slane %v1225, %v2193
        %v2196 = vunpack.c.l.s4 1987475062
        %v2197 = vunpack.c.0.s8 %v2196
        %v2198 = vperm.slane %v1225, %v2197
        %v2200 = vunpack.c.l.s4 269488144
        %v2201 = vunpack.c.0.s8 %v2200
        %v2202 = vperm.slane %v1228, %v2201
        %v2204 = vunpack.c.l.s4 842150450
        %v2205 = vunpack.c.0.s8 %v2204
        %v2206 = vperm.slane %v1228, %v2205
        %v2208 = vunpack.c.l.s4 1414812756
        %v2209 = vunpack.c.0.s8 %v2208
        %v2210 = vperm.slane %v1228, %v2209
        %v2212 = vunpack.c.l.s4 1987475062
        %v2213 = vunpack.c.0.s8 %v2212
        %v2214 = vperm.slane %v1228, %v2213
        %v2216 = vunpack.c.l.s4 269488144
        %v2217 = vunpack.c.0.s8 %v2216
        %v2218 = vperm.slane %v1231, %v2217
        %v2220 = vunpack.c.l.s4 842150450
        %v2221 = vunpack.c.0.s8 %v2220
        %v2222 = vperm.slane %v1231, %v2221
        %v2224 = vunpack.c.l.s4 1414812756
        %v2225 = vunpack.c.0.s8 %v2224
        %v2226 = vperm.slane %v1231, %v2225
        %v2228 = vunpack.c.l.s4 1987475062
        %v2229 = vunpack.c.0.s8 %v2228
        %v2230 = vperm.slane %v1231, %v2229
        %v2232 = vunpack.c.l.s4 269488144
        %v2233 = vunpack.c.0.s8 %v2232
        %v2234 = vperm.slane %v1234, %v2233
        %v2236 = vunpack.c.l.s4 842150450
        %v2237 = vunpack.c.0.s8 %v2236
        %v2238 = vperm.slane %v1234, %v2237
        %v2240 = vunpack.c.l.s4 1414812756
        %v2241 = vunpack.c.0.s8 %v2240
        %v2242 = vperm.slane %v1234, %v2241
        %v2244 = vunpack.c.l.s4 1987475062
        %v2245 = vunpack.c.0.s8 %v2244
        %v2246 = vperm.slane %v1234, %v2245
        %v2248 = vunpack.c.l.s4 269488144
        %v2249 = vunpack.c.0.s8 %v2248
        %v2250 = vperm.slane %v1237, %v2249
        %v2252 = vunpack.c.l.s4 842150450
        %v2253 = vunpack.c.0.s8 %v2252
        %v2254 = vperm.slane %v1237, %v2253
        %v2256 = vunpack.c.l.s4 1414812756
        %v2257 = vunpack.c.0.s8 %v2256
        %v2258 = vperm.slane %v1237, %v2257
        %v2260 = vunpack.c.l.s4 1987475062
        %v2261 = vunpack.c.0.s8 %v2260
        %v2262 = vperm.slane %v1237, %v2261
        %v2264 = vunpack.c.l.s4 269488144
        %v2265 = vunpack.c.0.s8 %v2264
        %v2266 = vperm.slane %v1240, %v2265
        %v2268 = vunpack.c.l.s4 842150450
        %v2269 = vunpack.c.0.s8 %v2268
        %v2270 = vperm.slane %v1240, %v2269
        %v2272 = vunpack.c.l.s4 1414812756
        %v2273 = vunpack.c.0.s8 %v2272
        %v2274 = vperm.slane %v1240, %v2273
        %v2276 = vunpack.c.l.s4 1987475062
        %v2277 = vunpack.c.0.s8 %v2276
        %v2278 = vperm.slane %v1240, %v2277
        %v2280 = vunpack.c.l.s4 269488144
        %v2281 = vunpack.c.0.s8 %v2280
        %v2282 = vperm.slane %v1243, %v2281
        %v2284 = vunpack.c.l.s4 842150450
        %v2285 = vunpack.c.0.s8 %v2284
        %v2286 = vperm.slane %v1243, %v2285
        %v2288 = vunpack.c.l.s4 1414812756
        %v2289 = vunpack.c.0.s8 %v2288
        %v2290 = vperm.slane %v1243, %v2289
        %v2292 = vunpack.c.l.s4 1987475062
        %v2293 = vunpack.c.0.s8 %v2292
        %v2294 = vperm.slane %v1243, %v2293
        %v2296 = vunpack.c.l.s4 269488144
        %v2297 = vunpack.c.0.s8 %v2296
        %v2298 = vperm.slane %v1246, %v2297
        %v2300 = vunpack.c.l.s4 842150450
        %v2301 = vunpack.c.0.s8 %v2300
        %v2302 = vperm.slane %v1246, %v2301
        %v2304 = vunpack.c.l.s4 1414812756
        %v2305 = vunpack.c.0.s8 %v2304
        %v2306 = vperm.slane %v1246, %v2305
        %v2308 = vunpack.c.l.s4 1987475062
        %v2309 = vunpack.c.0.s8 %v2308
        %v2310 = vperm.slane %v1246, %v2309
        %v2312 = vunpack.c.l.s4 269488144
        %v2313 = vunpack.c.0.s8 %v2312
        %v2314 = vperm.slane %v1249, %v2313
        %v2316 = vunpack.c.l.s4 842150450
        %v2317 = vunpack.c.0.s8 %v2316
        %v2318 = vperm.slane %v1249, %v2317
        %v2320 = vunpack.c.l.s4 1414812756
        %v2321 = vunpack.c.0.s8 %v2320
        %v2322 = vperm.slane %v1249, %v2321
        %v2324 = vunpack.c.l.s4 1987475062
        %v2325 = vunpack.c.0.s8 %v2324
        %v2326 = vperm.slane %v1249, %v2325
        %v2328 = vunpack.c.l.s4 269488144
        %v2329 = vunpack.c.0.s8 %v2328
        %v2330 = vperm.slane %v1252, %v2329
        %v2332 = vunpack.c.l.s4 842150450
        %v2333 = vunpack.c.0.s8 %v2332
        %v2334 = vperm.slane %v1252, %v2333
        %v2336 = vunpack.c.l.s4 1414812756
        %v2337 = vunpack.c.0.s8 %v2336
        %v2338 = vperm.slane %v1252, %v2337
        %v2340 = vunpack.c.l.s4 1987475062
        %v2341 = vunpack.c.0.s8 %v2340
        %v2342 = vperm.slane %v1252, %v2341
        %2343 = vst [vmem:[#allocation1] ss:$4 sm:$0xff] %v1322
        %s2344 = scalar_lea.vmem [#allocation1], 1
        %2345 = vst [vmem:[%s2344] ss:$4 sm:$0xff] %v1326
        %s2346 = scalar_lea.vmem [#allocation1], 2
        %2347 = vst [vmem:[%s2346] ss:$4 sm:$0xff] %v1330
        %s2348 = scalar_lea.vmem [#allocation1], 3
        %2349 = vst [vmem:[%s2348] ss:$4 sm:$0xff] %v1334
        %s2350 = scalar_lea.vmem [#allocation1], 32
        %2351 = vst [vmem:[%s2350] ss:$4 sm:$0xff] %v1338
        %s2352 = scalar_lea.vmem [#allocation1], 33
        %2353 = vst [vmem:[%s2352] ss:$4 sm:$0xff] %v1342
        %s2354 = scalar_lea.vmem [#allocation1], 34
        %2355 = vst [vmem:[%s2354] ss:$4 sm:$0xff] %v1346
        %s2356 = scalar_lea.vmem [#allocation1], 35
        %2357 = vst [vmem:[%s2356] ss:$4 sm:$0xff] %v1350
        %v2358 = vld.sshfl [vmem:[#allocation1] sm:$0xff pattern:$0x73625140]
        %v2359 = vld.sshfl [vmem:[#allocation1 + $0x20] sm:$0xff pattern:$0x73625140]
        %2360 = vst [vmem:[#allocation1] ss:$4 sm:$0xff] %v1354
        %2361 = vst [vmem:[%s2344] ss:$4 sm:$0xff] %v1358
        %2362 = vst [vmem:[%s2346] ss:$4 sm:$0xff] %v1362
        %2363 = vst [vmem:[%s2348] ss:$4 sm:$0xff] %v1366
        %2364 = vst [vmem:[%s2350] ss:$4 sm:$0xff] %v1370
        %2365 = vst [vmem:[%s2352] ss:$4 sm:$0xff] %v1374
        %2366 = vst [vmem:[%s2354] ss:$4 sm:$0xff] %v1378
        %2367 = vst [vmem:[%s2356] ss:$4 sm:$0xff] %v1382
        %v2368 = vld.sshfl [vmem:[#allocation1] sm:$0xff pattern:$0x73625140]
        %v2369 = vld.sshfl [vmem:[#allocation1 + $0x20] sm:$0xff pattern:$0x73625140]
        %2370 = vst [vmem:[#allocation1] ss:$4 sm:$0xff] %v1386
        %2371 = vst [vmem:[%s2344] ss:$4 sm:$0xff] %v1390
        %2372 = vst [vmem:[%s2346] ss:$4 sm:$0xff] %v1394
        %2373 = vst [vmem:[%s2348] ss:$4 sm:$0xff] %v1398
        %2374 = vst [vmem:[%s2350] ss:$4 sm:$0xff] %v1402
        %2375 = vst [vmem:[%s2352] ss:$4 sm:$0xff] %v1406
        %2376 = vst [vmem:[%s2354] ss:$4 sm:$0xff] %v1410
        %2377 = vst [vmem:[%s2356] ss:$4 sm:$0xff] %v1414
        %v2378 = vld.sshfl [vmem:[#allocation1] sm:$0xff pattern:$0x73625140]
        %v2379 = vld.sshfl [vmem:[#allocation1 + $0x20] sm:$0xff pattern:$0x73625140]
        %2380 = vst [vmem:[#allocation1] ss:$4 sm:$0xff] %v1418
        %2381 = vst [vmem:[%s2344] ss:$4 sm:$0xff] %v1422
        %2382 = vst [vmem:[%s2346] ss:$4 sm:$0xff] %v1426
        %2383 = vst [vmem:[%s2348] ss:$4 sm:$0xff] %v1430
        %2384 = vst [vmem:[%s2350] ss:$4 sm:$0xff] %v1434
        %2385 = vst [vmem:[%s2352] ss:$4 sm:$0xff] %v1438
        %2386 = vst [vmem:[%s2354] ss:$4 sm:$0xff] %v1442
        %2387 = vst [vmem:[%s2356] ss:$4 sm:$0xff] %v1446
        %v2388 = vld.sshfl [vmem:[#allocation1] sm:$0xff pattern:$0x73625140]
        %v2389 = vld.sshfl [vmem:[#allocation1 + $0x20] sm:$0xff pattern:$0x73625140]
        %2390 = vst [vmem:[#allocation1] ss:$4 sm:$0xff] %v1450
        %2391 = vst [vmem:[%s2344] ss:$4 sm:$0xff] %v1454
        %2392 = vst [vmem:[%s2346] ss:$4 sm:$0xff] %v1458
        %2393 = vst [vmem:[%s2348] ss:$4 sm:$0xff] %v1462
        %2394 = vst [vmem:[%s2350] ss:$4 sm:$0xff] %v1466
        %2395 = vst [vmem:[%s2352] ss:$4 sm:$0xff] %v1470
        %2396 = vst [vmem:[%s2354] ss:$4 sm:$0xff] %v1474
        %2397 = vst [vmem:[%s2356] ss:$4 sm:$0xff] %v1478
        %v2398 = vld.sshfl [vmem:[#allocation1] sm:$0xff pattern:$0x73625140]
        %v2399 = vld.sshfl [vmem:[#allocation1 + $0x20] sm:$0xff pattern:$0x73625140]
        %2400 = vst [vmem:[#allocation1] ss:$4 sm:$0xff] %v1482
        %2401 = vst [vmem:[%s2344] ss:$4 sm:$0xff] %v1486
        %2402 = vst [vmem:[%s2346] ss:$4 sm:$0xff] %v1490
        %2403 = vst [vmem:[%s2348] ss:$4 sm:$0xff] %v1494
        %2404 = vst [vmem:[%s2350] ss:$4 sm:$0xff] %v1498
        %2405 = vst [vmem:[%s2352] ss:$4 sm:$0xff] %v1502
        %2406 = vst [vmem:[%s2354] ss:$4 sm:$0xff] %v1506
        %2407 = vst [vmem:[%s2356] ss:$4 sm:$0xff] %v1510
        %v2408 = vld.sshfl [vmem:[#allocation1] sm:$0xff pattern:$0x73625140]
        %v2409 = vld.sshfl [vmem:[#allocation1 + $0x20] sm:$0xff pattern:$0x73625140]
        %2410 = vst [vmem:[#allocation1] ss:$4 sm:$0xff] %v1514
        %2411 = vst [vmem:[%s2344] ss:$4 sm:$0xff] %v1518
        %2412 = vst [vmem:[%s2346] ss:$4 sm:$0xff] %v1522
        %2413 = vst [vmem:[%s2348] ss:$4 sm:$0xff] %v1526
        %2414 = vst [vmem:[%s2350] ss:$4 sm:$0xff] %v1530
        %2415 = vst [vmem:[%s2352] ss:$4 sm:$0xff] %v1534
        %2416 = vst [vmem:[%s2354] ss:$4 sm:$0xff] %v1538
        %2417 = vst [vmem:[%s2356] ss:$4 sm:$0xff] %v1542
        %v2418 = vld.sshfl [vmem:[#allocation1] sm:$0xff pattern:$0x73625140]
        %v2419 = vld.sshfl [vmem:[#allocation1 + $0x20] sm:$0xff pattern:$0x73625140]
        %2420 = vst [vmem:[#allocation1] ss:$4 sm:$0xff] %v1546
        %2421 = vst [vmem:[%s2344] ss:$4 sm:$0xff] %v1550
        %2422 = vst [vmem:[%s2346] ss:$4 sm:$0xff] %v1554
        %2423 = vst [vmem:[%s2348] ss:$4 sm:$0xff] %v1558
        %2424 = vst [vmem:[%s2350] ss:$4 sm:$0xff] %v1562
        %2425 = vst [vmem:[%s2352] ss:$4 sm:$0xff] %v1566
        %2426 = vst [vmem:[%s2354] ss:$4 sm:$0xff] %v1570
        %2427 = vst [vmem:[%s2356] ss:$4 sm:$0xff] %v1574
        %v2428 = vld.sshfl [vmem:[#allocation1] sm:$0xff pattern:$0x73625140]
        %v2429 = vld.sshfl [vmem:[#allocation1 + $0x20] sm:$0xff pattern:$0x73625140]
        %2430 = vst [vmem:[#allocation1] ss:$4 sm:$0xff] %v1578
        %2431 = vst [vmem:[%s2344] ss:$4 sm:$0xff] %v1582
        %2432 = vst [vmem:[%s2346] ss:$4 sm:$0xff] %v1586
        %2433 = vst [vmem:[%s2348] ss:$4 sm:$0xff] %v1590
        %2434 = vst [vmem:[%s2350] ss:$4 sm:$0xff] %v1594
        %2435 = vst [vmem:[%s2352] ss:$4 sm:$0xff] %v1598
        %2436 = vst [vmem:[%s2354] ss:$4 sm:$0xff] %v1602
        %2437 = vst [vmem:[%s2356] ss:$4 sm:$0xff] %v1606
        %v2438 = vld.sshfl [vmem:[#allocation1] sm:$0xff pattern:$0x73625140]
        %v2439 = vld.sshfl [vmem:[#allocation1 + $0x20] sm:$0xff pattern:$0x73625140]
        %2440 = vst [vmem:[#allocation1] ss:$4 sm:$0xff] %v1610
        %2441 = vst [vmem:[%s2344] ss:$4 sm:$0xff] %v1614
        %2442 = vst [vmem:[%s2346] ss:$4 sm:$0xff] %v1618
        %2443 = vst [vmem:[%s2348] ss:$4 sm:$0xff] %v1622
        %2444 = vst [vmem:[%s2350] ss:$4 sm:$0xff] %v1626
        %2445 = vst [vmem:[%s2352] ss:$4 sm:$0xff] %v1630
        %2446 = vst [vmem:[%s2354] ss:$4 sm:$0xff] %v1634
        %2447 = vst [vmem:[%s2356] ss:$4 sm:$0xff] %v1638
        %v2448 = vld.sshfl [vmem:[#allocation1] sm:$0xff pattern:$0x73625140]
        %v2449 = vld.sshfl [vmem:[#allocation1 + $0x20] sm:$0xff pattern:$0x73625140]
        %2450 = vst [vmem:[#allocation1] ss:$4 sm:$0xff] %v1642
        %2451 = vst [vmem:[%s2344] ss:$4 sm:$0xff] %v1646
        %2452 = vst [vmem:[%s2346] ss:$4 sm:$0xff] %v1650
        %2453 = vst [vmem:[%s2348] ss:$4 sm:$0xff] %v1654
        %2454 = vst [vmem:[%s2350] ss:$4 sm:$0xff] %v1658
        %2455 = vst [vmem:[%s2352] ss:$4 sm:$0xff] %v1662
        %2456 = vst [vmem:[%s2354] ss:$4 sm:$0xff] %v1666
        %2457 = vst [vmem:[%s2356] ss:$4 sm:$0xff] %v1670
        %v2458 = vld.sshfl [vmem:[#allocation1] sm:$0xff pattern:$0x73625140]
        %v2459 = vld.sshfl [vmem:[#allocation1 + $0x20] sm:$0xff pattern:$0x73625140]
        %2460 = vst [vmem:[#allocation1] ss:$4 sm:$0xff] %v1674
        %2461 = vst [vmem:[%s2344] ss:$4 sm:$0xff] %v1678
        %2462 = vst [vmem:[%s2346] ss:$4 sm:$0xff] %v1682
        %2463 = vst [vmem:[%s2348] ss:$4 sm:$0xff] %v1686
        %2464 = vst [vmem:[%s2350] ss:$4 sm:$0xff] %v1690
        %2465 = vst [vmem:[%s2352] ss:$4 sm:$0xff] %v1694
        %2466 = vst [vmem:[%s2354] ss:$4 sm:$0xff] %v1698
        %2467 = vst [vmem:[%s2356] ss:$4 sm:$0xff] %v1702
        %v2468 = vld.sshfl [vmem:[#allocation1] sm:$0xff pattern:$0x73625140]
        %v2469 = vld.sshfl [vmem:[#allocation1 + $0x20] sm:$0xff pattern:$0x73625140]
        %2470 = vst [vmem:[#allocation1] ss:$4 sm:$0xff] %v1706
        %2471 = vst [vmem:[%s2344] ss:$4 sm:$0xff] %v1710
        %2472 = vst [vmem:[%s2346] ss:$4 sm:$0xff] %v1714
        %2473 = vst [vmem:[%s2348] ss:$4 sm:$0xff] %v1718
        %2474 = vst [vmem:[%s2350] ss:$4 sm:$0xff] %v1722
        %2475 = vst [vmem:[%s2352] ss:$4 sm:$0xff] %v1726
        %2476 = vst [vmem:[%s2354] ss:$4 sm:$0xff] %v1730
        %2477 = vst [vmem:[%s2356] ss:$4 sm:$0xff] %v1734
        %v2478 = vld.sshfl [vmem:[#allocation1] sm:$0xff pattern:$0x73625140]
        %v2479 = vld.sshfl [vmem:[#allocation1 + $0x20] sm:$0xff pattern:$0x73625140]
        %2480 = vst [vmem:[#allocation1] ss:$4 sm:$0xff] %v1738
        %2481 = vst [vmem:[%s2344] ss:$4 sm:$0xff] %v1742
        %2482 = vst [vmem:[%s2346] ss:$4 sm:$0xff] %v1746
        %2483 = vst [vmem:[%s2348] ss:$4 sm:$0xff] %v1750
        %2484 = vst [vmem:[%s2350] ss:$4 sm:$0xff] %v1754
        %2485 = vst [vmem:[%s2352] ss:$4 sm:$0xff] %v1758
        %2486 = vst [vmem:[%s2354] ss:$4 sm:$0xff] %v1762
        %2487 = vst [vmem:[%s2356] ss:$4 sm:$0xff] %v1766
        %v2488 = vld.sshfl [vmem:[#allocation1] sm:$0xff pattern:$0x73625140]
        %v2489 = vld.sshfl [vmem:[#allocation1 + $0x20] sm:$0xff pattern:$0x73625140]
        %2490 = vst [vmem:[#allocation1] ss:$4 sm:$0xff] %v1770
        %2491 = vst [vmem:[%s2344] ss:$4 sm:$0xff] %v1774
        %2492 = vst [vmem:[%s2346] ss:$4 sm:$0xff] %v1778
        %2493 = vst [vmem:[%s2348] ss:$4 sm:$0xff] %v1782
        %2494 = vst [vmem:[%s2350] ss:$4 sm:$0xff] %v1786
        %2495 = vst [vmem:[%s2352] ss:$4 sm:$0xff] %v1790
        %2496 = vst [vmem:[%s2354] ss:$4 sm:$0xff] %v1794
        %2497 = vst [vmem:[%s2356] ss:$4 sm:$0xff] %v1798
        %v2498 = vld.sshfl [vmem:[#allocation1] sm:$0xff pattern:$0x73625140]
        %v2499 = vld.sshfl [vmem:[#allocation1 + $0x20] sm:$0xff pattern:$0x73625140]
        %2500 = vst [vmem:[#allocation1] ss:$4 sm:$0xff] %v1802
        %2501 = vst [vmem:[%s2344] ss:$4 sm:$0xff] %v1806
        %2502 = vst [vmem:[%s2346] ss:$4 sm:$0xff] %v1810
        %2503 = vst [vmem:[%s2348] ss:$4 sm:$0xff] %v1814
        %2504 = vst [vmem:[%s2350] ss:$4 sm:$0xff] %v1818
        %2505 = vst [vmem:[%s2352] ss:$4 sm:$0xff] %v1822
        %2506 = vst [vmem:[%s2354] ss:$4 sm:$0xff] %v1826
        %2507 = vst [vmem:[%s2356] ss:$4 sm:$0xff] %v1830
        %v2508 = vld.sshfl [vmem:[#allocation1] sm:$0xff pattern:$0x73625140]
        %v2509 = vld.sshfl [vmem:[#allocation1 + $0x20] sm:$0xff pattern:$0x73625140]
        %2510 = vst [vmem:[#allocation1] ss:$4 sm:$0xff] %v1834
        %2511 = vst [vmem:[%s2344] ss:$4 sm:$0xff] %v1838
        %2512 = vst [vmem:[%s2346] ss:$4 sm:$0xff] %v1842
        %2513 = vst [vmem:[%s2348] ss:$4 sm:$0xff] %v1846
        %2514 = vst [vmem:[%s2350] ss:$4 sm:$0xff] %v1850
        %2515 = vst [vmem:[%s2352] ss:$4 sm:$0xff] %v1854
        %2516 = vst [vmem:[%s2354] ss:$4 sm:$0xff] %v1858
        %2517 = vst [vmem:[%s2356] ss:$4 sm:$0xff] %v1862
        %v2518 = vld.sshfl [vmem:[#allocation1] sm:$0xff pattern:$0x73625140]
        %v2519 = vld.sshfl [vmem:[#allocation1 + $0x20] sm:$0xff pattern:$0x73625140]
        %2520 = vst [vmem:[#allocation1] ss:$4 sm:$0xff] %v1866
        %2521 = vst [vmem:[%s2344] ss:$4 sm:$0xff] %v1870
        %2522 = vst [vmem:[%s2346] ss:$4 sm:$0xff] %v1874
        %2523 = vst [vmem:[%s2348] ss:$4 sm:$0xff] %v1878
        %2524 = vst [vmem:[%s2350] ss:$4 sm:$0xff] %v1882
        %2525 = vst [vmem:[%s2352] ss:$4 sm:$0xff] %v1886
        %2526 = vst [vmem:[%s2354] ss:$4 sm:$0xff] %v1890
        %2527 = vst [vmem:[%s2356] ss:$4 sm:$0xff] %v1894
        %v2528 = vld.sshfl [vmem:[#allocation1] sm:$0xff pattern:$0x73625140]
        %v2529 = vld.sshfl [vmem:[#allocation1 + $0x20] sm:$0xff pattern:$0x73625140]
        %2530 = vst [vmem:[#allocation1] ss:$4 sm:$0xff] %v1898
        %2531 = vst [vmem:[%s2344] ss:$4 sm:$0xff] %v1902
        %2532 = vst [vmem:[%s2346] ss:$4 sm:$0xff] %v1906
        %2533 = vst [vmem:[%s2348] ss:$4 sm:$0xff] %v1910
        %2534 = vst [vmem:[%s2350] ss:$4 sm:$0xff] %v1914
        %2535 = vst [vmem:[%s2352] ss:$4 sm:$0xff] %v1918
        %2536 = vst [vmem:[%s2354] ss:$4 sm:$0xff] %v1922
        %2537 = vst [vmem:[%s2356] ss:$4 sm:$0xff] %v1926
        %v2538 = vld.sshfl [vmem:[#allocation1] sm:$0xff pattern:$0x73625140]
        %v2539 = vld.sshfl [vmem:[#allocation1 + $0x20] sm:$0xff pattern:$0x73625140]
        %2540 = vst [vmem:[#allocation1] ss:$4 sm:$0xff] %v1930
        %2541 = vst [vmem:[%s2344] ss:$4 sm:$0xff] %v1934
        %2542 = vst [vmem:[%s2346] ss:$4 sm:$0xff] %v1938
        %2543 = vst [vmem:[%s2348] ss:$4 sm:$0xff] %v1942
        %2544 = vst [vmem:[%s2350] ss:$4 sm:$0xff] %v1946
        %2545 = vst [vmem:[%s2352] ss:$4 sm:$0xff] %v1950
        %2546 = vst [vmem:[%s2354] ss:$4 sm:$0xff] %v1954
        %2547 = vst [vmem:[%s2356] ss:$4 sm:$0xff] %v1958
        %v2548 = vld.sshfl [vmem:[#allocation1] sm:$0xff pattern:$0x73625140]
        %v2549 = vld.sshfl [vmem:[#allocation1 + $0x20] sm:$0xff pattern:$0x73625140]
        %2550 = vst [vmem:[#allocation1] ss:$4 sm:$0xff] %v1962
        %2551 = vst [vmem:[%s2344] ss:$4 sm:$0xff] %v1966
        %2552 = vst [vmem:[%s2346] ss:$4 sm:$0xff] %v1970
        %2553 = vst [vmem:[%s2348] ss:$4 sm:$0xff] %v1974
        %2554 = vst [vmem:[%s2350] ss:$4 sm:$0xff] %v1978
        %2555 = vst [vmem:[%s2352] ss:$4 sm:$0xff] %v1982
        %2556 = vst [vmem:[%s2354] ss:$4 sm:$0xff] %v1986
        %2557 = vst [vmem:[%s2356] ss:$4 sm:$0xff] %v1990
        %v2558 = vld.sshfl [vmem:[#allocation1] sm:$0xff pattern:$0x73625140]
        %v2559 = vld.sshfl [vmem:[#allocation1 + $0x20] sm:$0xff pattern:$0x73625140]
        %2560 = vst [vmem:[#allocation1] ss:$4 sm:$0xff] %v1994
        %2561 = vst [vmem:[%s2344] ss:$4 sm:$0xff] %v1998
        %2562 = vst [vmem:[%s2346] ss:$4 sm:$0xff] %v2002
        %2563 = vst [vmem:[%s2348] ss:$4 sm:$0xff] %v2006
        %2564 = vst [vmem:[%s2350] ss:$4 sm:$0xff] %v2010
        %2565 = vst [vmem:[%s2352] ss:$4 sm:$0xff] %v2014
        %2566 = vst [vmem:[%s2354] ss:$4 sm:$0xff] %v2018
        %2567 = vst [vmem:[%s2356] ss:$4 sm:$0xff] %v2022
        %v2568 = vld.sshfl [vmem:[#allocation1] sm:$0xff pattern:$0x73625140]
        %v2569 = vld.sshfl [vmem:[#allocation1 + $0x20] sm:$0xff pattern:$0x73625140]
        %2570 = vst [vmem:[#allocation1] ss:$4 sm:$0xff] %v2026
        %2571 = vst [vmem:[%s2344] ss:$4 sm:$0xff] %v2030
        %2572 = vst [vmem:[%s2346] ss:$4 sm:$0xff] %v2034
        %2573 = vst [vmem:[%s2348] ss:$4 sm:$0xff] %v2038
        %2574 = vst [vmem:[%s2350] ss:$4 sm:$0xff] %v2042
        %2575 = vst [vmem:[%s2352] ss:$4 sm:$0xff] %v2046
        %2576 = vst [vmem:[%s2354] ss:$4 sm:$0xff] %v2050
        %2577 = vst [vmem:[%s2356] ss:$4 sm:$0xff] %v2054
        %v2578 = vld.sshfl [vmem:[#allocation1] sm:$0xff pattern:$0x73625140]
        %v2579 = vld.sshfl [vmem:[#allocation1 + $0x20] sm:$0xff pattern:$0x73625140]
        %2580 = vst [vmem:[#allocation1] ss:$4 sm:$0xff] %v2058
        %2581 = vst [vmem:[%s2344] ss:$4 sm:$0xff] %v2062
        %2582 = vst [vmem:[%s2346] ss:$4 sm:$0xff] %v2066
        %2583 = vst [vmem:[%s2348] ss:$4 sm:$0xff] %v2070
        %2584 = vst [vmem:[%s2350] ss:$4 sm:$0xff] %v2074
        %2585 = vst [vmem:[%s2352] ss:$4 sm:$0xff] %v2078
        %2586 = vst [vmem:[%s2354] ss:$4 sm:$0xff] %v2082
        %2587 = vst [vmem:[%s2356] ss:$4 sm:$0xff] %v2086
        %v2588 = vld.sshfl [vmem:[#allocation1] sm:$0xff pattern:$0x73625140]
        %v2589 = vld.sshfl [vmem:[#allocation1 + $0x20] sm:$0xff pattern:$0x73625140]
        %2590 = vst [vmem:[#allocation1] ss:$4 sm:$0xff] %v2090
        %2591 = vst [vmem:[%s2344] ss:$4 sm:$0xff] %v2094
        %2592 = vst [vmem:[%s2346] ss:$4 sm:$0xff] %v2098
        %2593 = vst [vmem:[%s2348] ss:$4 sm:$0xff] %v2102
        %2594 = vst [vmem:[%s2350] ss:$4 sm:$0xff] %v2106
        %2595 = vst [vmem:[%s2352] ss:$4 sm:$0xff] %v2110
        %2596 = vst [vmem:[%s2354] ss:$4 sm:$0xff] %v2114
        %2597 = vst [vmem:[%s2356] ss:$4 sm:$0xff] %v2118
        %v2598 = vld.sshfl [vmem:[#allocation1] sm:$0xff pattern:$0x73625140]
        %v2599 = vld.sshfl [vmem:[#allocation1 + $0x20] sm:$0xff pattern:$0x73625140]
        %2600 = vst [vmem:[#allocation1] ss:$4 sm:$0xff] %v2122
        %2601 = vst [vmem:[%s2344] ss:$4 sm:$0xff] %v2126
        %2602 = vst [vmem:[%s2346] ss:$4 sm:$0xff] %v2130
        %2603 = vst [vmem:[%s2348] ss:$4 sm:$0xff] %v2134
        %2604 = vst [vmem:[%s2350] ss:$4 sm:$0xff] %v2138
        %2605 = vst [vmem:[%s2352] ss:$4 sm:$0xff] %v2142
        %2606 = vst [vmem:[%s2354] ss:$4 sm:$0xff] %v2146
        %2607 = vst [vmem:[%s2356] ss:$4 sm:$0xff] %v2150
        %v2608 = vld.sshfl [vmem:[#allocation1] sm:$0xff pattern:$0x73625140]
        %v2609 = vld.sshfl [vmem:[#allocation1 + $0x20] sm:$0xff pattern:$0x73625140]
        %2610 = vst [vmem:[#allocation1] ss:$4 sm:$0xff] %v2154
        %2611 = vst [vmem:[%s2344] ss:$4 sm:$0xff] %v2158
        %2612 = vst [vmem:[%s2346] ss:$4 sm:$0xff] %v2162
        %2613 = vst [vmem:[%s2348] ss:$4 sm:$0xff] %v2166
        %2614 = vst [vmem:[%s2350] ss:$4 sm:$0xff] %v2170
        %2615 = vst [vmem:[%s2352] ss:$4 sm:$0xff] %v2174
        %2616 = vst [vmem:[%s2354] ss:$4 sm:$0xff] %v2178
        %2617 = vst [vmem:[%s2356] ss:$4 sm:$0xff] %v2182
        %v2618 = vld.sshfl [vmem:[#allocation1] sm:$0xff pattern:$0x73625140]
        %v2619 = vld.sshfl [vmem:[#allocation1 + $0x20] sm:$0xff pattern:$0x73625140]
        %2620 = vst [vmem:[#allocation1] ss:$4 sm:$0xff] %v2186
        %2621 = vst [vmem:[%s2344] ss:$4 sm:$0xff] %v2190
        %2622 = vst [vmem:[%s2346] ss:$4 sm:$0xff] %v2194
        %2623 = vst [vmem:[%s2348] ss:$4 sm:$0xff] %v2198
        %2624 = vst [vmem:[%s2350] ss:$4 sm:$0xff] %v2202
        %2625 = vst [vmem:[%s2352] ss:$4 sm:$0xff] %v2206
        %2626 = vst [vmem:[%s2354] ss:$4 sm:$0xff] %v2210
        %2627 = vst [vmem:[%s2356] ss:$4 sm:$0xff] %v2214
        %v2628 = vld.sshfl [vmem:[#allocation1] sm:$0xff pattern:$0x73625140]
        %v2629 = vld.sshfl [vmem:[#allocation1 + $0x20] sm:$0xff pattern:$0x73625140]
        %2630 = vst [vmem:[#allocation1] ss:$4 sm:$0xff] %v2218
        %2631 = vst [vmem:[%s2344] ss:$4 sm:$0xff] %v2222
        %2632 = vst [vmem:[%s2346] ss:$4 sm:$0xff] %v2226
        %2633 = vst [vmem:[%s2348] ss:$4 sm:$0xff] %v2230
        %2634 = vst [vmem:[%s2350] ss:$4 sm:$0xff] %v2234
        %2635 = vst [vmem:[%s2352] ss:$4 sm:$0xff] %v2238
        %2636 = vst [vmem:[%s2354] ss:$4 sm:$0xff] %v2242
        %2637 = vst [vmem:[%s2356] ss:$4 sm:$0xff] %v2246
        %v2638 = vld.sshfl [vmem:[#allocation1] sm:$0xff pattern:$0x73625140]
        %v2639 = vld.sshfl [vmem:[#allocation1 + $0x20] sm:$0xff pattern:$0x73625140]
        %2640 = vst [vmem:[#allocation1] ss:$4 sm:$0xff] %v2250
        %2641 = vst [vmem:[%s2344] ss:$4 sm:$0xff] %v2254
        %2642 = vst [vmem:[%s2346] ss:$4 sm:$0xff] %v2258
        %2643 = vst [vmem:[%s2348] ss:$4 sm:$0xff] %v2262
        %2644 = vst [vmem:[%s2350] ss:$4 sm:$0xff] %v2266
        %2645 = vst [vmem:[%s2352] ss:$4 sm:$0xff] %v2270
        %2646 = vst [vmem:[%s2354] ss:$4 sm:$0xff] %v2274
        %2647 = vst [vmem:[%s2356] ss:$4 sm:$0xff] %v2278
        %v2648 = vld.sshfl [vmem:[#allocation1] sm:$0xff pattern:$0x73625140]
        %v2649 = vld.sshfl [vmem:[#allocation1 + $0x20] sm:$0xff pattern:$0x73625140]
        %2650 = vst [vmem:[#allocation1] ss:$4 sm:$0xff] %v2282
        %2651 = vst [vmem:[%s2344] ss:$4 sm:$0xff] %v2286
        %2652 = vst [vmem:[%s2346] ss:$4 sm:$0xff] %v2290
        %2653 = vst [vmem:[%s2348] ss:$4 sm:$0xff] %v2294
        %2654 = vst [vmem:[%s2350] ss:$4 sm:$0xff] %v2298
        %2655 = vst [vmem:[%s2352] ss:$4 sm:$0xff] %v2302
        %2656 = vst [vmem:[%s2354] ss:$4 sm:$0xff] %v2306
        %2657 = vst [vmem:[%s2356] ss:$4 sm:$0xff] %v2310
        %v2658 = vld.sshfl [vmem:[#allocation1] sm:$0xff pattern:$0x73625140]
        %v2659 = vld.sshfl [vmem:[#allocation1 + $0x20] sm:$0xff pattern:$0x73625140]
        %2660 = vst [vmem:[#allocation1] ss:$4 sm:$0xff] %v2314
        %2661 = vst [vmem:[%s2344] ss:$4 sm:$0xff] %v2318
        %2662 = vst [vmem:[%s2346] ss:$4 sm:$0xff] %v2322
        %2663 = vst [vmem:[%s2348] ss:$4 sm:$0xff] %v2326
        %2664 = vst [vmem:[%s2350] ss:$4 sm:$0xff] %v2330
        %2665 = vst [vmem:[%s2352] ss:$4 sm:$0xff] %v2334
        %2666 = vst [vmem:[%s2354] ss:$4 sm:$0xff] %v2338
        %2667 = vst [vmem:[%s2356] ss:$4 sm:$0xff] %v2342
        %v2668 = vld.sshfl [vmem:[#allocation1] sm:$0xff pattern:$0x73625140]
        %v2669 = vld.sshfl [vmem:[#allocation1 + $0x20] sm:$0xff pattern:$0x73625140]
        %2670 = vset.pattern.permute.xlu0 0
        %2671 = vperm.xlu0 %2670, %v2358
        %v2672 = vpop.permute.xlu0 %2671
        %2673 = vset.pattern.permute.xlu0 0
        %2674 = vperm.xlu0 %2673, %v2359
        %v2675 = vpop.permute.xlu0 %2674
        %2676 = vset.pattern.permute.xlu0 0
        %2677 = vperm.xlu0 %2676, %v2368
        %v2678 = vpop.permute.xlu0 %2677
        %2679 = vset.pattern.permute.xlu0 0
        %2680 = vperm.xlu0 %2679, %v2369
        %v2681 = vpop.permute.xlu0 %2680
        %2682 = vset.pattern.permute.xlu0 0
        %2683 = vperm.xlu0 %2682, %v2378
        %v2684 = vpop.permute.xlu0 %2683
        %2685 = vset.pattern.permute.xlu0 0
        %2686 = vperm.xlu0 %2685, %v2379
        %v2687 = vpop.permute.xlu0 %2686
        %2688 = vset.pattern.permute.xlu0 0
        %2689 = vperm.xlu0 %2688, %v2388
        %v2690 = vpop.permute.xlu0 %2689
        %2691 = vset.pattern.permute.xlu0 0
        %2692 = vperm.xlu0 %2691, %v2389
        %v2693 = vpop.permute.xlu0 %2692
        %2694 = vset.pattern.permute.xlu0 0
        %2695 = vperm.xlu0 %2694, %v2398
        %v2696 = vpop.permute.xlu0 %2695
        %2697 = vset.pattern.permute.xlu0 0
        %2698 = vperm.xlu0 %2697, %v2399
        %v2699 = vpop.permute.xlu0 %2698
        %2700 = vset.pattern.permute.xlu0 0
        %2701 = vperm.xlu0 %2700, %v2408
        %v2702 = vpop.permute.xlu0 %2701
        %2703 = vset.pattern.permute.xlu0 0
        %2704 = vperm.xlu0 %2703, %v2409
        %v2705 = vpop.permute.xlu0 %2704
        %2706 = vset.pattern.permute.xlu0 0
        %2707 = vperm.xlu0 %2706, %v2418
        %v2708 = vpop.permute.xlu0 %2707
        %2709 = vset.pattern.permute.xlu0 0
        %2710 = vperm.xlu0 %2709, %v2419
        %v2711 = vpop.permute.xlu0 %2710
        %2712 = vset.pattern.permute.xlu0 0
        %2713 = vperm.xlu0 %2712, %v2428
        %v2714 = vpop.permute.xlu0 %2713
        %2715 = vset.pattern.permute.xlu0 0
        %2716 = vperm.xlu0 %2715, %v2429
        %v2717 = vpop.permute.xlu0 %2716
        %2718 = vset.pattern.permute.xlu0 0
        %2719 = vperm.xlu0 %2718, %v2438
        %v2720 = vpop.permute.xlu0 %2719
        %2721 = vset.pattern.permute.xlu0 0
        %2722 = vperm.xlu0 %2721, %v2439
        %v2723 = vpop.permute.xlu0 %2722
        %2724 = vset.pattern.permute.xlu0 0
        %2725 = vperm.xlu0 %2724, %v2448
        %v2726 = vpop.permute.xlu0 %2725
        %2727 = vset.pattern.permute.xlu0 0
        %2728 = vperm.xlu0 %2727, %v2449
        %v2729 = vpop.permute.xlu0 %2728
        %2730 = vset.pattern.permute.xlu0 0
        %2731 = vperm.xlu0 %2730, %v2458
        %v2732 = vpop.permute.xlu0 %2731
        %2733 = vset.pattern.permute.xlu0 0
        %2734 = vperm.xlu0 %2733, %v2459
        %v2735 = vpop.permute.xlu0 %2734
        %2736 = vset.pattern.permute.xlu0 0
        %2737 = vperm.xlu0 %2736, %v2468
        %v2738 = vpop.permute.xlu0 %2737
        %2739 = vset.pattern.permute.xlu0 0
        %2740 = vperm.xlu0 %2739, %v2469
        %v2741 = vpop.permute.xlu0 %2740
        %2742 = vset.pattern.permute.xlu0 0
        %2743 = vperm.xlu0 %2742, %v2478
        %v2744 = vpop.permute.xlu0 %2743
        %2745 = vset.pattern.permute.xlu0 0
        %2746 = vperm.xlu0 %2745, %v2479
        %v2747 = vpop.permute.xlu0 %2746
        %2748 = vset.pattern.permute.xlu0 0
        %2749 = vperm.xlu0 %2748, %v2488
        %v2750 = vpop.permute.xlu0 %2749
        %2751 = vset.pattern.permute.xlu0 0
        %2752 = vperm.xlu0 %2751, %v2489
        %v2753 = vpop.permute.xlu0 %2752
        %2754 = vset.pattern.permute.xlu0 0
        %2755 = vperm.xlu0 %2754, %v2498
        %v2756 = vpop.permute.xlu0 %2755
        %2757 = vset.pattern.permute.xlu0 0
        %2758 = vperm.xlu0 %2757, %v2499
        %v2759 = vpop.permute.xlu0 %2758
        %2760 = vset.pattern.permute.xlu0 0
        %2761 = vperm.xlu0 %2760, %v2508
        %v2762 = vpop.permute.xlu0 %2761
        %2763 = vset.pattern.permute.xlu0 0
        %2764 = vperm.xlu0 %2763, %v2509
        %v2765 = vpop.permute.xlu0 %2764
        %2766 = vset.pattern.permute.xlu0 0
        %2767 = vperm.xlu0 %2766, %v2518
        %v2768 = vpop.permute.xlu0 %2767
        %2769 = vset.pattern.permute.xlu0 0
        %2770 = vperm.xlu0 %2769, %v2519
        %v2771 = vpop.permute.xlu0 %2770
        %2772 = vset.pattern.permute.xlu0 0
        %2773 = vperm.xlu0 %2772, %v2528
        %v2774 = vpop.permute.xlu0 %2773
        %2775 = vset.pattern.permute.xlu0 0
        %2776 = vperm.xlu0 %2775, %v2529
        %v2777 = vpop.permute.xlu0 %2776
        %2778 = vset.pattern.permute.xlu0 0
        %2779 = vperm.xlu0 %2778, %v2538
        %v2780 = vpop.permute.xlu0 %2779
        %2781 = vset.pattern.permute.xlu0 0
        %2782 = vperm.xlu0 %2781, %v2539
        %v2783 = vpop.permute.xlu0 %2782
        %2784 = vset.pattern.permute.xlu0 0
        %2785 = vperm.xlu0 %2784, %v2548
        %v2786 = vpop.permute.xlu0 %2785
        %2787 = vset.pattern.permute.xlu0 0
        %2788 = vperm.xlu0 %2787, %v2549
        %v2789 = vpop.permute.xlu0 %2788
        %2790 = vset.pattern.permute.xlu0 0
        %2791 = vperm.xlu0 %2790, %v2558
        %v2792 = vpop.permute.xlu0 %2791
        %2793 = vset.pattern.permute.xlu0 0
        %2794 = vperm.xlu0 %2793, %v2559
        %v2795 = vpop.permute.xlu0 %2794
        %2796 = vset.pattern.permute.xlu0 0
        %2797 = vperm.xlu0 %2796, %v2568
        %v2798 = vpop.permute.xlu0 %2797
        %2799 = vset.pattern.permute.xlu0 0
        %2800 = vperm.xlu0 %2799, %v2569
        %v2801 = vpop.permute.xlu0 %2800
        %2802 = vset.pattern.permute.xlu0 0
        %2803 = vperm.xlu0 %2802, %v2578
        %v2804 = vpop.permute.xlu0 %2803
        %2805 = vset.pattern.permute.xlu0 0
        %2806 = vperm.xlu0 %2805, %v2579
        %v2807 = vpop.permute.xlu0 %2806
        %2808 = vset.pattern.permute.xlu0 0
        %2809 = vperm.xlu0 %2808, %v2588
        %v2810 = vpop.permute.xlu0 %2809
        %2811 = vset.pattern.permute.xlu0 0
        %2812 = vperm.xlu0 %2811, %v2589
        %v2813 = vpop.permute.xlu0 %2812
        %2814 = vset.pattern.permute.xlu0 0
        %2815 = vperm.xlu0 %2814, %v2598
        %v2816 = vpop.permute.xlu0 %2815
        %2817 = vset.pattern.permute.xlu0 0
        %2818 = vperm.xlu0 %2817, %v2599
        %v2819 = vpop.permute.xlu0 %2818
        %2820 = vset.pattern.permute.xlu0 0
        %2821 = vperm.xlu0 %2820, %v2608
        %v2822 = vpop.permute.xlu0 %2821
        %2823 = vset.pattern.permute.xlu0 0
        %2824 = vperm.xlu0 %2823, %v2609
        %v2825 = vpop.permute.xlu0 %2824
        %2826 = vset.pattern.permute.xlu0 0
        %2827 = vperm.xlu0 %2826, %v2618
        %v2828 = vpop.permute.xlu0 %2827
        %2829 = vset.pattern.permute.xlu0 0
        %2830 = vperm.xlu0 %2829, %v2619
        %v2831 = vpop.permute.xlu0 %2830
        %2832 = vset.pattern.permute.xlu0 0
        %2833 = vperm.xlu0 %2832, %v2628
        %v2834 = vpop.permute.xlu0 %2833
        %2835 = vset.pattern.permute.xlu0 0
        %2836 = vperm.xlu0 %2835, %v2629
        %v2837 = vpop.permute.xlu0 %2836
        %2838 = vset.pattern.permute.xlu0 0
        %2839 = vperm.xlu0 %2838, %v2638
        %v2840 = vpop.permute.xlu0 %2839
        %2841 = vset.pattern.permute.xlu0 0
        %2842 = vperm.xlu0 %2841, %v2639
        %v2843 = vpop.permute.xlu0 %2842
        %2844 = vset.pattern.permute.xlu0 0
        %2845 = vperm.xlu0 %2844, %v2648
        %v2846 = vpop.permute.xlu0 %2845
        %2847 = vset.pattern.permute.xlu0 0
        %2848 = vperm.xlu0 %2847, %v2649
        %v2849 = vpop.permute.xlu0 %2848
        %2850 = vset.pattern.permute.xlu0 0
        %2851 = vperm.xlu0 %2850, %v2658
        %v2852 = vpop.permute.xlu0 %2851
        %2853 = vset.pattern.permute.xlu0 0
        %2854 = vperm.xlu0 %2853, %v2659
        %v2855 = vpop.permute.xlu0 %2854
        %2856 = vset.pattern.permute.xlu0 0
        %2857 = vperm.xlu0 %2856, %v2668
        %v2858 = vpop.permute.xlu0 %2857
        %2859 = vset.pattern.permute.xlu0 0
        %2860 = vperm.xlu0 %2859, %v2669
        %v2861 = vpop.permute.xlu0 %2860
        %v2862 = vlaneseq
        %v2863 = vand.u32 %v2862, 127
        %v2864 = vperm.slane %v2672, %v2863
        %v2865 = vadd.s32 %v2863, 4294967288
        %v2866 = vperm.slane %v2675, %v2865
        %vm2867 = vcmask 130112
        %v2868 = vsel %vm2867, %v2866, %v2864
        %v2869 = vadd.s32 %v2863, 4294967280
        %v2870 = vperm.slane %v2678, %v2869
        %vm2871 = vcmask 195712
        %v2872 = vsel %vm2871, %v2870, %v2868
        %v2873 = vadd.s32 %v2863, 4294967272
        %v2874 = vperm.slane %v2681, %v2873
        %vm2875 = vcmask 261312
        %v2876 = vsel %vm2875, %v2874, %v2872
        %v2877 = vadd.s32 %v2863, 4294967264
        %v2878 = vperm.slane %v2684, %v2877
        %vm2879 = vcmask 326912
        %v2880 = vsel %vm2879, %v2878, %v2876
        %v2881 = vadd.s32 %v2863, 4294967256
        %v2882 = vperm.slane %v2687, %v2881
        %vm2883 = vcmask 392512
        %v2884 = vsel %vm2883, %v2882, %v2880
        %v2885 = vadd.s32 %v2863, 4294967248
        %v2886 = vperm.slane %v2690, %v2885
        %vm2887 = vcmask 458112
        %v2888 = vsel %vm2887, %v2886, %v2884
        %v2889 = vadd.s32 %v2863, 4294967240
        %v2890 = vperm.slane %v2693, %v2889
        %vm2891 = vcmask 523712
        %v2892 = vsel %vm2891, %v2890, %v2888
        %v2893 = vadd.s32 %v2863, 4294967232
        %v2894 = vperm.slane %v2696, %v2893
        %vm2895 = vcmask 589312
        %v2896 = vsel %vm2895, %v2894, %v2892
        %v2897 = vadd.s32 %v2863, 4294967224
        %v2898 = vperm.slane %v2699, %v2897
        %vm2899 = vcmask 654912
        %v2900 = vsel %vm2899, %v2898, %v2896
        %v2901 = vadd.s32 %v2863, 4294967216
        %v2902 = vperm.slane %v2702, %v2901
        %vm2903 = vcmask 720512
        %v2904 = vsel %vm2903, %v2902, %v2900
        %v2905 = vadd.s32 %v2863, 4294967208
        %v2906 = vperm.slane %v2705, %v2905
        %vm2907 = vcmask 786112
        %v2908 = vsel %vm2907, %v2906, %v2904
        %v2909 = vadd.s32 %v2863, 4294967200
        %v2910 = vperm.slane %v2708, %v2909
        %vm2911 = vcmask 851712
        %v2912 = vsel %vm2911, %v2910, %v2908
        %v2913 = vadd.s32 %v2863, 4294967192
        %v2914 = vperm.slane %v2711, %v2913
        %vm2915 = vcmask 917312
        %v2916 = vsel %vm2915, %v2914, %v2912
        %v2917 = vadd.s32 %v2863, 4294967184
        %v2918 = vperm.slane %v2714, %v2917
        %vm2919 = vcmask 982912
        %v2920 = vsel %vm2919, %v2918, %v2916
        %v2921 = vadd.s32 %v2863, 4294967176
        %v2922 = vperm.slane %v2717, %v2921
        %vm2923 = vcmask 1048512
        %v2924 = vsel %vm2923, %v2922, %v2920
        %v2925 = vperm.slane %v2720, %v2863
        %v2926 = vperm.slane %v2723, %v2865
        %v2927 = vsel %vm2867, %v2926, %v2925
        %v2928 = vperm.slane %v2726, %v2869
        %v2929 = vsel %vm2871, %v2928, %v2927
        %v2930 = vperm.slane %v2729, %v2873
        %v2931 = vsel %vm2875, %v2930, %v2929
        %v2932 = vperm.slane %v2732, %v2877
        %v2933 = vsel %vm2879, %v2932, %v2931
        %v2934 = vperm.slane %v2735, %v2881
        %v2935 = vsel %vm2883, %v2934, %v2933
        %v2936 = vperm.slane %v2738, %v2885
        %v2937 = vsel %vm2887, %v2936, %v2935
        %v2938 = vperm.slane %v2741, %v2889
        %v2939 = vsel %vm2891, %v2938, %v2937
        %v2940 = vperm.slane %v2744, %v2893
        %v2941 = vsel %vm2895, %v2940, %v2939
        %v2942 = vperm.slane %v2747, %v2897
        %v2943 = vsel %vm2899, %v2942, %v2941
        %v2944 = vperm.slane %v2750, %v2901
        %v2945 = vsel %vm2903, %v2944, %v2943
        %v2946 = vperm.slane %v2753, %v2905
        %v2947 = vsel %vm2907, %v2946, %v2945
        %v2948 = vperm.slane %v2756, %v2909
        %v2949 = vsel %vm2911, %v2948, %v2947
        %v2950 = vperm.slane %v2759, %v2913
        %v2951 = vsel %vm2915, %v2950, %v2949
        %v2952 = vperm.slane %v2762, %v2917
        %v2953 = vsel %vm2919, %v2952, %v2951
        %v2954 = vperm.slane %v2765, %v2921
        %v2955 = vsel %vm2923, %v2954, %v2953
        %v2956 = vperm.slane %v2768, %v2863
        %v2957 = vperm.slane %v2771, %v2865
        %v2958 = vsel %vm2867, %v2957, %v2956
        %v2959 = vperm.slane %v2774, %v2869
        %v2960 = vsel %vm2871, %v2959, %v2958
        %v2961 = vperm.slane %v2777, %v2873
        %v2962 = vsel %vm2875, %v2961, %v2960
        %v2963 = vperm.slane %v2780, %v2877
        %v2964 = vsel %vm2879, %v2963, %v2962
        %v2965 = vperm.slane %v2783, %v2881
        %v2966 = vsel %vm2883, %v2965, %v2964
        %v2967 = vperm.slane %v2786, %v2885
        %v2968 = vsel %vm2887, %v2967, %v2966
        %v2969 = vperm.slane %v2789, %v2889
        %v2970 = vsel %vm2891, %v2969, %v2968
        %v2971 = vperm.slane %v2792, %v2893
        %v2972 = vsel %vm2895, %v2971, %v2970
        %v2973 = vperm.slane %v2795, %v2897
        %v2974 = vsel %vm2899, %v2973, %v2972
        %v2975 = vperm.slane %v2798, %v2901
        %v2976 = vsel %vm2903, %v2975, %v2974
        %v2977 = vperm.slane %v2801, %v2905
        %v2978 = vsel %vm2907, %v2977, %v2976
        %v2979 = vperm.slane %v2804, %v2909
        %v2980 = vsel %vm2911, %v2979, %v2978
        %v2981 = vperm.slane %v2807, %v2913
        %v2982 = vsel %vm2915, %v2981, %v2980
        %v2983 = vperm.slane %v2810, %v2917
        %v2984 = vsel %vm2919, %v2983, %v2982
        %v2985 = vperm.slane %v2813, %v2921
        %v2986 = vsel %vm2923, %v2985, %v2984
        %v2987 = vperm.slane %v2816, %v2863
        %v2988 = vperm.slane %v2819, %v2865
        %v2989 = vsel %vm2867, %v2988, %v2987
        %v2990 = vperm.slane %v2822, %v2869
        %v2991 = vsel %vm2871, %v2990, %v2989
        %v2992 = vperm.slane %v2825, %v2873
        %v2993 = vsel %vm2875, %v2992, %v2991
        %v2994 = vperm.slane %v2828, %v2877
        %v2995 = vsel %vm2879, %v2994, %v2993
        %v2996 = vperm.slane %v2831, %v2881
        %v2997 = vsel %vm2883, %v2996, %v2995
        %v2998 = vperm.slane %v2834, %v2885
        %v2999 = vsel %vm2887, %v2998, %v2997
        %v3000 = vperm.slane %v2837, %v2889
        %v3001 = vsel %vm2891, %v3000, %v2999
        %v3002 = vperm.slane %v2840, %v2893
        %v3003 = vsel %vm2895, %v3002, %v3001
        %v3004 = vperm.slane %v2843, %v2897
        %v3005 = vsel %vm2899, %v3004, %v3003
        %v3006 = vperm.slane %v2846, %v2901
        %v3007 = vsel %vm2903, %v3006, %v3005
        %v3008 = vperm.slane %v2849, %v2905
        %v3009 = vsel %vm2907, %v3008, %v3007
        %v3010 = vperm.slane %v2852, %v2909
        %v3011 = vsel %vm2911, %v3010, %v3009
        %v3012 = vperm.slane %v2855, %v2913
        %v3013 = vsel %vm2915, %v3012, %v3011
        %v3014 = vperm.slane %v2858, %v2917
        %v3015 = vsel %vm2919, %v3014, %v3013
        %v3016 = vperm.slane %v2861, %v2921
        %v3017 = vsel %vm2923, %v3016, %v3015
        %vm3018 = vcmask 1041409
        %v3019 = vsel %vm3018, %v2986, %v2924
        %v3020 = vsel %vm3018, %v3017, %v2955
        %v3021 = vrot.slane %v3020, 6
        %v3022 = vsel %vm731, %v3019, %v3021
        %v3024 = vsel %vm1254, %v3022, -1e+30
        %3026 = vst [vmem:[#allocation1] ss:$4 sm:$0xff] %v3024
        %v3027 = vld.sshfl [vmem:[#allocation1] sm:$0xff pattern:$0x73625140]
        %v3028 = vld.sshfl [vmem:[#allocation1 + $0x8] sm:$0xff pattern:$0x73625140]
        %v3031 = vsel %vm731, %v3027, -inf
        %v3032 = vsel %vm731, %v3028, -inf
        %v3033 = vmax.f32 %v3031, %v3032
        %3034 = vmax.xlane.f32.xlu0 %v3033
        %v3035 = vpop.xlane.xlu0 %3034
        %v3038 = vunpack.c.l.s4 269488144
        %v3039 = vunpack.c.0.s8 %v3038
        %v3040 = vperm.slane %v3035, %v3039
        %v3042 = vsub.f32 %v3024, %v3040
        %v3043 = vmul.f32 %v3042, 1.442695
        %v3044 = vpow.pop %v3043
        %v3045 = vsel %vm1254, 1.0, 0.0
        %v3046 = vmul.f32 %v3044, %v3045
        %3048 = vst [vmem:[#allocation1] ss:$4 sm:$0xff] %v3046
        %v3049 = vld.sshfl [vmem:[#allocation1] sm:$0xff pattern:$0x73625140]
        %v3050 = vld.sshfl [vmem:[#allocation1 + $0x8] sm:$0xff pattern:$0x73625140]
        %v3053 = vsel %vm731, %v3049, 0.0
        %v3054 = vsel %vm731, %v3050, 0.0
        %v3055 = vadd.f32 %v3053, %v3054
        %3056 = vadd.xlane.f32.xlu0 %v3055
        %v3057 = vpop.xlane.xlu0 %3056
        %v3058 = vadd.f32 %v3057, 1e-10
        %v3061 = vunpack.c.l.s4 269488144
        %v3062 = vunpack.c.0.s8 %v3061
        %v3063 = vperm.slane %v3058, %v3062
        %v3065 = vrcp.pop %v3063
        %v3066 = vmul.f32 %v3063, %v3065
        %v3067 = vsub.f32 1.0, %v3066
        %v3068 = vmul.f32 %v3065, %v3067
        %v3069 = vadd.f32 %v3065, %v3068
        %vm3070 = vweird.f32 %v3063
        %vm3071 = vweird.f32 %v3065
        %vm3072 = vmor %vm3070, %vm3071
        %v3073 = vsel %vm3072, %v3065, %v3069
        %v3074 = vand.u32 2147483647, %v3063
        %vm3075 = vcmp.eq.f32.partialorder %v3074, 8.507059e+37
        %v3076 = vand.u32 %v3063, 2147483648
        %v3077 = vor.u32 1.1754944e-38, %v3076
        %v3078 = vsel %vm3075, %v3077, %v3073
        %v3079 = vmul.f32 %v3046, %v3078
        %v3081 = vrot.slane %v3079, 1
        %v3082 = vrot.slane %v3079, 2
        %v3083 = vrot.slane %v3079, 3
        %vm3084 = vcmask 1040384
        %v3085 = vsel %vm3084, %v3079, %v3081
        %vm3086 = vcmask 1042434
        %v3087 = vsel %vm3086, %v3082, %v3083
        %v3088 = vsel %vm731, %v3085, %v3087
        %v3089 = vsel %vm3018, %v3079, %v3081
        %vm3090 = vcmask 1043459
        %v3091 = vsel %vm3090, %v3082, %v3083
        %vm3092 = vcmask 1042433
        %v3093 = vsel %vm3092, %v3089, %v3091
        %v3094 = vrot.slane %v3093, 1
        %v3095 = vperm.slane %v3088, 0
        %v3096 = vperm.slane %v3088, 1
        %v3097 = vperm.slane %v3094, 0
        %v3098 = vperm.slane %v3094, 1
        %v3103 = vpack.c.bf16 %v3096, %v3095
        %v3104 = vpack.c.bf16 %v3098, %v3097
        %v3105 = vld [vmem:[%s0] sm:$0xff]
        %v3106 = vld [vmem:[%s0 + $0x8] sm:$0xff]
        %v3107 = vld [vmem:[%s0 + $0x10] sm:$0xff]
        %v3108 = vld [vmem:[%s0 + $0x18] sm:$0xff]
        %v3109 = vld [vmem:[%s0 + $0x20] sm:$0xff]
        %v3110 = vld [vmem:[%s0 + $0x28] sm:$0xff]
        %v3111 = vld [vmem:[%s0 + $0x30] sm:$0xff]
        %v3112 = vld [vmem:[%s0 + $0x38] sm:$0xff]
        %v3113 = vld [vmem:[%s0 + $0x40] sm:$0xff]
        %v3114 = vld [vmem:[%s0 + $0x48] sm:$0xff]
        %v3115 = vld [vmem:[%s0 + $0x50] sm:$0xff]
        %v3116 = vld [vmem:[%s0 + $0x58] sm:$0xff]
        %v3117 = vld [vmem:[%s0 + $0x60] sm:$0xff]
        %v3118 = vld [vmem:[%s0 + $0x68] sm:$0xff]
        %v3119 = vld [vmem:[%s0 + $0x70] sm:$0xff]
        %v3120 = vld [vmem:[%s0 + $0x78] sm:$0xff]
        %v3121 = vld [vmem:[%s0 + $0x80] sm:$0xff]
        %v3122 = vld [vmem:[%s0 + $0x88] sm:$0xff]
        %v3123 = vld [vmem:[%s0 + $0x90] sm:$0xff]
        %v3124 = vld [vmem:[%s0 + $0x98] sm:$0xff]
        %v3125 = vld [vmem:[%s0 + $0xa0] sm:$0xff]
        %v3126 = vld [vmem:[%s0 + $0xa8] sm:$0xff]
        %v3127 = vld [vmem:[%s0 + $0xb0] sm:$0xff]
        %v3128 = vld [vmem:[%s0 + $0xb8] sm:$0xff]
        %v3129 = vld [vmem:[%s0 + $0xc0] sm:$0xff]
        %v3130 = vld [vmem:[%s0 + $0xc8] sm:$0xff]
        %v3131 = vld [vmem:[%s0 + $0xd0] sm:$0xff]
        %v3132 = vld [vmem:[%s0 + $0xd8] sm:$0xff]
        %v3133 = vld [vmem:[%s0 + $0xe0] sm:$0xff]
        %v3134 = vld [vmem:[%s0 + $0xe8] sm:$0xff]
        %v3135 = vld [vmem:[%s0 + $0xf0] sm:$0xff]
        %v3136 = vld [vmem:[%s0 + $0xf8] sm:$0xff]
        %v3137 = vld [vmem:[%s0 + $0x100] sm:$0xff]
        %v3138 = vld [vmem:[%s0 + $0x108] sm:$0xff]
        %v3139 = vld [vmem:[%s0 + $0x110] sm:$0xff]
        %v3140 = vld [vmem:[%s0 + $0x118] sm:$0xff]
        %v3141 = vld [vmem:[%s0 + $0x120] sm:$0xff]
        %v3142 = vld [vmem:[%s0 + $0x128] sm:$0xff]
        %v3143 = vld [vmem:[%s0 + $0x130] sm:$0xff]
        %v3144 = vld [vmem:[%s0 + $0x138] sm:$0xff]
        %v3145 = vld [vmem:[%s0 + $0x140] sm:$0xff]
        %v3146 = vld [vmem:[%s0 + $0x148] sm:$0xff]
        %v3147 = vld [vmem:[%s0 + $0x150] sm:$0xff]
        %v3148 = vld [vmem:[%s0 + $0x158] sm:$0xff]
        %v3149 = vld [vmem:[%s0 + $0x160] sm:$0xff]
        %v3150 = vld [vmem:[%s0 + $0x168] sm:$0xff]
        %v3151 = vld [vmem:[%s0 + $0x170] sm:$0xff]
        %v3152 = vld [vmem:[%s0 + $0x178] sm:$0xff]
        %v3153 = vld [vmem:[%s0 + $0x180] sm:$0xff]
        %v3154 = vld [vmem:[%s0 + $0x188] sm:$0xff]
        %v3155 = vld [vmem:[%s0 + $0x190] sm:$0xff]
        %v3156 = vld [vmem:[%s0 + $0x198] sm:$0xff]
        %v3157 = vld [vmem:[%s0 + $0x1a0] sm:$0xff]
        %v3158 = vld [vmem:[%s0 + $0x1a8] sm:$0xff]
        %v3159 = vld [vmem:[%s0 + $0x1b0] sm:$0xff]
        %v3160 = vld [vmem:[%s0 + $0x1b8] sm:$0xff]
        %v3161 = vld [vmem:[%s0 + $0x1c0] sm:$0xff]
        %v3162 = vld [vmem:[%s0 + $0x1c8] sm:$0xff]
        %v3163 = vld [vmem:[%s0 + $0x1d0] sm:$0xff]
        %v3164 = vld [vmem:[%s0 + $0x1d8] sm:$0xff]
        %v3165 = vld [vmem:[%s0 + $0x1e0] sm:$0xff]
        %v3166 = vld [vmem:[%s0 + $0x1e8] sm:$0xff]
        %v3167 = vld [vmem:[%s0 + $0x1f0] sm:$0xff]
        %v3168 = vld [vmem:[%s0 + $0x1f8] sm:$0xff]
        %v3169 = vpack.c.bf16 %v3105, %v3105
        %v3170 = vpack.c.bf16 %v3106, %v3106
        %v3171 = vpack.c.bf16 %v3107, %v3107
        %v3172 = vpack.c.bf16 %v3108, %v3108
        %v3173 = vpack.c.bf16 %v3109, %v3109
        %v3174 = vpack.c.bf16 %v3110, %v3110
        %v3175 = vpack.c.bf16 %v3111, %v3111
        %v3176 = vpack.c.bf16 %v3112, %v3112
        %v3177 = vpack.c.bf16 %v3113, %v3113
        %v3178 = vpack.c.bf16 %v3114, %v3114
        %v3179 = vpack.c.bf16 %v3115, %v3115
        %v3180 = vpack.c.bf16 %v3116, %v3116
        %v3181 = vpack.c.bf16 %v3117, %v3117
        %v3182 = vpack.c.bf16 %v3118, %v3118
        %v3183 = vpack.c.bf16 %v3119, %v3119
        %v3184 = vpack.c.bf16 %v3120, %v3120
        %v3185 = vpack.c.bf16 %v3121, %v3121
        %v3186 = vpack.c.bf16 %v3122, %v3122
        %v3187 = vpack.c.bf16 %v3123, %v3123
        %v3188 = vpack.c.bf16 %v3124, %v3124
        %v3189 = vpack.c.bf16 %v3125, %v3125
        %v3190 = vpack.c.bf16 %v3126, %v3126
        %v3191 = vpack.c.bf16 %v3127, %v3127
        %v3192 = vpack.c.bf16 %v3128, %v3128
        %v3193 = vpack.c.bf16 %v3129, %v3129
        %v3194 = vpack.c.bf16 %v3130, %v3130
        %v3195 = vpack.c.bf16 %v3131, %v3131
        %v3196 = vpack.c.bf16 %v3132, %v3132
        %v3197 = vpack.c.bf16 %v3133, %v3133
        %v3198 = vpack.c.bf16 %v3134, %v3134
        %v3199 = vpack.c.bf16 %v3135, %v3135
        %v3200 = vpack.c.bf16 %v3136, %v3136
        %v3201 = vpack.c.bf16 %v3137, %v3137
        %v3202 = vpack.c.bf16 %v3138, %v3138
        %v3203 = vpack.c.bf16 %v3139, %v3139
        %v3204 = vpack.c.bf16 %v3140, %v3140
        %v3205 = vpack.c.bf16 %v3141, %v3141
        %v3206 = vpack.c.bf16 %v3142, %v3142
        %v3207 = vpack.c.bf16 %v3143, %v3143
        %v3208 = vpack.c.bf16 %v3144, %v3144
        %v3209 = vpack.c.bf16 %v3145, %v3145
        %v3210 = vpack.c.bf16 %v3146, %v3146
        %v3211 = vpack.c.bf16 %v3147, %v3147
        %v3212 = vpack.c.bf16 %v3148, %v3148
        %v3213 = vpack.c.bf16 %v3149, %v3149
        %v3214 = vpack.c.bf16 %v3150, %v3150
        %v3215 = vpack.c.bf16 %v3151, %v3151
        %v3216 = vpack.c.bf16 %v3152, %v3152
        %v3217 = vpack.c.bf16 %v3153, %v3153
        %v3218 = vpack.c.bf16 %v3154, %v3154
        %v3219 = vpack.c.bf16 %v3155, %v3155
        %v3220 = vpack.c.bf16 %v3156, %v3156
        %v3221 = vpack.c.bf16 %v3157, %v3157
        %v3222 = vpack.c.bf16 %v3158, %v3158
        %v3223 = vpack.c.bf16 %v3159, %v3159
        %v3224 = vpack.c.bf16 %v3160, %v3160
        %v3225 = vpack.c.bf16 %v3161, %v3161
        %v3226 = vpack.c.bf16 %v3162, %v3162
        %v3227 = vpack.c.bf16 %v3163, %v3163
        %v3228 = vpack.c.bf16 %v3164, %v3164
        %v3229 = vpack.c.bf16 %v3165, %v3165
        %v3230 = vpack.c.bf16 %v3166, %v3166
        %v3231 = vpack.c.bf16 %v3167, %v3167
        %v3232 = vpack.c.bf16 %v3168, %v3168
        %v3234 = vunpack.c.l.b16 %v3103
        %v3235 = vunpack.c.h.b16 %v3103
        %v3236 = vpack.c.b16 %v3234, %v3234
        %v3237 = vpack.c.b16 %v3235, %v3235
        %v3272 = vunpack.c.l.b16 %v3169
        %v3273 = vunpack.c.l.b16 %v3170
        %v3274 = vunpack.c.l.b16 %v3171
        %v3275 = vunpack.c.l.b16 %v3172
        %v3276 = vunpack.c.l.b16 %v3173
        %v3277 = vunpack.c.l.b16 %v3174
        %v3278 = vunpack.c.l.b16 %v3175
        %v3279 = vunpack.c.l.b16 %v3176
        %v3280 = vunpack.c.l.b16 %v3177
        %v3281 = vunpack.c.l.b16 %v3178
        %v3282 = vunpack.c.l.b16 %v3179
        %v3283 = vunpack.c.l.b16 %v3180
        %v3284 = vunpack.c.l.b16 %v3181
        %v3285 = vunpack.c.l.b16 %v3182
        %v3286 = vunpack.c.l.b16 %v3183
        %v3287 = vunpack.c.l.b16 %v3184
        %v3288 = vunpack.c.l.b16 %v3185
        %v3289 = vunpack.c.l.b16 %v3186
        %v3290 = vunpack.c.l.b16 %v3187
        %v3291 = vunpack.c.l.b16 %v3188
        %v3292 = vunpack.c.l.b16 %v3189
        %v3293 = vunpack.c.l.b16 %v3190
        %v3294 = vunpack.c.l.b16 %v3191
        %v3295 = vunpack.c.l.b16 %v3192
        %v3296 = vunpack.c.l.b16 %v3193
        %v3297 = vunpack.c.l.b16 %v3194
        %v3298 = vunpack.c.l.b16 %v3195
        %v3299 = vunpack.c.l.b16 %v3196
        %v3300 = vunpack.c.l.b16 %v3197
        %v3301 = vunpack.c.l.b16 %v3198
        %v3302 = vunpack.c.l.b16 %v3199
        %v3303 = vunpack.c.l.b16 %v3200
        %v3304 = vpack.c.b16 %v3273, %v3272
        %v3305 = vpack.c.b16 %v3275, %v3274
        %v3306 = vpack.c.b16 %v3277, %v3276
        %v3307 = vpack.c.b16 %v3279, %v3278
        %v3308 = vpack.c.b16 %v3281, %v3280
        %v3309 = vpack.c.b16 %v3283, %v3282
        %v3310 = vpack.c.b16 %v3285, %v3284
        %v3311 = vpack.c.b16 %v3287, %v3286
        %v3312 = vpack.c.b16 %v3289, %v3288
        %v3313 = vpack.c.b16 %v3291, %v3290
        %v3314 = vpack.c.b16 %v3293, %v3292
        %v3315 = vpack.c.b16 %v3295, %v3294
        %v3316 = vpack.c.b16 %v3297, %v3296
        %v3317 = vpack.c.b16 %v3299, %v3298
        %v3318 = vpack.c.b16 %v3301, %v3300
        %v3319 = vpack.c.b16 %v3303, %v3302
        %3336 = vmatpush.bf16.msra.mxu0 %v3311
        %3337 = vmatpush.bf16.msra.mxu0 %v3310
        %3338 = vmatpush.bf16.msra.mxu0 %v3309
        %3339 = vmatpush.bf16.msra.mxu0 %v3308
        %3340 = vmatpush.bf16.msra.mxu0 %v3307
        %3341 = vmatpush.bf16.msra.mxu0 %v3306
        %3342 = vmatpush.bf16.msra.mxu0 %v3305
        %3343 = vmatpush.bf16.msra.mxu0 %v3304
        %3344 = vmatmul.bf16.gmra.mxu0 %v3236
        %v3345 = vpop.f32.mrf.mxu0
        %v3346 = vadd.f32 0.0, %v3345
        %v3347 = vpop.f32.mrf.mxu0
        %3348 = vdwg.mxu0
        %3349 = vmatpush.bf16.msra.mxu0 %v3319
        %3350 = vmatpush.bf16.msra.mxu0 %v3318
        %3351 = vmatpush.bf16.msra.mxu0 %v3317
        %3352 = vmatpush.bf16.msra.mxu0 %v3316
        %3353 = vmatpush.bf16.msra.mxu0 %v3315
        %3354 = vmatpush.bf16.msra.mxu0 %v3314
        %3355 = vmatpush.bf16.msra.mxu0 %v3313
        %3356 = vmatpush.bf16.msra.mxu0 %v3312
        %3357 = vmatmul.bf16.gmra.mxu0 %v3237
        %v3358 = vpop.f32.mrf.mxu0
        %v3359 = vadd.f32 %v3346, %v3358
        %v3360 = vpop.f32.mrf.mxu0
        %3361 = vdwg.mxu0
        %v3363 = vunpack.c.l.b16 %v3104
        %v3364 = vunpack.c.h.b16 %v3104
        %v3365 = vpack.c.b16 %v3363, %v3363
        %v3366 = vpack.c.b16 %v3364, %v3364
        %v3401 = vunpack.c.l.b16 %v3201
        %v3402 = vunpack.c.l.b16 %v3202
        %v3403 = vunpack.c.l.b16 %v3203
        %v3404 = vunpack.c.l.b16 %v3204
        %v3405 = vunpack.c.l.b16 %v3205
        %v3406 = vunpack.c.l.b16 %v3206
        %v3407 = vunpack.c.l.b16 %v3207
        %v3408 = vunpack.c.l.b16 %v3208
        %v3409 = vunpack.c.l.b16 %v3209
        %v3410 = vunpack.c.l.b16 %v3210
        %v3411 = vunpack.c.l.b16 %v3211
        %v3412 = vunpack.c.l.b16 %v3212
        %v3413 = vunpack.c.l.b16 %v3213
        %v3414 = vunpack.c.l.b16 %v3214
        %v3415 = vunpack.c.l.b16 %v3215
        %v3416 = vunpack.c.l.b16 %v3216
        %v3417 = vunpack.c.l.b16 %v3217
        %v3418 = vunpack.c.l.b16 %v3218
        %v3419 = vunpack.c.l.b16 %v3219
        %v3420 = vunpack.c.l.b16 %v3220
        %v3421 = vunpack.c.l.b16 %v3221
        %v3422 = vunpack.c.l.b16 %v3222
        %v3423 = vunpack.c.l.b16 %v3223
        %v3424 = vunpack.c.l.b16 %v3224
        %v3425 = vunpack.c.l.b16 %v3225
        %v3426 = vunpack.c.l.b16 %v3226
        %v3427 = vunpack.c.l.b16 %v3227
        %v3428 = vunpack.c.l.b16 %v3228
        %v3429 = vunpack.c.l.b16 %v3229
        %v3430 = vunpack.c.l.b16 %v3230
        %v3431 = vunpack.c.l.b16 %v3231
        %v3432 = vunpack.c.l.b16 %v3232
        %v3433 = vpack.c.b16 %v3402, %v3401
        %v3434 = vpack.c.b16 %v3404, %v3403
        %v3435 = vpack.c.b16 %v3406, %v3405
        %v3436 = vpack.c.b16 %v3408, %v3407
        %v3437 = vpack.c.b16 %v3410, %v3409
        %v3438 = vpack.c.b16 %v3412, %v3411
        %v3439 = vpack.c.b16 %v3414, %v3413
        %v3440 = vpack.c.b16 %v3416, %v3415
        %v3441 = vpack.c.b16 %v3418, %v3417
        %v3442 = vpack.c.b16 %v3420, %v3419
        %v3443 = vpack.c.b16 %v3422, %v3421
        %v3444 = vpack.c.b16 %v3424, %v3423
        %v3445 = vpack.c.b16 %v3426, %v3425
        %v3446 = vpack.c.b16 %v3428, %v3427
        %v3447 = vpack.c.b16 %v3430, %v3429
        %v3448 = vpack.c.b16 %v3432, %v3431
        %3465 = vmatpush.bf16.msra.mxu0 %v3440
        %3466 = vmatpush.bf16.msra.mxu0 %v3439
        %3467 = vmatpush.bf16.msra.mxu0 %v3438
        %3468 = vmatpush.bf16.msra.mxu0 %v3437
        %3469 = vmatpush.bf16.msra.mxu0 %v3436
        %3470 = vmatpush.bf16.msra.mxu0 %v3435
        %3471 = vmatpush.bf16.msra.mxu0 %v3434
        %3472 = vmatpush.bf16.msra.mxu0 %v3433
        %3473 = vmatmul.bf16.gmra.mxu0 %v3365
        %v3474 = vpop.f32.mrf.mxu0
        %v3475 = vadd.f32 0.0, %v3474
        %v3476 = vpop.f32.mrf.mxu0
        %3477 = vdwg.mxu0
        %3478 = vmatpush.bf16.msra.mxu0 %v3448
        %3479 = vmatpush.bf16.msra.mxu0 %v3447
        %3480 = vmatpush.bf16.msra.mxu0 %v3446
        %3481 = vmatpush.bf16.msra.mxu0 %v3445
        %3482 = vmatpush.bf16.msra.mxu0 %v3444
        %3483 = vmatpush.bf16.msra.mxu0 %v3443
        %3484 = vmatpush.bf16.msra.mxu0 %v3442
        %3485 = vmatpush.bf16.msra.mxu0 %v3441
        %3486 = vmatmul.bf16.gmra.mxu0 %v3366
        %v3487 = vpop.f32.mrf.mxu0
        %v3488 = vadd.f32 %v3475, %v3487
        %v3489 = vpop.f32.mrf.mxu0
        %3490 = vdwg.mxu0
        %v3491 = vld [vmem:[%s12] sm:$0xff]
        %v3492 = vld [vmem:[%s12 + $0x8] sm:$0xff]
        %v3493 = vld [vmem:[%s12 + $0x10] sm:$0xff]
        %v3494 = vld [vmem:[%s12 + $0x18] sm:$0xff]
        %v3495 = vld [vmem:[%s13] sm:$0xff]
        %v3496 = vld [vmem:[%s13 + $0x8] sm:$0xff]
        %v3497 = vld [vmem:[%s13 + $0x10] sm:$0xff]
        %v3498 = vld [vmem:[%s13 + $0x18] sm:$0xff]
        %v3501 = vrot.slane %v3488, 7
        %v3502 = vsel %vm3018, %v3501, %v3359
        %v3503 = vsel %vm677, %v3502, 0
        %3505 = vmatpush.msra.mxu0 0.0
        %3506 = vmatpush.msra.mxu0 0.0
        %3507 = vmatpush.msra.mxu0 0.0
        %3508 = vmatpush.msra.mxu0 0.0
        %3509 = vmatpush.msra.mxu0 0.0
        %3510 = vmatpush.msra.mxu0 0.0
        %3511 = vmatpush.msra.mxu0 0.0
        %3512 = vmatpush.msra.mxu0 0.0
        %3513 = vmatpush.msra.mxu0 0.0
        %3514 = vmatpush.msra.mxu0 0.0
        %3515 = vmatpush.msra.mxu0 0.0
        %3516 = vmatpush.msra.mxu0 0.0
        %3517 = vmatpush.msra.mxu0 %v3498
        %3518 = vmatpush.msra.mxu0 %v3497
        %3519 = vmatpush.msra.mxu0 %v3496
        %3520 = vmatpush.msra.mxu0 %v3495
        %3521 = vmatmul.f32.gmra.mxu0 %v3503
        %v3522 = vpop.f32.mrf.mxu0
        %v3523 = vadd.f32 0.0, %v3522
        %3524 = vdwg.mxu0
        %3525 = vmatpush.msra.mxu0 0.0
        %3526 = vmatpush.msra.mxu0 0.0
        %3527 = vmatpush.msra.mxu0 0.0
        %3528 = vmatpush.msra.mxu0 0.0
        %3529 = vmatpush.msra.mxu0 0.0
        %3530 = vmatpush.msra.mxu0 0.0
        %3531 = vmatpush.msra.mxu0 0.0
        %3532 = vmatpush.msra.mxu0 0.0
        %3533 = vmatpush.msra.mxu0 0.0
        %3534 = vmatpush.msra.mxu0 0.0
        %3535 = vmatpush.msra.mxu0 0.0
        %3536 = vmatpush.msra.mxu0 0.0
        %3537 = vmatpush.msra.mxu0 %v3494
        %3538 = vmatpush.msra.mxu0 %v3493
        %3539 = vmatpush.msra.mxu0 %v3492
        %3540 = vmatpush.msra.mxu0 %v3491
        %3541 = vmatmul.f32.gmra.mxu0 %v773
        %v3542 = vpop.f32.mrf.mxu0
        %v3543 = vadd.f32 %v3523, %v3542
        %3544 = vdwg.mxu0
        %v3545 = vld [vmem:[%s14] sm:$0xff]
        %v3546 = vld [vmem:[%s14 + $0x8] sm:$0x3]
        %v3548 = vsel %vm731, %v3546, 0
        %3550 = vmatpush.msra.mxu0 0.0
        %3551 = vmatpush.msra.mxu0 0.0
        %3552 = vmatpush.msra.mxu0 0.0
        %3553 = vmatpush.msra.mxu0 0.0
        %3554 = vmatpush.msra.mxu0 0.0
        %3555 = vmatpush.msra.mxu0 0.0
        %3556 = vmatpush.msra.mxu0 0.0
        %3557 = vmatpush.msra.mxu0 0.0
        %3558 = vmatpush.msra.mxu0 0.0
        %3559 = vmatpush.msra.mxu0 0.0
        %3560 = vmatpush.msra.mxu0 0.0
        %3561 = vmatpush.msra.mxu0 0.0
        %3562 = vmatpush.msra.mxu0 0.0
        %3563 = vmatpush.msra.mxu0 0.0
        %3564 = vmatpush.msra.mxu0 %v3548
        %3565 = vmatpush.msra.mxu0 %v3545
        %3566 = vmatmul.f32.gmra.mxu0 %v729
        %v3567 = vpop.f32.mrf.mxu0
        %v3568 = vadd.f32 0.0, %v3567
        %3569 = vdwg.mxu0
        %v3570 = vadd.f32 %v3543, %v3568
        %v3571 = vld [vmem:[%s15] sm:$0x1]
        %v3573 = vperm.slane %v3571, 0
        %v3575 = vadd.f32 %v3570, %v3573
        %vm3576 = vcmask 74752
        %3577 = vst.msk [vmem:[%s643] sm:$0x3] %vm3576, %v3575
        %v3578 = vsel %vm3576, %v3575, -inf
        %3579 = vmax.xlane.f32.xlu0 %v3578
        %v3580 = vpop.xlane.xlu0 %3579
        %v3581 = vsub.f32 %v3575, %v3580
        %v3582 = vmul.f32 %v3581, 1.442695
        %v3583 = vpow.pop %v3582
        %v3584 = vsel %vm3576, %v3583, 0.0
        %3585 = vadd.xlane.f32.xlu0 %v3584
        %v3586 = vpop.xlane.xlu0 %3585
        %v3587 = vlog2.pop %v3586
        %v3588 = vmul.f32 %v3587, 0.6931472
        %v3589 = vadd.f32 %v3588, %v3580
        %v3590 = vld [vmem:[%s653] sm:$0x3]
        %v3591 = vmul.f32 %v3575, %v3590
        %v3592 = vsel %vm3576, %v3591, 0.0
        %3593 = vadd.xlane.f32.xlu0 %v3592
        %v3594 = vpop.xlane.xlu0 %3593
        %v3595 = vsub.f32 %v3589, %v3594
        %v3596 = vld [vmem:[%s657] sm:$0x3]
        %v3597 = vld [vmem:[#allocation3] sm:$0x1]
        %v3598 = vmul.f32 %v3595, %v3596
        %vm3599 = vcmask 1024
        %v3600 = vsel %vm3599, %v3598, 0.0
        %v3601 = vrot.slane %v3600, 4
        %v3602 = vadd.f32 %v3600, %v3601
        %v3603 = vrot.slane %v3602, 2
        %v3604 = vadd.f32 %v3602, %v3603
        %v3605 = vrot.slane %v3604, 1
        %v3606 = vadd.f32 %v3604, %v3605
        %v3607 = vadd.f32 %v3597, %v3606
        %vm3608 = vcmask 0
        %3609 = vst.msk [vmem:[#allocation3] sm:$0x1] %vm3608, %v3607
        %v3610 = vld [vmem:[#allocation4] sm:$0x1]
        %v3611 = vsel %vm3599, %v3596, 0.0
        %v3612 = vrot.slane %v3611, 4
        %v3613 = vadd.f32 %v3611, %v3612
        %v3614 = vrot.slane %v3613, 2
        %v3615 = vadd.f32 %v3613, %v3614
        %v3616 = vrot.slane %v3615, 1
        %v3617 = vadd.f32 %v3615, %v3616
        %v3618 = vadd.f32 %v3610, %v3617
        %3619 = vst.msk [vmem:[#allocation4] sm:$0x1] %vm3608, %v3618
        %p3620 = scmp.eq.s32.totalorder %s36, 5
        // Predicated region
        $region101: #{can_forward.3} parent=95 // pred_check
          %p3621 = pneg %p3620
        $region102: #{can_forward.3} parent=95 // pred_check_branch
          %3623 = sbr.rel (%p3621) target = $region104
        $region103: #{can_forward.3} parent=95 // pred_region
          %v3624 = vld [vmem:[#allocation3] sm:$0x1]
          %v3625 = vld [vmem:[#allocation4] sm:$0x1]
          %v3626 = vadd.f32 %v3625, 1e-10
          %v3627 = vrcp.pop %v3626
          %v3628 = vmul.f32 %v3626, %v3627
          %v3629 = vsub.f32 1.0, %v3628
          %v3630 = vmul.f32 %v3627, %v3629
          %v3631 = vadd.f32 %v3627, %v3630
          %vm3632 = vweird.f32 %v3626
          %vm3633 = vweird.f32 %v3627
          %vm3634 = vmor %vm3632, %vm3633
          %v3635 = vsel %vm3634, %v3627, %v3631
          %v3636 = vand.u32 2147483647, %v3626
          %vm3637 = vcmp.eq.f32.partialorder %v3636, 8.507059e+37
          %v3638 = vand.u32 %v3626, 2147483648
          %v3639 = vor.u32 1.1754944e-38, %v3638
          %v3640 = vsel %vm3637, %v3639, %v3635
          %v3641 = vmul.f32 %v3624, %v3640
          %3642 = vst.msk [vmem:[#allocation7] sm:$0x1] %vm3608, %v3641
        $region104: #{can_forward.3} parent=95 // pred_fallthru
          _
        %s3643 = sand.u32 %s458, 1
        %s3644 = scalar_lea.sflag [#allocation6], %s3643
        %s3645 = sand.u32 %s458, 1
        %s3646 = smul.addr %s3645, 2
        %s3647 = scalar_lea.vmem [#allocation5], %s3646
        // Predicated region
        $region105: #{can_forward.3} parent=95 // pred_check
          %p3648 = pneg %p468
        $region106: #{can_forward.3} parent=95 // pred_check_branch
          %3650 = sbr.rel (%p3648) target = $region108
        $region107: #{can_forward.3} parent=95 // pred_region
          %3652 = vsyncadd %s3644, 0
          %s3653 = smul.addr %s36, 2
          %s3654 = scalar_lea.hbm %s19, %s3653
          %s3656 = sshll.u32 %s3647, 4
          %s3657 = int_to_ptr.vmem [resolvable:$true] %s3656
          %s3658 = sshll.u32 %s3654, 4
          %s3659 = int_to_ptr.hbm [resolvable:$true] %s3658
          %3661 = dma.vmem_to_hbm [thread:$0]  %s3657, 32, %s3659, %s3644
        $region108: #{can_forward.3} parent=95 // pred_fallthru
          _
        // Predicated region
        $region109: #{can_forward.3} parent=95 // pred_check
          %p3662 = pneg %p489
        $region110: #{can_forward.3} parent=95 // pred_check_branch
          %3664 = sbr.rel (%p3662) target = $region112
        $region111: #{can_forward.3} parent=95 // pred_region
          %3666 = vsyncadd [#allocation8], 0
          %s3668 = sshll.u32 [#allocation7], 4
          %s3669 = int_to_ptr.vmem [resolvable:$true] %s3668
          %s3670 = sshll.u32 %s20, 4
          %s3671 = int_to_ptr.hbm [resolvable:$true] %s3670
          %3673 = dma.vmem_to_hbm [thread:$0]  %s3669, 16, %s3671, [#allocation8]
        $region112: #{can_forward.3} parent=95 // pred_fallthru
          _
        // Predicated region
        $region113: #{can_forward.3} parent=95 // pred_check
          %p3674 = pneg %p489
        $region114: #{can_forward.3} parent=95 // pred_check_branch
          %3676 = sbr.rel (%p3674) target = $region116
        $region115: #{can_forward.3} parent=95 // pred_region
          %3678 = dma.done [#allocation8], 16
        $region116: #{can_forward.3} parent=95 // pred_fallthru
          _
      $region96: #{can_forward.3} parent=5 // pred_fallthru
        _
      %p3679 = scmp.le.s32.totalorder 2, %s31
      // Predicated region
      $region117: #{can_forward.3} parent=5 // pred_check
        %p3680 = pneg %p3679
      $region118: #{can_forward.3} parent=5 // pred_check_branch
        %3682 = sbr.rel (%p3680) target = $region120
      $region119: #{can_forward.3} parent=5 // pred_region
        %s3683 = ssub.s32 %s31, 2
        // Predicated region
        $region121: #{can_forward.3} parent=119 // pred_check
          %p3684 = pneg %p474
        $region122: #{can_forward.3} parent=119 // pred_check_branch
          %3686 = sbr.rel (%p3684) target = $region124
        $region123: #{can_forward.3} parent=119 // pred_region
          %s3687 = sand.u32 %s459, 1
          %s3688 = scalar_lea.sflag [#allocation6], %s3687
          %s3689 = sand.u32 %s459, 1
          %s3690 = smul.addr %s3689, 2
          %s3691 = scalar_lea.vmem [#allocation5], %s3690
          %3693 = dma.done %s3688, 32
        $region124: #{can_forward.3} parent=119 // pred_fallthru
          _
      $region120: #{can_forward.3} parent=5 // pred_fallthru
        _
    $region6: #{can_forward.3} parent=1 // loop_footer
      %s35 = sadd.s32 1, %s31
    $region7: #{can_forward.3} parent=1 // loop_footer_branch
      %30 = sbr.rel target = $region3
    $region8: #{can_forward.3} parent=1 // loop_exit
      _
    %3694 = vsyncpa [#allocation6], 1
    %s3695 = scalar_lea.sflag [#allocation6], 1
    %3696 = vsyncpa %s3695, 1
    %3697 = vsyncpa [#allocation8], 1

</llo_original>
